<compile_context>
chip_gen: v6e
topology: v6e:2x2x1
jax: 0.10.0
libtpu: 0.0.40
codegen_flags: <defaults>
</compile_context>

<pallas_src>
import functools
import math

import jax
import jax.numpy as jnp
from jax import lax
from jax.experimental import pallas as pl
from jax.experimental.pallas import tpu as pltpu


def _round_up(x, m):
  return ((x + m - 1) // m) * m


def _nbytes(x):
  return math.prod(x.shape) * jnp.dtype(x.dtype).itemsize


# ----------------------------------------------------------------------------
# Fused decoder kernel: full pointer-decoding loop in one pallas_call.
# All arrays use the "transposed" layout: feature rows, (batch*position) lanes.
# ----------------------------------------------------------------------------
def fused_decoder_kernel(
    # ---- inputs -------------------------------------------------------
    enc_t_ref,      # (2H, B*Pp)   column b*Pp + p = encoding_matrix[b, :, p]
    zero_one_ref,   # (1,  B*Pp)   additive padding penalty (0 valid, 1e30 pad)
    wd_h_ref, wd_s_ref, wd_e_ref,              # (2,H,H), (2,H,2H), (2,H,2H)
    w1e_ref, w1r_ref, b1_ref,                  # (2,pool*H,2H), (2,pool*H,H), (2,pool*H,1)
    w2_ref, b2_ref,                            # (2,pool*H,H), (2,pool*H,1)
    w3a_ref, w3b_ref, b3_ref,                  # (2,pool_pad,H), (2,pool_pad,H), (2,pool_pad,1)
    wih_s_ref, wih_e_ref, whh_ref, blstm_ref,  # (4H,2H), (4H,2H), (4H,H), (4H,1)
    wmlp_ref, bmlp_ref,                        # (H,H), (H,1)
    # ---- outputs ------------------------------------------------------
    alphas_ref,     # (iters, 1, B*Pp)  lane-dense entropy traces
    betas_ref,      # (iters, 1, B*Pp)
    start_ref,      # (1, B) int32
    end_ref,        # (1, B) int32
    # ---- scratch ------------------------------------------------------
    encw1_ref,      # (2, pool*H, B*Pp) f32: hoisted enc @ W1_enc per branch
    *, B, P_pad, H, pool, iters):
  f32 = jnp.float32
  poolH = pool * H

  # --- hoisted, loop-invariant encoder matmul (largest matmul, done once) ---
  enc_t = enc_t_ref[...]                                     # (2H, B*Pp)
  for bi in range(2):
    encw1_ref[bi] = jnp.dot(w1e_ref[bi], enc_t, preferred_element_type=f32)

  def pool_max(pre):
    # Maxout pooling: rows were permuted on the host so pool-chunk k occupies
    # rows [k*H, (k+1)*H) -> the max is over static sublane row chunks.
    m = pre[0:H, :]
    for k in range(1, pool):
      m = jnp.maximum(m, pre[k * H:(k + 1) * H, :])
    return m

  def branch(bi, hxT, sT, eT):
    """Maxout highway scores + masked argmax + gather for branch bi.

    Returns (masked scores (1, B*Pp), argmax indices (1, B) f32,
             gathered encoder state (2H, B))."""
    # r = tanh(WD @ [hx; s; e])  ->  rT (H, B); weights column-split on host.
    rT = jnp.tanh(jnp.dot(wd_h_ref[bi], hxT, preferred_element_type=f32)
                  + jnp.dot(wd_s_ref[bi], sT, preferred_element_type=f32)
                  + jnp.dot(wd_e_ref[bi], eT, preferred_element_type=f32))
    rwT = jnp.dot(w1r_ref[bi], rT, preferred_element_type=f32)        # (poolH, B)
    # broadcast each batch column over its P_pad-wide lane segment
    rw_full = jnp.concatenate(
        [jnp.broadcast_to(rwT[:, b:b + 1], (poolH, P_pad)) for b in range(B)],
        axis=1)                                                       # (poolH, B*Pp)
    pre1 = encw1_ref[bi] + rw_full + b1_ref[bi]                       # (poolH, B*Pp)
    m1 = pool_max(pre1)                                               # (H, B*Pp)
    pre2 = jnp.dot(w2_ref[bi], m1, preferred_element_type=f32) + b2_ref[bi]
    m2 = pool_max(pre2)                                               # (H, B*Pp)
    pre3 = (jnp.dot(w3a_ref[bi], m1, preferred_element_type=f32)
            + jnp.dot(w3b_ref[bi], m2, preferred_element_type=f32)
            + b3_ref[bi])                                             # (pool_pad, B*Pp)
    scores = jnp.max(pre3, axis=0, keepdims=True)                     # (1, B*Pp)
    masked = scores - zero_one_ref[...]                               # (1, B*Pp)

    # per-batch masked argmax (first max, like torch.argmax) + pointer gather
    ids = lax.broadcasted_iota(jnp.int32, (1, P_pad), 1).astype(f32)  # (1, Pp)
    idx_pieces, state_pieces = [], []
    for b in range(B):
      seg = masked[:, b * P_pad:(b + 1) * P_pad]                      # (1, Pp)
      mx = jnp.max(seg, axis=1, keepdims=True)                        # (1, 1)
      cand = jnp.where(seg >= mx, ids, float(P_pad))
      idx_b = jnp.min(cand, axis=1, keepdims=True)                    # (1, 1)
      sel_b = (ids == idx_b).astype(f32)                              # (1, Pp) one-hot
      enc_seg = enc_t_ref[:, b * P_pad:(b + 1) * P_pad]               # (2H, Pp)
      state_pieces.append(jnp.sum(enc_seg * sel_b, axis=1, keepdims=True))  # (2H,1)
      idx_pieces.append(idx_b)
    idx_row = jnp.concatenate(idx_pieces, axis=1)                     # (1, B)
    new_state = jnp.concatenate(state_pieces, axis=1)                 # (2H, B)
    return masked, idx_row, new_state

  # initial pointers: start = end = 0 -> encoder column b*Pp for every batch b
  sT = jnp.concatenate(
      [enc_t_ref[:, b * P_pad:b * P_pad + 1] for b in range(B)], axis=1)   # (2H, B)
  eT = sT
  hxT = jnp.zeros((H, B), f32)
  cxT = jnp.zeros((H, B), f32)

  for it in range(iters):          # iters is small & static: fully unrolled
    # --- start pointer ---
    alphas, s_idx, sT = branch(0, hxT, sT, eT)
    # --- end pointer (uses the freshly updated start state) ---
    betas, e_idx, eT = branch(1, hxT, sT, eT)

    # --- LSTMCell on cat(s_state, e_state) with hidden hx (weights pre-split) ---
    gates = (jnp.dot(wih_s_ref[...], sT, preferred_element_type=f32)
             + jnp.dot(wih_e_ref[...], eT, preferred_element_type=f32)
             + jnp.dot(whh_ref[...], hxT, preferred_element_type=f32)
             + blstm_ref[...])                                        # (4H, B): i,f,g,o
    i_g = jax.nn.sigmoid(gates[0 * H:1 * H, :])
    f_g = jax.nn.sigmoid(gates[1 * H:2 * H, :])
    g_g = jnp.tanh(gates[2 * H:3 * H, :])
    o_g = jax.nn.sigmoid(gates[3 * H:4 * H, :])
    cxT = f_g * cxT + i_g * g_g
    h_new = o_g * jnp.tanh(cxT)
    # hx = self.mlp(hx)   (istraining=False: BatchNorm1d / Dropout skipped)
    hxT = jnp.dot(wmlp_ref[...], h_new, preferred_element_type=f32) + bmlp_ref[...]

    # --- outputs: entropy traces every iteration, pointers only once ---
    alphas_ref[it] = alphas
    betas_ref[it] = betas
    if it == iters - 1:
      start_ref[...] = s_idx.astype(jnp.int32)
      end_ref[...] = e_idx.astype(jnp.int32)


# ----------------------------------------------------------------------------
# Parameter construction (deterministic, matches nn.Module shapes).
# Weights are kept in the PyTorch (out, in) orientation (used as matmul LHS).
# ----------------------------------------------------------------------------
def _normal(key, shape, scale=0.1):
  return scale * jax.random.normal(key, shape, jnp.float32)


def permute_maxout(W, b, d_out, pool):
  """Reorder Linear(d_in, d_out*pool) output rows so pool-chunk k is row-contiguous.

  PyTorch Maxout does out.view(..., d_out, pool).max(-1); after this
  permutation the max over pool is a max over row chunks [k*d_out, (k+1)*d_out).
  """
  d_in = W.shape[1]
  Wp = W.reshape(d_out, pool, d_in).transpose(1, 0, 2).reshape(pool * d_out, d_in)
  bp = b.reshape(d_out, pool).T.reshape(pool * d_out)
  return Wp, bp


def make_branch_params(key, H, pool):
  pool_pad = _round_up(pool, 8)
  poolH = pool * H
  ks = jax.random.split(key, 7)
  wd = _normal(ks[0], (H, 5 * H))                 # WD.weight (out,in), bias=False
  w1 = _normal(ks[1], (poolH, 3 * H))             # maxout1.lin.weight
  b1 = _normal(ks[2], (poolH,))
  w2 = _normal(ks[3], (poolH, H))                 # maxout2.lin.weight
  b2 = _normal(ks[4], (poolH,))
  w3 = _normal(ks[5], (1 * pool, 2 * H))          # maxout3.lin.weight
  b3 = _normal(ks[6], (1 * pool,))

  w1p, b1p = permute_maxout(w1, b1, H, pool)
  w2p, b2p = permute_maxout(w2, b2, H, pool)
  # maxout3 has d_out=1 -> no permutation; pad pool rows to a sublane multiple
  # with zero weights and -inf bias so the max is unaffected.
  w3p = jnp.pad(w3, ((0, pool_pad - pool), (0, 0)))
  b3p = jnp.pad(b3, (0, pool_pad - pool), constant_values=-1e30)
  return dict(
      wd_h=wd[:, 0:H],                            # (H, H)   hx part
      wd_s=wd[:, H:3 * H],                        # (H, 2H)  start-state part
      wd_e=wd[:, 3 * H:5 * H],                    # (H, 2H)  end-state part
      w1e=w1p[:, :2 * H],                         # (poolH, 2H)
      w1r=w1p[:, 2 * H:],                         # (poolH, H)
      b1=b1p[:, None],                            # (poolH, 1)
      w2=w2p,                                     # (poolH, H)
      b2=b2p[:, None],                            # (poolH, 1)
      w3a=w3p[:, :H],                             # (pool_pad, H)  m1 part
      w3b=w3p[:, H:],                             # (pool_pad, H)  m2 part
      b3=b3p[:, None],                            # (pool_pad, 1)
  )


def make_decoder_params(key, H, pool):
  k_start, k_end, k1, k2, k3, k4, k5, k6 = jax.random.split(key, 8)
  ps = make_branch_params(k_start, H, pool)
  pe = make_branch_params(k_end, H, pool)
  branch = {k: jnp.stack([ps[k], pe[k]], axis=0) for k in ps}  # leading axis: 0=start,1=end

  wih = _normal(k1, (4 * H, 4 * H))               # LSTMCell weight_ih (4H, 4H_in)
  whh = _normal(k2, (4 * H, H))                   # weight_hh (4H, H)
  lstm = dict(
      wih_s=wih[:, :2 * H],                       # input columns for s_state
      wih_e=wih[:, 2 * H:],                       # input columns for e_state
      whh=whh,
      b=(_normal(k3, (4 * H,)) + _normal(k4, (4 * H,)))[:, None],   # b_ih + b_hh, (4H,1)
  )
  mlp = dict(wmlp=_normal(k5, (H, H)), bmlp=_normal(k6, (H,))[:, None])
  return {"branch": branch, "lstm": lstm, "mlp": mlp}


# ----------------------------------------------------------------------------
# Decoder forward (matches PyTorch Decoder.forward, istraining=False path).
# ----------------------------------------------------------------------------
def decoder_forward(encoding_matrix, passage_lens, params, *, hidden_dim,
                    pooling_size, number_of_iters):
  # encoding_matrix: (B, 2H, P) in the PyTorch layout.
  B, twoH, P = encoding_matrix.shape
  H = hidden_dim
  assert twoH == 2 * H
  P_pad = _round_up(P, 128)        # lane-align positions; padded slots masked
  BP = B * P_pad

  # enc^T in (2H, B*P_pad): column b*P_pad + p = encoding_matrix[b, :, p]
  enc_t = jnp.transpose(encoding_matrix.astype(jnp.float32), (1, 0, 2))  # (2H, B, P)
  enc_t = jnp.pad(enc_t, ((0, 0), (0, 0), (0, P_pad - P))).reshape(2 * H, BP)

  # TODO(synk): get_zero_one_mat is not defined in the reference source; we
  # assume the standard additive padding mask (0 on valid positions, large
  # penalty on padded positions) which is what it is used for.
  lens = jnp.asarray(passage_lens, jnp.int32).reshape(B, 1)
  pos = jnp.arange(P_pad)[None, :]
  zero_one = jnp.where(pos < lens, 0.0, 1e30).astype(jnp.float32).reshape(1, BP)

  br, lstm, mlp = params["branch"], params["lstm"], params["mlp"]
  inputs = (enc_t, zero_one,
            br["wd_h"], br["wd_s"], br["wd_e"],
            br["w1e"], br["w1r"], br["b1"],
            br["w2"], br["b2"],
            br["w3a"], br["w3b"], br["b3"],
            lstm["wih_s"], lstm["wih_e"], lstm["whh"], lstm["b"],
            mlp["wmlp"], mlp["bmlp"])
  out_shapes = (
      jax.ShapeDtypeStruct((number_of_iters, 1, BP), jnp.float32),   # alphas (lane-dense)
      jax.ShapeDtypeStruct((number_of_iters, 1, BP), jnp.float32),   # betas
      jax.ShapeDtypeStruct((1, B), jnp.int32),                       # start
      jax.ShapeDtypeStruct((1, B), jnp.int32),                       # end
  )
  scratch_shape = (2, pooling_size * H, BP)

  # Explicit VMEM budget sized from the actual resident set (everything is
  # fully VMEM-resident in this gridless kernel) -- required headroom on v7x.
  resident = (sum(_nbytes(x) for x in inputs)
              + sum(_nbytes(s) for s in out_shapes)
              + math.prod(scratch_shape) * 4)
  vmem_limit = int(min(100 * 2**20, max(16 * 2**20, 2 * resident + (4 << 20))))

  kernel = functools.partial(fused_decoder_kernel, B=B, P_pad=P_pad, H=H,
                             pool=pooling_size, iters=number_of_iters)

  alphas, betas, start, end = pl.pallas_call(
      kernel,
      out_shape=out_shapes,
      scratch_shapes=[pltpu.VMEM(scratch_shape, jnp.float32)],
      compiler_params=pltpu.CompilerParams(vmem_limit_bytes=vmem_limit),
  )(*inputs)

  alphas = alphas.reshape(number_of_iters, B, P_pad)[:, :, :P]
  betas = betas.reshape(number_of_iters, B, P_pad)[:, :, :P]
  entropies = [[alphas[i], betas[i]] for i in range(number_of_iters)]
  return start[0], end[0], entropies


# ----------------------------------------------------------------------------
if __name__ == "__main__":
  B = 2        # batch_size
  H = 32       # hidden_dim
  P = 8        # max passage length
  POOL = 2     # pooling_size
  ITERS = 2    # number_of_iters

  key = jax.random.PRNGKey(0)
  k_enc, k_params = jax.random.split(key)
  encoding_matrix = jax.random.normal(k_enc, (B, 2 * H, P), jnp.float32)   # PyTorch layout
  passage_lens = jnp.array([8, 5], jnp.int32)
  params = make_decoder_params(k_params, H, POOL)

  fwd = jax.jit(functools.partial(decoder_forward, hidden_dim=H,
                                  pooling_size=POOL, number_of_iters=ITERS))
  start, end, entropies = fwd(encoding_matrix, passage_lens, params)

  jax.block_until_ready((start, end, entropies))
  print("KERNEL_OK")
</pallas_src>

<mosaic_0001>
module attributes {stable_mosaic.version = 11 : i64} {
  func.func @fused_decoder_kernel(%arg0: memref<64x256xf32, #tpu.memory_space<vmem>>, %arg1: memref<1x256xf32, #tpu.memory_space<vmem>>, %arg2: memref<2x32x32xf32, #tpu.memory_space<vmem>>, %arg3: memref<2x32x64xf32, #tpu.memory_space<vmem>>, %arg4: memref<2x32x64xf32, #tpu.memory_space<vmem>>, %arg5: memref<2x64x64xf32, #tpu.memory_space<vmem>>, %arg6: memref<2x64x32xf32, #tpu.memory_space<vmem>>, %arg7: memref<2x64x1xf32, #tpu.memory_space<vmem>>, %arg8: memref<2x64x32xf32, #tpu.memory_space<vmem>>, %arg9: memref<2x64x1xf32, #tpu.memory_space<vmem>>, %arg10: memref<2x8x32xf32, #tpu.memory_space<vmem>>, %arg11: memref<2x8x32xf32, #tpu.memory_space<vmem>>, %arg12: memref<2x8x1xf32, #tpu.memory_space<vmem>>, %arg13: memref<128x64xf32, #tpu.memory_space<vmem>>, %arg14: memref<128x64xf32, #tpu.memory_space<vmem>>, %arg15: memref<128x32xf32, #tpu.memory_space<vmem>>, %arg16: memref<128x1xf32, #tpu.memory_space<vmem>>, %arg17: memref<32x32xf32, #tpu.memory_space<vmem>>, %arg18: memref<32x1xf32, #tpu.memory_space<vmem>>, %arg19: memref<2x1x256xf32, #tpu.memory_space<vmem>>, %arg20: memref<2x1x256xf32, #tpu.memory_space<vmem>>, %arg21: memref<1x2xi32, #tpu.memory_space<vmem>>, %arg22: memref<1x2xi32, #tpu.memory_space<vmem>>, %arg23: memref<2x64x256xf32, #tpu.memory_space<vmem>>) attributes {dimension_semantics = [], scalar_prefetch = 0 : i64, scratch_operands = 1 : i64, tpu.core_type = #tpu.core_type<tc>} {
    %c0 = arith.constant 0 : index
    %c0_0 = arith.constant 0 : index
    %0 = vector.load %arg0[%c0, %c0_0] : memref<64x256xf32, #tpu.memory_space<vmem>>, vector<64x256xf32>
    %c0_1 = arith.constant 0 : index
    %c0_2 = arith.constant 0 : index
    %c0_3 = arith.constant 0 : index
    %1 = vector.load %arg5[%c0_1, %c0_2, %c0_3] : memref<2x64x64xf32, #tpu.memory_space<vmem>>, vector<1x64x64xf32>
    %2 = vector.shape_cast %1 : vector<1x64x64xf32> to vector<64x64xf32>
    %cst = arith.constant dense<0.000000e+00> : vector<64x256xf32>
    %3 = tpu.matmul %2, %0, %cst {dimension_numbers = #tpu.dot_dimension_numbers<[1], [0], [0], [1], [0, 0, 1, 1], [], []>} : vector<64x64xf32>, vector<64x256xf32>, vector<64x256xf32> -> vector<64x256xf32>
    %c0_4 = arith.constant 0 : index
    %c0_5 = arith.constant 0 : index
    %c0_6 = arith.constant 0 : index
    %4 = vector.load %arg23[%c0_4, %c0_5, %c0_6] : memref<2x64x256xf32, #tpu.memory_space<vmem>>, vector<1x64x256xf32>
    %5 = vector.shape_cast %4 : vector<1x64x256xf32> to vector<64x256xf32>
    %6 = vector.shape_cast %3 : vector<64x256xf32> to vector<1x64x256xf32>
    tpu.vector_store %arg23[%c0_4, %c0_5, %c0_6], %6 {strides = array<i32>} : memref<2x64x256xf32, #tpu.memory_space<vmem>>, vector<1x64x256xf32>,
    %c1 = arith.constant 1 : index
    %c0_7 = arith.constant 0 : index
    %c0_8 = arith.constant 0 : index
    %7 = vector.load %arg5[%c1, %c0_7, %c0_8] : memref<2x64x64xf32, #tpu.memory_space<vmem>>, vector<1x64x64xf32>
    %8 = vector.shape_cast %7 : vector<1x64x64xf32> to vector<64x64xf32>
    %cst_9 = arith.constant dense<0.000000e+00> : vector<64x256xf32>
    %9 = tpu.matmul %8, %0, %cst_9 {dimension_numbers = #tpu.dot_dimension_numbers<[1], [0], [0], [1], [0, 0, 1, 1], [], []>} : vector<64x64xf32>, vector<64x256xf32>, vector<64x256xf32> -> vector<64x256xf32>
    %c1_10 = arith.constant 1 : index
    %c0_11 = arith.constant 0 : index
    %c0_12 = arith.constant 0 : index
    %10 = vector.load %arg23[%c1_10, %c0_11, %c0_12] : memref<2x64x256xf32, #tpu.memory_space<vmem>>, vector<1x64x256xf32>
    %11 = vector.shape_cast %10 : vector<1x64x256xf32> to vector<64x256xf32>
    %12 = vector.shape_cast %9 : vector<64x256xf32> to vector<1x64x256xf32>
    tpu.vector_store %arg23[%c1_10, %c0_11, %c0_12], %12 {strides = array<i32>} : memref<2x64x256xf32, #tpu.memory_space<vmem>>, vector<1x64x256xf32>,
    %c0_13 = arith.constant 0 : index
    %c0_14 = arith.constant 0 : index
    %13 = vector.load %arg0[%c0_13, %c0_14] : memref<64x256xf32, #tpu.memory_space<vmem>>, vector<64x1xf32>
    %c0_15 = arith.constant 0 : index
    %c128 = arith.constant 128 : index
    %14 = vector.load %arg0[%c0_15, %c128] : memref<64x256xf32, #tpu.memory_space<vmem>>, vector<64x1xf32>
    %15 = tpu.concatenate %13, %14 in 1 : vector<64x1xf32>, vector<64x1xf32> -> vector<64x2xf32>
    %cst_16 = arith.constant 0.000000e+00 : f32
    %16 = vector.broadcast %cst_16 : f32 to vector<32x2xf32>
    %cst_17 = arith.constant 0.000000e+00 : f32
    %17 = vector.broadcast %cst_17 : f32 to vector<32x2xf32>
    %c0_18 = arith.constant 0 : index
    %c0_19 = arith.constant 0 : index
    %c0_20 = arith.constant 0 : index
    %18 = vector.load %arg2[%c0_18, %c0_19, %c0_20] : memref<2x32x32xf32, #tpu.memory_space<vmem>>, vector<1x32x32xf32>
    %19 = vector.shape_cast %18 : vector<1x32x32xf32> to vector<32x32xf32>
    %cst_21 = arith.constant dense<0.000000e+00> : vector<32x2xf32>
    %20 = tpu.matmul %19, %16, %cst_21 {dimension_numbers = #tpu.dot_dimension_numbers<[1], [0], [0], [1], [0, 0, 1, 1], [], []>} : vector<32x32xf32>, vector<32x2xf32>, vector<32x2xf32> -> vector<32x2xf32>
    %c0_22 = arith.constant 0 : index
    %c0_23 = arith.constant 0 : index
    %c0_24 = arith.constant 0 : index
    %21 = vector.load %arg3[%c0_22, %c0_23, %c0_24] : memref<2x32x64xf32, #tpu.memory_space<vmem>>, vector<1x32x64xf32>
    %22 = vector.shape_cast %21 : vector<1x32x64xf32> to vector<32x64xf32>
    %cst_25 = arith.constant dense<0.000000e+00> : vector<32x2xf32>
    %23 = tpu.matmul %22, %15, %cst_25 {dimension_numbers = #tpu.dot_dimension_numbers<[1], [0], [0], [1], [0, 0, 1, 1], [], []>} : vector<32x64xf32>, vector<64x2xf32>, vector<32x2xf32> -> vector<32x2xf32>
    %24 = arith.addf %20, %23 : vector<32x2xf32>
    %c0_26 = arith.constant 0 : index
    %c0_27 = arith.constant 0 : index
    %c0_28 = arith.constant 0 : index
    %25 = vector.load %arg4[%c0_26, %c0_27, %c0_28] : memref<2x32x64xf32, #tpu.memory_space<vmem>>, vector<1x32x64xf32>
    %26 = vector.shape_cast %25 : vector<1x32x64xf32> to vector<32x64xf32>
    %cst_29 = arith.constant dense<0.000000e+00> : vector<32x2xf32>
    %27 = tpu.matmul %26, %15, %cst_29 {dimension_numbers = #tpu.dot_dimension_numbers<[1], [0], [0], [1], [0, 0, 1, 1], [], []>} : vector<32x64xf32>, vector<64x2xf32>, vector<32x2xf32> -> vector<32x2xf32>
    %28 = arith.addf %24, %27 : vector<32x2xf32>
    %29 = math.tanh %28 : vector<32x2xf32>
    %c0_30 = arith.constant 0 : index
    %c0_31 = arith.constant 0 : index
    %c0_32 = arith.constant 0 : index
    %30 = vector.load %arg6[%c0_30, %c0_31, %c0_32] : memref<2x64x32xf32, #tpu.memory_space<vmem>>, vector<1x64x32xf32>
    %31 = vector.shape_cast %30 : vector<1x64x32xf32> to vector<64x32xf32>
    %cst_33 = arith.constant dense<0.000000e+00> : vector<64x2xf32>
    %32 = tpu.matmul %31, %29, %cst_33 {dimension_numbers = #tpu.dot_dimension_numbers<[1], [0], [0], [1], [0, 0, 1, 1], [], []>} : vector<64x32xf32>, vector<32x2xf32>, vector<64x2xf32> -> vector<64x2xf32>
    %33 = vector.extract_strided_slice %32 {offsets = [0, 0], sizes = [64, 1], strides = [1, 1]} : vector<64x2xf32> to vector<64x1xf32>
    %34 = vector.shape_cast %33 : vector<64x1xf32> to vector<64x1xf32>
    %35 = vector.broadcast %34 : vector<64x1xf32> to vector<64x128xf32>
    %36 = vector.extract_strided_slice %32 {offsets = [0, 1], sizes = [64, 1], strides = [1, 1]} : vector<64x2xf32> to vector<64x1xf32>
    %37 = vector.shape_cast %36 : vector<64x1xf32> to vector<64x1xf32>
    %38 = vector.broadcast %37 : vector<64x1xf32> to vector<64x128xf32>
    %39 = tpu.concatenate %35, %38 in 1 : vector<64x128xf32>, vector<64x128xf32> -> vector<64x256xf32>
    %c0_34 = arith.constant 0 : index
    %c0_35 = arith.constant 0 : index
    %c0_36 = arith.constant 0 : index
    %40 = vector.load %arg23[%c0_34, %c0_35, %c0_36] : memref<2x64x256xf32, #tpu.memory_space<vmem>>, vector<1x64x256xf32>
    %41 = vector.shape_cast %40 : vector<1x64x256xf32> to vector<64x256xf32>
    %42 = arith.addf %41, %39 : vector<64x256xf32>
    %c0_37 = arith.constant 0 : index
    %c0_38 = arith.constant 0 : index
    %c0_39 = arith.constant 0 : index
    %43 = vector.load %arg7[%c0_37, %c0_38, %c0_39] : memref<2x64x1xf32, #tpu.memory_space<vmem>>, vector<1x64x1xf32>
    %44 = vector.shape_cast %43 : vector<1x64x1xf32> to vector<64x1xf32>
    %45 = vector.broadcast %44 : vector<64x1xf32> to vector<64x256xf32>
    %46 = arith.addf %42, %45 : vector<64x256xf32>
    %47 = vector.extract_strided_slice %46 {offsets = [0, 0], sizes = [32, 256], strides = [1, 1]} : vector<64x256xf32> to vector<32x256xf32>
    %48 = vector.extract_strided_slice %46 {offsets = [32, 0], sizes = [32, 256], strides = [1, 1]} : vector<64x256xf32> to vector<32x256xf32>
    %49 = arith.maximumf %47, %48 : vector<32x256xf32>
    %c0_40 = arith.constant 0 : index
    %c0_41 = arith.constant 0 : index
    %c0_42 = arith.constant 0 : index
    %50 = vector.load %arg8[%c0_40, %c0_41, %c0_42] : memref<2x64x32xf32, #tpu.memory_space<vmem>>, vector<1x64x32xf32>
    %51 = vector.shape_cast %50 : vector<1x64x32xf32> to vector<64x32xf32>
    %cst_43 = arith.constant dense<0.000000e+00> : vector<64x256xf32>
    %52 = tpu.matmul %51, %49, %cst_43 {dimension_numbers = #tpu.dot_dimension_numbers<[1], [0], [0], [1], [0, 0, 1, 1], [], []>} : vector<64x32xf32>, vector<32x256xf32>, vector<64x256xf32> -> vector<64x256xf32>
    %c0_44 = arith.constant 0 : index
    %c0_45 = arith.constant 0 : index
    %c0_46 = arith.constant 0 : index
    %53 = vector.load %arg9[%c0_44, %c0_45, %c0_46] : memref<2x64x1xf32, #tpu.memory_space<vmem>>, vector<1x64x1xf32>
    %54 = vector.shape_cast %53 : vector<1x64x1xf32> to vector<64x1xf32>
    %55 = vector.broadcast %54 : vector<64x1xf32> to vector<64x256xf32>
    %56 = arith.addf %52, %55 : vector<64x256xf32>
    %57 = vector.extract_strided_slice %56 {offsets = [0, 0], sizes = [32, 256], strides = [1, 1]} : vector<64x256xf32> to vector<32x256xf32>
    %58 = vector.extract_strided_slice %56 {offsets = [32, 0], sizes = [32, 256], strides = [1, 1]} : vector<64x256xf32> to vector<32x256xf32>
    %59 = arith.maximumf %57, %58 : vector<32x256xf32>
    %c0_47 = arith.constant 0 : index
    %c0_48 = arith.constant 0 : index
    %c0_49 = arith.constant 0 : index
    %60 = vector.load %arg10[%c0_47, %c0_48, %c0_49] : memref<2x8x32xf32, #tpu.memory_space<vmem>>, vector<1x8x32xf32>
    %61 = vector.shape_cast %60 : vector<1x8x32xf32> to vector<8x32xf32>
    %cst_50 = arith.constant dense<0.000000e+00> : vector<8x256xf32>
    %62 = tpu.matmul %61, %49, %cst_50 {dimension_numbers = #tpu.dot_dimension_numbers<[1], [0], [0], [1], [0, 0, 1, 1], [], []>} : vector<8x32xf32>, vector<32x256xf32>, vector<8x256xf32> -> vector<8x256xf32>
    %c0_51 = arith.constant 0 : index
    %c0_52 = arith.constant 0 : index
    %c0_53 = arith.constant 0 : index
    %63 = vector.load %arg11[%c0_51, %c0_52, %c0_53] : memref<2x8x32xf32, #tpu.memory_space<vmem>>, vector<1x8x32xf32>
    %64 = vector.shape_cast %63 : vector<1x8x32xf32> to vector<8x32xf32>
    %cst_54 = arith.constant dense<0.000000e+00> : vector<8x256xf32>
    %65 = tpu.matmul %64, %59, %cst_54 {dimension_numbers = #tpu.dot_dimension_numbers<[1], [0], [0], [1], [0, 0, 1, 1], [], []>} : vector<8x32xf32>, vector<32x256xf32>, vector<8x256xf32> -> vector<8x256xf32>
    %66 = arith.addf %62, %65 : vector<8x256xf32>
    %c0_55 = arith.constant 0 : index
    %c0_56 = arith.constant 0 : index
    %c0_57 = arith.constant 0 : index
    %67 = vector.load %arg12[%c0_55, %c0_56, %c0_57] : memref<2x8x1xf32, #tpu.memory_space<vmem>>, vector<1x8x1xf32>
    %68 = vector.shape_cast %67 : vector<1x8x1xf32> to vector<8x1xf32>
    %69 = vector.broadcast %68 : vector<8x1xf32> to vector<8x256xf32>
    %70 = arith.addf %66, %69 : vector<8x256xf32>
    %cst_58 = arith.constant dense<0xFF800000> : vector<256xf32>
    %71 = vector.multi_reduction <maximumf>, %70, %cst_58 [0] : vector<8x256xf32> to vector<256xf32>
    %72 = vector.shape_cast %71 : vector<256xf32> to vector<1x256xf32>
    %c0_59 = arith.constant 0 : index
    %c0_60 = arith.constant 0 : index
    %73 = vector.load %arg1[%c0_59, %c0_60] : memref<1x256xf32, #tpu.memory_space<vmem>>, vector<1x256xf32>
    %74 = arith.subf %72, %73 : vector<1x256xf32>
    %75 = tpu.iota {dimensions = array<i32: 1>} : vector<1x128xi32>
    %76 = arith.sitofp %75 : vector<1x128xi32> to vector<1x128xf32>
    %77 = vector.extract_strided_slice %74 {offsets = [0, 0], sizes = [1, 128], strides = [1, 1]} : vector<1x256xf32> to vector<1x128xf32>
    %cst_61 = arith.constant dense<0xFF800000> : vector<1xf32>
    %78 = vector.multi_reduction <maximumf>, %77, %cst_61 [1] : vector<1x128xf32> to vector<1xf32>
    %79 = vector.shape_cast %78 : vector<1xf32> to vector<1x1xf32>
    %80 = vector.broadcast %79 : vector<1x1xf32> to vector<1x128xf32>
    %81 = arith.cmpf oge, %77, %80 : vector<1x128xf32>
    %cst_62 = arith.constant 1.280000e+02 : f32
    %82 = vector.broadcast %cst_62 : f32 to vector<1x128xf32>
    %83 = arith.select %81, %76, %82 : vector<1x128xi1>, vector<1x128xf32>
    %cst_63 = arith.constant dense<0x7F800000> : vector<1xf32>
    %84 = vector.multi_reduction <minimumf>, %83, %cst_63 [1] : vector<1x128xf32> to vector<1xf32>
    %85 = vector.shape_cast %84 : vector<1xf32> to vector<1x1xf32>
    %86 = vector.broadcast %85 : vector<1x1xf32> to vector<1x128xf32>
    %87 = arith.cmpf oeq, %76, %86 : vector<1x128xf32>
    %88 = arith.extui %87 : vector<1x128xi1> to vector<1x128xi32>
    %89 = arith.sitofp %88 : vector<1x128xi32> to vector<1x128xf32>
    %c0_64 = arith.constant 0 : index
    %c0_65 = arith.constant 0 : index
    %90 = vector.load %arg0[%c0_64, %c0_65] : memref<64x256xf32, #tpu.memory_space<vmem>>, vector<64x128xf32>
    %91 = vector.broadcast %89 : vector<1x128xf32> to vector<64x128xf32>
    %92 = arith.mulf %90, %91 : vector<64x128xf32>
    %cst_66 = arith.constant dense<0.000000e+00> : vector<64xf32>
    %93 = vector.multi_reduction <add>, %92, %cst_66 [1] : vector<64x128xf32> to vector<64xf32>
    %94 = vector.shape_cast %93 : vector<64xf32> to vector<64x1xf32>
    %95 = vector.extract_strided_slice %74 {offsets = [0, 128], sizes = [1, 128], strides = [1, 1]} : vector<1x256xf32> to vector<1x128xf32>
    %cst_67 = arith.constant dense<0xFF800000> : vector<1xf32>
    %96 = vector.multi_reduction <maximumf>, %95, %cst_67 [1] : vector<1x128xf32> to vector<1xf32>
    %97 = vector.shape_cast %96 : vector<1xf32> to vector<1x1xf32>
    %98 = vector.broadcast %97 : vector<1x1xf32> to vector<1x128xf32>
    %99 = arith.cmpf oge, %95, %98 : vector<1x128xf32>
    %cst_68 = arith.constant 1.280000e+02 : f32
    %100 = vector.broadcast %cst_68 : f32 to vector<1x128xf32>
    %101 = arith.select %99, %76, %100 : vector<1x128xi1>, vector<1x128xf32>
    %cst_69 = arith.constant dense<0x7F800000> : vector<1xf32>
    %102 = vector.multi_reduction <minimumf>, %101, %cst_69 [1] : vector<1x128xf32> to vector<1xf32>
    %103 = vector.shape_cast %102 : vector<1xf32> to vector<1x1xf32>
    %104 = vector.broadcast %103 : vector<1x1xf32> to vector<1x128xf32>
    %105 = arith.cmpf oeq, %76, %104 : vector<1x128xf32>
    %106 = arith.extui %105 : vector<1x128xi1> to vector<1x128xi32>
    %107 = arith.sitofp %106 : vector<1x128xi32> to vector<1x128xf32>
    %c0_70 = arith.constant 0 : index
    %c128_71 = arith.constant 128 : index
    %108 = vector.load %arg0[%c0_70, %c128_71] : memref<64x256xf32, #tpu.memory_space<vmem>>, vector<64x128xf32>
    %109 = vector.broadcast %107 : vector<1x128xf32> to vector<64x128xf32>
    %110 = arith.mulf %108, %109 : vector<64x128xf32>
    %cst_72 = arith.constant dense<0.000000e+00> : vector<64xf32>
    %111 = vector.multi_reduction <add>, %110, %cst_72 [1] : vector<64x128xf32> to vector<64xf32>
    %112 = vector.shape_cast %111 : vector<64xf32> to vector<64x1xf32>
    %113 = tpu.concatenate %94, %112 in 1 : vector<64x1xf32>, vector<64x1xf32> -> vector<64x2xf32>
    %c1_73 = arith.constant 1 : index
    %c0_74 = arith.constant 0 : index
    %c0_75 = arith.constant 0 : index
    %114 = vector.load %arg2[%c1_73, %c0_74, %c0_75] : memref<2x32x32xf32, #tpu.memory_space<vmem>>, vector<1x32x32xf32>
    %115 = vector.shape_cast %114 : vector<1x32x32xf32> to vector<32x32xf32>
    %cst_76 = arith.constant dense<0.000000e+00> : vector<32x2xf32>
    %116 = tpu.matmul %115, %16, %cst_76 {dimension_numbers = #tpu.dot_dimension_numbers<[1], [0], [0], [1], [0, 0, 1, 1], [], []>} : vector<32x32xf32>, vector<32x2xf32>, vector<32x2xf32> -> vector<32x2xf32>
    %c1_77 = arith.constant 1 : index
    %c0_78 = arith.constant 0 : index
    %c0_79 = arith.constant 0 : index
    %117 = vector.load %arg3[%c1_77, %c0_78, %c0_79] : memref<2x32x64xf32, #tpu.memory_space<vmem>>, vector<1x32x64xf32>
    %118 = vector.shape_cast %117 : vector<1x32x64xf32> to vector<32x64xf32>
    %cst_80 = arith.constant dense<0.000000e+00> : vector<32x2xf32>
    %119 = tpu.matmul %118, %113, %cst_80 {dimension_numbers = #tpu.dot_dimension_numbers<[1], [0], [0], [1], [0, 0, 1, 1], [], []>} : vector<32x64xf32>, vector<64x2xf32>, vector<32x2xf32> -> vector<32x2xf32>
    %120 = arith.addf %116, %119 : vector<32x2xf32>
    %c1_81 = arith.constant 1 : index
    %c0_82 = arith.constant 0 : index
    %c0_83 = arith.constant 0 : index
    %121 = vector.load %arg4[%c1_81, %c0_82, %c0_83] : memref<2x32x64xf32, #tpu.memory_space<vmem>>, vector<1x32x64xf32>
    %122 = vector.shape_cast %121 : vector<1x32x64xf32> to vector<32x64xf32>
    %cst_84 = arith.constant dense<0.000000e+00> : vector<32x2xf32>
    %123 = tpu.matmul %122, %15, %cst_84 {dimension_numbers = #tpu.dot_dimension_numbers<[1], [0], [0], [1], [0, 0, 1, 1], [], []>} : vector<32x64xf32>, vector<64x2xf32>, vector<32x2xf32> -> vector<32x2xf32>
    %124 = arith.addf %120, %123 : vector<32x2xf32>
    %125 = math.tanh %124 : vector<32x2xf32>
    %c1_85 = arith.constant 1 : index
    %c0_86 = arith.constant 0 : index
    %c0_87 = arith.constant 0 : index
    %126 = vector.load %arg6[%c1_85, %c0_86, %c0_87] : memref<2x64x32xf32, #tpu.memory_space<vmem>>, vector<1x64x32xf32>
    %127 = vector.shape_cast %126 : vector<1x64x32xf32> to vector<64x32xf32>
    %cst_88 = arith.constant dense<0.000000e+00> : vector<64x2xf32>
    %128 = tpu.matmul %127, %125, %cst_88 {dimension_numbers = #tpu.dot_dimension_numbers<[1], [0], [0], [1], [0, 0, 1, 1], [], []>} : vector<64x32xf32>, vector<32x2xf32>, vector<64x2xf32> -> vector<64x2xf32>
    %129 = vector.extract_strided_slice %128 {offsets = [0, 0], sizes = [64, 1], strides = [1, 1]} : vector<64x2xf32> to vector<64x1xf32>
    %130 = vector.shape_cast %129 : vector<64x1xf32> to vector<64x1xf32>
    %131 = vector.broadcast %130 : vector<64x1xf32> to vector<64x128xf32>
    %132 = vector.extract_strided_slice %128 {offsets = [0, 1], sizes = [64, 1], strides = [1, 1]} : vector<64x2xf32> to vector<64x1xf32>
    %133 = vector.shape_cast %132 : vector<64x1xf32> to vector<64x1xf32>
    %134 = vector.broadcast %133 : vector<64x1xf32> to vector<64x128xf32>
    %135 = tpu.concatenate %131, %134 in 1 : vector<64x128xf32>, vector<64x128xf32> -> vector<64x256xf32>
    %c1_89 = arith.constant 1 : index
    %c0_90 = arith.constant 0 : index
    %c0_91 = arith.constant 0 : index
    %136 = vector.load %arg23[%c1_89, %c0_90, %c0_91] : memref<2x64x256xf32, #tpu.memory_space<vmem>>, vector<1x64x256xf32>
    %137 = vector.shape_cast %136 : vector<1x64x256xf32> to vector<64x256xf32>
    %138 = arith.addf %137, %135 : vector<64x256xf32>
    %c1_92 = arith.constant 1 : index
    %c0_93 = arith.constant 0 : index
    %c0_94 = arith.constant 0 : index
    %139 = vector.load %arg7[%c1_92, %c0_93, %c0_94] : memref<2x64x1xf32, #tpu.memory_space<vmem>>, vector<1x64x1xf32>
    %140 = vector.shape_cast %139 : vector<1x64x1xf32> to vector<64x1xf32>
    %141 = vector.broadcast %140 : vector<64x1xf32> to vector<64x256xf32>
    %142 = arith.addf %138, %141 : vector<64x256xf32>
    %143 = vector.extract_strided_slice %142 {offsets = [0, 0], sizes = [32, 256], strides = [1, 1]} : vector<64x256xf32> to vector<32x256xf32>
    %144 = vector.extract_strided_slice %142 {offsets = [32, 0], sizes = [32, 256], strides = [1, 1]} : vector<64x256xf32> to vector<32x256xf32>
    %145 = arith.maximumf %143, %144 : vector<32x256xf32>
    %c1_95 = arith.constant 1 : index
    %c0_96 = arith.constant 0 : index
    %c0_97 = arith.constant 0 : index
    %146 = vector.load %arg8[%c1_95, %c0_96, %c0_97] : memref<2x64x32xf32, #tpu.memory_space<vmem>>, vector<1x64x32xf32>
    %147 = vector.shape_cast %146 : vector<1x64x32xf32> to vector<64x32xf32>
    %cst_98 = arith.constant dense<0.000000e+00> : vector<64x256xf32>
    %148 = tpu.matmul %147, %145, %cst_98 {dimension_numbers = #tpu.dot_dimension_numbers<[1], [0], [0], [1], [0, 0, 1, 1], [], []>} : vector<64x32xf32>, vector<32x256xf32>, vector<64x256xf32> -> vector<64x256xf32>
    %c1_99 = arith.constant 1 : index
    %c0_100 = arith.constant 0 : index
    %c0_101 = arith.constant 0 : index
    %149 = vector.load %arg9[%c1_99, %c0_100, %c0_101] : memref<2x64x1xf32, #tpu.memory_space<vmem>>, vector<1x64x1xf32>
    %150 = vector.shape_cast %149 : vector<1x64x1xf32> to vector<64x1xf32>
    %151 = vector.broadcast %150 : vector<64x1xf32> to vector<64x256xf32>
    %152 = arith.addf %148, %151 : vector<64x256xf32>
    %153 = vector.extract_strided_slice %152 {offsets = [0, 0], sizes = [32, 256], strides = [1, 1]} : vector<64x256xf32> to vector<32x256xf32>
    %154 = vector.extract_strided_slice %152 {offsets = [32, 0], sizes = [32, 256], strides = [1, 1]} : vector<64x256xf32> to vector<32x256xf32>
    %155 = arith.maximumf %153, %154 : vector<32x256xf32>
    %c1_102 = arith.constant 1 : index
    %c0_103 = arith.constant 0 : index
    %c0_104 = arith.constant 0 : index
    %156 = vector.load %arg10[%c1_102, %c0_103, %c0_104] : memref<2x8x32xf32, #tpu.memory_space<vmem>>, vector<1x8x32xf32>
    %157 = vector.shape_cast %156 : vector<1x8x32xf32> to vector<8x32xf32>
    %cst_105 = arith.constant dense<0.000000e+00> : vector<8x256xf32>
    %158 = tpu.matmul %157, %145, %cst_105 {dimension_numbers = #tpu.dot_dimension_numbers<[1], [0], [0], [1], [0, 0, 1, 1], [], []>} : vector<8x32xf32>, vector<32x256xf32>, vector<8x256xf32> -> vector<8x256xf32>
    %c1_106 = arith.constant 1 : index
    %c0_107 = arith.constant 0 : index
    %c0_108 = arith.constant 0 : index
    %159 = vector.load %arg11[%c1_106, %c0_107, %c0_108] : memref<2x8x32xf32, #tpu.memory_space<vmem>>, vector<1x8x32xf32>
    %160 = vector.shape_cast %159 : vector<1x8x32xf32> to vector<8x32xf32>
    %cst_109 = arith.constant dense<0.000000e+00> : vector<8x256xf32>
    %161 = tpu.matmul %160, %155, %cst_109 {dimension_numbers = #tpu.dot_dimension_numbers<[1], [0], [0], [1], [0, 0, 1, 1], [], []>} : vector<8x32xf32>, vector<32x256xf32>, vector<8x256xf32> -> vector<8x256xf32>
    %162 = arith.addf %158, %161 : vector<8x256xf32>
    %c1_110 = arith.constant 1 : index
    %c0_111 = arith.constant 0 : index
    %c0_112 = arith.constant 0 : index
    %163 = vector.load %arg12[%c1_110, %c0_111, %c0_112] : memref<2x8x1xf32, #tpu.memory_space<vmem>>, vector<1x8x1xf32>
    %164 = vector.shape_cast %163 : vector<1x8x1xf32> to vector<8x1xf32>
    %165 = vector.broadcast %164 : vector<8x1xf32> to vector<8x256xf32>
    %166 = arith.addf %162, %165 : vector<8x256xf32>
    %cst_113 = arith.constant dense<0xFF800000> : vector<256xf32>
    %167 = vector.multi_reduction <maximumf>, %166, %cst_113 [0] : vector<8x256xf32> to vector<256xf32>
    %168 = vector.shape_cast %167 : vector<256xf32> to vector<1x256xf32>
    %c0_114 = arith.constant 0 : index
    %c0_115 = arith.constant 0 : index
    %169 = vector.load %arg1[%c0_114, %c0_115] : memref<1x256xf32, #tpu.memory_space<vmem>>, vector<1x256xf32>
    %170 = arith.subf %168, %169 : vector<1x256xf32>
    %171 = tpu.iota {dimensions = array<i32: 1>} : vector<1x128xi32>
    %172 = arith.sitofp %171 : vector<1x128xi32> to vector<1x128xf32>
    %173 = vector.extract_strided_slice %170 {offsets = [0, 0], sizes = [1, 128], strides = [1, 1]} : vector<1x256xf32> to vector<1x128xf32>
    %cst_116 = arith.constant dense<0xFF800000> : vector<1xf32>
    %174 = vector.multi_reduction <maximumf>, %173, %cst_116 [1] : vector<1x128xf32> to vector<1xf32>
    %175 = vector.shape_cast %174 : vector<1xf32> to vector<1x1xf32>
    %176 = vector.broadcast %175 : vector<1x1xf32> to vector<1x128xf32>
    %177 = arith.cmpf oge, %173, %176 : vector<1x128xf32>
    %cst_117 = arith.constant 1.280000e+02 : f32
    %178 = vector.broadcast %cst_117 : f32 to vector<1x128xf32>
    %179 = arith.select %177, %172, %178 : vector<1x128xi1>, vector<1x128xf32>
    %cst_118 = arith.constant dense<0x7F800000> : vector<1xf32>
    %180 = vector.multi_reduction <minimumf>, %179, %cst_118 [1] : vector<1x128xf32> to vector<1xf32>
    %181 = vector.shape_cast %180 : vector<1xf32> to vector<1x1xf32>
    %182 = vector.broadcast %181 : vector<1x1xf32> to vector<1x128xf32>
    %183 = arith.cmpf oeq, %172, %182 : vector<1x128xf32>
    %184 = arith.extui %183 : vector<1x128xi1> to vector<1x128xi32>
    %185 = arith.sitofp %184 : vector<1x128xi32> to vector<1x128xf32>
    %c0_119 = arith.constant 0 : index
    %c0_120 = arith.constant 0 : index
    %186 = vector.load %arg0[%c0_119, %c0_120] : memref<64x256xf32, #tpu.memory_space<vmem>>, vector<64x128xf32>
    %187 = vector.broadcast %185 : vector<1x128xf32> to vector<64x128xf32>
    %188 = arith.mulf %186, %187 : vector<64x128xf32>
    %cst_121 = arith.constant dense<0.000000e+00> : vector<64xf32>
    %189 = vector.multi_reduction <add>, %188, %cst_121 [1] : vector<64x128xf32> to vector<64xf32>
    %190 = vector.shape_cast %189 : vector<64xf32> to vector<64x1xf32>
    %191 = vector.extract_strided_slice %170 {offsets = [0, 128], sizes = [1, 128], strides = [1, 1]} : vector<1x256xf32> to vector<1x128xf32>
    %cst_122 = arith.constant dense<0xFF800000> : vector<1xf32>
    %192 = vector.multi_reduction <maximumf>, %191, %cst_122 [1] : vector<1x128xf32> to vector<1xf32>
    %193 = vector.shape_cast %192 : vector<1xf32> to vector<1x1xf32>
    %194 = vector.broadcast %193 : vector<1x1xf32> to vector<1x128xf32>
    %195 = arith.cmpf oge, %191, %194 : vector<1x128xf32>
    %cst_123 = arith.constant 1.280000e+02 : f32
    %196 = vector.broadcast %cst_123 : f32 to vector<1x128xf32>
    %197 = arith.select %195, %172, %196 : vector<1x128xi1>, vector<1x128xf32>
    %cst_124 = arith.constant dense<0x7F800000> : vector<1xf32>
    %198 = vector.multi_reduction <minimumf>, %197, %cst_124 [1] : vector<1x128xf32> to vector<1xf32>
    %199 = vector.shape_cast %198 : vector<1xf32> to vector<1x1xf32>
    %200 = vector.broadcast %199 : vector<1x1xf32> to vector<1x128xf32>
    %201 = arith.cmpf oeq, %172, %200 : vector<1x128xf32>
    %202 = arith.extui %201 : vector<1x128xi1> to vector<1x128xi32>
    %203 = arith.sitofp %202 : vector<1x128xi32> to vector<1x128xf32>
    %c0_125 = arith.constant 0 : index
    %c128_126 = arith.constant 128 : index
    %204 = vector.load %arg0[%c0_125, %c128_126] : memref<64x256xf32, #tpu.memory_space<vmem>>, vector<64x128xf32>
    %205 = vector.broadcast %203 : vector<1x128xf32> to vector<64x128xf32>
    %206 = arith.mulf %204, %205 : vector<64x128xf32>
    %cst_127 = arith.constant dense<0.000000e+00> : vector<64xf32>
    %207 = vector.multi_reduction <add>, %206, %cst_127 [1] : vector<64x128xf32> to vector<64xf32>
    %208 = vector.shape_cast %207 : vector<64xf32> to vector<64x1xf32>
    %209 = tpu.concatenate %190, %208 in 1 : vector<64x1xf32>, vector<64x1xf32> -> vector<64x2xf32>
    %c0_128 = arith.constant 0 : index
    %c0_129 = arith.constant 0 : index
    %210 = vector.load %arg13[%c0_128, %c0_129] : memref<128x64xf32, #tpu.memory_space<vmem>>, vector<128x64xf32>
    %cst_130 = arith.constant dense<0.000000e+00> : vector<128x2xf32>
    %211 = tpu.matmul %210, %113, %cst_130 {dimension_numbers = #tpu.dot_dimension_numbers<[1], [0], [0], [1], [0, 0, 1, 1], [], []>} : vector<128x64xf32>, vector<64x2xf32>, vector<128x2xf32> -> vector<128x2xf32>
    %c0_131 = arith.constant 0 : index
    %c0_132 = arith.constant 0 : index
    %212 = vector.load %arg14[%c0_131, %c0_132] : memref<128x64xf32, #tpu.memory_space<vmem>>, vector<128x64xf32>
    %cst_133 = arith.constant dense<0.000000e+00> : vector<128x2xf32>
    %213 = tpu.matmul %212, %209, %cst_133 {dimension_numbers = #tpu.dot_dimension_numbers<[1], [0], [0], [1], [0, 0, 1, 1], [], []>} : vector<128x64xf32>, vector<64x2xf32>, vector<128x2xf32> -> vector<128x2xf32>
    %214 = arith.addf %211, %213 : vector<128x2xf32>
    %c0_134 = arith.constant 0 : index
    %c0_135 = arith.constant 0 : index
    %215 = vector.load %arg15[%c0_134, %c0_135] : memref<128x32xf32, #tpu.memory_space<vmem>>, vector<128x32xf32>
    %cst_136 = arith.constant dense<0.000000e+00> : vector<128x2xf32>
    %216 = tpu.matmul %215, %16, %cst_136 {dimension_numbers = #tpu.dot_dimension_numbers<[1], [0], [0], [1], [0, 0, 1, 1], [], []>} : vector<128x32xf32>, vector<32x2xf32>, vector<128x2xf32> -> vector<128x2xf32>
    %217 = arith.addf %214, %216 : vector<128x2xf32>
    %c0_137 = arith.constant 0 : index
    %c0_138 = arith.constant 0 : index
    %218 = vector.load %arg16[%c0_137, %c0_138] : memref<128x1xf32, #tpu.memory_space<vmem>>, vector<128x1xf32>
    %219 = vector.broadcast %218 : vector<128x1xf32> to vector<128x2xf32>
    %220 = arith.addf %217, %219 : vector<128x2xf32>
    %221 = vector.extract_strided_slice %220 {offsets = [0, 0], sizes = [32, 2], strides = [1, 1]} : vector<128x2xf32> to vector<32x2xf32>
    %222 = arith.negf %221 : vector<32x2xf32>
    %223 = math.exp %222 : vector<32x2xf32>
    %cst_139 = arith.constant 1.000000e+00 : f32
    %224 = vector.broadcast %cst_139 : f32 to vector<32x2xf32>
    %225 = arith.addf %224, %223 : vector<32x2xf32>
    %226 = arith.divf %224, %225 : vector<32x2xf32>
    %227 = vector.extract_strided_slice %220 {offsets = [32, 0], sizes = [32, 2], strides = [1, 1]} : vector<128x2xf32> to vector<32x2xf32>
    %228 = arith.negf %227 : vector<32x2xf32>
    %229 = math.exp %228 : vector<32x2xf32>
    %cst_140 = arith.constant 1.000000e+00 : f32
    %230 = vector.broadcast %cst_140 : f32 to vector<32x2xf32>
    %231 = arith.addf %230, %229 : vector<32x2xf32>
    %232 = arith.divf %230, %231 : vector<32x2xf32>
    %233 = vector.extract_strided_slice %220 {offsets = [64, 0], sizes = [32, 2], strides = [1, 1]} : vector<128x2xf32> to vector<32x2xf32>
    %234 = math.tanh %233 : vector<32x2xf32>
    %235 = vector.extract_strided_slice %220 {offsets = [96, 0], sizes = [32, 2], strides = [1, 1]} : vector<128x2xf32> to vector<32x2xf32>
    %236 = arith.negf %235 : vector<32x2xf32>
    %237 = math.exp %236 : vector<32x2xf32>
    %cst_141 = arith.constant 1.000000e+00 : f32
    %238 = vector.broadcast %cst_141 : f32 to vector<32x2xf32>
    %239 = arith.addf %238, %237 : vector<32x2xf32>
    %240 = arith.divf %238, %239 : vector<32x2xf32>
    %241 = arith.mulf %232, %17 : vector<32x2xf32>
    %242 = arith.mulf %226, %234 : vector<32x2xf32>
    %243 = arith.addf %241, %242 : vector<32x2xf32>
    %244 = math.tanh %243 : vector<32x2xf32>
    %245 = arith.mulf %240, %244 : vector<32x2xf32>
    %c0_142 = arith.constant 0 : index
    %c0_143 = arith.constant 0 : index
    %246 = vector.load %arg17[%c0_142, %c0_143] : memref<32x32xf32, #tpu.memory_space<vmem>>, vector<32x32xf32>
    %cst_144 = arith.constant dense<0.000000e+00> : vector<32x2xf32>
    %247 = tpu.matmul %246, %245, %cst_144 {dimension_numbers = #tpu.dot_dimension_numbers<[1], [0], [0], [1], [0, 0, 1, 1], [], []>} : vector<32x32xf32>, vector<32x2xf32>, vector<32x2xf32> -> vector<32x2xf32>
    %c0_145 = arith.constant 0 : index
    %c0_146 = arith.constant 0 : index
    %248 = vector.load %arg18[%c0_145, %c0_146] : memref<32x1xf32, #tpu.memory_space<vmem>>, vector<32x1xf32>
    %249 = vector.broadcast %248 : vector<32x1xf32> to vector<32x2xf32>
    %250 = arith.addf %247, %249 : vector<32x2xf32>
    %c0_147 = arith.constant 0 : index
    %c0_148 = arith.constant 0 : index
    %c0_149 = arith.constant 0 : index
    %251 = vector.load %arg19[%c0_147, %c0_148, %c0_149] : memref<2x1x256xf32, #tpu.memory_space<vmem>>, vector<1x1x256xf32>
    %252 = vector.shape_cast %251 : vector<1x1x256xf32> to vector<1x256xf32>
    %253 = vector.shape_cast %74 : vector<1x256xf32> to vector<1x1x256xf32>
    tpu.vector_store %arg19[%c0_147, %c0_148, %c0_149], %253 {strides = array<i32>} : memref<2x1x256xf32, #tpu.memory_space<vmem>>, vector<1x1x256xf32>,
    %c0_150 = arith.constant 0 : index
    %c0_151 = arith.constant 0 : index
    %c0_152 = arith.constant 0 : index
    %254 = vector.load %arg20[%c0_150, %c0_151, %c0_152] : memref<2x1x256xf32, #tpu.memory_space<vmem>>, vector<1x1x256xf32>
    %255 = vector.shape_cast %254 : vector<1x1x256xf32> to vector<1x256xf32>
    %256 = vector.shape_cast %170 : vector<1x256xf32> to vector<1x1x256xf32>
    tpu.vector_store %arg20[%c0_150, %c0_151, %c0_152], %256 {strides = array<i32>} : memref<2x1x256xf32, #tpu.memory_space<vmem>>, vector<1x1x256xf32>,
    %c0_153 = arith.constant 0 : index
    %c0_154 = arith.constant 0 : index
    %c0_155 = arith.constant 0 : index
    %257 = vector.load %arg2[%c0_153, %c0_154, %c0_155] : memref<2x32x32xf32, #tpu.memory_space<vmem>>, vector<1x32x32xf32>
    %258 = vector.shape_cast %257 : vector<1x32x32xf32> to vector<32x32xf32>
    %cst_156 = arith.constant dense<0.000000e+00> : vector<32x2xf32>
    %259 = tpu.matmul %258, %250, %cst_156 {dimension_numbers = #tpu.dot_dimension_numbers<[1], [0], [0], [1], [0, 0, 1, 1], [], []>} : vector<32x32xf32>, vector<32x2xf32>, vector<32x2xf32> -> vector<32x2xf32>
    %c0_157 = arith.constant 0 : index
    %c0_158 = arith.constant 0 : index
    %c0_159 = arith.constant 0 : index
    %260 = vector.load %arg3[%c0_157, %c0_158, %c0_159] : memref<2x32x64xf32, #tpu.memory_space<vmem>>, vector<1x32x64xf32>
    %261 = vector.shape_cast %260 : vector<1x32x64xf32> to vector<32x64xf32>
    %cst_160 = arith.constant dense<0.000000e+00> : vector<32x2xf32>
    %262 = tpu.matmul %261, %113, %cst_160 {dimension_numbers = #tpu.dot_dimension_numbers<[1], [0], [0], [1], [0, 0, 1, 1], [], []>} : vector<32x64xf32>, vector<64x2xf32>, vector<32x2xf32> -> vector<32x2xf32>
    %263 = arith.addf %259, %262 : vector<32x2xf32>
    %c0_161 = arith.constant 0 : index
    %c0_162 = arith.constant 0 : index
    %c0_163 = arith.constant 0 : index
    %264 = vector.load %arg4[%c0_161, %c0_162, %c0_163] : memref<2x32x64xf32, #tpu.memory_space<vmem>>, vector<1x32x64xf32>
    %265 = vector.shape_cast %264 : vector<1x32x64xf32> to vector<32x64xf32>
    %cst_164 = arith.constant dense<0.000000e+00> : vector<32x2xf32>
    %266 = tpu.matmul %265, %209, %cst_164 {dimension_numbers = #tpu.dot_dimension_numbers<[1], [0], [0], [1], [0, 0, 1, 1], [], []>} : vector<32x64xf32>, vector<64x2xf32>, vector<32x2xf32> -> vector<32x2xf32>
    %267 = arith.addf %263, %266 : vector<32x2xf32>
    %268 = math.tanh %267 : vector<32x2xf32>
    %c0_165 = arith.constant 0 : index
    %c0_166 = arith.constant 0 : index
    %c0_167 = arith.constant 0 : index
    %269 = vector.load %arg6[%c0_165, %c0_166, %c0_167] : memref<2x64x32xf32, #tpu.memory_space<vmem>>, vector<1x64x32xf32>
    %270 = vector.shape_cast %269 : vector<1x64x32xf32> to vector<64x32xf32>
    %cst_168 = arith.constant dense<0.000000e+00> : vector<64x2xf32>
    %271 = tpu.matmul %270, %268, %cst_168 {dimension_numbers = #tpu.dot_dimension_numbers<[1], [0], [0], [1], [0, 0, 1, 1], [], []>} : vector<64x32xf32>, vector<32x2xf32>, vector<64x2xf32> -> vector<64x2xf32>
    %272 = vector.extract_strided_slice %271 {offsets = [0, 0], sizes = [64, 1], strides = [1, 1]} : vector<64x2xf32> to vector<64x1xf32>
    %273 = vector.shape_cast %272 : vector<64x1xf32> to vector<64x1xf32>
    %274 = vector.broadcast %273 : vector<64x1xf32> to vector<64x128xf32>
    %275 = vector.extract_strided_slice %271 {offsets = [0, 1], sizes = [64, 1], strides = [1, 1]} : vector<64x2xf32> to vector<64x1xf32>
    %276 = vector.shape_cast %275 : vector<64x1xf32> to vector<64x1xf32>
    %277 = vector.broadcast %276 : vector<64x1xf32> to vector<64x128xf32>
    %278 = tpu.concatenate %274, %277 in 1 : vector<64x128xf32>, vector<64x128xf32> -> vector<64x256xf32>
    %c0_169 = arith.constant 0 : index
    %c0_170 = arith.constant 0 : index
    %c0_171 = arith.constant 0 : index
    %279 = vector.load %arg23[%c0_169, %c0_170, %c0_171] : memref<2x64x256xf32, #tpu.memory_space<vmem>>, vector<1x64x256xf32>
    %280 = vector.shape_cast %279 : vector<1x64x256xf32> to vector<64x256xf32>
    %281 = arith.addf %280, %278 : vector<64x256xf32>
    %c0_172 = arith.constant 0 : index
    %c0_173 = arith.constant 0 : index
    %c0_174 = arith.constant 0 : index
    %282 = vector.load %arg7[%c0_172, %c0_173, %c0_174] : memref<2x64x1xf32, #tpu.memory_space<vmem>>, vector<1x64x1xf32>
    %283 = vector.shape_cast %282 : vector<1x64x1xf32> to vector<64x1xf32>
    %284 = vector.broadcast %283 : vector<64x1xf32> to vector<64x256xf32>
    %285 = arith.addf %281, %284 : vector<64x256xf32>
    %286 = vector.extract_strided_slice %285 {offsets = [0, 0], sizes = [32, 256], strides = [1, 1]} : vector<64x256xf32> to vector<32x256xf32>
    %287 = vector.extract_strided_slice %285 {offsets = [32, 0], sizes = [32, 256], strides = [1, 1]} : vector<64x256xf32> to vector<32x256xf32>
    %288 = arith.maximumf %286, %287 : vector<32x256xf32>
    %c0_175 = arith.constant 0 : index
    %c0_176 = arith.constant 0 : index
    %c0_177 = arith.constant 0 : index
    %289 = vector.load %arg8[%c0_175, %c0_176, %c0_177] : memref<2x64x32xf32, #tpu.memory_space<vmem>>, vector<1x64x32xf32>
    %290 = vector.shape_cast %289 : vector<1x64x32xf32> to vector<64x32xf32>
    %cst_178 = arith.constant dense<0.000000e+00> : vector<64x256xf32>
    %291 = tpu.matmul %290, %288, %cst_178 {dimension_numbers = #tpu.dot_dimension_numbers<[1], [0], [0], [1], [0, 0, 1, 1], [], []>} : vector<64x32xf32>, vector<32x256xf32>, vector<64x256xf32> -> vector<64x256xf32>
    %c0_179 = arith.constant 0 : index
    %c0_180 = arith.constant 0 : index
    %c0_181 = arith.constant 0 : index
    %292 = vector.load %arg9[%c0_179, %c0_180, %c0_181] : memref<2x64x1xf32, #tpu.memory_space<vmem>>, vector<1x64x1xf32>
    %293 = vector.shape_cast %292 : vector<1x64x1xf32> to vector<64x1xf32>
    %294 = vector.broadcast %293 : vector<64x1xf32> to vector<64x256xf32>
    %295 = arith.addf %291, %294 : vector<64x256xf32>
    %296 = vector.extract_strided_slice %295 {offsets = [0, 0], sizes = [32, 256], strides = [1, 1]} : vector<64x256xf32> to vector<32x256xf32>
    %297 = vector.extract_strided_slice %295 {offsets = [32, 0], sizes = [32, 256], strides = [1, 1]} : vector<64x256xf32> to vector<32x256xf32>
    %298 = arith.maximumf %296, %297 : vector<32x256xf32>
    %c0_182 = arith.constant 0 : index
    %c0_183 = arith.constant 0 : index
    %c0_184 = arith.constant 0 : index
    %299 = vector.load %arg10[%c0_182, %c0_183, %c0_184] : memref<2x8x32xf32, #tpu.memory_space<vmem>>, vector<1x8x32xf32>
    %300 = vector.shape_cast %299 : vector<1x8x32xf32> to vector<8x32xf32>
    %cst_185 = arith.constant dense<0.000000e+00> : vector<8x256xf32>
    %301 = tpu.matmul %300, %288, %cst_185 {dimension_numbers = #tpu.dot_dimension_numbers<[1], [0], [0], [1], [0, 0, 1, 1], [], []>} : vector<8x32xf32>, vector<32x256xf32>, vector<8x256xf32> -> vector<8x256xf32>
    %c0_186 = arith.constant 0 : index
    %c0_187 = arith.constant 0 : index
    %c0_188 = arith.constant 0 : index
    %302 = vector.load %arg11[%c0_186, %c0_187, %c0_188] : memref<2x8x32xf32, #tpu.memory_space<vmem>>, vector<1x8x32xf32>
    %303 = vector.shape_cast %302 : vector<1x8x32xf32> to vector<8x32xf32>
    %cst_189 = arith.constant dense<0.000000e+00> : vector<8x256xf32>
    %304 = tpu.matmul %303, %298, %cst_189 {dimension_numbers = #tpu.dot_dimension_numbers<[1], [0], [0], [1], [0, 0, 1, 1], [], []>} : vector<8x32xf32>, vector<32x256xf32>, vector<8x256xf32> -> vector<8x256xf32>
    %305 = arith.addf %301, %304 : vector<8x256xf32>
    %c0_190 = arith.constant 0 : index
    %c0_191 = arith.constant 0 : index
    %c0_192 = arith.constant 0 : index
    %306 = vector.load %arg12[%c0_190, %c0_191, %c0_192] : memref<2x8x1xf32, #tpu.memory_space<vmem>>, vector<1x8x1xf32>
    %307 = vector.shape_cast %306 : vector<1x8x1xf32> to vector<8x1xf32>
    %308 = vector.broadcast %307 : vector<8x1xf32> to vector<8x256xf32>
    %309 = arith.addf %305, %308 : vector<8x256xf32>
    %cst_193 = arith.constant dense<0xFF800000> : vector<256xf32>
    %310 = vector.multi_reduction <maximumf>, %309, %cst_193 [0] : vector<8x256xf32> to vector<256xf32>
    %311 = vector.shape_cast %310 : vector<256xf32> to vector<1x256xf32>
    %c0_194 = arith.constant 0 : index
    %c0_195 = arith.constant 0 : index
    %312 = vector.load %arg1[%c0_194, %c0_195] : memref<1x256xf32, #tpu.memory_space<vmem>>, vector<1x256xf32>
    %313 = arith.subf %311, %312 : vector<1x256xf32>
    %314 = tpu.iota {dimensions = array<i32: 1>} : vector<1x128xi32>
    %315 = arith.sitofp %314 : vector<1x128xi32> to vector<1x128xf32>
    %316 = vector.extract_strided_slice %313 {offsets = [0, 0], sizes = [1, 128], strides = [1, 1]} : vector<1x256xf32> to vector<1x128xf32>
    %cst_196 = arith.constant dense<0xFF800000> : vector<1xf32>
    %317 = vector.multi_reduction <maximumf>, %316, %cst_196 [1] : vector<1x128xf32> to vector<1xf32>
    %318 = vector.shape_cast %317 : vector<1xf32> to vector<1x1xf32>
    %319 = vector.broadcast %318 : vector<1x1xf32> to vector<1x128xf32>
    %320 = arith.cmpf oge, %316, %319 : vector<1x128xf32>
    %cst_197 = arith.constant 1.280000e+02 : f32
    %321 = vector.broadcast %cst_197 : f32 to vector<1x128xf32>
    %322 = arith.select %320, %315, %321 : vector<1x128xi1>, vector<1x128xf32>
    %cst_198 = arith.constant dense<0x7F800000> : vector<1xf32>
    %323 = vector.multi_reduction <minimumf>, %322, %cst_198 [1] : vector<1x128xf32> to vector<1xf32>
    %324 = vector.shape_cast %323 : vector<1xf32> to vector<1x1xf32>
    %325 = vector.broadcast %324 : vector<1x1xf32> to vector<1x128xf32>
    %326 = arith.cmpf oeq, %315, %325 : vector<1x128xf32>
    %327 = arith.extui %326 : vector<1x128xi1> to vector<1x128xi32>
    %328 = arith.sitofp %327 : vector<1x128xi32> to vector<1x128xf32>
    %c0_199 = arith.constant 0 : index
    %c0_200 = arith.constant 0 : index
    %329 = vector.load %arg0[%c0_199, %c0_200] : memref<64x256xf32, #tpu.memory_space<vmem>>, vector<64x128xf32>
    %330 = vector.broadcast %328 : vector<1x128xf32> to vector<64x128xf32>
    %331 = arith.mulf %329, %330 : vector<64x128xf32>
    %cst_201 = arith.constant dense<0.000000e+00> : vector<64xf32>
    %332 = vector.multi_reduction <add>, %331, %cst_201 [1] : vector<64x128xf32> to vector<64xf32>
    %333 = vector.shape_cast %332 : vector<64xf32> to vector<64x1xf32>
    %334 = vector.extract_strided_slice %313 {offsets = [0, 128], sizes = [1, 128], strides = [1, 1]} : vector<1x256xf32> to vector<1x128xf32>
    %cst_202 = arith.constant dense<0xFF800000> : vector<1xf32>
    %335 = vector.multi_reduction <maximumf>, %334, %cst_202 [1] : vector<1x128xf32> to vector<1xf32>
    %336 = vector.shape_cast %335 : vector<1xf32> to vector<1x1xf32>
    %337 = vector.broadcast %336 : vector<1x1xf32> to vector<1x128xf32>
    %338 = arith.cmpf oge, %334, %337 : vector<1x128xf32>
    %cst_203 = arith.constant 1.280000e+02 : f32
    %339 = vector.broadcast %cst_203 : f32 to vector<1x128xf32>
    %340 = arith.select %338, %315, %339 : vector<1x128xi1>, vector<1x128xf32>
    %cst_204 = arith.constant dense<0x7F800000> : vector<1xf32>
    %341 = vector.multi_reduction <minimumf>, %340, %cst_204 [1] : vector<1x128xf32> to vector<1xf32>
    %342 = vector.shape_cast %341 : vector<1xf32> to vector<1x1xf32>
    %343 = vector.broadcast %342 : vector<1x1xf32> to vector<1x128xf32>
    %344 = arith.cmpf oeq, %315, %343 : vector<1x128xf32>
    %345 = arith.extui %344 : vector<1x128xi1> to vector<1x128xi32>
    %346 = arith.sitofp %345 : vector<1x128xi32> to vector<1x128xf32>
    %c0_205 = arith.constant 0 : index
    %c128_206 = arith.constant 128 : index
    %347 = vector.load %arg0[%c0_205, %c128_206] : memref<64x256xf32, #tpu.memory_space<vmem>>, vector<64x128xf32>
    %348 = vector.broadcast %346 : vector<1x128xf32> to vector<64x128xf32>
    %349 = arith.mulf %347, %348 : vector<64x128xf32>
    %cst_207 = arith.constant dense<0.000000e+00> : vector<64xf32>
    %350 = vector.multi_reduction <add>, %349, %cst_207 [1] : vector<64x128xf32> to vector<64xf32>
    %351 = vector.shape_cast %350 : vector<64xf32> to vector<64x1xf32>
    %352 = tpu.concatenate %324, %342 in 1 : vector<1x1xf32>, vector<1x1xf32> -> vector<1x2xf32>
    %353 = tpu.concatenate %333, %351 in 1 : vector<64x1xf32>, vector<64x1xf32> -> vector<64x2xf32>
    %c1_208 = arith.constant 1 : index
    %c0_209 = arith.constant 0 : index
    %c0_210 = arith.constant 0 : index
    %354 = vector.load %arg2[%c1_208, %c0_209, %c0_210] : memref<2x32x32xf32, #tpu.memory_space<vmem>>, vector<1x32x32xf32>
    %355 = vector.shape_cast %354 : vector<1x32x32xf32> to vector<32x32xf32>
    %cst_211 = arith.constant dense<0.000000e+00> : vector<32x2xf32>
    %356 = tpu.matmul %355, %250, %cst_211 {dimension_numbers = #tpu.dot_dimension_numbers<[1], [0], [0], [1], [0, 0, 1, 1], [], []>} : vector<32x32xf32>, vector<32x2xf32>, vector<32x2xf32> -> vector<32x2xf32>
    %c1_212 = arith.constant 1 : index
    %c0_213 = arith.constant 0 : index
    %c0_214 = arith.constant 0 : index
    %357 = vector.load %arg3[%c1_212, %c0_213, %c0_214] : memref<2x32x64xf32, #tpu.memory_space<vmem>>, vector<1x32x64xf32>
    %358 = vector.shape_cast %357 : vector<1x32x64xf32> to vector<32x64xf32>
    %cst_215 = arith.constant dense<0.000000e+00> : vector<32x2xf32>
    %359 = tpu.matmul %358, %353, %cst_215 {dimension_numbers = #tpu.dot_dimension_numbers<[1], [0], [0], [1], [0, 0, 1, 1], [], []>} : vector<32x64xf32>, vector<64x2xf32>, vector<32x2xf32> -> vector<32x2xf32>
    %360 = arith.addf %356, %359 : vector<32x2xf32>
    %c1_216 = arith.constant 1 : index
    %c0_217 = arith.constant 0 : index
    %c0_218 = arith.constant 0 : index
    %361 = vector.load %arg4[%c1_216, %c0_217, %c0_218] : memref<2x32x64xf32, #tpu.memory_space<vmem>>, vector<1x32x64xf32>
    %362 = vector.shape_cast %361 : vector<1x32x64xf32> to vector<32x64xf32>
    %cst_219 = arith.constant dense<0.000000e+00> : vector<32x2xf32>
    %363 = tpu.matmul %362, %209, %cst_219 {dimension_numbers = #tpu.dot_dimension_numbers<[1], [0], [0], [1], [0, 0, 1, 1], [], []>} : vector<32x64xf32>, vector<64x2xf32>, vector<32x2xf32> -> vector<32x2xf32>
    %364 = arith.addf %360, %363 : vector<32x2xf32>
    %365 = math.tanh %364 : vector<32x2xf32>
    %c1_220 = arith.constant 1 : index
    %c0_221 = arith.constant 0 : index
    %c0_222 = arith.constant 0 : index
    %366 = vector.load %arg6[%c1_220, %c0_221, %c0_222] : memref<2x64x32xf32, #tpu.memory_space<vmem>>, vector<1x64x32xf32>
    %367 = vector.shape_cast %366 : vector<1x64x32xf32> to vector<64x32xf32>
    %cst_223 = arith.constant dense<0.000000e+00> : vector<64x2xf32>
    %368 = tpu.matmul %367, %365, %cst_223 {dimension_numbers = #tpu.dot_dimension_numbers<[1], [0], [0], [1], [0, 0, 1, 1], [], []>} : vector<64x32xf32>, vector<32x2xf32>, vector<64x2xf32> -> vector<64x2xf32>
    %369 = vector.extract_strided_slice %368 {offsets = [0, 0], sizes = [64, 1], strides = [1, 1]} : vector<64x2xf32> to vector<64x1xf32>
    %370 = vector.shape_cast %369 : vector<64x1xf32> to vector<64x1xf32>
    %371 = vector.broadcast %370 : vector<64x1xf32> to vector<64x128xf32>
    %372 = vector.extract_strided_slice %368 {offsets = [0, 1], sizes = [64, 1], strides = [1, 1]} : vector<64x2xf32> to vector<64x1xf32>
    %373 = vector.shape_cast %372 : vector<64x1xf32> to vector<64x1xf32>
    %374 = vector.broadcast %373 : vector<64x1xf32> to vector<64x128xf32>
    %375 = tpu.concatenate %371, %374 in 1 : vector<64x128xf32>, vector<64x128xf32> -> vector<64x256xf32>
    %c1_224 = arith.constant 1 : index
    %c0_225 = arith.constant 0 : index
    %c0_226 = arith.constant 0 : index
    %376 = vector.load %arg23[%c1_224, %c0_225, %c0_226] : memref<2x64x256xf32, #tpu.memory_space<vmem>>, vector<1x64x256xf32>
    %377 = vector.shape_cast %376 : vector<1x64x256xf32> to vector<64x256xf32>
    %378 = arith.addf %377, %375 : vector<64x256xf32>
    %c1_227 = arith.constant 1 : index
    %c0_228 = arith.constant 0 : index
    %c0_229 = arith.constant 0 : index
    %379 = vector.load %arg7[%c1_227, %c0_228, %c0_229] : memref<2x64x1xf32, #tpu.memory_space<vmem>>, vector<1x64x1xf32>
    %380 = vector.shape_cast %379 : vector<1x64x1xf32> to vector<64x1xf32>
    %381 = vector.broadcast %380 : vector<64x1xf32> to vector<64x256xf32>
    %382 = arith.addf %378, %381 : vector<64x256xf32>
    %383 = vector.extract_strided_slice %382 {offsets = [0, 0], sizes = [32, 256], strides = [1, 1]} : vector<64x256xf32> to vector<32x256xf32>
    %384 = vector.extract_strided_slice %382 {offsets = [32, 0], sizes = [32, 256], strides = [1, 1]} : vector<64x256xf32> to vector<32x256xf32>
    %385 = arith.maximumf %383, %384 : vector<32x256xf32>
    %c1_230 = arith.constant 1 : index
    %c0_231 = arith.constant 0 : index
    %c0_232 = arith.constant 0 : index
    %386 = vector.load %arg8[%c1_230, %c0_231, %c0_232] : memref<2x64x32xf32, #tpu.memory_space<vmem>>, vector<1x64x32xf32>
    %387 = vector.shape_cast %386 : vector<1x64x32xf32> to vector<64x32xf32>
    %cst_233 = arith.constant dense<0.000000e+00> : vector<64x256xf32>
    %388 = tpu.matmul %387, %385, %cst_233 {dimension_numbers = #tpu.dot_dimension_numbers<[1], [0], [0], [1], [0, 0, 1, 1], [], []>} : vector<64x32xf32>, vector<32x256xf32>, vector<64x256xf32> -> vector<64x256xf32>
    %c1_234 = arith.constant 1 : index
    %c0_235 = arith.constant 0 : index
    %c0_236 = arith.constant 0 : index
    %389 = vector.load %arg9[%c1_234, %c0_235, %c0_236] : memref<2x64x1xf32, #tpu.memory_space<vmem>>, vector<1x64x1xf32>
    %390 = vector.shape_cast %389 : vector<1x64x1xf32> to vector<64x1xf32>
    %391 = vector.broadcast %390 : vector<64x1xf32> to vector<64x256xf32>
    %392 = arith.addf %388, %391 : vector<64x256xf32>
    %393 = vector.extract_strided_slice %392 {offsets = [0, 0], sizes = [32, 256], strides = [1, 1]} : vector<64x256xf32> to vector<32x256xf32>
    %394 = vector.extract_strided_slice %392 {offsets = [32, 0], sizes = [32, 256], strides = [1, 1]} : vector<64x256xf32> to vector<32x256xf32>
    %395 = arith.maximumf %393, %394 : vector<32x256xf32>
    %c1_237 = arith.constant 1 : index
    %c0_238 = arith.constant 0 : index
    %c0_239 = arith.constant 0 : index
    %396 = vector.load %arg10[%c1_237, %c0_238, %c0_239] : memref<2x8x32xf32, #tpu.memory_space<vmem>>, vector<1x8x32xf32>
    %397 = vector.shape_cast %396 : vector<1x8x32xf32> to vector<8x32xf32>
    %cst_240 = arith.constant dense<0.000000e+00> : vector<8x256xf32>
    %398 = tpu.matmul %397, %385, %cst_240 {dimension_numbers = #tpu.dot_dimension_numbers<[1], [0], [0], [1], [0, 0, 1, 1], [], []>} : vector<8x32xf32>, vector<32x256xf32>, vector<8x256xf32> -> vector<8x256xf32>
    %c1_241 = arith.constant 1 : index
    %c0_242 = arith.constant 0 : index
    %c0_243 = arith.constant 0 : index
    %399 = vector.load %arg11[%c1_241, %c0_242, %c0_243] : memref<2x8x32xf32, #tpu.memory_space<vmem>>, vector<1x8x32xf32>
    %400 = vector.shape_cast %399 : vector<1x8x32xf32> to vector<8x32xf32>
    %cst_244 = arith.constant dense<0.000000e+00> : vector<8x256xf32>
    %401 = tpu.matmul %400, %395, %cst_244 {dimension_numbers = #tpu.dot_dimension_numbers<[1], [0], [0], [1], [0, 0, 1, 1], [], []>} : vector<8x32xf32>, vector<32x256xf32>, vector<8x256xf32> -> vector<8x256xf32>
    %402 = arith.addf %398, %401 : vector<8x256xf32>
    %c1_245 = arith.constant 1 : index
    %c0_246 = arith.constant 0 : index
    %c0_247 = arith.constant 0 : index
    %403 = vector.load %arg12[%c1_245, %c0_246, %c0_247] : memref<2x8x1xf32, #tpu.memory_space<vmem>>, vector<1x8x1xf32>
    %404 = vector.shape_cast %403 : vector<1x8x1xf32> to vector<8x1xf32>
    %405 = vector.broadcast %404 : vector<8x1xf32> to vector<8x256xf32>
    %406 = arith.addf %402, %405 : vector<8x256xf32>
    %cst_248 = arith.constant dense<0xFF800000> : vector<256xf32>
    %407 = vector.multi_reduction <maximumf>, %406, %cst_248 [0] : vector<8x256xf32> to vector<256xf32>
    %408 = vector.shape_cast %407 : vector<256xf32> to vector<1x256xf32>
    %c0_249 = arith.constant 0 : index
    %c0_250 = arith.constant 0 : index
    %409 = vector.load %arg1[%c0_249, %c0_250] : memref<1x256xf32, #tpu.memory_space<vmem>>, vector<1x256xf32>
    %410 = arith.subf %408, %409 : vector<1x256xf32>
    %411 = tpu.iota {dimensions = array<i32: 1>} : vector<1x128xi32>
    %412 = arith.sitofp %411 : vector<1x128xi32> to vector<1x128xf32>
    %413 = vector.extract_strided_slice %410 {offsets = [0, 0], sizes = [1, 128], strides = [1, 1]} : vector<1x256xf32> to vector<1x128xf32>
    %cst_251 = arith.constant dense<0xFF800000> : vector<1xf32>
    %414 = vector.multi_reduction <maximumf>, %413, %cst_251 [1] : vector<1x128xf32> to vector<1xf32>
    %415 = vector.shape_cast %414 : vector<1xf32> to vector<1x1xf32>
    %416 = vector.broadcast %415 : vector<1x1xf32> to vector<1x128xf32>
    %417 = arith.cmpf oge, %413, %416 : vector<1x128xf32>
    %cst_252 = arith.constant 1.280000e+02 : f32
    %418 = vector.broadcast %cst_252 : f32 to vector<1x128xf32>
    %419 = arith.select %417, %412, %418 : vector<1x128xi1>, vector<1x128xf32>
    %cst_253 = arith.constant dense<0x7F800000> : vector<1xf32>
    %420 = vector.multi_reduction <minimumf>, %419, %cst_253 [1] : vector<1x128xf32> to vector<1xf32>
    %421 = vector.shape_cast %420 : vector<1xf32> to vector<1x1xf32>
    %422 = vector.extract_strided_slice %410 {offsets = [0, 128], sizes = [1, 128], strides = [1, 1]} : vector<1x256xf32> to vector<1x128xf32>
    %cst_254 = arith.constant dense<0xFF800000> : vector<1xf32>
    %423 = vector.multi_reduction <maximumf>, %422, %cst_254 [1] : vector<1x128xf32> to vector<1xf32>
    %424 = vector.shape_cast %423 : vector<1xf32> to vector<1x1xf32>
    %425 = vector.broadcast %424 : vector<1x1xf32> to vector<1x128xf32>
    %426 = arith.cmpf oge, %422, %425 : vector<1x128xf32>
    %cst_255 = arith.constant 1.280000e+02 : f32
    %427 = vector.broadcast %cst_255 : f32 to vector<1x128xf32>
    %428 = arith.select %426, %412, %427 : vector<1x128xi1>, vector<1x128xf32>
    %cst_256 = arith.constant dense<0x7F800000> : vector<1xf32>
    %429 = vector.multi_reduction <minimumf>, %428, %cst_256 [1] : vector<1x128xf32> to vector<1xf32>
    %430 = vector.shape_cast %429 : vector<1xf32> to vector<1x1xf32>
    %431 = tpu.concatenate %421, %430 in 1 : vector<1x1xf32>, vector<1x1xf32> -> vector<1x2xf32>
    %c1_257 = arith.constant 1 : index
    %c0_258 = arith.constant 0 : index
    %c0_259 = arith.constant 0 : index
    %432 = vector.load %arg19[%c1_257, %c0_258, %c0_259] : memref<2x1x256xf32, #tpu.memory_space<vmem>>, vector<1x1x256xf32>
    %433 = vector.shape_cast %432 : vector<1x1x256xf32> to vector<1x256xf32>
    %434 = vector.shape_cast %313 : vector<1x256xf32> to vector<1x1x256xf32>
    tpu.vector_store %arg19[%c1_257, %c0_258, %c0_259], %434 {strides = array<i32>} : memref<2x1x256xf32, #tpu.memory_space<vmem>>, vector<1x1x256xf32>,
    %c1_260 = arith.constant 1 : index
    %c0_261 = arith.constant 0 : index
    %c0_262 = arith.constant 0 : index
    %435 = vector.load %arg20[%c1_260, %c0_261, %c0_262] : memref<2x1x256xf32, #tpu.memory_space<vmem>>, vector<1x1x256xf32>
    %436 = vector.shape_cast %435 : vector<1x1x256xf32> to vector<1x256xf32>
    %437 = vector.shape_cast %410 : vector<1x256xf32> to vector<1x1x256xf32>
    tpu.vector_store %arg20[%c1_260, %c0_261, %c0_262], %437 {strides = array<i32>} : memref<2x1x256xf32, #tpu.memory_space<vmem>>, vector<1x1x256xf32>,
    %438 = arith.fptosi %352 : vector<1x2xf32> to vector<1x2xi32>
    %c0_263 = arith.constant 0 : index
    %c0_264 = arith.constant 0 : index
    %439 = vector.load %arg21[%c0_263, %c0_264] : memref<1x2xi32, #tpu.memory_space<vmem>>, vector<1x2xi32>
    tpu.vector_store %arg21[%c0_263, %c0_264], %438 {strides = array<i32>} : memref<1x2xi32, #tpu.memory_space<vmem>>, vector<1x2xi32>,
    %440 = arith.fptosi %431 : vector<1x2xf32> to vector<1x2xi32>
    %c0_265 = arith.constant 0 : index
    %c0_266 = arith.constant 0 : index
    %441 = vector.load %arg22[%c0_265, %c0_266] : memref<1x2xi32, #tpu.memory_space<vmem>>, vector<1x2xi32>
    tpu.vector_store %arg22[%c0_265, %c0_266], %440 {strides = array<i32>} : memref<1x2xi32, #tpu.memory_space<vmem>>, vector<1x2xi32>,
    return
  }
}

</mosaic_0001>

<llo_original>
// kernel: decoder_forward.1
$region0: #{decoder_forward.1}
  #allocation0 [shape = 'u32[]', space=smem, size = 0x4, offset = 0x4, fixed_abs, tag = 'smem constant byte address 0x4 - core index']
  #allocation1 [shape = 'u32[144,128]{1,0:T(1,128)}', space=vmem, size = 0x12000, scoped, tag = 'internal scratch']
  #allocation2 [shape = 'f32[2,64,256]{2,1,0:T(8,128)}', space=vmem, size = 0x20000, scoped, tag = 'scratch operand']
  %s0 = inlined_call_operand.vmem [shape: f32[64,256], index: 0, kind: input, shape index: {}]
  %s1 = inlined_call_operand.vmem [shape: f32[1,256], index: 1, kind: input, shape index: {}]
  %s2 = inlined_call_operand.vmem [shape: f32[2,32,32], index: 2, kind: input, shape index: {}]
  %s3 = inlined_call_operand.vmem [shape: f32[2,32,64], index: 3, kind: input, shape index: {}]
  %s4 = inlined_call_operand.vmem [shape: f32[2,32,64], index: 4, kind: input, shape index: {}]
  %s5 = inlined_call_operand.vmem [shape: f32[2,64,64], index: 5, kind: input, shape index: {}]
  %s6 = inlined_call_operand.vmem [shape: f32[2,64,32], index: 6, kind: input, shape index: {}]
  %s7 = inlined_call_operand.vmem [shape: f32[2,64,1], index: 7, kind: input, shape index: {}]
  %s8 = inlined_call_operand.vmem [shape: f32[2,64,32], index: 8, kind: input, shape index: {}]
  %s9 = inlined_call_operand.vmem [shape: f32[2,64,1], index: 9, kind: input, shape index: {}]
  %s10 = inlined_call_operand.vmem [shape: f32[2,8,32], index: 10, kind: input, shape index: {}]
  %s11 = inlined_call_operand.vmem [shape: f32[2,8,32], index: 11, kind: input, shape index: {}]
  %s12 = inlined_call_operand.vmem [shape: f32[2,8,1], index: 12, kind: input, shape index: {}]
  %s13 = inlined_call_operand.vmem [shape: f32[128,64], index: 13, kind: input, shape index: {}]
  %s14 = inlined_call_operand.vmem [shape: f32[128,64], index: 14, kind: input, shape index: {}]
  %s15 = inlined_call_operand.vmem [shape: f32[128,32], index: 15, kind: input, shape index: {}]
  %s16 = inlined_call_operand.vmem [shape: f32[128,1], index: 16, kind: input, shape index: {}]
  %s17 = inlined_call_operand.vmem [shape: f32[32,32], index: 17, kind: input, shape index: {}]
  %s18 = inlined_call_operand.vmem [shape: f32[32,1], index: 18, kind: input, shape index: {}]
  %s19 = inlined_call_operand.vmem [shape: f32[2,1,256], index: 19, kind: output, shape index: {0}]
  %s20 = inlined_call_operand.vmem [shape: f32[2,1,256], index: 20, kind: output, shape index: {1}]
  %s21 = inlined_call_operand.hbm [shape: s32[1,2], index: 21, kind: output, shape index: {2}]
  %s22 = inlined_call_operand.hbm [shape: s32[1,2], index: 22, kind: output, shape index: {3}]
  %23 = xla_tuple %s19, %s20, %s21, %s22
  %s24 = sld [smem:[#allocation0]]
  $region110: #{decoder_forward.1} parent=0
    _
  %s26 = ssub.s32 1, %s24
  %s27 = scalar_select 0, %s26, %s24
  $region1: #{decoder_forward.1} parent=0
    #allocation3 [shape = 'u8[512]{0}', space=vmem, size = 0x400, scoped, tag = 'output window, operand 2, single buffered']
    #allocation4 [shape = 's32[1]{0}', space=sflag, size = 0x4, scoped, tag = 'scoped memory for decoder_forward.1']
    #allocation5 [shape = 'u8[512]{0}', space=vmem, size = 0x400, scoped, tag = 'output window, operand 3, single buffered']
    #allocation6 [shape = 's32[1]{0}', space=sflag, size = 0x4, scoped, tag = 'scoped memory for decoder_forward.1']
    %28 = vsyncpa [#allocation4], 0
    %29 = vsyncpa [#allocation6], 0
    // Predicated region
    $region2: #{decoder_forward.1} parent=1 // pred_check
      _
    $region3: #{decoder_forward.1} parent=1 // pred_check_branch
      %31 = sbr.rel (0) target = $region5
    $region4: #{decoder_forward.1} parent=1 // pred_region
      _
    $region5: #{decoder_forward.1} parent=1 // pred_fallthru
      _
    // Predicated region
    $region6: #{decoder_forward.1} parent=1 // pred_check
      _
    $region7: #{decoder_forward.1} parent=1 // pred_check_branch
      %33 = sbr.rel (0) target = $region9
    $region8: #{decoder_forward.1} parent=1 // pred_region
      _
    $region9: #{decoder_forward.1} parent=1 // pred_fallthru
      _
    // Predicated region
    $region10: #{decoder_forward.1} parent=1 // pred_check
      _
    $region11: #{decoder_forward.1} parent=1 // pred_check_branch
      %35 = sbr.rel (0) target = $region13
    $region12: #{decoder_forward.1} parent=1 // pred_region
      _
    $region13: #{decoder_forward.1} parent=1 // pred_fallthru
      _
    // Predicated region
    $region14: #{decoder_forward.1} parent=1 // pred_check
      _
    $region15: #{decoder_forward.1} parent=1 // pred_check_branch
      %37 = sbr.rel (0) target = $region17
    $region16: #{decoder_forward.1} parent=1 // pred_region
      _
    $region17: #{decoder_forward.1} parent=1 // pred_fallthru
      _
    // Predicated region
    $region18: #{decoder_forward.1} parent=1 // pred_check
      _
    $region19: #{decoder_forward.1} parent=1 // pred_check_branch
      %39 = sbr.rel (0) target = $region21
    $region20: #{decoder_forward.1} parent=1 // pred_region
      _
    $region21: #{decoder_forward.1} parent=1 // pred_fallthru
      _
    // Predicated region
    $region22: #{decoder_forward.1} parent=1 // pred_check
      _
    $region23: #{decoder_forward.1} parent=1 // pred_check_branch
      %41 = sbr.rel (0) target = $region25
    $region24: #{decoder_forward.1} parent=1 // pred_region
      _
    $region25: #{decoder_forward.1} parent=1 // pred_fallthru
      _
    // Predicated region
    $region26: #{decoder_forward.1} parent=1 // pred_check
      _
    $region27: #{decoder_forward.1} parent=1 // pred_check_branch
      %43 = sbr.rel (0) target = $region29
    $region28: #{decoder_forward.1} parent=1 // pred_region
      _
    $region29: #{decoder_forward.1} parent=1 // pred_fallthru
      _
    // Predicated region
    $region30: #{decoder_forward.1} parent=1 // pred_check
      _
    $region31: #{decoder_forward.1} parent=1 // pred_check_branch
      %45 = sbr.rel (0) target = $region33
    $region32: #{decoder_forward.1} parent=1 // pred_region
      _
    $region33: #{decoder_forward.1} parent=1 // pred_fallthru
      _
    // Predicated region
    $region34: #{decoder_forward.1} parent=1 // pred_check
      _
    $region35: #{decoder_forward.1} parent=1 // pred_check_branch
      %47 = sbr.rel (0) target = $region37
    $region36: #{decoder_forward.1} parent=1 // pred_region
      _
    $region37: #{decoder_forward.1} parent=1 // pred_fallthru
      _
    // Predicated region
    $region38: #{decoder_forward.1} parent=1 // pred_check
      _
    $region39: #{decoder_forward.1} parent=1 // pred_check_branch
      %49 = sbr.rel (0) target = $region41
    $region40: #{decoder_forward.1} parent=1 // pred_region
      _
    $region41: #{decoder_forward.1} parent=1 // pred_fallthru
      _
    // Predicated region
    $region42: #{decoder_forward.1} parent=1 // pred_check
      _
    $region43: #{decoder_forward.1} parent=1 // pred_check_branch
      %51 = sbr.rel (0) target = $region45
    $region44: #{decoder_forward.1} parent=1 // pred_region
      _
    $region45: #{decoder_forward.1} parent=1 // pred_fallthru
      _
    // Predicated region
    $region46: #{decoder_forward.1} parent=1 // pred_check
      _
    $region47: #{decoder_forward.1} parent=1 // pred_check_branch
      %53 = sbr.rel (0) target = $region49
    $region48: #{decoder_forward.1} parent=1 // pred_region
      _
    $region49: #{decoder_forward.1} parent=1 // pred_fallthru
      _
    // Predicated region
    $region50: #{decoder_forward.1} parent=1 // pred_check
      _
    $region51: #{decoder_forward.1} parent=1 // pred_check_branch
      %55 = sbr.rel (0) target = $region53
    $region52: #{decoder_forward.1} parent=1 // pred_region
      _
    $region53: #{decoder_forward.1} parent=1 // pred_fallthru
      _
    // Predicated region
    $region54: #{decoder_forward.1} parent=1 // pred_check
      _
    $region55: #{decoder_forward.1} parent=1 // pred_check_branch
      %57 = sbr.rel (0) target = $region57
    $region56: #{decoder_forward.1} parent=1 // pred_region
      _
    $region57: #{decoder_forward.1} parent=1 // pred_fallthru
      _
    // Predicated region
    $region58: #{decoder_forward.1} parent=1 // pred_check
      _
    $region59: #{decoder_forward.1} parent=1 // pred_check_branch
      %59 = sbr.rel (0) target = $region61
    $region60: #{decoder_forward.1} parent=1 // pred_region
      _
    $region61: #{decoder_forward.1} parent=1 // pred_fallthru
      _
    // Predicated region
    $region62: #{decoder_forward.1} parent=1 // pred_check
      _
    $region63: #{decoder_forward.1} parent=1 // pred_check_branch
      %61 = sbr.rel (0) target = $region65
    $region64: #{decoder_forward.1} parent=1 // pred_region
      _
    $region65: #{decoder_forward.1} parent=1 // pred_fallthru
      _
    // Predicated region
    $region66: #{decoder_forward.1} parent=1 // pred_check
      _
    $region67: #{decoder_forward.1} parent=1 // pred_check_branch
      %63 = sbr.rel (0) target = $region69
    $region68: #{decoder_forward.1} parent=1 // pred_region
      _
    $region69: #{decoder_forward.1} parent=1 // pred_fallthru
      _
    // Predicated region
    $region70: #{decoder_forward.1} parent=1 // pred_check
      _
    $region71: #{decoder_forward.1} parent=1 // pred_check_branch
      %65 = sbr.rel (0) target = $region73
    $region72: #{decoder_forward.1} parent=1 // pred_region
      _
    $region73: #{decoder_forward.1} parent=1 // pred_fallthru
      _
    // Predicated region
    $region74: #{decoder_forward.1} parent=1 // pred_check
      _
    $region75: #{decoder_forward.1} parent=1 // pred_check_branch
      %67 = sbr.rel (0) target = $region77
    $region76: #{decoder_forward.1} parent=1 // pred_region
      _
    $region77: #{decoder_forward.1} parent=1 // pred_fallthru
      _
    %v68 = vld [vmem:[%s0] sm:$0xff]
    %v69 = vld [vmem:[%s0 + $0x8] sm:$0xff]
    %v70 = vld [vmem:[%s0 + $0x10] sm:$0xff]
    %v71 = vld [vmem:[%s0 + $0x18] sm:$0xff]
    %v72 = vld [vmem:[%s0 + $0x20] sm:$0xff]
    %v73 = vld [vmem:[%s0 + $0x28] sm:$0xff]
    %v74 = vld [vmem:[%s0 + $0x30] sm:$0xff]
    %v75 = vld [vmem:[%s0 + $0x38] sm:$0xff]
    %v76 = vld [vmem:[%s0 + $0x40] sm:$0xff]
    %v77 = vld [vmem:[%s0 + $0x48] sm:$0xff]
    %v78 = vld [vmem:[%s0 + $0x50] sm:$0xff]
    %v79 = vld [vmem:[%s0 + $0x58] sm:$0xff]
    %v80 = vld [vmem:[%s0 + $0x60] sm:$0xff]
    %v81 = vld [vmem:[%s0 + $0x68] sm:$0xff]
    %v82 = vld [vmem:[%s0 + $0x70] sm:$0xff]
    %v83 = vld [vmem:[%s0 + $0x78] sm:$0xff]
    %v84 = vld [vmem:[%s5] sm:$0xff]
    %v85 = vld [vmem:[%s5 + $0x8] sm:$0xff]
    %v86 = vld [vmem:[%s5 + $0x10] sm:$0xff]
    %v87 = vld [vmem:[%s5 + $0x18] sm:$0xff]
    %v88 = vld [vmem:[%s5 + $0x20] sm:$0xff]
    %v89 = vld [vmem:[%s5 + $0x28] sm:$0xff]
    %v90 = vld [vmem:[%s5 + $0x30] sm:$0xff]
    %v91 = vld [vmem:[%s5 + $0x38] sm:$0xff]
    %vm92 = vcmask 523264
    %v94 = vsel %vm92, %v84, 0
    %v97 = vsel %vm92, %v85, 0
    %v100 = vsel %vm92, %v86, 0
    %v103 = vsel %vm92, %v87, 0
    %v106 = vsel %vm92, %v88, 0
    %v109 = vsel %vm92, %v89, 0
    %v112 = vsel %vm92, %v90, 0
    %v115 = vsel %vm92, %v91, 0
    %117 = vmatprep.subr.mxu0 0.0
    %118 = vmatpush1.msra.mxu0 0.0
    %119 = vmatprep.subr.mxu0 0.0
    %120 = vmatpush1.msra.mxu0 0.0
    %121 = vmatprep.subr.mxu0 0.0
    %122 = vmatpush1.msra.mxu0 0.0
    %123 = vmatprep.subr.mxu0 0.0
    %124 = vmatpush1.msra.mxu0 0.0
    %125 = vmatprep.subr.mxu0 0.0
    %126 = vmatpush1.msra.mxu0 0.0
    %127 = vmatprep.subr.mxu0 0.0
    %128 = vmatpush1.msra.mxu0 0.0
    %129 = vmatprep.subr.mxu0 0.0
    %130 = vmatpush1.msra.mxu0 0.0
    %131 = vmatprep.subr.mxu0 0.0
    %132 = vmatpush1.msra.mxu0 0.0
    %133 = vmatprep.subr.mxu0 %v83
    %134 = vmatpush1.msra.mxu0 %v82
    %135 = vmatprep.subr.mxu0 %v81
    %136 = vmatpush1.msra.mxu0 %v80
    %137 = vmatprep.subr.mxu0 %v79
    %138 = vmatpush1.msra.mxu0 %v78
    %139 = vmatprep.subr.mxu0 %v77
    %140 = vmatpush1.msra.mxu0 %v76
    %141 = vmatprep.subr.mxu0 %v75
    %142 = vmatpush1.msra.mxu0 %v74
    %143 = vmatprep.subr.mxu0 %v73
    %144 = vmatpush1.msra.mxu0 %v72
    %145 = vmatprep.subr.mxu0 %v71
    %146 = vmatpush1.msra.mxu0 %v70
    %147 = vmatprep.subr.mxu0 %v69
    %148 = vmatpush1.msra.mxu0 %v68
    %149 = vmatprep.subr.mxu0 0.0
    %150 = vmatpush2.msra.mxu0 0.0
    %151 = vmatprep.subr.mxu0 0.0
    %152 = vmatpush2.msra.mxu0 0.0
    %153 = vmatprep.subr.mxu0 0.0
    %154 = vmatpush2.msra.mxu0 0.0
    %155 = vmatprep.subr.mxu0 0.0
    %156 = vmatpush2.msra.mxu0 0.0
    %157 = vmatprep.subr.mxu0 0.0
    %158 = vmatpush2.msra.mxu0 0.0
    %159 = vmatprep.subr.mxu0 0.0
    %160 = vmatpush2.msra.mxu0 0.0
    %161 = vmatprep.subr.mxu0 0.0
    %162 = vmatpush2.msra.mxu0 0.0
    %163 = vmatprep.subr.mxu0 0.0
    %164 = vmatpush2.msra.mxu0 0.0
    %165 = vmatprep.subr.mxu0 0.0
    %166 = vmatpush2.msra.mxu0 0.0
    %167 = vmatprep.subr.mxu0 0.0
    %168 = vmatpush2.msra.mxu0 0.0
    %169 = vmatprep.subr.mxu0 0.0
    %170 = vmatpush2.msra.mxu0 0.0
    %171 = vmatprep.subr.mxu0 0.0
    %172 = vmatpush2.msra.mxu0 0.0
    %173 = vmatprep.subr.mxu0 0.0
    %174 = vmatpush2.msra.mxu0 0.0
    %175 = vmatprep.subr.mxu0 0.0
    %176 = vmatpush2.msra.mxu0 0.0
    %177 = vmatprep.subr.mxu0 0.0
    %178 = vmatpush2.msra.mxu0 0.0
    %179 = vmatprep.subr.mxu0 0.0
    %180 = vmatpush2.msra.mxu0 0.0
    %181 = vmatprep.mubr.f32.mxu0 0.0
    %182 = vmatmul.mubr.f32.gmra.mxu0 %v94
    %v183 = vpop.f32.mrf.mxu0
    %v184 = vadd.f32 0.0, %v183
    %v185 = vpop.f32.mrf.mxu0
    %v186 = vadd.f32 0.0, %v185
    %187 = vmatprep.mubr.f32.mxu0 0.0
    %188 = vmatmul.mubr.f32.gmra.mxu0 %v97
    %v189 = vpop.f32.mrf.mxu0
    %v190 = vadd.f32 0.0, %v189
    %v191 = vpop.f32.mrf.mxu0
    %v192 = vadd.f32 0.0, %v191
    %193 = vmatprep.mubr.f32.mxu0 0.0
    %194 = vmatmul.mubr.f32.gmra.mxu0 %v100
    %v195 = vpop.f32.mrf.mxu0
    %v196 = vadd.f32 0.0, %v195
    %v197 = vpop.f32.mrf.mxu0
    %v198 = vadd.f32 0.0, %v197
    %199 = vmatprep.mubr.f32.mxu0 0.0
    %200 = vmatmul.mubr.f32.gmra.mxu0 %v103
    %v201 = vpop.f32.mrf.mxu0
    %v202 = vadd.f32 0.0, %v201
    %v203 = vpop.f32.mrf.mxu0
    %v204 = vadd.f32 0.0, %v203
    %205 = vmatprep.mubr.f32.mxu0 0.0
    %206 = vmatmul.mubr.f32.gmra.mxu0 %v106
    %v207 = vpop.f32.mrf.mxu0
    %v208 = vadd.f32 0.0, %v207
    %v209 = vpop.f32.mrf.mxu0
    %v210 = vadd.f32 0.0, %v209
    %211 = vmatprep.mubr.f32.mxu0 0.0
    %212 = vmatmul.mubr.f32.gmra.mxu0 %v109
    %v213 = vpop.f32.mrf.mxu0
    %v214 = vadd.f32 0.0, %v213
    %v215 = vpop.f32.mrf.mxu0
    %v216 = vadd.f32 0.0, %v215
    %217 = vmatprep.mubr.f32.mxu0 0.0
    %218 = vmatmul.mubr.f32.gmra.mxu0 %v112
    %v219 = vpop.f32.mrf.mxu0
    %v220 = vadd.f32 0.0, %v219
    %v221 = vpop.f32.mrf.mxu0
    %v222 = vadd.f32 0.0, %v221
    %223 = vmatprep.mubr.f32.mxu0 0.0
    %224 = vmatmul.mubr.f32.gmra.mxu0 %v115
    %v225 = vpop.f32.mrf.mxu0
    %v226 = vadd.f32 0.0, %v225
    %v227 = vpop.f32.mrf.mxu0
    %v228 = vadd.f32 0.0, %v227
    %229 = vdwg.mxu0
    %230 = vst [vmem:[#allocation2] sm:$0xff] %v184
    %231 = vst [vmem:[#allocation2 + $0x8] sm:$0xff] %v186
    %232 = vst [vmem:[#allocation2 + $0x10] sm:$0xff] %v190
    %233 = vst [vmem:[#allocation2 + $0x18] sm:$0xff] %v192
    %234 = vst [vmem:[#allocation2 + $0x20] sm:$0xff] %v196
    %235 = vst [vmem:[#allocation2 + $0x28] sm:$0xff] %v198
    %236 = vst [vmem:[#allocation2 + $0x30] sm:$0xff] %v202
    %237 = vst [vmem:[#allocation2 + $0x38] sm:$0xff] %v204
    %238 = vst [vmem:[#allocation2 + $0x40] sm:$0xff] %v208
    %239 = vst [vmem:[#allocation2 + $0x48] sm:$0xff] %v210
    %240 = vst [vmem:[#allocation2 + $0x50] sm:$0xff] %v214
    %241 = vst [vmem:[#allocation2 + $0x58] sm:$0xff] %v216
    %242 = vst [vmem:[#allocation2 + $0x60] sm:$0xff] %v220
    %243 = vst [vmem:[#allocation2 + $0x68] sm:$0xff] %v222
    %244 = vst [vmem:[#allocation2 + $0x70] sm:$0xff] %v226
    %245 = vst [vmem:[#allocation2 + $0x78] sm:$0xff] %v228
    %s246 = scalar_lea.vmem %s5, 64
    %v247 = vld [vmem:[%s246] sm:$0xff]
    %v248 = vld [vmem:[%s246 + $0x8] sm:$0xff]
    %v249 = vld [vmem:[%s246 + $0x10] sm:$0xff]
    %v250 = vld [vmem:[%s246 + $0x18] sm:$0xff]
    %v251 = vld [vmem:[%s246 + $0x20] sm:$0xff]
    %v252 = vld [vmem:[%s246 + $0x28] sm:$0xff]
    %v253 = vld [vmem:[%s246 + $0x30] sm:$0xff]
    %v254 = vld [vmem:[%s246 + $0x38] sm:$0xff]
    %v256 = vsel %vm92, %v247, 0
    %v259 = vsel %vm92, %v248, 0
    %v262 = vsel %vm92, %v249, 0
    %v265 = vsel %vm92, %v250, 0
    %v268 = vsel %vm92, %v251, 0
    %v271 = vsel %vm92, %v252, 0
    %v274 = vsel %vm92, %v253, 0
    %v277 = vsel %vm92, %v254, 0
    %279 = vmatprep.subr.mxu0 0.0
    %280 = vmatpush1.msra.mxu0 0.0
    %281 = vmatprep.subr.mxu0 0.0
    %282 = vmatpush1.msra.mxu0 0.0
    %283 = vmatprep.subr.mxu0 0.0
    %284 = vmatpush1.msra.mxu0 0.0
    %285 = vmatprep.subr.mxu0 0.0
    %286 = vmatpush1.msra.mxu0 0.0
    %287 = vmatprep.subr.mxu0 0.0
    %288 = vmatpush1.msra.mxu0 0.0
    %289 = vmatprep.subr.mxu0 0.0
    %290 = vmatpush1.msra.mxu0 0.0
    %291 = vmatprep.subr.mxu0 0.0
    %292 = vmatpush1.msra.mxu0 0.0
    %293 = vmatprep.subr.mxu0 0.0
    %294 = vmatpush1.msra.mxu0 0.0
    %295 = vmatprep.subr.mxu0 %v83
    %296 = vmatpush1.msra.mxu0 %v82
    %297 = vmatprep.subr.mxu0 %v81
    %298 = vmatpush1.msra.mxu0 %v80
    %299 = vmatprep.subr.mxu0 %v79
    %300 = vmatpush1.msra.mxu0 %v78
    %301 = vmatprep.subr.mxu0 %v77
    %302 = vmatpush1.msra.mxu0 %v76
    %303 = vmatprep.subr.mxu0 %v75
    %304 = vmatpush1.msra.mxu0 %v74
    %305 = vmatprep.subr.mxu0 %v73
    %306 = vmatpush1.msra.mxu0 %v72
    %307 = vmatprep.subr.mxu0 %v71
    %308 = vmatpush1.msra.mxu0 %v70
    %309 = vmatprep.subr.mxu0 %v69
    %310 = vmatpush1.msra.mxu0 %v68
    %311 = vmatprep.subr.mxu0 0.0
    %312 = vmatpush2.msra.mxu0 0.0
    %313 = vmatprep.subr.mxu0 0.0
    %314 = vmatpush2.msra.mxu0 0.0
    %315 = vmatprep.subr.mxu0 0.0
    %316 = vmatpush2.msra.mxu0 0.0
    %317 = vmatprep.subr.mxu0 0.0
    %318 = vmatpush2.msra.mxu0 0.0
    %319 = vmatprep.subr.mxu0 0.0
    %320 = vmatpush2.msra.mxu0 0.0
    %321 = vmatprep.subr.mxu0 0.0
    %322 = vmatpush2.msra.mxu0 0.0
    %323 = vmatprep.subr.mxu0 0.0
    %324 = vmatpush2.msra.mxu0 0.0
    %325 = vmatprep.subr.mxu0 0.0
    %326 = vmatpush2.msra.mxu0 0.0
    %327 = vmatprep.subr.mxu0 0.0
    %328 = vmatpush2.msra.mxu0 0.0
    %329 = vmatprep.subr.mxu0 0.0
    %330 = vmatpush2.msra.mxu0 0.0
    %331 = vmatprep.subr.mxu0 0.0
    %332 = vmatpush2.msra.mxu0 0.0
    %333 = vmatprep.subr.mxu0 0.0
    %334 = vmatpush2.msra.mxu0 0.0
    %335 = vmatprep.subr.mxu0 0.0
    %336 = vmatpush2.msra.mxu0 0.0
    %337 = vmatprep.subr.mxu0 0.0
    %338 = vmatpush2.msra.mxu0 0.0
    %339 = vmatprep.subr.mxu0 0.0
    %340 = vmatpush2.msra.mxu0 0.0
    %341 = vmatprep.subr.mxu0 0.0
    %342 = vmatpush2.msra.mxu0 0.0
    %343 = vmatprep.mubr.f32.mxu0 0.0
    %344 = vmatmul.mubr.f32.gmra.mxu0 %v256
    %v345 = vpop.f32.mrf.mxu0
    %v346 = vadd.f32 0.0, %v345
    %v347 = vpop.f32.mrf.mxu0
    %v348 = vadd.f32 0.0, %v347
    %349 = vmatprep.mubr.f32.mxu0 0.0
    %350 = vmatmul.mubr.f32.gmra.mxu0 %v259
    %v351 = vpop.f32.mrf.mxu0
    %v352 = vadd.f32 0.0, %v351
    %v353 = vpop.f32.mrf.mxu0
    %v354 = vadd.f32 0.0, %v353
    %355 = vmatprep.mubr.f32.mxu0 0.0
    %356 = vmatmul.mubr.f32.gmra.mxu0 %v262
    %v357 = vpop.f32.mrf.mxu0
    %v358 = vadd.f32 0.0, %v357
    %v359 = vpop.f32.mrf.mxu0
    %v360 = vadd.f32 0.0, %v359
    %361 = vmatprep.mubr.f32.mxu0 0.0
    %362 = vmatmul.mubr.f32.gmra.mxu0 %v265
    %v363 = vpop.f32.mrf.mxu0
    %v364 = vadd.f32 0.0, %v363
    %v365 = vpop.f32.mrf.mxu0
    %v366 = vadd.f32 0.0, %v365
    %367 = vmatprep.mubr.f32.mxu0 0.0
    %368 = vmatmul.mubr.f32.gmra.mxu0 %v268
    %v369 = vpop.f32.mrf.mxu0
    %v370 = vadd.f32 0.0, %v369
    %v371 = vpop.f32.mrf.mxu0
    %v372 = vadd.f32 0.0, %v371
    %373 = vmatprep.mubr.f32.mxu0 0.0
    %374 = vmatmul.mubr.f32.gmra.mxu0 %v271
    %v375 = vpop.f32.mrf.mxu0
    %v376 = vadd.f32 0.0, %v375
    %v377 = vpop.f32.mrf.mxu0
    %v378 = vadd.f32 0.0, %v377
    %379 = vmatprep.mubr.f32.mxu0 0.0
    %380 = vmatmul.mubr.f32.gmra.mxu0 %v274
    %v381 = vpop.f32.mrf.mxu0
    %v382 = vadd.f32 0.0, %v381
    %v383 = vpop.f32.mrf.mxu0
    %v384 = vadd.f32 0.0, %v383
    %385 = vmatprep.mubr.f32.mxu0 0.0
    %386 = vmatmul.mubr.f32.gmra.mxu0 %v277
    %v387 = vpop.f32.mrf.mxu0
    %v388 = vadd.f32 0.0, %v387
    %v389 = vpop.f32.mrf.mxu0
    %v390 = vadd.f32 0.0, %v389
    %391 = vdwg.mxu0
    %s392 = scalar_lea.vmem [#allocation2], 128
    %393 = vst [vmem:[%s392] sm:$0xff] %v346
    %394 = vst [vmem:[%s392 + $0x8] sm:$0xff] %v348
    %395 = vst [vmem:[%s392 + $0x10] sm:$0xff] %v352
    %396 = vst [vmem:[%s392 + $0x18] sm:$0xff] %v354
    %397 = vst [vmem:[%s392 + $0x20] sm:$0xff] %v358
    %398 = vst [vmem:[%s392 + $0x28] sm:$0xff] %v360
    %399 = vst [vmem:[%s392 + $0x30] sm:$0xff] %v364
    %400 = vst [vmem:[%s392 + $0x38] sm:$0xff] %v366
    %401 = vst [vmem:[%s392 + $0x40] sm:$0xff] %v370
    %402 = vst [vmem:[%s392 + $0x48] sm:$0xff] %v372
    %403 = vst [vmem:[%s392 + $0x50] sm:$0xff] %v376
    %404 = vst [vmem:[%s392 + $0x58] sm:$0xff] %v378
    %405 = vst [vmem:[%s392 + $0x60] sm:$0xff] %v382
    %406 = vst [vmem:[%s392 + $0x68] sm:$0xff] %v384
    %407 = vst [vmem:[%s392 + $0x70] sm:$0xff] %v388
    %408 = vst [vmem:[%s392 + $0x78] sm:$0xff] %v390
    %v409 = vld [vmem:[%s0] sm:$0xff]
    %v410 = vld [vmem:[%s0 + $0x10] sm:$0xff]
    %v411 = vld [vmem:[%s0 + $0x20] sm:$0xff]
    %v412 = vld [vmem:[%s0 + $0x30] sm:$0xff]
    %v413 = vld [vmem:[%s0 + $0x40] sm:$0xff]
    %v414 = vld [vmem:[%s0 + $0x50] sm:$0xff]
    %v415 = vld [vmem:[%s0 + $0x60] sm:$0xff]
    %v416 = vld [vmem:[%s0 + $0x70] sm:$0xff]
    %v417 = vld [vmem:[%s0 + $0x8] sm:$0xff]
    %v418 = vld [vmem:[%s0 + $0x18] sm:$0xff]
    %v419 = vld [vmem:[%s0 + $0x28] sm:$0xff]
    %v420 = vld [vmem:[%s0 + $0x38] sm:$0xff]
    %v421 = vld [vmem:[%s0 + $0x48] sm:$0xff]
    %v422 = vld [vmem:[%s0 + $0x58] sm:$0xff]
    %v423 = vld [vmem:[%s0 + $0x68] sm:$0xff]
    %v424 = vld [vmem:[%s0 + $0x78] sm:$0xff]
    %433 = vrot.lane.b32.xlu0 %v417, 1
    %v434 = vpop.permute.xlu0 %433
    %435 = vrot.lane.b32.xlu0 %v418, 1
    %v436 = vpop.permute.xlu0 %435
    %437 = vrot.lane.b32.xlu0 %v419, 1
    %v438 = vpop.permute.xlu0 %437
    %439 = vrot.lane.b32.xlu0 %v420, 1
    %v440 = vpop.permute.xlu0 %439
    %441 = vrot.lane.b32.xlu0 %v421, 1
    %v442 = vpop.permute.xlu0 %441
    %443 = vrot.lane.b32.xlu0 %v422, 1
    %v444 = vpop.permute.xlu0 %443
    %445 = vrot.lane.b32.xlu0 %v423, 1
    %v446 = vpop.permute.xlu0 %445
    %447 = vrot.lane.b32.xlu0 %v424, 1
    %v448 = vpop.permute.xlu0 %447
    %vm457 = vcmask 7168
    %v458 = vsel %vm457, %v409, %v434
    %v459 = vsel %vm457, %v410, %v436
    %v460 = vsel %vm457, %v411, %v438
    %v461 = vsel %vm457, %v412, %v440
    %v462 = vsel %vm457, %v413, %v442
    %v463 = vsel %vm457, %v414, %v444
    %v464 = vsel %vm457, %v415, %v446
    %v465 = vsel %vm457, %v416, %v448
    %v466 = vld [vmem:[%s2] sm:$0xff]
    %v467 = vld [vmem:[%s2 + $0x8] sm:$0xff]
    %v468 = vld [vmem:[%s2 + $0x10] sm:$0xff]
    %v469 = vld [vmem:[%s2 + $0x18] sm:$0xff]
    %v470 = vld [vmem:[%s3] sm:$0xff]
    %v471 = vld [vmem:[%s3 + $0x8] sm:$0xff]
    %v472 = vld [vmem:[%s3 + $0x10] sm:$0xff]
    %v473 = vld [vmem:[%s3 + $0x18] sm:$0xff]
    %v475 = vsel %vm92, %v470, 0
    %v478 = vsel %vm92, %v471, 0
    %v481 = vsel %vm92, %v472, 0
    %v484 = vsel %vm92, %v473, 0
    %486 = vmatprep.subr.mxu0 0.0
    %487 = vmatpush1.msra.mxu0 0.0
    %488 = vmatprep.subr.mxu0 0.0
    %489 = vmatpush1.msra.mxu0 0.0
    %490 = vmatprep.subr.mxu0 0.0
    %491 = vmatpush1.msra.mxu0 0.0
    %492 = vmatprep.subr.mxu0 0.0
    %493 = vmatpush1.msra.mxu0 0.0
    %494 = vmatprep.subr.mxu0 0.0
    %495 = vmatpush1.msra.mxu0 0.0
    %496 = vmatprep.subr.mxu0 0.0
    %497 = vmatpush1.msra.mxu0 0.0
    %498 = vmatprep.subr.mxu0 0.0
    %499 = vmatpush1.msra.mxu0 0.0
    %500 = vmatprep.subr.mxu0 0.0
    %501 = vmatpush1.msra.mxu0 0.0
    %502 = vmatprep.subr.mxu0 0.0
    %503 = vmatpush1.msra.mxu0 %v465
    %504 = vmatprep.subr.mxu0 0.0
    %505 = vmatpush1.msra.mxu0 %v464
    %506 = vmatprep.subr.mxu0 0.0
    %507 = vmatpush1.msra.mxu0 %v463
    %508 = vmatprep.subr.mxu0 0.0
    %509 = vmatpush1.msra.mxu0 %v462
    %510 = vmatprep.subr.mxu0 0.0
    %511 = vmatpush1.msra.mxu0 %v461
    %512 = vmatprep.subr.mxu0 0.0
    %513 = vmatpush1.msra.mxu0 %v460
    %514 = vmatprep.subr.mxu0 0.0
    %515 = vmatpush1.msra.mxu0 %v459
    %516 = vmatprep.subr.mxu0 0.0
    %517 = vmatpush1.msra.mxu0 %v458
    %518 = vmatprep.subr.mxu0 0.0
    %519 = vmatpush2.msra.mxu0 0.0
    %520 = vmatprep.subr.mxu0 0.0
    %521 = vmatpush2.msra.mxu0 0.0
    %522 = vmatprep.subr.mxu0 0.0
    %523 = vmatpush2.msra.mxu0 0.0
    %524 = vmatprep.subr.mxu0 0.0
    %525 = vmatpush2.msra.mxu0 0.0
    %526 = vmatprep.subr.mxu0 0.0
    %527 = vmatpush2.msra.mxu0 0.0
    %528 = vmatprep.subr.mxu0 0.0
    %529 = vmatpush2.msra.mxu0 0.0
    %530 = vmatprep.subr.mxu0 0.0
    %531 = vmatpush2.msra.mxu0 0.0
    %532 = vmatprep.subr.mxu0 0.0
    %533 = vmatpush2.msra.mxu0 0.0
    %534 = vmatprep.subr.mxu0 0.0
    %535 = vmatpush2.msra.mxu0 0.0
    %536 = vmatprep.subr.mxu0 0.0
    %537 = vmatpush2.msra.mxu0 0.0
    %538 = vmatprep.subr.mxu0 0.0
    %539 = vmatpush2.msra.mxu0 0.0
    %540 = vmatprep.subr.mxu0 0.0
    %541 = vmatpush2.msra.mxu0 0.0
    %542 = vmatprep.subr.mxu0 0.0
    %543 = vmatpush2.msra.mxu0 0.0
    %544 = vmatprep.subr.mxu0 0.0
    %545 = vmatpush2.msra.mxu0 0.0
    %546 = vmatprep.subr.mxu0 0.0
    %547 = vmatpush2.msra.mxu0 0.0
    %548 = vmatprep.subr.mxu0 0.0
    %549 = vmatpush2.msra.mxu0 0.0
    %550 = vmatprep.mubr.f32.mxu0 0.0
    %551 = vmatmul.mubr.f32.gmra.mxu0 %v475
    %v552 = vpop.f32.mrf.mxu0
    %v553 = vadd.f32 0.0, %v552
    %v554 = vpop.f32.mrf.mxu0
    %555 = vmatprep.mubr.f32.mxu0 0.0
    %556 = vmatmul.mubr.f32.gmra.mxu0 %v478
    %v557 = vpop.f32.mrf.mxu0
    %v558 = vadd.f32 0.0, %v557
    %v559 = vpop.f32.mrf.mxu0
    %560 = vmatprep.mubr.f32.mxu0 0.0
    %561 = vmatmul.mubr.f32.gmra.mxu0 %v481
    %v562 = vpop.f32.mrf.mxu0
    %v563 = vadd.f32 0.0, %v562
    %v564 = vpop.f32.mrf.mxu0
    %565 = vmatprep.mubr.f32.mxu0 0.0
    %566 = vmatmul.mubr.f32.gmra.mxu0 %v484
    %v567 = vpop.f32.mrf.mxu0
    %v568 = vadd.f32 0.0, %v567
    %v569 = vpop.f32.mrf.mxu0
    %570 = vdwg.mxu0
    %vm571 = vcmask 261120
    %v573 = vsel %vm571, %v466, 0
    %v576 = vsel %vm571, %v467, 0
    %v579 = vsel %vm571, %v468, 0
    %v582 = vsel %vm571, %v469, 0
    %584 = vmatprep.subr.mxu0 0.0
    %585 = vmatpush1.msra.mxu0 0.0
    %586 = vmatprep.subr.mxu0 0.0
    %587 = vmatpush1.msra.mxu0 0.0
    %588 = vmatprep.subr.mxu0 0.0
    %589 = vmatpush1.msra.mxu0 0.0
    %590 = vmatprep.subr.mxu0 0.0
    %591 = vmatpush1.msra.mxu0 0.0
    %592 = vmatprep.subr.mxu0 0.0
    %593 = vmatpush1.msra.mxu0 0.0
    %594 = vmatprep.subr.mxu0 0.0
    %595 = vmatpush1.msra.mxu0 0.0
    %596 = vmatprep.subr.mxu0 0.0
    %597 = vmatpush1.msra.mxu0 0.0
    %598 = vmatprep.subr.mxu0 0.0
    %599 = vmatpush1.msra.mxu0 0.0
    %600 = vmatprep.subr.mxu0 0.0
    %601 = vmatpush1.msra.mxu0 0.0
    %602 = vmatprep.subr.mxu0 0.0
    %603 = vmatpush1.msra.mxu0 0.0
    %604 = vmatprep.subr.mxu0 0.0
    %605 = vmatpush1.msra.mxu0 0.0
    %606 = vmatprep.subr.mxu0 0.0
    %607 = vmatpush1.msra.mxu0 0.0
    %608 = vmatprep.subr.mxu0 0.0
    %609 = vmatpush1.msra.mxu0 0.0
    %610 = vmatprep.subr.mxu0 0.0
    %611 = vmatpush1.msra.mxu0 0.0
    %612 = vmatprep.subr.mxu0 0.0
    %613 = vmatpush1.msra.mxu0 0.0
    %614 = vmatprep.subr.mxu0 0.0
    %615 = vmatpush1.msra.mxu0 0.0
    %616 = vmatprep.subr.mxu0 0.0
    %617 = vmatpush2.msra.mxu0 0.0
    %618 = vmatprep.subr.mxu0 0.0
    %619 = vmatpush2.msra.mxu0 0.0
    %620 = vmatprep.subr.mxu0 0.0
    %621 = vmatpush2.msra.mxu0 0.0
    %622 = vmatprep.subr.mxu0 0.0
    %623 = vmatpush2.msra.mxu0 0.0
    %624 = vmatprep.subr.mxu0 0.0
    %625 = vmatpush2.msra.mxu0 0.0
    %626 = vmatprep.subr.mxu0 0.0
    %627 = vmatpush2.msra.mxu0 0.0
    %628 = vmatprep.subr.mxu0 0.0
    %629 = vmatpush2.msra.mxu0 0.0
    %630 = vmatprep.subr.mxu0 0.0
    %631 = vmatpush2.msra.mxu0 0.0
    %632 = vmatprep.subr.mxu0 0.0
    %633 = vmatpush2.msra.mxu0 0.0
    %634 = vmatprep.subr.mxu0 0.0
    %635 = vmatpush2.msra.mxu0 0.0
    %636 = vmatprep.subr.mxu0 0.0
    %637 = vmatpush2.msra.mxu0 0.0
    %638 = vmatprep.subr.mxu0 0.0
    %639 = vmatpush2.msra.mxu0 0.0
    %640 = vmatprep.subr.mxu0 0.0
    %641 = vmatpush2.msra.mxu0 0.0
    %642 = vmatprep.subr.mxu0 0.0
    %643 = vmatpush2.msra.mxu0 0.0
    %644 = vmatprep.subr.mxu0 0.0
    %645 = vmatpush2.msra.mxu0 0.0
    %646 = vmatprep.subr.mxu0 0.0
    %647 = vmatpush2.msra.mxu0 0.0
    %648 = vmatprep.mubr.f32.mxu0 0.0
    %649 = vmatmul.mubr.f32.gmra.mxu0 %v573
    %v650 = vpop.f32.mrf.mxu0
    %v651 = vadd.f32 %v553, %v650
    %v652 = vpop.f32.mrf.mxu0
    %653 = vmatprep.mubr.f32.mxu0 0.0
    %654 = vmatmul.mubr.f32.gmra.mxu0 %v576
    %v655 = vpop.f32.mrf.mxu0
    %v656 = vadd.f32 %v558, %v655
    %v657 = vpop.f32.mrf.mxu0
    %658 = vmatprep.mubr.f32.mxu0 0.0
    %659 = vmatmul.mubr.f32.gmra.mxu0 %v579
    %v660 = vpop.f32.mrf.mxu0
    %v661 = vadd.f32 %v563, %v660
    %v662 = vpop.f32.mrf.mxu0
    %663 = vmatprep.mubr.f32.mxu0 0.0
    %664 = vmatmul.mubr.f32.gmra.mxu0 %v582
    %v665 = vpop.f32.mrf.mxu0
    %v666 = vadd.f32 %v568, %v665
    %v667 = vpop.f32.mrf.mxu0
    %668 = vdwg.mxu0
    %v669 = vld [vmem:[%s4] sm:$0xff]
    %v670 = vld [vmem:[%s4 + $0x8] sm:$0xff]
    %v671 = vld [vmem:[%s4 + $0x10] sm:$0xff]
    %v672 = vld [vmem:[%s4 + $0x18] sm:$0xff]
    %v674 = vsel %vm92, %v669, 0
    %v677 = vsel %vm92, %v670, 0
    %v680 = vsel %vm92, %v671, 0
    %v683 = vsel %vm92, %v672, 0
    %685 = vmatprep.subr.mxu0 0.0
    %686 = vmatpush1.msra.mxu0 0.0
    %687 = vmatprep.subr.mxu0 0.0
    %688 = vmatpush1.msra.mxu0 0.0
    %689 = vmatprep.subr.mxu0 0.0
    %690 = vmatpush1.msra.mxu0 0.0
    %691 = vmatprep.subr.mxu0 0.0
    %692 = vmatpush1.msra.mxu0 0.0
    %693 = vmatprep.subr.mxu0 0.0
    %694 = vmatpush1.msra.mxu0 0.0
    %695 = vmatprep.subr.mxu0 0.0
    %696 = vmatpush1.msra.mxu0 0.0
    %697 = vmatprep.subr.mxu0 0.0
    %698 = vmatpush1.msra.mxu0 0.0
    %699 = vmatprep.subr.mxu0 0.0
    %700 = vmatpush1.msra.mxu0 0.0
    %701 = vmatprep.subr.mxu0 0.0
    %702 = vmatpush1.msra.mxu0 %v465
    %703 = vmatprep.subr.mxu0 0.0
    %704 = vmatpush1.msra.mxu0 %v464
    %705 = vmatprep.subr.mxu0 0.0
    %706 = vmatpush1.msra.mxu0 %v463
    %707 = vmatprep.subr.mxu0 0.0
    %708 = vmatpush1.msra.mxu0 %v462
    %709 = vmatprep.subr.mxu0 0.0
    %710 = vmatpush1.msra.mxu0 %v461
    %711 = vmatprep.subr.mxu0 0.0
    %712 = vmatpush1.msra.mxu0 %v460
    %713 = vmatprep.subr.mxu0 0.0
    %714 = vmatpush1.msra.mxu0 %v459
    %715 = vmatprep.subr.mxu0 0.0
    %716 = vmatpush1.msra.mxu0 %v458
    %717 = vmatprep.subr.mxu0 0.0
    %718 = vmatpush2.msra.mxu0 0.0
    %719 = vmatprep.subr.mxu0 0.0
    %720 = vmatpush2.msra.mxu0 0.0
    %721 = vmatprep.subr.mxu0 0.0
    %722 = vmatpush2.msra.mxu0 0.0
    %723 = vmatprep.subr.mxu0 0.0
    %724 = vmatpush2.msra.mxu0 0.0
    %725 = vmatprep.subr.mxu0 0.0
    %726 = vmatpush2.msra.mxu0 0.0
    %727 = vmatprep.subr.mxu0 0.0
    %728 = vmatpush2.msra.mxu0 0.0
    %729 = vmatprep.subr.mxu0 0.0
    %730 = vmatpush2.msra.mxu0 0.0
    %731 = vmatprep.subr.mxu0 0.0
    %732 = vmatpush2.msra.mxu0 0.0
    %733 = vmatprep.subr.mxu0 0.0
    %734 = vmatpush2.msra.mxu0 0.0
    %735 = vmatprep.subr.mxu0 0.0
    %736 = vmatpush2.msra.mxu0 0.0
    %737 = vmatprep.subr.mxu0 0.0
    %738 = vmatpush2.msra.mxu0 0.0
    %739 = vmatprep.subr.mxu0 0.0
    %740 = vmatpush2.msra.mxu0 0.0
    %741 = vmatprep.subr.mxu0 0.0
    %742 = vmatpush2.msra.mxu0 0.0
    %743 = vmatprep.subr.mxu0 0.0
    %744 = vmatpush2.msra.mxu0 0.0
    %745 = vmatprep.subr.mxu0 0.0
    %746 = vmatpush2.msra.mxu0 0.0
    %747 = vmatprep.subr.mxu0 0.0
    %748 = vmatpush2.msra.mxu0 0.0
    %749 = vmatprep.mubr.f32.mxu0 0.0
    %750 = vmatmul.mubr.f32.gmra.mxu0 %v674
    %v751 = vpop.f32.mrf.mxu0
    %v752 = vadd.f32 0.0, %v751
    %v753 = vpop.f32.mrf.mxu0
    %754 = vmatprep.mubr.f32.mxu0 0.0
    %755 = vmatmul.mubr.f32.gmra.mxu0 %v677
    %v756 = vpop.f32.mrf.mxu0
    %v757 = vadd.f32 0.0, %v756
    %v758 = vpop.f32.mrf.mxu0
    %759 = vmatprep.mubr.f32.mxu0 0.0
    %760 = vmatmul.mubr.f32.gmra.mxu0 %v680
    %v761 = vpop.f32.mrf.mxu0
    %v762 = vadd.f32 0.0, %v761
    %v763 = vpop.f32.mrf.mxu0
    %764 = vmatprep.mubr.f32.mxu0 0.0
    %765 = vmatmul.mubr.f32.gmra.mxu0 %v683
    %v766 = vpop.f32.mrf.mxu0
    %v767 = vadd.f32 0.0, %v766
    %v768 = vpop.f32.mrf.mxu0
    %769 = vdwg.mxu0
    %v770 = vadd.f32 %v651, %v752
    %v771 = vadd.f32 %v656, %v757
    %v772 = vadd.f32 %v661, %v762
    %v773 = vadd.f32 %v666, %v767
    %v774 = vtanh.pop %v770
    %v775 = vtanh.pop %v771
    %v776 = vtanh.pop %v772
    %v777 = vtanh.pop %v773
    %v778 = vld [vmem:[%s6] sm:$0xff]
    %v779 = vld [vmem:[%s6 + $0x8] sm:$0xff]
    %v780 = vld [vmem:[%s6 + $0x10] sm:$0xff]
    %v781 = vld [vmem:[%s6 + $0x18] sm:$0xff]
    %v782 = vld [vmem:[%s6 + $0x20] sm:$0xff]
    %v783 = vld [vmem:[%s6 + $0x28] sm:$0xff]
    %v784 = vld [vmem:[%s6 + $0x30] sm:$0xff]
    %v785 = vld [vmem:[%s6 + $0x38] sm:$0xff]
    %v787 = vsel %vm571, %v778, 0
    %v790 = vsel %vm571, %v779, 0
    %v793 = vsel %vm571, %v780, 0
    %v796 = vsel %vm571, %v781, 0
    %v799 = vsel %vm571, %v782, 0
    %v802 = vsel %vm571, %v783, 0
    %v805 = vsel %vm571, %v784, 0
    %v808 = vsel %vm571, %v785, 0
    %810 = vmatprep.subr.mxu0 0.0
    %811 = vmatpush1.msra.mxu0 0.0
    %812 = vmatprep.subr.mxu0 0.0
    %813 = vmatpush1.msra.mxu0 0.0
    %814 = vmatprep.subr.mxu0 0.0
    %815 = vmatpush1.msra.mxu0 0.0
    %816 = vmatprep.subr.mxu0 0.0
    %817 = vmatpush1.msra.mxu0 0.0
    %818 = vmatprep.subr.mxu0 0.0
    %819 = vmatpush1.msra.mxu0 0.0
    %820 = vmatprep.subr.mxu0 0.0
    %821 = vmatpush1.msra.mxu0 0.0
    %822 = vmatprep.subr.mxu0 0.0
    %823 = vmatpush1.msra.mxu0 0.0
    %824 = vmatprep.subr.mxu0 0.0
    %825 = vmatpush1.msra.mxu0 0.0
    %826 = vmatprep.subr.mxu0 0.0
    %827 = vmatpush1.msra.mxu0 0.0
    %828 = vmatprep.subr.mxu0 0.0
    %829 = vmatpush1.msra.mxu0 0.0
    %830 = vmatprep.subr.mxu0 0.0
    %831 = vmatpush1.msra.mxu0 0.0
    %832 = vmatprep.subr.mxu0 0.0
    %833 = vmatpush1.msra.mxu0 0.0
    %834 = vmatprep.subr.mxu0 0.0
    %835 = vmatpush1.msra.mxu0 %v777
    %836 = vmatprep.subr.mxu0 0.0
    %837 = vmatpush1.msra.mxu0 %v776
    %838 = vmatprep.subr.mxu0 0.0
    %839 = vmatpush1.msra.mxu0 %v775
    %840 = vmatprep.subr.mxu0 0.0
    %841 = vmatpush1.msra.mxu0 %v774
    %842 = vmatprep.subr.mxu0 0.0
    %843 = vmatpush2.msra.mxu0 0.0
    %844 = vmatprep.subr.mxu0 0.0
    %845 = vmatpush2.msra.mxu0 0.0
    %846 = vmatprep.subr.mxu0 0.0
    %847 = vmatpush2.msra.mxu0 0.0
    %848 = vmatprep.subr.mxu0 0.0
    %849 = vmatpush2.msra.mxu0 0.0
    %850 = vmatprep.subr.mxu0 0.0
    %851 = vmatpush2.msra.mxu0 0.0
    %852 = vmatprep.subr.mxu0 0.0
    %853 = vmatpush2.msra.mxu0 0.0
    %854 = vmatprep.subr.mxu0 0.0
    %855 = vmatpush2.msra.mxu0 0.0
    %856 = vmatprep.subr.mxu0 0.0
    %857 = vmatpush2.msra.mxu0 0.0
    %858 = vmatprep.subr.mxu0 0.0
    %859 = vmatpush2.msra.mxu0 0.0
    %860 = vmatprep.subr.mxu0 0.0
    %861 = vmatpush2.msra.mxu0 0.0
    %862 = vmatprep.subr.mxu0 0.0
    %863 = vmatpush2.msra.mxu0 0.0
    %864 = vmatprep.subr.mxu0 0.0
    %865 = vmatpush2.msra.mxu0 0.0
    %866 = vmatprep.subr.mxu0 0.0
    %867 = vmatpush2.msra.mxu0 0.0
    %868 = vmatprep.subr.mxu0 0.0
    %869 = vmatpush2.msra.mxu0 0.0
    %870 = vmatprep.subr.mxu0 0.0
    %871 = vmatpush2.msra.mxu0 0.0
    %872 = vmatprep.subr.mxu0 0.0
    %873 = vmatpush2.msra.mxu0 0.0
    %874 = vmatprep.mubr.f32.mxu0 0.0
    %875 = vmatmul.mubr.f32.gmra.mxu0 %v787
    %v876 = vpop.f32.mrf.mxu0
    %v877 = vadd.f32 0.0, %v876
    %v878 = vpop.f32.mrf.mxu0
    %879 = vmatprep.mubr.f32.mxu0 0.0
    %880 = vmatmul.mubr.f32.gmra.mxu0 %v790
    %v881 = vpop.f32.mrf.mxu0
    %v882 = vadd.f32 0.0, %v881
    %v883 = vpop.f32.mrf.mxu0
    %884 = vmatprep.mubr.f32.mxu0 0.0
    %885 = vmatmul.mubr.f32.gmra.mxu0 %v793
    %v886 = vpop.f32.mrf.mxu0
    %v887 = vadd.f32 0.0, %v886
    %v888 = vpop.f32.mrf.mxu0
    %889 = vmatprep.mubr.f32.mxu0 0.0
    %890 = vmatmul.mubr.f32.gmra.mxu0 %v796
    %v891 = vpop.f32.mrf.mxu0
    %v892 = vadd.f32 0.0, %v891
    %v893 = vpop.f32.mrf.mxu0
    %894 = vmatprep.mubr.f32.mxu0 0.0
    %895 = vmatmul.mubr.f32.gmra.mxu0 %v799
    %v896 = vpop.f32.mrf.mxu0
    %v897 = vadd.f32 0.0, %v896
    %v898 = vpop.f32.mrf.mxu0
    %899 = vmatprep.mubr.f32.mxu0 0.0
    %900 = vmatmul.mubr.f32.gmra.mxu0 %v802
    %v901 = vpop.f32.mrf.mxu0
    %v902 = vadd.f32 0.0, %v901
    %v903 = vpop.f32.mrf.mxu0
    %904 = vmatprep.mubr.f32.mxu0 0.0
    %905 = vmatmul.mubr.f32.gmra.mxu0 %v805
    %v906 = vpop.f32.mrf.mxu0
    %v907 = vadd.f32 0.0, %v906
    %v908 = vpop.f32.mrf.mxu0
    %909 = vmatprep.mubr.f32.mxu0 0.0
    %910 = vmatmul.mubr.f32.gmra.mxu0 %v808
    %v911 = vpop.f32.mrf.mxu0
    %v912 = vadd.f32 0.0, %v911
    %v913 = vpop.f32.mrf.mxu0
    %914 = vdwg.mxu0
    %916 = vset.pattern.permute.xlu0 0
    %917 = vperm.xlu0 %916, %v877
    %v918 = vpop.permute.xlu0 %917
    %921 = vset.pattern.permute.xlu0 0
    %922 = vperm.xlu0 %921, %v882
    %v923 = vpop.permute.xlu0 %922
    %926 = vset.pattern.permute.xlu0 0
    %927 = vperm.xlu0 %926, %v887
    %v928 = vpop.permute.xlu0 %927
    %931 = vset.pattern.permute.xlu0 0
    %932 = vperm.xlu0 %931, %v892
    %v933 = vpop.permute.xlu0 %932
    %936 = vset.pattern.permute.xlu0 0
    %937 = vperm.xlu0 %936, %v897
    %v938 = vpop.permute.xlu0 %937
    %941 = vset.pattern.permute.xlu0 0
    %942 = vperm.xlu0 %941, %v902
    %v943 = vpop.permute.xlu0 %942
    %946 = vset.pattern.permute.xlu0 0
    %947 = vperm.xlu0 %946, %v907
    %v948 = vpop.permute.xlu0 %947
    %951 = vset.pattern.permute.xlu0 0
    %952 = vperm.xlu0 %951, %v912
    %v953 = vpop.permute.xlu0 %952
    %955 = vset.pattern.permute.xlu0 1
    %956 = vperm.xlu0 %955, %v877
    %v957 = vpop.permute.xlu0 %956
    %959 = vset.pattern.permute.xlu0 1
    %960 = vperm.xlu0 %959, %v882
    %v961 = vpop.permute.xlu0 %960
    %963 = vset.pattern.permute.xlu0 1
    %964 = vperm.xlu0 %963, %v887
    %v965 = vpop.permute.xlu0 %964
    %967 = vset.pattern.permute.xlu0 1
    %968 = vperm.xlu0 %967, %v892
    %v969 = vpop.permute.xlu0 %968
    %971 = vset.pattern.permute.xlu0 1
    %972 = vperm.xlu0 %971, %v897
    %v973 = vpop.permute.xlu0 %972
    %975 = vset.pattern.permute.xlu0 1
    %976 = vperm.xlu0 %975, %v902
    %v977 = vpop.permute.xlu0 %976
    %979 = vset.pattern.permute.xlu0 1
    %980 = vperm.xlu0 %979, %v907
    %v981 = vpop.permute.xlu0 %980
    %983 = vset.pattern.permute.xlu0 1
    %984 = vperm.xlu0 %983, %v912
    %v985 = vpop.permute.xlu0 %984
    %v987 = vld [vmem:[#allocation2] sm:$0xff]
    %v988 = vld [vmem:[#allocation2 + $0x8] sm:$0xff]
    %v989 = vld [vmem:[#allocation2 + $0x10] sm:$0xff]
    %v990 = vld [vmem:[#allocation2 + $0x18] sm:$0xff]
    %v991 = vld [vmem:[#allocation2 + $0x20] sm:$0xff]
    %v992 = vld [vmem:[#allocation2 + $0x28] sm:$0xff]
    %v993 = vld [vmem:[#allocation2 + $0x30] sm:$0xff]
    %v994 = vld [vmem:[#allocation2 + $0x38] sm:$0xff]
    %v995 = vld [vmem:[#allocation2 + $0x40] sm:$0xff]
    %v996 = vld [vmem:[#allocation2 + $0x48] sm:$0xff]
    %v997 = vld [vmem:[#allocation2 + $0x50] sm:$0xff]
    %v998 = vld [vmem:[#allocation2 + $0x58] sm:$0xff]
    %v999 = vld [vmem:[#allocation2 + $0x60] sm:$0xff]
    %v1000 = vld [vmem:[#allocation2 + $0x68] sm:$0xff]
    %v1001 = vld [vmem:[#allocation2 + $0x70] sm:$0xff]
    %v1002 = vld [vmem:[#allocation2 + $0x78] sm:$0xff]
    %v1003 = vadd.f32 %v987, %v918
    %v1004 = vadd.f32 %v988, %v957
    %v1005 = vadd.f32 %v989, %v923
    %v1006 = vadd.f32 %v990, %v961
    %v1007 = vadd.f32 %v991, %v928
    %v1008 = vadd.f32 %v992, %v965
    %v1009 = vadd.f32 %v993, %v933
    %v1010 = vadd.f32 %v994, %v969
    %v1011 = vadd.f32 %v995, %v938
    %v1012 = vadd.f32 %v996, %v973
    %v1013 = vadd.f32 %v997, %v943
    %v1014 = vadd.f32 %v998, %v977
    %v1015 = vadd.f32 %v999, %v948
    %v1016 = vadd.f32 %v1000, %v981
    %v1017 = vadd.f32 %v1001, %v953
    %v1018 = vadd.f32 %v1002, %v985
    %v1019 = vld [vmem:[%s7] sm:$0xff]
    %v1020 = vld [vmem:[%s7 + $0x8] sm:$0xff]
    %v1021 = vld [vmem:[%s7 + $0x10] sm:$0xff]
    %v1022 = vld [vmem:[%s7 + $0x18] sm:$0xff]
    %v1023 = vld [vmem:[%s7 + $0x20] sm:$0xff]
    %v1024 = vld [vmem:[%s7 + $0x28] sm:$0xff]
    %v1025 = vld [vmem:[%s7 + $0x30] sm:$0xff]
    %v1026 = vld [vmem:[%s7 + $0x38] sm:$0xff]
    %1028 = vset.pattern.permute.xlu0 0
    %1029 = vperm.xlu0 %1028, %v1019
    %v1030 = vpop.permute.xlu0 %1029
    %1033 = vset.pattern.permute.xlu0 0
    %1034 = vperm.xlu0 %1033, %v1020
    %v1035 = vpop.permute.xlu0 %1034
    %1038 = vset.pattern.permute.xlu0 0
    %1039 = vperm.xlu0 %1038, %v1021
    %v1040 = vpop.permute.xlu0 %1039
    %1043 = vset.pattern.permute.xlu0 0
    %1044 = vperm.xlu0 %1043, %v1022
    %v1045 = vpop.permute.xlu0 %1044
    %1048 = vset.pattern.permute.xlu0 0
    %1049 = vperm.xlu0 %1048, %v1023
    %v1050 = vpop.permute.xlu0 %1049
    %1053 = vset.pattern.permute.xlu0 0
    %1054 = vperm.xlu0 %1053, %v1024
    %v1055 = vpop.permute.xlu0 %1054
    %1058 = vset.pattern.permute.xlu0 0
    %1059 = vperm.xlu0 %1058, %v1025
    %v1060 = vpop.permute.xlu0 %1059
    %1063 = vset.pattern.permute.xlu0 0
    %1064 = vperm.xlu0 %1063, %v1026
    %v1065 = vpop.permute.xlu0 %1064
    %v1067 = vadd.f32 %v1003, %v1030
    %v1068 = vadd.f32 %v1004, %v1030
    %v1069 = vadd.f32 %v1005, %v1035
    %v1070 = vadd.f32 %v1006, %v1035
    %v1071 = vadd.f32 %v1007, %v1040
    %v1072 = vadd.f32 %v1008, %v1040
    %v1073 = vadd.f32 %v1009, %v1045
    %v1074 = vadd.f32 %v1010, %v1045
    %v1075 = vadd.f32 %v1011, %v1050
    %v1076 = vadd.f32 %v1012, %v1050
    %v1077 = vadd.f32 %v1013, %v1055
    %v1078 = vadd.f32 %v1014, %v1055
    %v1079 = vadd.f32 %v1015, %v1060
    %v1080 = vadd.f32 %v1016, %v1060
    %v1081 = vadd.f32 %v1017, %v1065
    %v1082 = vadd.f32 %v1018, %v1065
    %v1083 = vmax.f32 %v1067, %v1075
    %v1084 = vmax.f32 %v1068, %v1076
    %v1085 = vmax.f32 %v1069, %v1077
    %v1086 = vmax.f32 %v1070, %v1078
    %v1087 = vmax.f32 %v1071, %v1079
    %v1088 = vmax.f32 %v1072, %v1080
    %v1089 = vmax.f32 %v1073, %v1081
    %v1090 = vmax.f32 %v1074, %v1082
    %v1091 = vld [vmem:[%s8] sm:$0xff]
    %v1092 = vld [vmem:[%s8 + $0x8] sm:$0xff]
    %v1093 = vld [vmem:[%s8 + $0x10] sm:$0xff]
    %v1094 = vld [vmem:[%s8 + $0x18] sm:$0xff]
    %v1095 = vld [vmem:[%s8 + $0x20] sm:$0xff]
    %v1096 = vld [vmem:[%s8 + $0x28] sm:$0xff]
    %v1097 = vld [vmem:[%s8 + $0x30] sm:$0xff]
    %v1098 = vld [vmem:[%s8 + $0x38] sm:$0xff]
    %v1099 = vld [vmem:[%s9] sm:$0xff]
    %v1100 = vld [vmem:[%s9 + $0x8] sm:$0xff]
    %v1101 = vld [vmem:[%s9 + $0x10] sm:$0xff]
    %v1102 = vld [vmem:[%s9 + $0x18] sm:$0xff]
    %v1103 = vld [vmem:[%s9 + $0x20] sm:$0xff]
    %v1104 = vld [vmem:[%s9 + $0x28] sm:$0xff]
    %v1105 = vld [vmem:[%s9 + $0x30] sm:$0xff]
    %v1106 = vld [vmem:[%s9 + $0x38] sm:$0xff]
    %1108 = vset.pattern.permute.xlu0 0
    %1109 = vperm.xlu0 %1108, %v1099
    %v1110 = vpop.permute.xlu0 %1109
    %1113 = vset.pattern.permute.xlu0 0
    %1114 = vperm.xlu0 %1113, %v1100
    %v1115 = vpop.permute.xlu0 %1114
    %1118 = vset.pattern.permute.xlu0 0
    %1119 = vperm.xlu0 %1118, %v1101
    %v1120 = vpop.permute.xlu0 %1119
    %1123 = vset.pattern.permute.xlu0 0
    %1124 = vperm.xlu0 %1123, %v1102
    %v1125 = vpop.permute.xlu0 %1124
    %1128 = vset.pattern.permute.xlu0 0
    %1129 = vperm.xlu0 %1128, %v1103
    %v1130 = vpop.permute.xlu0 %1129
    %1133 = vset.pattern.permute.xlu0 0
    %1134 = vperm.xlu0 %1133, %v1104
    %v1135 = vpop.permute.xlu0 %1134
    %1138 = vset.pattern.permute.xlu0 0
    %1139 = vperm.xlu0 %1138, %v1105
    %v1140 = vpop.permute.xlu0 %1139
    %1143 = vset.pattern.permute.xlu0 0
    %1144 = vperm.xlu0 %1143, %v1106
    %v1145 = vpop.permute.xlu0 %1144
    %v1148 = vsel %vm571, %v1091, 0
    %v1151 = vsel %vm571, %v1092, 0
    %v1154 = vsel %vm571, %v1093, 0
    %v1157 = vsel %vm571, %v1094, 0
    %v1160 = vsel %vm571, %v1095, 0
    %v1163 = vsel %vm571, %v1096, 0
    %v1166 = vsel %vm571, %v1097, 0
    %v1169 = vsel %vm571, %v1098, 0
    %1171 = vmatprep.subr.mxu0 0.0
    %1172 = vmatpush1.msra.mxu0 0.0
    %1173 = vmatprep.subr.mxu0 0.0
    %1174 = vmatpush1.msra.mxu0 0.0
    %1175 = vmatprep.subr.mxu0 0.0
    %1176 = vmatpush1.msra.mxu0 0.0
    %1177 = vmatprep.subr.mxu0 0.0
    %1178 = vmatpush1.msra.mxu0 0.0
    %1179 = vmatprep.subr.mxu0 0.0
    %1180 = vmatpush1.msra.mxu0 0.0
    %1181 = vmatprep.subr.mxu0 0.0
    %1182 = vmatpush1.msra.mxu0 0.0
    %1183 = vmatprep.subr.mxu0 0.0
    %1184 = vmatpush1.msra.mxu0 0.0
    %1185 = vmatprep.subr.mxu0 0.0
    %1186 = vmatpush1.msra.mxu0 0.0
    %1187 = vmatprep.subr.mxu0 0.0
    %1188 = vmatpush1.msra.mxu0 0.0
    %1189 = vmatprep.subr.mxu0 0.0
    %1190 = vmatpush1.msra.mxu0 0.0
    %1191 = vmatprep.subr.mxu0 0.0
    %1192 = vmatpush1.msra.mxu0 0.0
    %1193 = vmatprep.subr.mxu0 0.0
    %1194 = vmatpush1.msra.mxu0 0.0
    %1195 = vmatprep.subr.mxu0 %v1090
    %1196 = vmatpush1.msra.mxu0 %v1089
    %1197 = vmatprep.subr.mxu0 %v1088
    %1198 = vmatpush1.msra.mxu0 %v1087
    %1199 = vmatprep.subr.mxu0 %v1086
    %1200 = vmatpush1.msra.mxu0 %v1085
    %1201 = vmatprep.subr.mxu0 %v1084
    %1202 = vmatpush1.msra.mxu0 %v1083
    %1203 = vmatprep.subr.mxu0 0.0
    %1204 = vmatpush2.msra.mxu0 0.0
    %1205 = vmatprep.subr.mxu0 0.0
    %1206 = vmatpush2.msra.mxu0 0.0
    %1207 = vmatprep.subr.mxu0 0.0
    %1208 = vmatpush2.msra.mxu0 0.0
    %1209 = vmatprep.subr.mxu0 0.0
    %1210 = vmatpush2.msra.mxu0 0.0
    %1211 = vmatprep.subr.mxu0 0.0
    %1212 = vmatpush2.msra.mxu0 0.0
    %1213 = vmatprep.subr.mxu0 0.0
    %1214 = vmatpush2.msra.mxu0 0.0
    %1215 = vmatprep.subr.mxu0 0.0
    %1216 = vmatpush2.msra.mxu0 0.0
    %1217 = vmatprep.subr.mxu0 0.0
    %1218 = vmatpush2.msra.mxu0 0.0
    %1219 = vmatprep.subr.mxu0 0.0
    %1220 = vmatpush2.msra.mxu0 0.0
    %1221 = vmatprep.subr.mxu0 0.0
    %1222 = vmatpush2.msra.mxu0 0.0
    %1223 = vmatprep.subr.mxu0 0.0
    %1224 = vmatpush2.msra.mxu0 0.0
    %1225 = vmatprep.subr.mxu0 0.0
    %1226 = vmatpush2.msra.mxu0 0.0
    %1227 = vmatprep.subr.mxu0 0.0
    %1228 = vmatpush2.msra.mxu0 0.0
    %1229 = vmatprep.subr.mxu0 0.0
    %1230 = vmatpush2.msra.mxu0 0.0
    %1231 = vmatprep.subr.mxu0 0.0
    %1232 = vmatpush2.msra.mxu0 0.0
    %1233 = vmatprep.subr.mxu0 0.0
    %1234 = vmatpush2.msra.mxu0 0.0
    %1235 = vmatprep.mubr.f32.mxu0 0.0
    %1236 = vmatmul.mubr.f32.gmra.mxu0 %v1148
    %v1237 = vpop.f32.mrf.mxu0
    %v1238 = vadd.f32 %v1110, %v1237
    %v1239 = vpop.f32.mrf.mxu0
    %v1240 = vadd.f32 %v1110, %v1239
    %1241 = vmatprep.mubr.f32.mxu0 0.0
    %1242 = vmatmul.mubr.f32.gmra.mxu0 %v1151
    %v1243 = vpop.f32.mrf.mxu0
    %v1244 = vadd.f32 %v1115, %v1243
    %v1245 = vpop.f32.mrf.mxu0
    %v1246 = vadd.f32 %v1115, %v1245
    %1247 = vmatprep.mubr.f32.mxu0 0.0
    %1248 = vmatmul.mubr.f32.gmra.mxu0 %v1154
    %v1249 = vpop.f32.mrf.mxu0
    %v1250 = vadd.f32 %v1120, %v1249
    %v1251 = vpop.f32.mrf.mxu0
    %v1252 = vadd.f32 %v1120, %v1251
    %1253 = vmatprep.mubr.f32.mxu0 0.0
    %1254 = vmatmul.mubr.f32.gmra.mxu0 %v1157
    %v1255 = vpop.f32.mrf.mxu0
    %v1256 = vadd.f32 %v1125, %v1255
    %v1257 = vpop.f32.mrf.mxu0
    %v1258 = vadd.f32 %v1125, %v1257
    %1259 = vmatprep.mubr.f32.mxu0 0.0
    %1260 = vmatmul.mubr.f32.gmra.mxu0 %v1160
    %v1261 = vpop.f32.mrf.mxu0
    %v1262 = vadd.f32 %v1130, %v1261
    %v1263 = vpop.f32.mrf.mxu0
    %v1264 = vadd.f32 %v1130, %v1263
    %1265 = vmatprep.mubr.f32.mxu0 0.0
    %1266 = vmatmul.mubr.f32.gmra.mxu0 %v1163
    %v1267 = vpop.f32.mrf.mxu0
    %v1268 = vadd.f32 %v1135, %v1267
    %v1269 = vpop.f32.mrf.mxu0
    %v1270 = vadd.f32 %v1135, %v1269
    %1271 = vmatprep.mubr.f32.mxu0 0.0
    %1272 = vmatmul.mubr.f32.gmra.mxu0 %v1166
    %v1273 = vpop.f32.mrf.mxu0
    %v1274 = vadd.f32 %v1140, %v1273
    %v1275 = vpop.f32.mrf.mxu0
    %v1276 = vadd.f32 %v1140, %v1275
    %1277 = vmatprep.mubr.f32.mxu0 0.0
    %1278 = vmatmul.mubr.f32.gmra.mxu0 %v1169
    %v1279 = vpop.f32.mrf.mxu0
    %v1280 = vadd.f32 %v1145, %v1279
    %v1281 = vpop.f32.mrf.mxu0
    %v1282 = vadd.f32 %v1145, %v1281
    %1283 = vdwg.mxu0
    %v1284 = vmax.f32 %v1238, %v1262
    %v1285 = vmax.f32 %v1240, %v1264
    %v1286 = vmax.f32 %v1244, %v1268
    %v1287 = vmax.f32 %v1246, %v1270
    %v1288 = vmax.f32 %v1250, %v1274
    %v1289 = vmax.f32 %v1252, %v1276
    %v1290 = vmax.f32 %v1256, %v1280
    %v1291 = vmax.f32 %v1258, %v1282
    %v1292 = vld [vmem:[%s10] sm:$0xff]
    %v1293 = vld [vmem:[%s11] sm:$0xff]
    %v1295 = vsel %vm571, %v1293, 0
    %1297 = vmatprep.subr.mxu0 0.0
    %1298 = vmatpush1.msra.mxu0 0.0
    %1299 = vmatprep.subr.mxu0 0.0
    %1300 = vmatpush1.msra.mxu0 0.0
    %1301 = vmatprep.subr.mxu0 0.0
    %1302 = vmatpush1.msra.mxu0 0.0
    %1303 = vmatprep.subr.mxu0 0.0
    %1304 = vmatpush1.msra.mxu0 0.0
    %1305 = vmatprep.subr.mxu0 0.0
    %1306 = vmatpush1.msra.mxu0 0.0
    %1307 = vmatprep.subr.mxu0 0.0
    %1308 = vmatpush1.msra.mxu0 0.0
    %1309 = vmatprep.subr.mxu0 0.0
    %1310 = vmatpush1.msra.mxu0 0.0
    %1311 = vmatprep.subr.mxu0 0.0
    %1312 = vmatpush1.msra.mxu0 0.0
    %1313 = vmatprep.subr.mxu0 0.0
    %1314 = vmatpush1.msra.mxu0 0.0
    %1315 = vmatprep.subr.mxu0 0.0
    %1316 = vmatpush1.msra.mxu0 0.0
    %1317 = vmatprep.subr.mxu0 0.0
    %1318 = vmatpush1.msra.mxu0 0.0
    %1319 = vmatprep.subr.mxu0 0.0
    %1320 = vmatpush1.msra.mxu0 0.0
    %1321 = vmatprep.subr.mxu0 %v1291
    %1322 = vmatpush1.msra.mxu0 %v1290
    %1323 = vmatprep.subr.mxu0 %v1289
    %1324 = vmatpush1.msra.mxu0 %v1288
    %1325 = vmatprep.subr.mxu0 %v1287
    %1326 = vmatpush1.msra.mxu0 %v1286
    %1327 = vmatprep.subr.mxu0 %v1285
    %1328 = vmatpush1.msra.mxu0 %v1284
    %1329 = vmatprep.subr.mxu0 0.0
    %1330 = vmatpush2.msra.mxu0 0.0
    %1331 = vmatprep.subr.mxu0 0.0
    %1332 = vmatpush2.msra.mxu0 0.0
    %1333 = vmatprep.subr.mxu0 0.0
    %1334 = vmatpush2.msra.mxu0 0.0
    %1335 = vmatprep.subr.mxu0 0.0
    %1336 = vmatpush2.msra.mxu0 0.0
    %1337 = vmatprep.subr.mxu0 0.0
    %1338 = vmatpush2.msra.mxu0 0.0
    %1339 = vmatprep.subr.mxu0 0.0
    %1340 = vmatpush2.msra.mxu0 0.0
    %1341 = vmatprep.subr.mxu0 0.0
    %1342 = vmatpush2.msra.mxu0 0.0
    %1343 = vmatprep.subr.mxu0 0.0
    %1344 = vmatpush2.msra.mxu0 0.0
    %1345 = vmatprep.subr.mxu0 0.0
    %1346 = vmatpush2.msra.mxu0 0.0
    %1347 = vmatprep.subr.mxu0 0.0
    %1348 = vmatpush2.msra.mxu0 0.0
    %1349 = vmatprep.subr.mxu0 0.0
    %1350 = vmatpush2.msra.mxu0 0.0
    %1351 = vmatprep.subr.mxu0 0.0
    %1352 = vmatpush2.msra.mxu0 0.0
    %1353 = vmatprep.subr.mxu0 0.0
    %1354 = vmatpush2.msra.mxu0 0.0
    %1355 = vmatprep.subr.mxu0 0.0
    %1356 = vmatpush2.msra.mxu0 0.0
    %1357 = vmatprep.subr.mxu0 0.0
    %1358 = vmatpush2.msra.mxu0 0.0
    %1359 = vmatprep.subr.mxu0 0.0
    %1360 = vmatpush2.msra.mxu0 0.0
    %1361 = vmatprep.mubr.f32.mxu0 0.0
    %1362 = vmatmul.mubr.f32.gmra.mxu0 %v1295
    %v1363 = vpop.f32.mrf.mxu0
    %v1364 = vadd.f32 0.0, %v1363
    %v1365 = vpop.f32.mrf.mxu0
    %v1366 = vadd.f32 0.0, %v1365
    %1367 = vdwg.mxu0
    %v1369 = vsel %vm571, %v1292, 0
    %1371 = vmatprep.subr.mxu0 0.0
    %1372 = vmatpush1.msra.mxu0 0.0
    %1373 = vmatprep.subr.mxu0 0.0
    %1374 = vmatpush1.msra.mxu0 0.0
    %1375 = vmatprep.subr.mxu0 0.0
    %1376 = vmatpush1.msra.mxu0 0.0
    %1377 = vmatprep.subr.mxu0 0.0
    %1378 = vmatpush1.msra.mxu0 0.0
    %1379 = vmatprep.subr.mxu0 0.0
    %1380 = vmatpush1.msra.mxu0 0.0
    %1381 = vmatprep.subr.mxu0 0.0
    %1382 = vmatpush1.msra.mxu0 0.0
    %1383 = vmatprep.subr.mxu0 0.0
    %1384 = vmatpush1.msra.mxu0 0.0
    %1385 = vmatprep.subr.mxu0 0.0
    %1386 = vmatpush1.msra.mxu0 0.0
    %1387 = vmatprep.subr.mxu0 0.0
    %1388 = vmatpush1.msra.mxu0 0.0
    %1389 = vmatprep.subr.mxu0 0.0
    %1390 = vmatpush1.msra.mxu0 0.0
    %1391 = vmatprep.subr.mxu0 0.0
    %1392 = vmatpush1.msra.mxu0 0.0
    %1393 = vmatprep.subr.mxu0 0.0
    %1394 = vmatpush1.msra.mxu0 0.0
    %1395 = vmatprep.subr.mxu0 %v1090
    %1396 = vmatpush1.msra.mxu0 %v1089
    %1397 = vmatprep.subr.mxu0 %v1088
    %1398 = vmatpush1.msra.mxu0 %v1087
    %1399 = vmatprep.subr.mxu0 %v1086
    %1400 = vmatpush1.msra.mxu0 %v1085
    %1401 = vmatprep.subr.mxu0 %v1084
    %1402 = vmatpush1.msra.mxu0 %v1083
    %1403 = vmatprep.subr.mxu0 0.0
    %1404 = vmatpush2.msra.mxu0 0.0
    %1405 = vmatprep.subr.mxu0 0.0
    %1406 = vmatpush2.msra.mxu0 0.0
    %1407 = vmatprep.subr.mxu0 0.0
    %1408 = vmatpush2.msra.mxu0 0.0
    %1409 = vmatprep.subr.mxu0 0.0
    %1410 = vmatpush2.msra.mxu0 0.0
    %1411 = vmatprep.subr.mxu0 0.0
    %1412 = vmatpush2.msra.mxu0 0.0
    %1413 = vmatprep.subr.mxu0 0.0
    %1414 = vmatpush2.msra.mxu0 0.0
    %1415 = vmatprep.subr.mxu0 0.0
    %1416 = vmatpush2.msra.mxu0 0.0
    %1417 = vmatprep.subr.mxu0 0.0
    %1418 = vmatpush2.msra.mxu0 0.0
    %1419 = vmatprep.subr.mxu0 0.0
    %1420 = vmatpush2.msra.mxu0 0.0
    %1421 = vmatprep.subr.mxu0 0.0
    %1422 = vmatpush2.msra.mxu0 0.0
    %1423 = vmatprep.subr.mxu0 0.0
    %1424 = vmatpush2.msra.mxu0 0.0
    %1425 = vmatprep.subr.mxu0 0.0
    %1426 = vmatpush2.msra.mxu0 0.0
    %1427 = vmatprep.subr.mxu0 0.0
    %1428 = vmatpush2.msra.mxu0 0.0
    %1429 = vmatprep.subr.mxu0 0.0
    %1430 = vmatpush2.msra.mxu0 0.0
    %1431 = vmatprep.subr.mxu0 0.0
    %1432 = vmatpush2.msra.mxu0 0.0
    %1433 = vmatprep.subr.mxu0 0.0
    %1434 = vmatpush2.msra.mxu0 0.0
    %1435 = vmatprep.mubr.f32.mxu0 0.0
    %1436 = vmatmul.mubr.f32.gmra.mxu0 %v1369
    %v1437 = vpop.f32.mrf.mxu0
    %v1438 = vadd.f32 %v1364, %v1437
    %v1439 = vpop.f32.mrf.mxu0
    %v1440 = vadd.f32 %v1366, %v1439
    %1441 = vdwg.mxu0
    %v1442 = vld [vmem:[%s12] sm:$0xff]
    %1444 = vset.pattern.permute.xlu0 0
    %1445 = vperm.xlu0 %1444, %v1442
    %v1446 = vpop.permute.xlu0 %1445
    %v1448 = vadd.f32 %v1438, %v1446
    %v1449 = vadd.f32 %v1440, %v1446
    %v1450 = vrot.slane %v1448, 4
    %v1451 = vmax.f32 %v1448, %v1450
    %v1452 = vrot.slane %v1451, 2
    %v1453 = vmax.f32 %v1451, %v1452
    %v1454 = vrot.slane %v1453, 1
    %v1455 = vmax.f32 %v1453, %v1454
    %v1456 = vrot.slane %v1449, 4
    %v1457 = vmax.f32 %v1449, %v1456
    %v1458 = vrot.slane %v1457, 2
    %v1459 = vmax.f32 %v1457, %v1458
    %v1460 = vrot.slane %v1459, 1
    %v1461 = vmax.f32 %v1459, %v1460
    %v1462 = vld [vmem:[%s1] sm:$0x3]
    %v1464 = vlaneseq
    %v1465 = vshrl.u32 %v1464, 7
    %v1466 = vsub.s32 0, %v1465
    %v1467 = vrot.slane %v1462, %v1466
    %v1468 = vlaneseq
    %v1469 = vshrl.u32 %v1468, 7
    %v1470 = vsub.s32 1, %v1469
    %v1471 = vrot.slane %v1462, %v1470
    %v1474 = vsub.f32 %v1455, %v1467
    %v1475 = vsub.f32 %v1461, %v1471
    %v1476 = vlaneseq
    %v1477 = vand.u32 %v1476, 127
    %v1478 = vcvt.s32.f32 %v1477
    %vm1479 = vcmask 1040384
    %v1480 = vsel %vm1479, %v1474, -inf
    %1481 = vmax.xlane.f32.xlu0 %v1480
    %v1482 = vpop.xlane.xlu0 %1481
    %vm1483 = vcmp.ge.f32.partialorder %v1474, %v1482
    %v1484 = vsel %vm1483, %v1478, 128.0
    %v1485 = vsel %vm1479, %v1484, inf
    %1486 = vmin.xlane.f32.xlu0 %v1485
    %v1487 = vpop.xlane.xlu0 %1486
    %vm1488 = vcmp.eq.f32.partialorder %v1478, %v1487
    %v1489 = vsel %vm1488, 1, 0
    %v1490 = vcvt.s32.f32 %v1489
    %v1491 = vlaneseq
    %v1492 = vshrl.u32 %v1491, 7
    %v1493 = vsub.s32 0, %v1492
    %v1494 = vrot.slane %v1490, %v1493
    %v1495 = vmul.f32 %v409, %v1494
    %v1496 = vmul.f32 %v410, %v1494
    %v1497 = vmul.f32 %v411, %v1494
    %v1498 = vmul.f32 %v412, %v1494
    %v1499 = vmul.f32 %v413, %v1494
    %v1500 = vmul.f32 %v414, %v1494
    %v1501 = vmul.f32 %v415, %v1494
    %v1502 = vmul.f32 %v416, %v1494
    %1503 = vadd.xlane.f32.xlu0 %v1495
    %v1504 = vpop.xlane.xlu0 %1503
    %1505 = vadd.xlane.f32.xlu0 %v1496
    %v1506 = vpop.xlane.xlu0 %1505
    %1507 = vadd.xlane.f32.xlu0 %v1497
    %v1508 = vpop.xlane.xlu0 %1507
    %1509 = vadd.xlane.f32.xlu0 %v1498
    %v1510 = vpop.xlane.xlu0 %1509
    %1511 = vadd.xlane.f32.xlu0 %v1499
    %v1512 = vpop.xlane.xlu0 %1511
    %1513 = vadd.xlane.f32.xlu0 %v1500
    %v1514 = vpop.xlane.xlu0 %1513
    %1515 = vadd.xlane.f32.xlu0 %v1501
    %v1516 = vpop.xlane.xlu0 %1515
    %1517 = vadd.xlane.f32.xlu0 %v1502
    %v1518 = vpop.xlane.xlu0 %1517
    %v1519 = vsel %vm1479, %v1475, -inf
    %1520 = vmax.xlane.f32.xlu0 %v1519
    %v1521 = vpop.xlane.xlu0 %1520
    %vm1522 = vcmp.ge.f32.partialorder %v1475, %v1521
    %v1523 = vsel %vm1522, %v1478, 128.0
    %v1524 = vsel %vm1479, %v1523, inf
    %1525 = vmin.xlane.f32.xlu0 %v1524
    %v1526 = vpop.xlane.xlu0 %1525
    %vm1527 = vcmp.eq.f32.partialorder %v1478, %v1526
    %v1528 = vsel %vm1527, 1, 0
    %v1529 = vcvt.s32.f32 %v1528
    %v1530 = vlaneseq
    %v1531 = vshrl.u32 %v1530, 7
    %v1532 = vsub.s32 0, %v1531
    %v1533 = vrot.slane %v1529, %v1532
    %v1534 = vmul.f32 %v417, %v1533
    %v1535 = vmul.f32 %v418, %v1533
    %v1536 = vmul.f32 %v419, %v1533
    %v1537 = vmul.f32 %v420, %v1533
    %v1538 = vmul.f32 %v421, %v1533
    %v1539 = vmul.f32 %v422, %v1533
    %v1540 = vmul.f32 %v423, %v1533
    %v1541 = vmul.f32 %v424, %v1533
    %1542 = vadd.xlane.f32.xlu0 %v1534
    %v1543 = vpop.xlane.xlu0 %1542
    %1544 = vadd.xlane.f32.xlu0 %v1535
    %v1545 = vpop.xlane.xlu0 %1544
    %1546 = vadd.xlane.f32.xlu0 %v1536
    %v1547 = vpop.xlane.xlu0 %1546
    %1548 = vadd.xlane.f32.xlu0 %v1537
    %v1549 = vpop.xlane.xlu0 %1548
    %1550 = vadd.xlane.f32.xlu0 %v1538
    %v1551 = vpop.xlane.xlu0 %1550
    %1552 = vadd.xlane.f32.xlu0 %v1539
    %v1553 = vpop.xlane.xlu0 %1552
    %1554 = vadd.xlane.f32.xlu0 %v1540
    %v1555 = vpop.xlane.xlu0 %1554
    %1556 = vadd.xlane.f32.xlu0 %v1541
    %v1557 = vpop.xlane.xlu0 %1556
    %v1558 = vsel %vm457, %v1504, %v1543
    %v1559 = vsel %vm457, %v1506, %v1545
    %v1560 = vsel %vm457, %v1508, %v1547
    %v1561 = vsel %vm457, %v1510, %v1549
    %v1562 = vsel %vm457, %v1512, %v1551
    %v1563 = vsel %vm457, %v1514, %v1553
    %v1564 = vsel %vm457, %v1516, %v1555
    %v1565 = vsel %vm457, %v1518, %v1557
    %s1566 = scalar_lea.vmem %s2, 32
    %v1567 = vld [vmem:[%s1566] sm:$0xff]
    %v1568 = vld [vmem:[%s1566 + $0x8] sm:$0xff]
    %v1569 = vld [vmem:[%s1566 + $0x10] sm:$0xff]
    %v1570 = vld [vmem:[%s1566 + $0x18] sm:$0xff]
    %s1571 = scalar_lea.vmem %s3, 32
    %v1572 = vld [vmem:[%s1571] sm:$0xff]
    %v1573 = vld [vmem:[%s1571 + $0x8] sm:$0xff]
    %v1574 = vld [vmem:[%s1571 + $0x10] sm:$0xff]
    %v1575 = vld [vmem:[%s1571 + $0x18] sm:$0xff]
    %v1577 = vsel %vm92, %v1572, 0
    %v1580 = vsel %vm92, %v1573, 0
    %v1583 = vsel %vm92, %v1574, 0
    %v1586 = vsel %vm92, %v1575, 0
    %1588 = vmatprep.subr.mxu0 0.0
    %1589 = vmatpush1.msra.mxu0 0.0
    %1590 = vmatprep.subr.mxu0 0.0
    %1591 = vmatpush1.msra.mxu0 0.0
    %1592 = vmatprep.subr.mxu0 0.0
    %1593 = vmatpush1.msra.mxu0 0.0
    %1594 = vmatprep.subr.mxu0 0.0
    %1595 = vmatpush1.msra.mxu0 0.0
    %1596 = vmatprep.subr.mxu0 0.0
    %1597 = vmatpush1.msra.mxu0 0.0
    %1598 = vmatprep.subr.mxu0 0.0
    %1599 = vmatpush1.msra.mxu0 0.0
    %1600 = vmatprep.subr.mxu0 0.0
    %1601 = vmatpush1.msra.mxu0 0.0
    %1602 = vmatprep.subr.mxu0 0.0
    %1603 = vmatpush1.msra.mxu0 0.0
    %1604 = vmatprep.subr.mxu0 0.0
    %1605 = vmatpush1.msra.mxu0 %v1565
    %1606 = vmatprep.subr.mxu0 0.0
    %1607 = vmatpush1.msra.mxu0 %v1564
    %1608 = vmatprep.subr.mxu0 0.0
    %1609 = vmatpush1.msra.mxu0 %v1563
    %1610 = vmatprep.subr.mxu0 0.0
    %1611 = vmatpush1.msra.mxu0 %v1562
    %1612 = vmatprep.subr.mxu0 0.0
    %1613 = vmatpush1.msra.mxu0 %v1561
    %1614 = vmatprep.subr.mxu0 0.0
    %1615 = vmatpush1.msra.mxu0 %v1560
    %1616 = vmatprep.subr.mxu0 0.0
    %1617 = vmatpush1.msra.mxu0 %v1559
    %1618 = vmatprep.subr.mxu0 0.0
    %1619 = vmatpush1.msra.mxu0 %v1558
    %1620 = vmatprep.subr.mxu0 0.0
    %1621 = vmatpush2.msra.mxu0 0.0
    %1622 = vmatprep.subr.mxu0 0.0
    %1623 = vmatpush2.msra.mxu0 0.0
    %1624 = vmatprep.subr.mxu0 0.0
    %1625 = vmatpush2.msra.mxu0 0.0
    %1626 = vmatprep.subr.mxu0 0.0
    %1627 = vmatpush2.msra.mxu0 0.0
    %1628 = vmatprep.subr.mxu0 0.0
    %1629 = vmatpush2.msra.mxu0 0.0
    %1630 = vmatprep.subr.mxu0 0.0
    %1631 = vmatpush2.msra.mxu0 0.0
    %1632 = vmatprep.subr.mxu0 0.0
    %1633 = vmatpush2.msra.mxu0 0.0
    %1634 = vmatprep.subr.mxu0 0.0
    %1635 = vmatpush2.msra.mxu0 0.0
    %1636 = vmatprep.subr.mxu0 0.0
    %1637 = vmatpush2.msra.mxu0 0.0
    %1638 = vmatprep.subr.mxu0 0.0
    %1639 = vmatpush2.msra.mxu0 0.0
    %1640 = vmatprep.subr.mxu0 0.0
    %1641 = vmatpush2.msra.mxu0 0.0
    %1642 = vmatprep.subr.mxu0 0.0
    %1643 = vmatpush2.msra.mxu0 0.0
    %1644 = vmatprep.subr.mxu0 0.0
    %1645 = vmatpush2.msra.mxu0 0.0
    %1646 = vmatprep.subr.mxu0 0.0
    %1647 = vmatpush2.msra.mxu0 0.0
    %1648 = vmatprep.subr.mxu0 0.0
    %1649 = vmatpush2.msra.mxu0 0.0
    %1650 = vmatprep.subr.mxu0 0.0
    %1651 = vmatpush2.msra.mxu0 0.0
    %1652 = vmatprep.mubr.f32.mxu0 0.0
    %1653 = vmatmul.mubr.f32.gmra.mxu0 %v1577
    %v1654 = vpop.f32.mrf.mxu0
    %v1655 = vadd.f32 0.0, %v1654
    %v1656 = vpop.f32.mrf.mxu0
    %1657 = vmatprep.mubr.f32.mxu0 0.0
    %1658 = vmatmul.mubr.f32.gmra.mxu0 %v1580
    %v1659 = vpop.f32.mrf.mxu0
    %v1660 = vadd.f32 0.0, %v1659
    %v1661 = vpop.f32.mrf.mxu0
    %1662 = vmatprep.mubr.f32.mxu0 0.0
    %1663 = vmatmul.mubr.f32.gmra.mxu0 %v1583
    %v1664 = vpop.f32.mrf.mxu0
    %v1665 = vadd.f32 0.0, %v1664
    %v1666 = vpop.f32.mrf.mxu0
    %1667 = vmatprep.mubr.f32.mxu0 0.0
    %1668 = vmatmul.mubr.f32.gmra.mxu0 %v1586
    %v1669 = vpop.f32.mrf.mxu0
    %v1670 = vadd.f32 0.0, %v1669
    %v1671 = vpop.f32.mrf.mxu0
    %1672 = vdwg.mxu0
    %v1674 = vsel %vm571, %v1567, 0
    %v1677 = vsel %vm571, %v1568, 0
    %v1680 = vsel %vm571, %v1569, 0
    %v1683 = vsel %vm571, %v1570, 0
    %1685 = vmatprep.subr.mxu0 0.0
    %1686 = vmatpush1.msra.mxu0 0.0
    %1687 = vmatprep.subr.mxu0 0.0
    %1688 = vmatpush1.msra.mxu0 0.0
    %1689 = vmatprep.subr.mxu0 0.0
    %1690 = vmatpush1.msra.mxu0 0.0
    %1691 = vmatprep.subr.mxu0 0.0
    %1692 = vmatpush1.msra.mxu0 0.0
    %1693 = vmatprep.subr.mxu0 0.0
    %1694 = vmatpush1.msra.mxu0 0.0
    %1695 = vmatprep.subr.mxu0 0.0
    %1696 = vmatpush1.msra.mxu0 0.0
    %1697 = vmatprep.subr.mxu0 0.0
    %1698 = vmatpush1.msra.mxu0 0.0
    %1699 = vmatprep.subr.mxu0 0.0
    %1700 = vmatpush1.msra.mxu0 0.0
    %1701 = vmatprep.subr.mxu0 0.0
    %1702 = vmatpush1.msra.mxu0 0.0
    %1703 = vmatprep.subr.mxu0 0.0
    %1704 = vmatpush1.msra.mxu0 0.0
    %1705 = vmatprep.subr.mxu0 0.0
    %1706 = vmatpush1.msra.mxu0 0.0
    %1707 = vmatprep.subr.mxu0 0.0
    %1708 = vmatpush1.msra.mxu0 0.0
    %1709 = vmatprep.subr.mxu0 0.0
    %1710 = vmatpush1.msra.mxu0 0.0
    %1711 = vmatprep.subr.mxu0 0.0
    %1712 = vmatpush1.msra.mxu0 0.0
    %1713 = vmatprep.subr.mxu0 0.0
    %1714 = vmatpush1.msra.mxu0 0.0
    %1715 = vmatprep.subr.mxu0 0.0
    %1716 = vmatpush1.msra.mxu0 0.0
    %1717 = vmatprep.subr.mxu0 0.0
    %1718 = vmatpush2.msra.mxu0 0.0
    %1719 = vmatprep.subr.mxu0 0.0
    %1720 = vmatpush2.msra.mxu0 0.0
    %1721 = vmatprep.subr.mxu0 0.0
    %1722 = vmatpush2.msra.mxu0 0.0
    %1723 = vmatprep.subr.mxu0 0.0
    %1724 = vmatpush2.msra.mxu0 0.0
    %1725 = vmatprep.subr.mxu0 0.0
    %1726 = vmatpush2.msra.mxu0 0.0
    %1727 = vmatprep.subr.mxu0 0.0
    %1728 = vmatpush2.msra.mxu0 0.0
    %1729 = vmatprep.subr.mxu0 0.0
    %1730 = vmatpush2.msra.mxu0 0.0
    %1731 = vmatprep.subr.mxu0 0.0
    %1732 = vmatpush2.msra.mxu0 0.0
    %1733 = vmatprep.subr.mxu0 0.0
    %1734 = vmatpush2.msra.mxu0 0.0
    %1735 = vmatprep.subr.mxu0 0.0
    %1736 = vmatpush2.msra.mxu0 0.0
    %1737 = vmatprep.subr.mxu0 0.0
    %1738 = vmatpush2.msra.mxu0 0.0
    %1739 = vmatprep.subr.mxu0 0.0
    %1740 = vmatpush2.msra.mxu0 0.0
    %1741 = vmatprep.subr.mxu0 0.0
    %1742 = vmatpush2.msra.mxu0 0.0
    %1743 = vmatprep.subr.mxu0 0.0
    %1744 = vmatpush2.msra.mxu0 0.0
    %1745 = vmatprep.subr.mxu0 0.0
    %1746 = vmatpush2.msra.mxu0 0.0
    %1747 = vmatprep.subr.mxu0 0.0
    %1748 = vmatpush2.msra.mxu0 0.0
    %1749 = vmatprep.mubr.f32.mxu0 0.0
    %1750 = vmatmul.mubr.f32.gmra.mxu0 %v1674
    %v1751 = vpop.f32.mrf.mxu0
    %v1752 = vadd.f32 %v1655, %v1751
    %v1753 = vpop.f32.mrf.mxu0
    %1754 = vmatprep.mubr.f32.mxu0 0.0
    %1755 = vmatmul.mubr.f32.gmra.mxu0 %v1677
    %v1756 = vpop.f32.mrf.mxu0
    %v1757 = vadd.f32 %v1660, %v1756
    %v1758 = vpop.f32.mrf.mxu0
    %1759 = vmatprep.mubr.f32.mxu0 0.0
    %1760 = vmatmul.mubr.f32.gmra.mxu0 %v1680
    %v1761 = vpop.f32.mrf.mxu0
    %v1762 = vadd.f32 %v1665, %v1761
    %v1763 = vpop.f32.mrf.mxu0
    %1764 = vmatprep.mubr.f32.mxu0 0.0
    %1765 = vmatmul.mubr.f32.gmra.mxu0 %v1683
    %v1766 = vpop.f32.mrf.mxu0
    %v1767 = vadd.f32 %v1670, %v1766
    %v1768 = vpop.f32.mrf.mxu0
    %1769 = vdwg.mxu0
    %s1770 = scalar_lea.vmem %s4, 32
    %v1771 = vld [vmem:[%s1770] sm:$0xff]
    %v1772 = vld [vmem:[%s1770 + $0x8] sm:$0xff]
    %v1773 = vld [vmem:[%s1770 + $0x10] sm:$0xff]
    %v1774 = vld [vmem:[%s1770 + $0x18] sm:$0xff]
    %v1776 = vsel %vm92, %v1771, 0
    %v1779 = vsel %vm92, %v1772, 0
    %v1782 = vsel %vm92, %v1773, 0
    %v1785 = vsel %vm92, %v1774, 0
    %1787 = vmatprep.subr.mxu0 0.0
    %1788 = vmatpush1.msra.mxu0 0.0
    %1789 = vmatprep.subr.mxu0 0.0
    %1790 = vmatpush1.msra.mxu0 0.0
    %1791 = vmatprep.subr.mxu0 0.0
    %1792 = vmatpush1.msra.mxu0 0.0
    %1793 = vmatprep.subr.mxu0 0.0
    %1794 = vmatpush1.msra.mxu0 0.0
    %1795 = vmatprep.subr.mxu0 0.0
    %1796 = vmatpush1.msra.mxu0 0.0
    %1797 = vmatprep.subr.mxu0 0.0
    %1798 = vmatpush1.msra.mxu0 0.0
    %1799 = vmatprep.subr.mxu0 0.0
    %1800 = vmatpush1.msra.mxu0 0.0
    %1801 = vmatprep.subr.mxu0 0.0
    %1802 = vmatpush1.msra.mxu0 0.0
    %1803 = vmatprep.subr.mxu0 0.0
    %1804 = vmatpush1.msra.mxu0 %v465
    %1805 = vmatprep.subr.mxu0 0.0
    %1806 = vmatpush1.msra.mxu0 %v464
    %1807 = vmatprep.subr.mxu0 0.0
    %1808 = vmatpush1.msra.mxu0 %v463
    %1809 = vmatprep.subr.mxu0 0.0
    %1810 = vmatpush1.msra.mxu0 %v462
    %1811 = vmatprep.subr.mxu0 0.0
    %1812 = vmatpush1.msra.mxu0 %v461
    %1813 = vmatprep.subr.mxu0 0.0
    %1814 = vmatpush1.msra.mxu0 %v460
    %1815 = vmatprep.subr.mxu0 0.0
    %1816 = vmatpush1.msra.mxu0 %v459
    %1817 = vmatprep.subr.mxu0 0.0
    %1818 = vmatpush1.msra.mxu0 %v458
    %1819 = vmatprep.subr.mxu0 0.0
    %1820 = vmatpush2.msra.mxu0 0.0
    %1821 = vmatprep.subr.mxu0 0.0
    %1822 = vmatpush2.msra.mxu0 0.0
    %1823 = vmatprep.subr.mxu0 0.0
    %1824 = vmatpush2.msra.mxu0 0.0
    %1825 = vmatprep.subr.mxu0 0.0
    %1826 = vmatpush2.msra.mxu0 0.0
    %1827 = vmatprep.subr.mxu0 0.0
    %1828 = vmatpush2.msra.mxu0 0.0
    %1829 = vmatprep.subr.mxu0 0.0
    %1830 = vmatpush2.msra.mxu0 0.0
    %1831 = vmatprep.subr.mxu0 0.0
    %1832 = vmatpush2.msra.mxu0 0.0
    %1833 = vmatprep.subr.mxu0 0.0
    %1834 = vmatpush2.msra.mxu0 0.0
    %1835 = vmatprep.subr.mxu0 0.0
    %1836 = vmatpush2.msra.mxu0 0.0
    %1837 = vmatprep.subr.mxu0 0.0
    %1838 = vmatpush2.msra.mxu0 0.0
    %1839 = vmatprep.subr.mxu0 0.0
    %1840 = vmatpush2.msra.mxu0 0.0
    %1841 = vmatprep.subr.mxu0 0.0
    %1842 = vmatpush2.msra.mxu0 0.0
    %1843 = vmatprep.subr.mxu0 0.0
    %1844 = vmatpush2.msra.mxu0 0.0
    %1845 = vmatprep.subr.mxu0 0.0
    %1846 = vmatpush2.msra.mxu0 0.0
    %1847 = vmatprep.subr.mxu0 0.0
    %1848 = vmatpush2.msra.mxu0 0.0
    %1849 = vmatprep.subr.mxu0 0.0
    %1850 = vmatpush2.msra.mxu0 0.0
    %1851 = vmatprep.mubr.f32.mxu0 0.0
    %1852 = vmatmul.mubr.f32.gmra.mxu0 %v1776
    %v1853 = vpop.f32.mrf.mxu0
    %v1854 = vadd.f32 0.0, %v1853
    %v1855 = vpop.f32.mrf.mxu0
    %1856 = vmatprep.mubr.f32.mxu0 0.0
    %1857 = vmatmul.mubr.f32.gmra.mxu0 %v1779
    %v1858 = vpop.f32.mrf.mxu0
    %v1859 = vadd.f32 0.0, %v1858
    %v1860 = vpop.f32.mrf.mxu0
    %1861 = vmatprep.mubr.f32.mxu0 0.0
    %1862 = vmatmul.mubr.f32.gmra.mxu0 %v1782
    %v1863 = vpop.f32.mrf.mxu0
    %v1864 = vadd.f32 0.0, %v1863
    %v1865 = vpop.f32.mrf.mxu0
    %1866 = vmatprep.mubr.f32.mxu0 0.0
    %1867 = vmatmul.mubr.f32.gmra.mxu0 %v1785
    %v1868 = vpop.f32.mrf.mxu0
    %v1869 = vadd.f32 0.0, %v1868
    %v1870 = vpop.f32.mrf.mxu0
    %1871 = vdwg.mxu0
    %v1872 = vadd.f32 %v1752, %v1854
    %v1873 = vadd.f32 %v1757, %v1859
    %v1874 = vadd.f32 %v1762, %v1864
    %v1875 = vadd.f32 %v1767, %v1869
    %v1876 = vtanh.pop %v1872
    %v1877 = vtanh.pop %v1873
    %v1878 = vtanh.pop %v1874
    %v1879 = vtanh.pop %v1875
    %s1880 = scalar_lea.vmem %s6, 64
    %v1881 = vld [vmem:[%s1880] sm:$0xff]
    %v1882 = vld [vmem:[%s1880 + $0x8] sm:$0xff]
    %v1883 = vld [vmem:[%s1880 + $0x10] sm:$0xff]
    %v1884 = vld [vmem:[%s1880 + $0x18] sm:$0xff]
    %v1885 = vld [vmem:[%s1880 + $0x20] sm:$0xff]
    %v1886 = vld [vmem:[%s1880 + $0x28] sm:$0xff]
    %v1887 = vld [vmem:[%s1880 + $0x30] sm:$0xff]
    %v1888 = vld [vmem:[%s1880 + $0x38] sm:$0xff]
    %v1890 = vsel %vm571, %v1881, 0
    %v1893 = vsel %vm571, %v1882, 0
    %v1896 = vsel %vm571, %v1883, 0
    %v1899 = vsel %vm571, %v1884, 0
    %v1902 = vsel %vm571, %v1885, 0
    %v1905 = vsel %vm571, %v1886, 0
    %v1908 = vsel %vm571, %v1887, 0
    %v1911 = vsel %vm571, %v1888, 0
    %1913 = vmatprep.subr.mxu0 0.0
    %1914 = vmatpush1.msra.mxu0 0.0
    %1915 = vmatprep.subr.mxu0 0.0
    %1916 = vmatpush1.msra.mxu0 0.0
    %1917 = vmatprep.subr.mxu0 0.0
    %1918 = vmatpush1.msra.mxu0 0.0
    %1919 = vmatprep.subr.mxu0 0.0
    %1920 = vmatpush1.msra.mxu0 0.0
    %1921 = vmatprep.subr.mxu0 0.0
    %1922 = vmatpush1.msra.mxu0 0.0
    %1923 = vmatprep.subr.mxu0 0.0
    %1924 = vmatpush1.msra.mxu0 0.0
    %1925 = vmatprep.subr.mxu0 0.0
    %1926 = vmatpush1.msra.mxu0 0.0
    %1927 = vmatprep.subr.mxu0 0.0
    %1928 = vmatpush1.msra.mxu0 0.0
    %1929 = vmatprep.subr.mxu0 0.0
    %1930 = vmatpush1.msra.mxu0 0.0
    %1931 = vmatprep.subr.mxu0 0.0
    %1932 = vmatpush1.msra.mxu0 0.0
    %1933 = vmatprep.subr.mxu0 0.0
    %1934 = vmatpush1.msra.mxu0 0.0
    %1935 = vmatprep.subr.mxu0 0.0
    %1936 = vmatpush1.msra.mxu0 0.0
    %1937 = vmatprep.subr.mxu0 0.0
    %1938 = vmatpush1.msra.mxu0 %v1879
    %1939 = vmatprep.subr.mxu0 0.0
    %1940 = vmatpush1.msra.mxu0 %v1878
    %1941 = vmatprep.subr.mxu0 0.0
    %1942 = vmatpush1.msra.mxu0 %v1877
    %1943 = vmatprep.subr.mxu0 0.0
    %1944 = vmatpush1.msra.mxu0 %v1876
    %1945 = vmatprep.subr.mxu0 0.0
    %1946 = vmatpush2.msra.mxu0 0.0
    %1947 = vmatprep.subr.mxu0 0.0
    %1948 = vmatpush2.msra.mxu0 0.0
    %1949 = vmatprep.subr.mxu0 0.0
    %1950 = vmatpush2.msra.mxu0 0.0
    %1951 = vmatprep.subr.mxu0 0.0
    %1952 = vmatpush2.msra.mxu0 0.0
    %1953 = vmatprep.subr.mxu0 0.0
    %1954 = vmatpush2.msra.mxu0 0.0
    %1955 = vmatprep.subr.mxu0 0.0
    %1956 = vmatpush2.msra.mxu0 0.0
    %1957 = vmatprep.subr.mxu0 0.0
    %1958 = vmatpush2.msra.mxu0 0.0
    %1959 = vmatprep.subr.mxu0 0.0
    %1960 = vmatpush2.msra.mxu0 0.0
    %1961 = vmatprep.subr.mxu0 0.0
    %1962 = vmatpush2.msra.mxu0 0.0
    %1963 = vmatprep.subr.mxu0 0.0
    %1964 = vmatpush2.msra.mxu0 0.0
    %1965 = vmatprep.subr.mxu0 0.0
    %1966 = vmatpush2.msra.mxu0 0.0
    %1967 = vmatprep.subr.mxu0 0.0
    %1968 = vmatpush2.msra.mxu0 0.0
    %1969 = vmatprep.subr.mxu0 0.0
    %1970 = vmatpush2.msra.mxu0 0.0
    %1971 = vmatprep.subr.mxu0 0.0
    %1972 = vmatpush2.msra.mxu0 0.0
    %1973 = vmatprep.subr.mxu0 0.0
    %1974 = vmatpush2.msra.mxu0 0.0
    %1975 = vmatprep.subr.mxu0 0.0
    %1976 = vmatpush2.msra.mxu0 0.0
    %1977 = vmatprep.mubr.f32.mxu0 0.0
    %1978 = vmatmul.mubr.f32.gmra.mxu0 %v1890
    %v1979 = vpop.f32.mrf.mxu0
    %v1980 = vadd.f32 0.0, %v1979
    %v1981 = vpop.f32.mrf.mxu0
    %1982 = vmatprep.mubr.f32.mxu0 0.0
    %1983 = vmatmul.mubr.f32.gmra.mxu0 %v1893
    %v1984 = vpop.f32.mrf.mxu0
    %v1985 = vadd.f32 0.0, %v1984
    %v1986 = vpop.f32.mrf.mxu0
    %1987 = vmatprep.mubr.f32.mxu0 0.0
    %1988 = vmatmul.mubr.f32.gmra.mxu0 %v1896
    %v1989 = vpop.f32.mrf.mxu0
    %v1990 = vadd.f32 0.0, %v1989
    %v1991 = vpop.f32.mrf.mxu0
    %1992 = vmatprep.mubr.f32.mxu0 0.0
    %1993 = vmatmul.mubr.f32.gmra.mxu0 %v1899
    %v1994 = vpop.f32.mrf.mxu0
    %v1995 = vadd.f32 0.0, %v1994
    %v1996 = vpop.f32.mrf.mxu0
    %1997 = vmatprep.mubr.f32.mxu0 0.0
    %1998 = vmatmul.mubr.f32.gmra.mxu0 %v1902
    %v1999 = vpop.f32.mrf.mxu0
    %v2000 = vadd.f32 0.0, %v1999
    %v2001 = vpop.f32.mrf.mxu0
    %2002 = vmatprep.mubr.f32.mxu0 0.0
    %2003 = vmatmul.mubr.f32.gmra.mxu0 %v1905
    %v2004 = vpop.f32.mrf.mxu0
    %v2005 = vadd.f32 0.0, %v2004
    %v2006 = vpop.f32.mrf.mxu0
    %2007 = vmatprep.mubr.f32.mxu0 0.0
    %2008 = vmatmul.mubr.f32.gmra.mxu0 %v1908
    %v2009 = vpop.f32.mrf.mxu0
    %v2010 = vadd.f32 0.0, %v2009
    %v2011 = vpop.f32.mrf.mxu0
    %2012 = vmatprep.mubr.f32.mxu0 0.0
    %2013 = vmatmul.mubr.f32.gmra.mxu0 %v1911
    %v2014 = vpop.f32.mrf.mxu0
    %v2015 = vadd.f32 0.0, %v2014
    %v2016 = vpop.f32.mrf.mxu0
    %2017 = vdwg.mxu0
    %2019 = vset.pattern.permute.xlu0 0
    %2020 = vperm.xlu0 %2019, %v1980
    %v2021 = vpop.permute.xlu0 %2020
    %2024 = vset.pattern.permute.xlu0 0
    %2025 = vperm.xlu0 %2024, %v1985
    %v2026 = vpop.permute.xlu0 %2025
    %2029 = vset.pattern.permute.xlu0 0
    %2030 = vperm.xlu0 %2029, %v1990
    %v2031 = vpop.permute.xlu0 %2030
    %2034 = vset.pattern.permute.xlu0 0
    %2035 = vperm.xlu0 %2034, %v1995
    %v2036 = vpop.permute.xlu0 %2035
    %2039 = vset.pattern.permute.xlu0 0
    %2040 = vperm.xlu0 %2039, %v2000
    %v2041 = vpop.permute.xlu0 %2040
    %2044 = vset.pattern.permute.xlu0 0
    %2045 = vperm.xlu0 %2044, %v2005
    %v2046 = vpop.permute.xlu0 %2045
    %2049 = vset.pattern.permute.xlu0 0
    %2050 = vperm.xlu0 %2049, %v2010
    %v2051 = vpop.permute.xlu0 %2050
    %2054 = vset.pattern.permute.xlu0 0
    %2055 = vperm.xlu0 %2054, %v2015
    %v2056 = vpop.permute.xlu0 %2055
    %2058 = vset.pattern.permute.xlu0 1
    %2059 = vperm.xlu0 %2058, %v1980
    %v2060 = vpop.permute.xlu0 %2059
    %2062 = vset.pattern.permute.xlu0 1
    %2063 = vperm.xlu0 %2062, %v1985
    %v2064 = vpop.permute.xlu0 %2063
    %2066 = vset.pattern.permute.xlu0 1
    %2067 = vperm.xlu0 %2066, %v1990
    %v2068 = vpop.permute.xlu0 %2067
    %2070 = vset.pattern.permute.xlu0 1
    %2071 = vperm.xlu0 %2070, %v1995
    %v2072 = vpop.permute.xlu0 %2071
    %2074 = vset.pattern.permute.xlu0 1
    %2075 = vperm.xlu0 %2074, %v2000
    %v2076 = vpop.permute.xlu0 %2075
    %2078 = vset.pattern.permute.xlu0 1
    %2079 = vperm.xlu0 %2078, %v2005
    %v2080 = vpop.permute.xlu0 %2079
    %2082 = vset.pattern.permute.xlu0 1
    %2083 = vperm.xlu0 %2082, %v2010
    %v2084 = vpop.permute.xlu0 %2083
    %2086 = vset.pattern.permute.xlu0 1
    %2087 = vperm.xlu0 %2086, %v2015
    %v2088 = vpop.permute.xlu0 %2087
    %v2090 = vld [vmem:[%s392] sm:$0xff]
    %v2091 = vld [vmem:[%s392 + $0x8] sm:$0xff]
    %v2092 = vld [vmem:[%s392 + $0x10] sm:$0xff]
    %v2093 = vld [vmem:[%s392 + $0x18] sm:$0xff]
    %v2094 = vld [vmem:[%s392 + $0x20] sm:$0xff]
    %v2095 = vld [vmem:[%s392 + $0x28] sm:$0xff]
    %v2096 = vld [vmem:[%s392 + $0x30] sm:$0xff]
    %v2097 = vld [vmem:[%s392 + $0x38] sm:$0xff]
    %v2098 = vld [vmem:[%s392 + $0x40] sm:$0xff]
    %v2099 = vld [vmem:[%s392 + $0x48] sm:$0xff]
    %v2100 = vld [vmem:[%s392 + $0x50] sm:$0xff]
    %v2101 = vld [vmem:[%s392 + $0x58] sm:$0xff]
    %v2102 = vld [vmem:[%s392 + $0x60] sm:$0xff]
    %v2103 = vld [vmem:[%s392 + $0x68] sm:$0xff]
    %v2104 = vld [vmem:[%s392 + $0x70] sm:$0xff]
    %v2105 = vld [vmem:[%s392 + $0x78] sm:$0xff]
    %v2106 = vadd.f32 %v2090, %v2021
    %v2107 = vadd.f32 %v2091, %v2060
    %v2108 = vadd.f32 %v2092, %v2026
    %v2109 = vadd.f32 %v2093, %v2064
    %v2110 = vadd.f32 %v2094, %v2031
    %v2111 = vadd.f32 %v2095, %v2068
    %v2112 = vadd.f32 %v2096, %v2036
    %v2113 = vadd.f32 %v2097, %v2072
    %v2114 = vadd.f32 %v2098, %v2041
    %v2115 = vadd.f32 %v2099, %v2076
    %v2116 = vadd.f32 %v2100, %v2046
    %v2117 = vadd.f32 %v2101, %v2080
    %v2118 = vadd.f32 %v2102, %v2051
    %v2119 = vadd.f32 %v2103, %v2084
    %v2120 = vadd.f32 %v2104, %v2056
    %v2121 = vadd.f32 %v2105, %v2088
    %s2122 = scalar_lea.vmem %s7, 64
    %v2123 = vld [vmem:[%s2122] sm:$0xff]
    %v2124 = vld [vmem:[%s2122 + $0x8] sm:$0xff]
    %v2125 = vld [vmem:[%s2122 + $0x10] sm:$0xff]
    %v2126 = vld [vmem:[%s2122 + $0x18] sm:$0xff]
    %v2127 = vld [vmem:[%s2122 + $0x20] sm:$0xff]
    %v2128 = vld [vmem:[%s2122 + $0x28] sm:$0xff]
    %v2129 = vld [vmem:[%s2122 + $0x30] sm:$0xff]
    %v2130 = vld [vmem:[%s2122 + $0x38] sm:$0xff]
    %2132 = vset.pattern.permute.xlu0 0
    %2133 = vperm.xlu0 %2132, %v2123
    %v2134 = vpop.permute.xlu0 %2133
    %2137 = vset.pattern.permute.xlu0 0
    %2138 = vperm.xlu0 %2137, %v2124
    %v2139 = vpop.permute.xlu0 %2138
    %2142 = vset.pattern.permute.xlu0 0
    %2143 = vperm.xlu0 %2142, %v2125
    %v2144 = vpop.permute.xlu0 %2143
    %2147 = vset.pattern.permute.xlu0 0
    %2148 = vperm.xlu0 %2147, %v2126
    %v2149 = vpop.permute.xlu0 %2148
    %2152 = vset.pattern.permute.xlu0 0
    %2153 = vperm.xlu0 %2152, %v2127
    %v2154 = vpop.permute.xlu0 %2153
    %2157 = vset.pattern.permute.xlu0 0
    %2158 = vperm.xlu0 %2157, %v2128
    %v2159 = vpop.permute.xlu0 %2158
    %2162 = vset.pattern.permute.xlu0 0
    %2163 = vperm.xlu0 %2162, %v2129
    %v2164 = vpop.permute.xlu0 %2163
    %2167 = vset.pattern.permute.xlu0 0
    %2168 = vperm.xlu0 %2167, %v2130
    %v2169 = vpop.permute.xlu0 %2168
    %v2171 = vadd.f32 %v2106, %v2134
    %v2172 = vadd.f32 %v2107, %v2134
    %v2173 = vadd.f32 %v2108, %v2139
    %v2174 = vadd.f32 %v2109, %v2139
    %v2175 = vadd.f32 %v2110, %v2144
    %v2176 = vadd.f32 %v2111, %v2144
    %v2177 = vadd.f32 %v2112, %v2149
    %v2178 = vadd.f32 %v2113, %v2149
    %v2179 = vadd.f32 %v2114, %v2154
    %v2180 = vadd.f32 %v2115, %v2154
    %v2181 = vadd.f32 %v2116, %v2159
    %v2182 = vadd.f32 %v2117, %v2159
    %v2183 = vadd.f32 %v2118, %v2164
    %v2184 = vadd.f32 %v2119, %v2164
    %v2185 = vadd.f32 %v2120, %v2169
    %v2186 = vadd.f32 %v2121, %v2169
    %v2187 = vmax.f32 %v2171, %v2179
    %v2188 = vmax.f32 %v2172, %v2180
    %v2189 = vmax.f32 %v2173, %v2181
    %v2190 = vmax.f32 %v2174, %v2182
    %v2191 = vmax.f32 %v2175, %v2183
    %v2192 = vmax.f32 %v2176, %v2184
    %v2193 = vmax.f32 %v2177, %v2185
    %v2194 = vmax.f32 %v2178, %v2186
    %s2195 = scalar_lea.vmem %s8, 64
    %v2196 = vld [vmem:[%s2195] sm:$0xff]
    %v2197 = vld [vmem:[%s2195 + $0x8] sm:$0xff]
    %v2198 = vld [vmem:[%s2195 + $0x10] sm:$0xff]
    %v2199 = vld [vmem:[%s2195 + $0x18] sm:$0xff]
    %v2200 = vld [vmem:[%s2195 + $0x20] sm:$0xff]
    %v2201 = vld [vmem:[%s2195 + $0x28] sm:$0xff]
    %v2202 = vld [vmem:[%s2195 + $0x30] sm:$0xff]
    %v2203 = vld [vmem:[%s2195 + $0x38] sm:$0xff]
    %s2204 = scalar_lea.vmem %s9, 64
    %v2205 = vld [vmem:[%s2204] sm:$0xff]
    %v2206 = vld [vmem:[%s2204 + $0x8] sm:$0xff]
    %v2207 = vld [vmem:[%s2204 + $0x10] sm:$0xff]
    %v2208 = vld [vmem:[%s2204 + $0x18] sm:$0xff]
    %v2209 = vld [vmem:[%s2204 + $0x20] sm:$0xff]
    %v2210 = vld [vmem:[%s2204 + $0x28] sm:$0xff]
    %v2211 = vld [vmem:[%s2204 + $0x30] sm:$0xff]
    %v2212 = vld [vmem:[%s2204 + $0x38] sm:$0xff]
    %2214 = vset.pattern.permute.xlu0 0
    %2215 = vperm.xlu0 %2214, %v2205
    %v2216 = vpop.permute.xlu0 %2215
    %2219 = vset.pattern.permute.xlu0 0
    %2220 = vperm.xlu0 %2219, %v2206
    %v2221 = vpop.permute.xlu0 %2220
    %2224 = vset.pattern.permute.xlu0 0
    %2225 = vperm.xlu0 %2224, %v2207
    %v2226 = vpop.permute.xlu0 %2225
    %2229 = vset.pattern.permute.xlu0 0
    %2230 = vperm.xlu0 %2229, %v2208
    %v2231 = vpop.permute.xlu0 %2230
    %2234 = vset.pattern.permute.xlu0 0
    %2235 = vperm.xlu0 %2234, %v2209
    %v2236 = vpop.permute.xlu0 %2235
    %2239 = vset.pattern.permute.xlu0 0
    %2240 = vperm.xlu0 %2239, %v2210
    %v2241 = vpop.permute.xlu0 %2240
    %2244 = vset.pattern.permute.xlu0 0
    %2245 = vperm.xlu0 %2244, %v2211
    %v2246 = vpop.permute.xlu0 %2245
    %2249 = vset.pattern.permute.xlu0 0
    %2250 = vperm.xlu0 %2249, %v2212
    %v2251 = vpop.permute.xlu0 %2250
    %v2254 = vsel %vm571, %v2196, 0
    %v2257 = vsel %vm571, %v2197, 0
    %v2260 = vsel %vm571, %v2198, 0
    %v2263 = vsel %vm571, %v2199, 0
    %v2266 = vsel %vm571, %v2200, 0
    %v2269 = vsel %vm571, %v2201, 0
    %v2272 = vsel %vm571, %v2202, 0
    %v2275 = vsel %vm571, %v2203, 0
    %2277 = vmatprep.subr.mxu0 0.0
    %2278 = vmatpush1.msra.mxu0 0.0
    %2279 = vmatprep.subr.mxu0 0.0
    %2280 = vmatpush1.msra.mxu0 0.0
    %2281 = vmatprep.subr.mxu0 0.0
    %2282 = vmatpush1.msra.mxu0 0.0
    %2283 = vmatprep.subr.mxu0 0.0
    %2284 = vmatpush1.msra.mxu0 0.0
    %2285 = vmatprep.subr.mxu0 0.0
    %2286 = vmatpush1.msra.mxu0 0.0
    %2287 = vmatprep.subr.mxu0 0.0
    %2288 = vmatpush1.msra.mxu0 0.0
    %2289 = vmatprep.subr.mxu0 0.0
    %2290 = vmatpush1.msra.mxu0 0.0
    %2291 = vmatprep.subr.mxu0 0.0
    %2292 = vmatpush1.msra.mxu0 0.0
    %2293 = vmatprep.subr.mxu0 0.0
    %2294 = vmatpush1.msra.mxu0 0.0
    %2295 = vmatprep.subr.mxu0 0.0
    %2296 = vmatpush1.msra.mxu0 0.0
    %2297 = vmatprep.subr.mxu0 0.0
    %2298 = vmatpush1.msra.mxu0 0.0
    %2299 = vmatprep.subr.mxu0 0.0
    %2300 = vmatpush1.msra.mxu0 0.0
    %2301 = vmatprep.subr.mxu0 %v2194
    %2302 = vmatpush1.msra.mxu0 %v2193
    %2303 = vmatprep.subr.mxu0 %v2192
    %2304 = vmatpush1.msra.mxu0 %v2191
    %2305 = vmatprep.subr.mxu0 %v2190
    %2306 = vmatpush1.msra.mxu0 %v2189
    %2307 = vmatprep.subr.mxu0 %v2188
    %2308 = vmatpush1.msra.mxu0 %v2187
    %2309 = vmatprep.subr.mxu0 0.0
    %2310 = vmatpush2.msra.mxu0 0.0
    %2311 = vmatprep.subr.mxu0 0.0
    %2312 = vmatpush2.msra.mxu0 0.0
    %2313 = vmatprep.subr.mxu0 0.0
    %2314 = vmatpush2.msra.mxu0 0.0
    %2315 = vmatprep.subr.mxu0 0.0
    %2316 = vmatpush2.msra.mxu0 0.0
    %2317 = vmatprep.subr.mxu0 0.0
    %2318 = vmatpush2.msra.mxu0 0.0
    %2319 = vmatprep.subr.mxu0 0.0
    %2320 = vmatpush2.msra.mxu0 0.0
    %2321 = vmatprep.subr.mxu0 0.0
    %2322 = vmatpush2.msra.mxu0 0.0
    %2323 = vmatprep.subr.mxu0 0.0
    %2324 = vmatpush2.msra.mxu0 0.0
    %2325 = vmatprep.subr.mxu0 0.0
    %2326 = vmatpush2.msra.mxu0 0.0
    %2327 = vmatprep.subr.mxu0 0.0
    %2328 = vmatpush2.msra.mxu0 0.0
    %2329 = vmatprep.subr.mxu0 0.0
    %2330 = vmatpush2.msra.mxu0 0.0
    %2331 = vmatprep.subr.mxu0 0.0
    %2332 = vmatpush2.msra.mxu0 0.0
    %2333 = vmatprep.subr.mxu0 0.0
    %2334 = vmatpush2.msra.mxu0 0.0
    %2335 = vmatprep.subr.mxu0 0.0
    %2336 = vmatpush2.msra.mxu0 0.0
    %2337 = vmatprep.subr.mxu0 0.0
    %2338 = vmatpush2.msra.mxu0 0.0
    %2339 = vmatprep.subr.mxu0 0.0
    %2340 = vmatpush2.msra.mxu0 0.0
    %2341 = vmatprep.mubr.f32.mxu0 0.0
    %2342 = vmatmul.mubr.f32.gmra.mxu0 %v2254
    %v2343 = vpop.f32.mrf.mxu0
    %v2344 = vadd.f32 %v2216, %v2343
    %v2345 = vpop.f32.mrf.mxu0
    %v2346 = vadd.f32 %v2216, %v2345
    %2347 = vmatprep.mubr.f32.mxu0 0.0
    %2348 = vmatmul.mubr.f32.gmra.mxu0 %v2257
    %v2349 = vpop.f32.mrf.mxu0
    %v2350 = vadd.f32 %v2221, %v2349
    %v2351 = vpop.f32.mrf.mxu0
    %v2352 = vadd.f32 %v2221, %v2351
    %2353 = vmatprep.mubr.f32.mxu0 0.0
    %2354 = vmatmul.mubr.f32.gmra.mxu0 %v2260
    %v2355 = vpop.f32.mrf.mxu0
    %v2356 = vadd.f32 %v2226, %v2355
    %v2357 = vpop.f32.mrf.mxu0
    %v2358 = vadd.f32 %v2226, %v2357
    %2359 = vmatprep.mubr.f32.mxu0 0.0
    %2360 = vmatmul.mubr.f32.gmra.mxu0 %v2263
    %v2361 = vpop.f32.mrf.mxu0
    %v2362 = vadd.f32 %v2231, %v2361
    %v2363 = vpop.f32.mrf.mxu0
    %v2364 = vadd.f32 %v2231, %v2363
    %2365 = vmatprep.mubr.f32.mxu0 0.0
    %2366 = vmatmul.mubr.f32.gmra.mxu0 %v2266
    %v2367 = vpop.f32.mrf.mxu0
    %v2368 = vadd.f32 %v2236, %v2367
    %v2369 = vpop.f32.mrf.mxu0
    %v2370 = vadd.f32 %v2236, %v2369
    %2371 = vmatprep.mubr.f32.mxu0 0.0
    %2372 = vmatmul.mubr.f32.gmra.mxu0 %v2269
    %v2373 = vpop.f32.mrf.mxu0
    %v2374 = vadd.f32 %v2241, %v2373
    %v2375 = vpop.f32.mrf.mxu0
    %v2376 = vadd.f32 %v2241, %v2375
    %2377 = vmatprep.mubr.f32.mxu0 0.0
    %2378 = vmatmul.mubr.f32.gmra.mxu0 %v2272
    %v2379 = vpop.f32.mrf.mxu0
    %v2380 = vadd.f32 %v2246, %v2379
    %v2381 = vpop.f32.mrf.mxu0
    %v2382 = vadd.f32 %v2246, %v2381
    %2383 = vmatprep.mubr.f32.mxu0 0.0
    %2384 = vmatmul.mubr.f32.gmra.mxu0 %v2275
    %v2385 = vpop.f32.mrf.mxu0
    %v2386 = vadd.f32 %v2251, %v2385
    %v2387 = vpop.f32.mrf.mxu0
    %v2388 = vadd.f32 %v2251, %v2387
    %2389 = vdwg.mxu0
    %v2390 = vmax.f32 %v2344, %v2368
    %v2391 = vmax.f32 %v2346, %v2370
    %v2392 = vmax.f32 %v2350, %v2374
    %v2393 = vmax.f32 %v2352, %v2376
    %v2394 = vmax.f32 %v2356, %v2380
    %v2395 = vmax.f32 %v2358, %v2382
    %v2396 = vmax.f32 %v2362, %v2386
    %v2397 = vmax.f32 %v2364, %v2388
    %s2398 = scalar_lea.vmem %s10, 8
    %v2399 = vld [vmem:[%s2398] sm:$0xff]
    %s2400 = scalar_lea.vmem %s11, 8
    %v2401 = vld [vmem:[%s2400] sm:$0xff]
    %v2403 = vsel %vm571, %v2401, 0
    %2405 = vmatprep.subr.mxu0 0.0
    %2406 = vmatpush1.msra.mxu0 0.0
    %2407 = vmatprep.subr.mxu0 0.0
    %2408 = vmatpush1.msra.mxu0 0.0
    %2409 = vmatprep.subr.mxu0 0.0
    %2410 = vmatpush1.msra.mxu0 0.0
    %2411 = vmatprep.subr.mxu0 0.0
    %2412 = vmatpush1.msra.mxu0 0.0
    %2413 = vmatprep.subr.mxu0 0.0
    %2414 = vmatpush1.msra.mxu0 0.0
    %2415 = vmatprep.subr.mxu0 0.0
    %2416 = vmatpush1.msra.mxu0 0.0
    %2417 = vmatprep.subr.mxu0 0.0
    %2418 = vmatpush1.msra.mxu0 0.0
    %2419 = vmatprep.subr.mxu0 0.0
    %2420 = vmatpush1.msra.mxu0 0.0
    %2421 = vmatprep.subr.mxu0 0.0
    %2422 = vmatpush1.msra.mxu0 0.0
    %2423 = vmatprep.subr.mxu0 0.0
    %2424 = vmatpush1.msra.mxu0 0.0
    %2425 = vmatprep.subr.mxu0 0.0
    %2426 = vmatpush1.msra.mxu0 0.0
    %2427 = vmatprep.subr.mxu0 0.0
    %2428 = vmatpush1.msra.mxu0 0.0
    %2429 = vmatprep.subr.mxu0 %v2397
    %2430 = vmatpush1.msra.mxu0 %v2396
    %2431 = vmatprep.subr.mxu0 %v2395
    %2432 = vmatpush1.msra.mxu0 %v2394
    %2433 = vmatprep.subr.mxu0 %v2393
    %2434 = vmatpush1.msra.mxu0 %v2392
    %2435 = vmatprep.subr.mxu0 %v2391
    %2436 = vmatpush1.msra.mxu0 %v2390
    %2437 = vmatprep.subr.mxu0 0.0
    %2438 = vmatpush2.msra.mxu0 0.0
    %2439 = vmatprep.subr.mxu0 0.0
    %2440 = vmatpush2.msra.mxu0 0.0
    %2441 = vmatprep.subr.mxu0 0.0
    %2442 = vmatpush2.msra.mxu0 0.0
    %2443 = vmatprep.subr.mxu0 0.0
    %2444 = vmatpush2.msra.mxu0 0.0
    %2445 = vmatprep.subr.mxu0 0.0
    %2446 = vmatpush2.msra.mxu0 0.0
    %2447 = vmatprep.subr.mxu0 0.0
    %2448 = vmatpush2.msra.mxu0 0.0
    %2449 = vmatprep.subr.mxu0 0.0
    %2450 = vmatpush2.msra.mxu0 0.0
    %2451 = vmatprep.subr.mxu0 0.0
    %2452 = vmatpush2.msra.mxu0 0.0
    %2453 = vmatprep.subr.mxu0 0.0
    %2454 = vmatpush2.msra.mxu0 0.0
    %2455 = vmatprep.subr.mxu0 0.0
    %2456 = vmatpush2.msra.mxu0 0.0
    %2457 = vmatprep.subr.mxu0 0.0
    %2458 = vmatpush2.msra.mxu0 0.0
    %2459 = vmatprep.subr.mxu0 0.0
    %2460 = vmatpush2.msra.mxu0 0.0
    %2461 = vmatprep.subr.mxu0 0.0
    %2462 = vmatpush2.msra.mxu0 0.0
    %2463 = vmatprep.subr.mxu0 0.0
    %2464 = vmatpush2.msra.mxu0 0.0
    %2465 = vmatprep.subr.mxu0 0.0
    %2466 = vmatpush2.msra.mxu0 0.0
    %2467 = vmatprep.subr.mxu0 0.0
    %2468 = vmatpush2.msra.mxu0 0.0
    %2469 = vmatprep.mubr.f32.mxu0 0.0
    %2470 = vmatmul.mubr.f32.gmra.mxu0 %v2403
    %v2471 = vpop.f32.mrf.mxu0
    %v2472 = vadd.f32 0.0, %v2471
    %v2473 = vpop.f32.mrf.mxu0
    %v2474 = vadd.f32 0.0, %v2473
    %2475 = vdwg.mxu0
    %v2477 = vsel %vm571, %v2399, 0
    %2479 = vmatprep.subr.mxu0 0.0
    %2480 = vmatpush1.msra.mxu0 0.0
    %2481 = vmatprep.subr.mxu0 0.0
    %2482 = vmatpush1.msra.mxu0 0.0
    %2483 = vmatprep.subr.mxu0 0.0
    %2484 = vmatpush1.msra.mxu0 0.0
    %2485 = vmatprep.subr.mxu0 0.0
    %2486 = vmatpush1.msra.mxu0 0.0
    %2487 = vmatprep.subr.mxu0 0.0
    %2488 = vmatpush1.msra.mxu0 0.0
    %2489 = vmatprep.subr.mxu0 0.0
    %2490 = vmatpush1.msra.mxu0 0.0
    %2491 = vmatprep.subr.mxu0 0.0
    %2492 = vmatpush1.msra.mxu0 0.0
    %2493 = vmatprep.subr.mxu0 0.0
    %2494 = vmatpush1.msra.mxu0 0.0
    %2495 = vmatprep.subr.mxu0 0.0
    %2496 = vmatpush1.msra.mxu0 0.0
    %2497 = vmatprep.subr.mxu0 0.0
    %2498 = vmatpush1.msra.mxu0 0.0
    %2499 = vmatprep.subr.mxu0 0.0
    %2500 = vmatpush1.msra.mxu0 0.0
    %2501 = vmatprep.subr.mxu0 0.0
    %2502 = vmatpush1.msra.mxu0 0.0
    %2503 = vmatprep.subr.mxu0 %v2194
    %2504 = vmatpush1.msra.mxu0 %v2193
    %2505 = vmatprep.subr.mxu0 %v2192
    %2506 = vmatpush1.msra.mxu0 %v2191
    %2507 = vmatprep.subr.mxu0 %v2190
    %2508 = vmatpush1.msra.mxu0 %v2189
    %2509 = vmatprep.subr.mxu0 %v2188
    %2510 = vmatpush1.msra.mxu0 %v2187
    %2511 = vmatprep.subr.mxu0 0.0
    %2512 = vmatpush2.msra.mxu0 0.0
    %2513 = vmatprep.subr.mxu0 0.0
    %2514 = vmatpush2.msra.mxu0 0.0
    %2515 = vmatprep.subr.mxu0 0.0
    %2516 = vmatpush2.msra.mxu0 0.0
    %2517 = vmatprep.subr.mxu0 0.0
    %2518 = vmatpush2.msra.mxu0 0.0
    %2519 = vmatprep.subr.mxu0 0.0
    %2520 = vmatpush2.msra.mxu0 0.0
    %2521 = vmatprep.subr.mxu0 0.0
    %2522 = vmatpush2.msra.mxu0 0.0
    %2523 = vmatprep.subr.mxu0 0.0
    %2524 = vmatpush2.msra.mxu0 0.0
    %2525 = vmatprep.subr.mxu0 0.0
    %2526 = vmatpush2.msra.mxu0 0.0
    %2527 = vmatprep.subr.mxu0 0.0
    %2528 = vmatpush2.msra.mxu0 0.0
    %2529 = vmatprep.subr.mxu0 0.0
    %2530 = vmatpush2.msra.mxu0 0.0
    %2531 = vmatprep.subr.mxu0 0.0
    %2532 = vmatpush2.msra.mxu0 0.0
    %2533 = vmatprep.subr.mxu0 0.0
    %2534 = vmatpush2.msra.mxu0 0.0
    %2535 = vmatprep.subr.mxu0 0.0
    %2536 = vmatpush2.msra.mxu0 0.0
    %2537 = vmatprep.subr.mxu0 0.0
    %2538 = vmatpush2.msra.mxu0 0.0
    %2539 = vmatprep.subr.mxu0 0.0
    %2540 = vmatpush2.msra.mxu0 0.0
    %2541 = vmatprep.subr.mxu0 0.0
    %2542 = vmatpush2.msra.mxu0 0.0
    %2543 = vmatprep.mubr.f32.mxu0 0.0
    %2544 = vmatmul.mubr.f32.gmra.mxu0 %v2477
    %v2545 = vpop.f32.mrf.mxu0
    %v2546 = vadd.f32 %v2472, %v2545
    %v2547 = vpop.f32.mrf.mxu0
    %v2548 = vadd.f32 %v2474, %v2547
    %2549 = vdwg.mxu0
    %s2550 = scalar_lea.vmem %s12, 8
    %v2551 = vld [vmem:[%s2550] sm:$0xff]
    %2553 = vset.pattern.permute.xlu0 0
    %2554 = vperm.xlu0 %2553, %v2551
    %v2555 = vpop.permute.xlu0 %2554
    %v2557 = vadd.f32 %v2546, %v2555
    %v2558 = vadd.f32 %v2548, %v2555
    %v2559 = vrot.slane %v2557, 4
    %v2560 = vmax.f32 %v2557, %v2559
    %v2561 = vrot.slane %v2560, 2
    %v2562 = vmax.f32 %v2560, %v2561
    %v2563 = vrot.slane %v2562, 1
    %v2564 = vmax.f32 %v2562, %v2563
    %v2565 = vrot.slane %v2558, 4
    %v2566 = vmax.f32 %v2558, %v2565
    %v2567 = vrot.slane %v2566, 2
    %v2568 = vmax.f32 %v2566, %v2567
    %v2569 = vrot.slane %v2568, 1
    %v2570 = vmax.f32 %v2568, %v2569
    %v2571 = vsub.f32 %v2564, %v1467
    %v2572 = vsub.f32 %v2570, %v1471
    %v2573 = vsel %vm1479, %v2571, -inf
    %2574 = vmax.xlane.f32.xlu0 %v2573
    %v2575 = vpop.xlane.xlu0 %2574
    %vm2576 = vcmp.ge.f32.partialorder %v2571, %v2575
    %v2577 = vsel %vm2576, %v1478, 128.0
    %v2578 = vsel %vm1479, %v2577, inf
    %2579 = vmin.xlane.f32.xlu0 %v2578
    %v2580 = vpop.xlane.xlu0 %2579
    %vm2581 = vcmp.eq.f32.partialorder %v1478, %v2580
    %v2582 = vsel %vm2581, 1, 0
    %v2583 = vcvt.s32.f32 %v2582
    %v2584 = vlaneseq
    %v2585 = vshrl.u32 %v2584, 7
    %v2586 = vsub.s32 0, %v2585
    %v2587 = vrot.slane %v2583, %v2586
    %v2588 = vmul.f32 %v409, %v2587
    %v2589 = vmul.f32 %v410, %v2587
    %v2590 = vmul.f32 %v411, %v2587
    %v2591 = vmul.f32 %v412, %v2587
    %v2592 = vmul.f32 %v413, %v2587
    %v2593 = vmul.f32 %v414, %v2587
    %v2594 = vmul.f32 %v415, %v2587
    %v2595 = vmul.f32 %v416, %v2587
    %2596 = vadd.xlane.f32.xlu0 %v2588
    %v2597 = vpop.xlane.xlu0 %2596
    %2598 = vadd.xlane.f32.xlu0 %v2589
    %v2599 = vpop.xlane.xlu0 %2598
    %2600 = vadd.xlane.f32.xlu0 %v2590
    %v2601 = vpop.xlane.xlu0 %2600
    %2602 = vadd.xlane.f32.xlu0 %v2591
    %v2603 = vpop.xlane.xlu0 %2602
    %2604 = vadd.xlane.f32.xlu0 %v2592
    %v2605 = vpop.xlane.xlu0 %2604
    %2606 = vadd.xlane.f32.xlu0 %v2593
    %v2607 = vpop.xlane.xlu0 %2606
    %2608 = vadd.xlane.f32.xlu0 %v2594
    %v2609 = vpop.xlane.xlu0 %2608
    %2610 = vadd.xlane.f32.xlu0 %v2595
    %v2611 = vpop.xlane.xlu0 %2610
    %v2612 = vsel %vm1479, %v2572, -inf
    %2613 = vmax.xlane.f32.xlu0 %v2612
    %v2614 = vpop.xlane.xlu0 %2613
    %vm2615 = vcmp.ge.f32.partialorder %v2572, %v2614
    %v2616 = vsel %vm2615, %v1478, 128.0
    %v2617 = vsel %vm1479, %v2616, inf
    %2618 = vmin.xlane.f32.xlu0 %v2617
    %v2619 = vpop.xlane.xlu0 %2618
    %vm2620 = vcmp.eq.f32.partialorder %v1478, %v2619
    %v2621 = vsel %vm2620, 1, 0
    %v2622 = vcvt.s32.f32 %v2621
    %v2623 = vlaneseq
    %v2624 = vshrl.u32 %v2623, 7
    %v2625 = vsub.s32 0, %v2624
    %v2626 = vrot.slane %v2622, %v2625
    %v2627 = vmul.f32 %v417, %v2626
    %v2628 = vmul.f32 %v418, %v2626
    %v2629 = vmul.f32 %v419, %v2626
    %v2630 = vmul.f32 %v420, %v2626
    %v2631 = vmul.f32 %v421, %v2626
    %v2632 = vmul.f32 %v422, %v2626
    %v2633 = vmul.f32 %v423, %v2626
    %v2634 = vmul.f32 %v424, %v2626
    %2635 = vadd.xlane.f32.xlu0 %v2627
    %v2636 = vpop.xlane.xlu0 %2635
    %2637 = vadd.xlane.f32.xlu0 %v2628
    %v2638 = vpop.xlane.xlu0 %2637
    %2639 = vadd.xlane.f32.xlu0 %v2629
    %v2640 = vpop.xlane.xlu0 %2639
    %2641 = vadd.xlane.f32.xlu0 %v2630
    %v2642 = vpop.xlane.xlu0 %2641
    %2643 = vadd.xlane.f32.xlu0 %v2631
    %v2644 = vpop.xlane.xlu0 %2643
    %2645 = vadd.xlane.f32.xlu0 %v2632
    %v2646 = vpop.xlane.xlu0 %2645
    %2647 = vadd.xlane.f32.xlu0 %v2633
    %v2648 = vpop.xlane.xlu0 %2647
    %2649 = vadd.xlane.f32.xlu0 %v2634
    %v2650 = vpop.xlane.xlu0 %2649
    %v2651 = vsel %vm457, %v2597, %v2636
    %v2652 = vsel %vm457, %v2599, %v2638
    %v2653 = vsel %vm457, %v2601, %v2640
    %v2654 = vsel %vm457, %v2603, %v2642
    %v2655 = vsel %vm457, %v2605, %v2644
    %v2656 = vsel %vm457, %v2607, %v2646
    %v2657 = vsel %vm457, %v2609, %v2648
    %v2658 = vsel %vm457, %v2611, %v2650
    %v2659 = vld [vmem:[%s13] sm:$0xff]
    %v2660 = vld [vmem:[%s13 + $0x8] sm:$0xff]
    %v2661 = vld [vmem:[%s13 + $0x10] sm:$0xff]
    %v2662 = vld [vmem:[%s13 + $0x18] sm:$0xff]
    %v2663 = vld [vmem:[%s13 + $0x20] sm:$0xff]
    %v2664 = vld [vmem:[%s13 + $0x28] sm:$0xff]
    %v2665 = vld [vmem:[%s13 + $0x30] sm:$0xff]
    %v2666 = vld [vmem:[%s13 + $0x38] sm:$0xff]
    %v2667 = vld [vmem:[%s13 + $0x40] sm:$0xff]
    %v2668 = vld [vmem:[%s13 + $0x48] sm:$0xff]
    %v2669 = vld [vmem:[%s13 + $0x50] sm:$0xff]
    %v2670 = vld [vmem:[%s13 + $0x58] sm:$0xff]
    %v2671 = vld [vmem:[%s13 + $0x60] sm:$0xff]
    %v2672 = vld [vmem:[%s13 + $0x68] sm:$0xff]
    %v2673 = vld [vmem:[%s13 + $0x70] sm:$0xff]
    %v2674 = vld [vmem:[%s13 + $0x78] sm:$0xff]
    %v2675 = vld [vmem:[%s14] sm:$0xff]
    %v2676 = vld [vmem:[%s14 + $0x8] sm:$0xff]
    %v2677 = vld [vmem:[%s14 + $0x10] sm:$0xff]
    %v2678 = vld [vmem:[%s14 + $0x18] sm:$0xff]
    %v2679 = vld [vmem:[%s14 + $0x20] sm:$0xff]
    %v2680 = vld [vmem:[%s14 + $0x28] sm:$0xff]
    %v2681 = vld [vmem:[%s14 + $0x30] sm:$0xff]
    %v2682 = vld [vmem:[%s14 + $0x38] sm:$0xff]
    %v2683 = vld [vmem:[%s14 + $0x40] sm:$0xff]
    %v2684 = vld [vmem:[%s14 + $0x48] sm:$0xff]
    %v2685 = vld [vmem:[%s14 + $0x50] sm:$0xff]
    %v2686 = vld [vmem:[%s14 + $0x58] sm:$0xff]
    %v2687 = vld [vmem:[%s14 + $0x60] sm:$0xff]
    %v2688 = vld [vmem:[%s14 + $0x68] sm:$0xff]
    %v2689 = vld [vmem:[%s14 + $0x70] sm:$0xff]
    %v2690 = vld [vmem:[%s14 + $0x78] sm:$0xff]
    %v2692 = vsel %vm92, %v2675, 0
    %v2695 = vsel %vm92, %v2676, 0
    %v2698 = vsel %vm92, %v2677, 0
    %v2701 = vsel %vm92, %v2678, 0
    %v2704 = vsel %vm92, %v2679, 0
    %v2707 = vsel %vm92, %v2680, 0
    %v2710 = vsel %vm92, %v2681, 0
    %v2713 = vsel %vm92, %v2682, 0
    %v2716 = vsel %vm92, %v2683, 0
    %v2719 = vsel %vm92, %v2684, 0
    %v2722 = vsel %vm92, %v2685, 0
    %v2725 = vsel %vm92, %v2686, 0
    %v2728 = vsel %vm92, %v2687, 0
    %v2731 = vsel %vm92, %v2688, 0
    %v2734 = vsel %vm92, %v2689, 0
    %v2737 = vsel %vm92, %v2690, 0
    %2739 = vmatprep.subr.mxu0 0.0
    %2740 = vmatpush1.msra.mxu0 0.0
    %2741 = vmatprep.subr.mxu0 0.0
    %2742 = vmatpush1.msra.mxu0 0.0
    %2743 = vmatprep.subr.mxu0 0.0
    %2744 = vmatpush1.msra.mxu0 0.0
    %2745 = vmatprep.subr.mxu0 0.0
    %2746 = vmatpush1.msra.mxu0 0.0
    %2747 = vmatprep.subr.mxu0 0.0
    %2748 = vmatpush1.msra.mxu0 0.0
    %2749 = vmatprep.subr.mxu0 0.0
    %2750 = vmatpush1.msra.mxu0 0.0
    %2751 = vmatprep.subr.mxu0 0.0
    %2752 = vmatpush1.msra.mxu0 0.0
    %2753 = vmatprep.subr.mxu0 0.0
    %2754 = vmatpush1.msra.mxu0 0.0
    %2755 = vmatprep.subr.mxu0 0.0
    %2756 = vmatpush1.msra.mxu0 %v2658
    %2757 = vmatprep.subr.mxu0 0.0
    %2758 = vmatpush1.msra.mxu0 %v2657
    %2759 = vmatprep.subr.mxu0 0.0
    %2760 = vmatpush1.msra.mxu0 %v2656
    %2761 = vmatprep.subr.mxu0 0.0
    %2762 = vmatpush1.msra.mxu0 %v2655
    %2763 = vmatprep.subr.mxu0 0.0
    %2764 = vmatpush1.msra.mxu0 %v2654
    %2765 = vmatprep.subr.mxu0 0.0
    %2766 = vmatpush1.msra.mxu0 %v2653
    %2767 = vmatprep.subr.mxu0 0.0
    %2768 = vmatpush1.msra.mxu0 %v2652
    %2769 = vmatprep.subr.mxu0 0.0
    %2770 = vmatpush1.msra.mxu0 %v2651
    %2771 = vmatprep.subr.mxu0 0.0
    %2772 = vmatpush2.msra.mxu0 0.0
    %2773 = vmatprep.subr.mxu0 0.0
    %2774 = vmatpush2.msra.mxu0 0.0
    %2775 = vmatprep.subr.mxu0 0.0
    %2776 = vmatpush2.msra.mxu0 0.0
    %2777 = vmatprep.subr.mxu0 0.0
    %2778 = vmatpush2.msra.mxu0 0.0
    %2779 = vmatprep.subr.mxu0 0.0
    %2780 = vmatpush2.msra.mxu0 0.0
    %2781 = vmatprep.subr.mxu0 0.0
    %2782 = vmatpush2.msra.mxu0 0.0
    %2783 = vmatprep.subr.mxu0 0.0
    %2784 = vmatpush2.msra.mxu0 0.0
    %2785 = vmatprep.subr.mxu0 0.0
    %2786 = vmatpush2.msra.mxu0 0.0
    %2787 = vmatprep.subr.mxu0 0.0
    %2788 = vmatpush2.msra.mxu0 0.0
    %2789 = vmatprep.subr.mxu0 0.0
    %2790 = vmatpush2.msra.mxu0 0.0
    %2791 = vmatprep.subr.mxu0 0.0
    %2792 = vmatpush2.msra.mxu0 0.0
    %2793 = vmatprep.subr.mxu0 0.0
    %2794 = vmatpush2.msra.mxu0 0.0
    %2795 = vmatprep.subr.mxu0 0.0
    %2796 = vmatpush2.msra.mxu0 0.0
    %2797 = vmatprep.subr.mxu0 0.0
    %2798 = vmatpush2.msra.mxu0 0.0
    %2799 = vmatprep.subr.mxu0 0.0
    %2800 = vmatpush2.msra.mxu0 0.0
    %2801 = vmatprep.subr.mxu0 0.0
    %2802 = vmatpush2.msra.mxu0 0.0
    %2803 = vmatprep.mubr.f32.mxu0 0.0
    %2804 = vmatmul.mubr.f32.gmra.mxu0 %v2692
    %v2805 = vpop.f32.mrf.mxu0
    %v2806 = vadd.f32 0.0, %v2805
    %v2807 = vpop.f32.mrf.mxu0
    %2808 = vmatprep.mubr.f32.mxu0 0.0
    %2809 = vmatmul.mubr.f32.gmra.mxu0 %v2695
    %v2810 = vpop.f32.mrf.mxu0
    %v2811 = vadd.f32 0.0, %v2810
    %v2812 = vpop.f32.mrf.mxu0
    %2813 = vmatprep.mubr.f32.mxu0 0.0
    %2814 = vmatmul.mubr.f32.gmra.mxu0 %v2698
    %v2815 = vpop.f32.mrf.mxu0
    %v2816 = vadd.f32 0.0, %v2815
    %v2817 = vpop.f32.mrf.mxu0
    %2818 = vmatprep.mubr.f32.mxu0 0.0
    %2819 = vmatmul.mubr.f32.gmra.mxu0 %v2701
    %v2820 = vpop.f32.mrf.mxu0
    %v2821 = vadd.f32 0.0, %v2820
    %v2822 = vpop.f32.mrf.mxu0
    %2823 = vmatprep.mubr.f32.mxu0 0.0
    %2824 = vmatmul.mubr.f32.gmra.mxu0 %v2704
    %v2825 = vpop.f32.mrf.mxu0
    %v2826 = vadd.f32 0.0, %v2825
    %v2827 = vpop.f32.mrf.mxu0
    %2828 = vmatprep.mubr.f32.mxu0 0.0
    %2829 = vmatmul.mubr.f32.gmra.mxu0 %v2707
    %v2830 = vpop.f32.mrf.mxu0
    %v2831 = vadd.f32 0.0, %v2830
    %v2832 = vpop.f32.mrf.mxu0
    %2833 = vmatprep.mubr.f32.mxu0 0.0
    %2834 = vmatmul.mubr.f32.gmra.mxu0 %v2710
    %v2835 = vpop.f32.mrf.mxu0
    %v2836 = vadd.f32 0.0, %v2835
    %v2837 = vpop.f32.mrf.mxu0
    %2838 = vmatprep.mubr.f32.mxu0 0.0
    %2839 = vmatmul.mubr.f32.gmra.mxu0 %v2713
    %v2840 = vpop.f32.mrf.mxu0
    %v2841 = vadd.f32 0.0, %v2840
    %v2842 = vpop.f32.mrf.mxu0
    %2843 = vmatprep.mubr.f32.mxu0 0.0
    %2844 = vmatmul.mubr.f32.gmra.mxu0 %v2716
    %v2845 = vpop.f32.mrf.mxu0
    %v2846 = vadd.f32 0.0, %v2845
    %v2847 = vpop.f32.mrf.mxu0
    %2848 = vmatprep.mubr.f32.mxu0 0.0
    %2849 = vmatmul.mubr.f32.gmra.mxu0 %v2719
    %v2850 = vpop.f32.mrf.mxu0
    %v2851 = vadd.f32 0.0, %v2850
    %v2852 = vpop.f32.mrf.mxu0
    %2853 = vmatprep.mubr.f32.mxu0 0.0
    %2854 = vmatmul.mubr.f32.gmra.mxu0 %v2722
    %v2855 = vpop.f32.mrf.mxu0
    %v2856 = vadd.f32 0.0, %v2855
    %v2857 = vpop.f32.mrf.mxu0
    %2858 = vmatprep.mubr.f32.mxu0 0.0
    %2859 = vmatmul.mubr.f32.gmra.mxu0 %v2725
    %v2860 = vpop.f32.mrf.mxu0
    %v2861 = vadd.f32 0.0, %v2860
    %v2862 = vpop.f32.mrf.mxu0
    %2863 = vmatprep.mubr.f32.mxu0 0.0
    %2864 = vmatmul.mubr.f32.gmra.mxu0 %v2728
    %v2865 = vpop.f32.mrf.mxu0
    %v2866 = vadd.f32 0.0, %v2865
    %v2867 = vpop.f32.mrf.mxu0
    %2868 = vmatprep.mubr.f32.mxu0 0.0
    %2869 = vmatmul.mubr.f32.gmra.mxu0 %v2731
    %v2870 = vpop.f32.mrf.mxu0
    %v2871 = vadd.f32 0.0, %v2870
    %v2872 = vpop.f32.mrf.mxu0
    %2873 = vmatprep.mubr.f32.mxu0 0.0
    %2874 = vmatmul.mubr.f32.gmra.mxu0 %v2734
    %v2875 = vpop.f32.mrf.mxu0
    %v2876 = vadd.f32 0.0, %v2875
    %v2877 = vpop.f32.mrf.mxu0
    %2878 = vmatprep.mubr.f32.mxu0 0.0
    %2879 = vmatmul.mubr.f32.gmra.mxu0 %v2737
    %v2880 = vpop.f32.mrf.mxu0
    %v2881 = vadd.f32 0.0, %v2880
    %v2882 = vpop.f32.mrf.mxu0
    %2883 = vdwg.mxu0
    %v2885 = vsel %vm92, %v2659, 0
    %v2888 = vsel %vm92, %v2660, 0
    %v2891 = vsel %vm92, %v2661, 0
    %v2894 = vsel %vm92, %v2662, 0
    %v2897 = vsel %vm92, %v2663, 0
    %v2900 = vsel %vm92, %v2664, 0
    %v2903 = vsel %vm92, %v2665, 0
    %v2906 = vsel %vm92, %v2666, 0
    %v2909 = vsel %vm92, %v2667, 0
    %v2912 = vsel %vm92, %v2668, 0
    %v2915 = vsel %vm92, %v2669, 0
    %v2918 = vsel %vm92, %v2670, 0
    %v2921 = vsel %vm92, %v2671, 0
    %v2924 = vsel %vm92, %v2672, 0
    %v2927 = vsel %vm92, %v2673, 0
    %v2930 = vsel %vm92, %v2674, 0
    %2932 = vmatprep.subr.mxu0 0.0
    %2933 = vmatpush1.msra.mxu0 0.0
    %2934 = vmatprep.subr.mxu0 0.0
    %2935 = vmatpush1.msra.mxu0 0.0
    %2936 = vmatprep.subr.mxu0 0.0
    %2937 = vmatpush1.msra.mxu0 0.0
    %2938 = vmatprep.subr.mxu0 0.0
    %2939 = vmatpush1.msra.mxu0 0.0
    %2940 = vmatprep.subr.mxu0 0.0
    %2941 = vmatpush1.msra.mxu0 0.0
    %2942 = vmatprep.subr.mxu0 0.0
    %2943 = vmatpush1.msra.mxu0 0.0
    %2944 = vmatprep.subr.mxu0 0.0
    %2945 = vmatpush1.msra.mxu0 0.0
    %2946 = vmatprep.subr.mxu0 0.0
    %2947 = vmatpush1.msra.mxu0 0.0
    %2948 = vmatprep.subr.mxu0 0.0
    %2949 = vmatpush1.msra.mxu0 %v1565
    %2950 = vmatprep.subr.mxu0 0.0
    %2951 = vmatpush1.msra.mxu0 %v1564
    %2952 = vmatprep.subr.mxu0 0.0
    %2953 = vmatpush1.msra.mxu0 %v1563
    %2954 = vmatprep.subr.mxu0 0.0
    %2955 = vmatpush1.msra.mxu0 %v1562
    %2956 = vmatprep.subr.mxu0 0.0
    %2957 = vmatpush1.msra.mxu0 %v1561
    %2958 = vmatprep.subr.mxu0 0.0
    %2959 = vmatpush1.msra.mxu0 %v1560
    %2960 = vmatprep.subr.mxu0 0.0
    %2961 = vmatpush1.msra.mxu0 %v1559
    %2962 = vmatprep.subr.mxu0 0.0
    %2963 = vmatpush1.msra.mxu0 %v1558
    %2964 = vmatprep.subr.mxu0 0.0
    %2965 = vmatpush2.msra.mxu0 0.0
    %2966 = vmatprep.subr.mxu0 0.0
    %2967 = vmatpush2.msra.mxu0 0.0
    %2968 = vmatprep.subr.mxu0 0.0
    %2969 = vmatpush2.msra.mxu0 0.0
    %2970 = vmatprep.subr.mxu0 0.0
    %2971 = vmatpush2.msra.mxu0 0.0
    %2972 = vmatprep.subr.mxu0 0.0
    %2973 = vmatpush2.msra.mxu0 0.0
    %2974 = vmatprep.subr.mxu0 0.0
    %2975 = vmatpush2.msra.mxu0 0.0
    %2976 = vmatprep.subr.mxu0 0.0
    %2977 = vmatpush2.msra.mxu0 0.0
    %2978 = vmatprep.subr.mxu0 0.0
    %2979 = vmatpush2.msra.mxu0 0.0
    %2980 = vmatprep.subr.mxu0 0.0
    %2981 = vmatpush2.msra.mxu0 0.0
    %2982 = vmatprep.subr.mxu0 0.0
    %2983 = vmatpush2.msra.mxu0 0.0
    %2984 = vmatprep.subr.mxu0 0.0
    %2985 = vmatpush2.msra.mxu0 0.0
    %2986 = vmatprep.subr.mxu0 0.0
    %2987 = vmatpush2.msra.mxu0 0.0
    %2988 = vmatprep.subr.mxu0 0.0
    %2989 = vmatpush2.msra.mxu0 0.0
    %2990 = vmatprep.subr.mxu0 0.0
    %2991 = vmatpush2.msra.mxu0 0.0
    %2992 = vmatprep.subr.mxu0 0.0
    %2993 = vmatpush2.msra.mxu0 0.0
    %2994 = vmatprep.subr.mxu0 0.0
    %2995 = vmatpush2.msra.mxu0 0.0
    %2996 = vmatprep.mubr.f32.mxu0 0.0
    %2997 = vmatmul.mubr.f32.gmra.mxu0 %v2885
    %v2998 = vpop.f32.mrf.mxu0
    %v2999 = vadd.f32 %v2806, %v2998
    %v3000 = vpop.f32.mrf.mxu0
    %3001 = vmatprep.mubr.f32.mxu0 0.0
    %3002 = vmatmul.mubr.f32.gmra.mxu0 %v2888
    %v3003 = vpop.f32.mrf.mxu0
    %v3004 = vadd.f32 %v2811, %v3003
    %v3005 = vpop.f32.mrf.mxu0
    %3006 = vmatprep.mubr.f32.mxu0 0.0
    %3007 = vmatmul.mubr.f32.gmra.mxu0 %v2891
    %v3008 = vpop.f32.mrf.mxu0
    %v3009 = vadd.f32 %v2816, %v3008
    %v3010 = vpop.f32.mrf.mxu0
    %3011 = vmatprep.mubr.f32.mxu0 0.0
    %3012 = vmatmul.mubr.f32.gmra.mxu0 %v2894
    %v3013 = vpop.f32.mrf.mxu0
    %v3014 = vadd.f32 %v2821, %v3013
    %v3015 = vpop.f32.mrf.mxu0
    %3016 = vmatprep.mubr.f32.mxu0 0.0
    %3017 = vmatmul.mubr.f32.gmra.mxu0 %v2897
    %v3018 = vpop.f32.mrf.mxu0
    %v3019 = vadd.f32 %v2826, %v3018
    %v3020 = vpop.f32.mrf.mxu0
    %3021 = vmatprep.mubr.f32.mxu0 0.0
    %3022 = vmatmul.mubr.f32.gmra.mxu0 %v2900
    %v3023 = vpop.f32.mrf.mxu0
    %v3024 = vadd.f32 %v2831, %v3023
    %v3025 = vpop.f32.mrf.mxu0
    %3026 = vmatprep.mubr.f32.mxu0 0.0
    %3027 = vmatmul.mubr.f32.gmra.mxu0 %v2903
    %v3028 = vpop.f32.mrf.mxu0
    %v3029 = vadd.f32 %v2836, %v3028
    %v3030 = vpop.f32.mrf.mxu0
    %3031 = vmatprep.mubr.f32.mxu0 0.0
    %3032 = vmatmul.mubr.f32.gmra.mxu0 %v2906
    %v3033 = vpop.f32.mrf.mxu0
    %v3034 = vadd.f32 %v2841, %v3033
    %v3035 = vpop.f32.mrf.mxu0
    %3036 = vmatprep.mubr.f32.mxu0 0.0
    %3037 = vmatmul.mubr.f32.gmra.mxu0 %v2909
    %v3038 = vpop.f32.mrf.mxu0
    %v3039 = vadd.f32 %v2846, %v3038
    %v3040 = vpop.f32.mrf.mxu0
    %3041 = vmatprep.mubr.f32.mxu0 0.0
    %3042 = vmatmul.mubr.f32.gmra.mxu0 %v2912
    %v3043 = vpop.f32.mrf.mxu0
    %v3044 = vadd.f32 %v2851, %v3043
    %v3045 = vpop.f32.mrf.mxu0
    %3046 = vmatprep.mubr.f32.mxu0 0.0
    %3047 = vmatmul.mubr.f32.gmra.mxu0 %v2915
    %v3048 = vpop.f32.mrf.mxu0
    %v3049 = vadd.f32 %v2856, %v3048
    %v3050 = vpop.f32.mrf.mxu0
    %3051 = vmatprep.mubr.f32.mxu0 0.0
    %3052 = vmatmul.mubr.f32.gmra.mxu0 %v2918
    %v3053 = vpop.f32.mrf.mxu0
    %v3054 = vadd.f32 %v2861, %v3053
    %v3055 = vpop.f32.mrf.mxu0
    %3056 = vmatprep.mubr.f32.mxu0 0.0
    %3057 = vmatmul.mubr.f32.gmra.mxu0 %v2921
    %v3058 = vpop.f32.mrf.mxu0
    %v3059 = vadd.f32 %v2866, %v3058
    %v3060 = vpop.f32.mrf.mxu0
    %3061 = vmatprep.mubr.f32.mxu0 0.0
    %3062 = vmatmul.mubr.f32.gmra.mxu0 %v2924
    %v3063 = vpop.f32.mrf.mxu0
    %v3064 = vadd.f32 %v2871, %v3063
    %v3065 = vpop.f32.mrf.mxu0
    %3066 = vmatprep.mubr.f32.mxu0 0.0
    %3067 = vmatmul.mubr.f32.gmra.mxu0 %v2927
    %v3068 = vpop.f32.mrf.mxu0
    %v3069 = vadd.f32 %v2876, %v3068
    %v3070 = vpop.f32.mrf.mxu0
    %3071 = vmatprep.mubr.f32.mxu0 0.0
    %3072 = vmatmul.mubr.f32.gmra.mxu0 %v2930
    %v3073 = vpop.f32.mrf.mxu0
    %v3074 = vadd.f32 %v2881, %v3073
    %v3075 = vpop.f32.mrf.mxu0
    %3076 = vdwg.mxu0
    %v3077 = vld [vmem:[%s15] sm:$0xff]
    %v3078 = vld [vmem:[%s15 + $0x8] sm:$0xff]
    %v3079 = vld [vmem:[%s15 + $0x10] sm:$0xff]
    %v3080 = vld [vmem:[%s15 + $0x18] sm:$0xff]
    %v3081 = vld [vmem:[%s15 + $0x20] sm:$0xff]
    %v3082 = vld [vmem:[%s15 + $0x28] sm:$0xff]
    %v3083 = vld [vmem:[%s15 + $0x30] sm:$0xff]
    %v3084 = vld [vmem:[%s15 + $0x38] sm:$0xff]
    %v3085 = vld [vmem:[%s15 + $0x40] sm:$0xff]
    %v3086 = vld [vmem:[%s15 + $0x48] sm:$0xff]
    %v3087 = vld [vmem:[%s15 + $0x50] sm:$0xff]
    %v3088 = vld [vmem:[%s15 + $0x58] sm:$0xff]
    %v3089 = vld [vmem:[%s15 + $0x60] sm:$0xff]
    %v3090 = vld [vmem:[%s15 + $0x68] sm:$0xff]
    %v3091 = vld [vmem:[%s15 + $0x70] sm:$0xff]
    %v3092 = vld [vmem:[%s15 + $0x78] sm:$0xff]
    %v3094 = vsel %vm571, %v3077, 0
    %v3097 = vsel %vm571, %v3078, 0
    %v3100 = vsel %vm571, %v3079, 0
    %v3103 = vsel %vm571, %v3080, 0
    %v3106 = vsel %vm571, %v3081, 0
    %v3109 = vsel %vm571, %v3082, 0
    %v3112 = vsel %vm571, %v3083, 0
    %v3115 = vsel %vm571, %v3084, 0
    %v3118 = vsel %vm571, %v3085, 0
    %v3121 = vsel %vm571, %v3086, 0
    %v3124 = vsel %vm571, %v3087, 0
    %v3127 = vsel %vm571, %v3088, 0
    %v3130 = vsel %vm571, %v3089, 0
    %v3133 = vsel %vm571, %v3090, 0
    %v3136 = vsel %vm571, %v3091, 0
    %v3139 = vsel %vm571, %v3092, 0
    %3141 = vmatprep.subr.mxu0 0.0
    %3142 = vmatpush1.msra.mxu0 0.0
    %3143 = vmatprep.subr.mxu0 0.0
    %3144 = vmatpush1.msra.mxu0 0.0
    %3145 = vmatprep.subr.mxu0 0.0
    %3146 = vmatpush1.msra.mxu0 0.0
    %3147 = vmatprep.subr.mxu0 0.0
    %3148 = vmatpush1.msra.mxu0 0.0
    %3149 = vmatprep.subr.mxu0 0.0
    %3150 = vmatpush1.msra.mxu0 0.0
    %3151 = vmatprep.subr.mxu0 0.0
    %3152 = vmatpush1.msra.mxu0 0.0
    %3153 = vmatprep.subr.mxu0 0.0
    %3154 = vmatpush1.msra.mxu0 0.0
    %3155 = vmatprep.subr.mxu0 0.0
    %3156 = vmatpush1.msra.mxu0 0.0
    %3157 = vmatprep.subr.mxu0 0.0
    %3158 = vmatpush1.msra.mxu0 0.0
    %3159 = vmatprep.subr.mxu0 0.0
    %3160 = vmatpush1.msra.mxu0 0.0
    %3161 = vmatprep.subr.mxu0 0.0
    %3162 = vmatpush1.msra.mxu0 0.0
    %3163 = vmatprep.subr.mxu0 0.0
    %3164 = vmatpush1.msra.mxu0 0.0
    %3165 = vmatprep.subr.mxu0 0.0
    %3166 = vmatpush1.msra.mxu0 0.0
    %3167 = vmatprep.subr.mxu0 0.0
    %3168 = vmatpush1.msra.mxu0 0.0
    %3169 = vmatprep.subr.mxu0 0.0
    %3170 = vmatpush1.msra.mxu0 0.0
    %3171 = vmatprep.subr.mxu0 0.0
    %3172 = vmatpush1.msra.mxu0 0.0
    %3173 = vmatprep.subr.mxu0 0.0
    %3174 = vmatpush2.msra.mxu0 0.0
    %3175 = vmatprep.subr.mxu0 0.0
    %3176 = vmatpush2.msra.mxu0 0.0
    %3177 = vmatprep.subr.mxu0 0.0
    %3178 = vmatpush2.msra.mxu0 0.0
    %3179 = vmatprep.subr.mxu0 0.0
    %3180 = vmatpush2.msra.mxu0 0.0
    %3181 = vmatprep.subr.mxu0 0.0
    %3182 = vmatpush2.msra.mxu0 0.0
    %3183 = vmatprep.subr.mxu0 0.0
    %3184 = vmatpush2.msra.mxu0 0.0
    %3185 = vmatprep.subr.mxu0 0.0
    %3186 = vmatpush2.msra.mxu0 0.0
    %3187 = vmatprep.subr.mxu0 0.0
    %3188 = vmatpush2.msra.mxu0 0.0
    %3189 = vmatprep.subr.mxu0 0.0
    %3190 = vmatpush2.msra.mxu0 0.0
    %3191 = vmatprep.subr.mxu0 0.0
    %3192 = vmatpush2.msra.mxu0 0.0
    %3193 = vmatprep.subr.mxu0 0.0
    %3194 = vmatpush2.msra.mxu0 0.0
    %3195 = vmatprep.subr.mxu0 0.0
    %3196 = vmatpush2.msra.mxu0 0.0
    %3197 = vmatprep.subr.mxu0 0.0
    %3198 = vmatpush2.msra.mxu0 0.0
    %3199 = vmatprep.subr.mxu0 0.0
    %3200 = vmatpush2.msra.mxu0 0.0
    %3201 = vmatprep.subr.mxu0 0.0
    %3202 = vmatpush2.msra.mxu0 0.0
    %3203 = vmatprep.subr.mxu0 0.0
    %3204 = vmatpush2.msra.mxu0 0.0
    %3205 = vmatprep.mubr.f32.mxu0 0.0
    %3206 = vmatmul.mubr.f32.gmra.mxu0 %v3094
    %v3207 = vpop.f32.mrf.mxu0
    %v3208 = vadd.f32 0.0, %v3207
    %v3209 = vpop.f32.mrf.mxu0
    %3210 = vmatprep.mubr.f32.mxu0 0.0
    %3211 = vmatmul.mubr.f32.gmra.mxu0 %v3097
    %v3212 = vpop.f32.mrf.mxu0
    %v3213 = vadd.f32 0.0, %v3212
    %v3214 = vpop.f32.mrf.mxu0
    %3215 = vmatprep.mubr.f32.mxu0 0.0
    %3216 = vmatmul.mubr.f32.gmra.mxu0 %v3100
    %v3217 = vpop.f32.mrf.mxu0
    %v3218 = vadd.f32 0.0, %v3217
    %v3219 = vpop.f32.mrf.mxu0
    %3220 = vmatprep.mubr.f32.mxu0 0.0
    %3221 = vmatmul.mubr.f32.gmra.mxu0 %v3103
    %v3222 = vpop.f32.mrf.mxu0
    %v3223 = vadd.f32 0.0, %v3222
    %v3224 = vpop.f32.mrf.mxu0
    %3225 = vmatprep.mubr.f32.mxu0 0.0
    %3226 = vmatmul.mubr.f32.gmra.mxu0 %v3106
    %v3227 = vpop.f32.mrf.mxu0
    %v3228 = vadd.f32 0.0, %v3227
    %v3229 = vpop.f32.mrf.mxu0
    %3230 = vmatprep.mubr.f32.mxu0 0.0
    %3231 = vmatmul.mubr.f32.gmra.mxu0 %v3109
    %v3232 = vpop.f32.mrf.mxu0
    %v3233 = vadd.f32 0.0, %v3232
    %v3234 = vpop.f32.mrf.mxu0
    %3235 = vmatprep.mubr.f32.mxu0 0.0
    %3236 = vmatmul.mubr.f32.gmra.mxu0 %v3112
    %v3237 = vpop.f32.mrf.mxu0
    %v3238 = vadd.f32 0.0, %v3237
    %v3239 = vpop.f32.mrf.mxu0
    %3240 = vmatprep.mubr.f32.mxu0 0.0
    %3241 = vmatmul.mubr.f32.gmra.mxu0 %v3115
    %v3242 = vpop.f32.mrf.mxu0
    %v3243 = vadd.f32 0.0, %v3242
    %v3244 = vpop.f32.mrf.mxu0
    %3245 = vmatprep.mubr.f32.mxu0 0.0
    %3246 = vmatmul.mubr.f32.gmra.mxu0 %v3118
    %v3247 = vpop.f32.mrf.mxu0
    %v3248 = vadd.f32 0.0, %v3247
    %v3249 = vpop.f32.mrf.mxu0
    %3250 = vmatprep.mubr.f32.mxu0 0.0
    %3251 = vmatmul.mubr.f32.gmra.mxu0 %v3121
    %v3252 = vpop.f32.mrf.mxu0
    %v3253 = vadd.f32 0.0, %v3252
    %v3254 = vpop.f32.mrf.mxu0
    %3255 = vmatprep.mubr.f32.mxu0 0.0
    %3256 = vmatmul.mubr.f32.gmra.mxu0 %v3124
    %v3257 = vpop.f32.mrf.mxu0
    %v3258 = vadd.f32 0.0, %v3257
    %v3259 = vpop.f32.mrf.mxu0
    %3260 = vmatprep.mubr.f32.mxu0 0.0
    %3261 = vmatmul.mubr.f32.gmra.mxu0 %v3127
    %v3262 = vpop.f32.mrf.mxu0
    %v3263 = vadd.f32 0.0, %v3262
    %v3264 = vpop.f32.mrf.mxu0
    %3265 = vmatprep.mubr.f32.mxu0 0.0
    %3266 = vmatmul.mubr.f32.gmra.mxu0 %v3130
    %v3267 = vpop.f32.mrf.mxu0
    %v3268 = vadd.f32 0.0, %v3267
    %v3269 = vpop.f32.mrf.mxu0
    %3270 = vmatprep.mubr.f32.mxu0 0.0
    %3271 = vmatmul.mubr.f32.gmra.mxu0 %v3133
    %v3272 = vpop.f32.mrf.mxu0
    %v3273 = vadd.f32 0.0, %v3272
    %v3274 = vpop.f32.mrf.mxu0
    %3275 = vmatprep.mubr.f32.mxu0 0.0
    %3276 = vmatmul.mubr.f32.gmra.mxu0 %v3136
    %v3277 = vpop.f32.mrf.mxu0
    %v3278 = vadd.f32 0.0, %v3277
    %v3279 = vpop.f32.mrf.mxu0
    %3280 = vmatprep.mubr.f32.mxu0 0.0
    %3281 = vmatmul.mubr.f32.gmra.mxu0 %v3139
    %v3282 = vpop.f32.mrf.mxu0
    %v3283 = vadd.f32 0.0, %v3282
    %v3284 = vpop.f32.mrf.mxu0
    %3285 = vdwg.mxu0
    %v3286 = vadd.f32 %v2999, %v3208
    %v3287 = vadd.f32 %v3004, %v3213
    %v3288 = vadd.f32 %v3009, %v3218
    %v3289 = vadd.f32 %v3014, %v3223
    %v3290 = vadd.f32 %v3019, %v3228
    %v3291 = vadd.f32 %v3024, %v3233
    %v3292 = vadd.f32 %v3029, %v3238
    %v3293 = vadd.f32 %v3034, %v3243
    %v3294 = vadd.f32 %v3039, %v3248
    %v3295 = vadd.f32 %v3044, %v3253
    %v3296 = vadd.f32 %v3049, %v3258
    %v3297 = vadd.f32 %v3054, %v3263
    %v3298 = vadd.f32 %v3059, %v3268
    %v3299 = vadd.f32 %v3064, %v3273
    %v3300 = vadd.f32 %v3069, %v3278
    %v3301 = vadd.f32 %v3074, %v3283
    %v3302 = vld [vmem:[%s16] sm:$0xff]
    %v3303 = vld [vmem:[%s16 + $0x8] sm:$0xff]
    %v3304 = vld [vmem:[%s16 + $0x10] sm:$0xff]
    %v3305 = vld [vmem:[%s16 + $0x18] sm:$0xff]
    %v3306 = vld [vmem:[%s16 + $0x20] sm:$0xff]
    %v3307 = vld [vmem:[%s16 + $0x28] sm:$0xff]
    %v3308 = vld [vmem:[%s16 + $0x30] sm:$0xff]
    %v3309 = vld [vmem:[%s16 + $0x38] sm:$0xff]
    %v3310 = vld [vmem:[%s16 + $0x40] sm:$0xff]
    %v3311 = vld [vmem:[%s16 + $0x48] sm:$0xff]
    %v3312 = vld [vmem:[%s16 + $0x50] sm:$0xff]
    %v3313 = vld [vmem:[%s16 + $0x58] sm:$0xff]
    %v3314 = vld [vmem:[%s16 + $0x60] sm:$0xff]
    %v3315 = vld [vmem:[%s16 + $0x68] sm:$0xff]
    %v3316 = vld [vmem:[%s16 + $0x70] sm:$0xff]
    %v3317 = vld [vmem:[%s16 + $0x78] sm:$0xff]
    %3319 = vset.pattern.permute.xlu0 0
    %3320 = vperm.xlu0 %3319, %v3302
    %v3321 = vpop.permute.xlu0 %3320
    %3324 = vset.pattern.permute.xlu0 0
    %3325 = vperm.xlu0 %3324, %v3303
    %v3326 = vpop.permute.xlu0 %3325
    %3329 = vset.pattern.permute.xlu0 0
    %3330 = vperm.xlu0 %3329, %v3304
    %v3331 = vpop.permute.xlu0 %3330
    %3334 = vset.pattern.permute.xlu0 0
    %3335 = vperm.xlu0 %3334, %v3305
    %v3336 = vpop.permute.xlu0 %3335
    %3339 = vset.pattern.permute.xlu0 0
    %3340 = vperm.xlu0 %3339, %v3306
    %v3341 = vpop.permute.xlu0 %3340
    %3344 = vset.pattern.permute.xlu0 0
    %3345 = vperm.xlu0 %3344, %v3307
    %v3346 = vpop.permute.xlu0 %3345
    %3349 = vset.pattern.permute.xlu0 0
    %3350 = vperm.xlu0 %3349, %v3308
    %v3351 = vpop.permute.xlu0 %3350
    %3354 = vset.pattern.permute.xlu0 0
    %3355 = vperm.xlu0 %3354, %v3309
    %v3356 = vpop.permute.xlu0 %3355
    %3359 = vset.pattern.permute.xlu0 0
    %3360 = vperm.xlu0 %3359, %v3310
    %v3361 = vpop.permute.xlu0 %3360
    %3364 = vset.pattern.permute.xlu0 0
    %3365 = vperm.xlu0 %3364, %v3311
    %v3366 = vpop.permute.xlu0 %3365
    %3369 = vset.pattern.permute.xlu0 0
    %3370 = vperm.xlu0 %3369, %v3312
    %v3371 = vpop.permute.xlu0 %3370
    %3374 = vset.pattern.permute.xlu0 0
    %3375 = vperm.xlu0 %3374, %v3313
    %v3376 = vpop.permute.xlu0 %3375
    %3379 = vset.pattern.permute.xlu0 0
    %3380 = vperm.xlu0 %3379, %v3314
    %v3381 = vpop.permute.xlu0 %3380
    %3384 = vset.pattern.permute.xlu0 0
    %3385 = vperm.xlu0 %3384, %v3315
    %v3386 = vpop.permute.xlu0 %3385
    %3389 = vset.pattern.permute.xlu0 0
    %3390 = vperm.xlu0 %3389, %v3316
    %v3391 = vpop.permute.xlu0 %3390
    %3394 = vset.pattern.permute.xlu0 0
    %3395 = vperm.xlu0 %3394, %v3317
    %v3396 = vpop.permute.xlu0 %3395
    %v3398 = vadd.f32 %v3286, %v3321
    %v3399 = vadd.f32 %v3287, %v3326
    %v3400 = vadd.f32 %v3288, %v3331
    %v3401 = vadd.f32 %v3289, %v3336
    %v3402 = vadd.f32 %v3290, %v3341
    %v3403 = vadd.f32 %v3291, %v3346
    %v3404 = vadd.f32 %v3292, %v3351
    %v3405 = vadd.f32 %v3293, %v3356
    %v3406 = vadd.f32 %v3294, %v3361
    %v3407 = vadd.f32 %v3295, %v3366
    %v3408 = vadd.f32 %v3296, %v3371
    %v3409 = vadd.f32 %v3297, %v3376
    %v3410 = vadd.f32 %v3298, %v3381
    %v3411 = vadd.f32 %v3299, %v3386
    %v3412 = vadd.f32 %v3300, %v3391
    %v3413 = vadd.f32 %v3301, %v3396
    %v3414 = vxor.u32 %v3398, 2147483648
    %v3415 = vxor.u32 %v3399, 2147483648
    %v3416 = vxor.u32 %v3400, 2147483648
    %v3417 = vxor.u32 %v3401, 2147483648
    %v3418 = vmul.f32 %v3414, 1.442695
    %v3419 = vpow.pop %v3418
    %v3420 = vmul.f32 %v3415, 1.442695
    %v3421 = vpow.pop %v3420
    %v3422 = vmul.f32 %v3416, 1.442695
    %v3423 = vpow.pop %v3422
    %v3424 = vmul.f32 %v3417, 1.442695
    %v3425 = vpow.pop %v3424
    %v3426 = vadd.f32 %v3419, 1.0
    %v3427 = vadd.f32 %v3421, 1.0
    %v3428 = vadd.f32 %v3423, 1.0
    %v3429 = vadd.f32 %v3425, 1.0
    %v3430 = vrcp.pop %v3426
    %v3431 = vmul.f32 1.0, %v3430
    %v3432 = vrcp.pop %v3427
    %v3433 = vmul.f32 1.0, %v3432
    %v3434 = vrcp.pop %v3428
    %v3435 = vmul.f32 1.0, %v3434
    %v3436 = vrcp.pop %v3429
    %v3437 = vmul.f32 1.0, %v3436
    %v3438 = vxor.u32 %v3402, 2147483648
    %v3439 = vxor.u32 %v3403, 2147483648
    %v3440 = vxor.u32 %v3404, 2147483648
    %v3441 = vxor.u32 %v3405, 2147483648
    %v3442 = vmul.f32 %v3438, 1.442695
    %v3443 = vpow.pop %v3442
    %v3444 = vmul.f32 %v3439, 1.442695
    %v3445 = vpow.pop %v3444
    %v3446 = vmul.f32 %v3440, 1.442695
    %v3447 = vpow.pop %v3446
    %v3448 = vmul.f32 %v3441, 1.442695
    %v3449 = vpow.pop %v3448
    %v3450 = vadd.f32 %v3443, 1.0
    %v3451 = vadd.f32 %v3445, 1.0
    %v3452 = vadd.f32 %v3447, 1.0
    %v3453 = vadd.f32 %v3449, 1.0
    %v3454 = vrcp.pop %v3450
    %v3455 = vmul.f32 1.0, %v3454
    %v3456 = vrcp.pop %v3451
    %v3457 = vmul.f32 1.0, %v3456
    %v3458 = vrcp.pop %v3452
    %v3459 = vmul.f32 1.0, %v3458
    %v3460 = vrcp.pop %v3453
    %v3461 = vmul.f32 1.0, %v3460
    %v3462 = vtanh.pop %v3406
    %v3463 = vtanh.pop %v3407
    %v3464 = vtanh.pop %v3408
    %v3465 = vtanh.pop %v3409
    %v3466 = vxor.u32 %v3410, 2147483648
    %v3467 = vxor.u32 %v3411, 2147483648
    %v3468 = vxor.u32 %v3412, 2147483648
    %v3469 = vxor.u32 %v3413, 2147483648
    %v3470 = vmul.f32 %v3466, 1.442695
    %v3471 = vpow.pop %v3470
    %v3472 = vmul.f32 %v3467, 1.442695
    %v3473 = vpow.pop %v3472
    %v3474 = vmul.f32 %v3468, 1.442695
    %v3475 = vpow.pop %v3474
    %v3476 = vmul.f32 %v3469, 1.442695
    %v3477 = vpow.pop %v3476
    %v3478 = vadd.f32 %v3471, 1.0
    %v3479 = vadd.f32 %v3473, 1.0
    %v3480 = vadd.f32 %v3475, 1.0
    %v3481 = vadd.f32 %v3477, 1.0
    %v3482 = vrcp.pop %v3478
    %v3483 = vmul.f32 1.0, %v3482
    %v3484 = vrcp.pop %v3479
    %v3485 = vmul.f32 1.0, %v3484
    %v3486 = vrcp.pop %v3480
    %v3487 = vmul.f32 1.0, %v3486
    %v3488 = vrcp.pop %v3481
    %v3489 = vmul.f32 1.0, %v3488
    %v3490 = vmul.f32 %v3455, 0.0
    %v3491 = vmul.f32 %v3457, 0.0
    %v3492 = vmul.f32 %v3459, 0.0
    %v3493 = vmul.f32 %v3461, 0.0
    %v3494 = vmul.f32 %v3431, %v3462
    %v3495 = vmul.f32 %v3433, %v3463
    %v3496 = vmul.f32 %v3435, %v3464
    %v3497 = vmul.f32 %v3437, %v3465
    %v3498 = vadd.f32 %v3490, %v3494
    %v3499 = vadd.f32 %v3491, %v3495
    %v3500 = vadd.f32 %v3492, %v3496
    %v3501 = vadd.f32 %v3493, %v3497
    %v3502 = vtanh.pop %v3498
    %v3503 = vtanh.pop %v3499
    %v3504 = vtanh.pop %v3500
    %v3505 = vtanh.pop %v3501
    %v3506 = vmul.f32 %v3483, %v3502
    %v3507 = vmul.f32 %v3485, %v3503
    %v3508 = vmul.f32 %v3487, %v3504
    %v3509 = vmul.f32 %v3489, %v3505
    %v3510 = vld [vmem:[%s17] sm:$0xff]
    %v3511 = vld [vmem:[%s17 + $0x8] sm:$0xff]
    %v3512 = vld [vmem:[%s17 + $0x10] sm:$0xff]
    %v3513 = vld [vmem:[%s17 + $0x18] sm:$0xff]
    %v3514 = vld [vmem:[%s18] sm:$0xff]
    %v3515 = vld [vmem:[%s18 + $0x8] sm:$0xff]
    %v3516 = vld [vmem:[%s18 + $0x10] sm:$0xff]
    %v3517 = vld [vmem:[%s18 + $0x18] sm:$0xff]
    %3519 = vset.pattern.permute.xlu0 0
    %3520 = vperm.xlu0 %3519, %v3514
    %v3521 = vpop.permute.xlu0 %3520
    %3524 = vset.pattern.permute.xlu0 0
    %3525 = vperm.xlu0 %3524, %v3515
    %v3526 = vpop.permute.xlu0 %3525
    %3529 = vset.pattern.permute.xlu0 0
    %3530 = vperm.xlu0 %3529, %v3516
    %v3531 = vpop.permute.xlu0 %3530
    %3534 = vset.pattern.permute.xlu0 0
    %3535 = vperm.xlu0 %3534, %v3517
    %v3536 = vpop.permute.xlu0 %3535
    %v3539 = vsel %vm571, %v3510, 0
    %v3542 = vsel %vm571, %v3511, 0
    %v3545 = vsel %vm571, %v3512, 0
    %v3548 = vsel %vm571, %v3513, 0
    %3550 = vmatprep.subr.mxu0 0.0
    %3551 = vmatpush1.msra.mxu0 0.0
    %3552 = vmatprep.subr.mxu0 0.0
    %3553 = vmatpush1.msra.mxu0 0.0
    %3554 = vmatprep.subr.mxu0 0.0
    %3555 = vmatpush1.msra.mxu0 0.0
    %3556 = vmatprep.subr.mxu0 0.0
    %3557 = vmatpush1.msra.mxu0 0.0
    %3558 = vmatprep.subr.mxu0 0.0
    %3559 = vmatpush1.msra.mxu0 0.0
    %3560 = vmatprep.subr.mxu0 0.0
    %3561 = vmatpush1.msra.mxu0 0.0
    %3562 = vmatprep.subr.mxu0 0.0
    %3563 = vmatpush1.msra.mxu0 0.0
    %3564 = vmatprep.subr.mxu0 0.0
    %3565 = vmatpush1.msra.mxu0 0.0
    %3566 = vmatprep.subr.mxu0 0.0
    %3567 = vmatpush1.msra.mxu0 0.0
    %3568 = vmatprep.subr.mxu0 0.0
    %3569 = vmatpush1.msra.mxu0 0.0
    %3570 = vmatprep.subr.mxu0 0.0
    %3571 = vmatpush1.msra.mxu0 0.0
    %3572 = vmatprep.subr.mxu0 0.0
    %3573 = vmatpush1.msra.mxu0 0.0
    %3574 = vmatprep.subr.mxu0 0.0
    %3575 = vmatpush1.msra.mxu0 %v3509
    %3576 = vmatprep.subr.mxu0 0.0
    %3577 = vmatpush1.msra.mxu0 %v3508
    %3578 = vmatprep.subr.mxu0 0.0
    %3579 = vmatpush1.msra.mxu0 %v3507
    %3580 = vmatprep.subr.mxu0 0.0
    %3581 = vmatpush1.msra.mxu0 %v3506
    %3582 = vmatprep.subr.mxu0 0.0
    %3583 = vmatpush2.msra.mxu0 0.0
    %3584 = vmatprep.subr.mxu0 0.0
    %3585 = vmatpush2.msra.mxu0 0.0
    %3586 = vmatprep.subr.mxu0 0.0
    %3587 = vmatpush2.msra.mxu0 0.0
    %3588 = vmatprep.subr.mxu0 0.0
    %3589 = vmatpush2.msra.mxu0 0.0
    %3590 = vmatprep.subr.mxu0 0.0
    %3591 = vmatpush2.msra.mxu0 0.0
    %3592 = vmatprep.subr.mxu0 0.0
    %3593 = vmatpush2.msra.mxu0 0.0
    %3594 = vmatprep.subr.mxu0 0.0
    %3595 = vmatpush2.msra.mxu0 0.0
    %3596 = vmatprep.subr.mxu0 0.0
    %3597 = vmatpush2.msra.mxu0 0.0
    %3598 = vmatprep.subr.mxu0 0.0
    %3599 = vmatpush2.msra.mxu0 0.0
    %3600 = vmatprep.subr.mxu0 0.0
    %3601 = vmatpush2.msra.mxu0 0.0
    %3602 = vmatprep.subr.mxu0 0.0
    %3603 = vmatpush2.msra.mxu0 0.0
    %3604 = vmatprep.subr.mxu0 0.0
    %3605 = vmatpush2.msra.mxu0 0.0
    %3606 = vmatprep.subr.mxu0 0.0
    %3607 = vmatpush2.msra.mxu0 0.0
    %3608 = vmatprep.subr.mxu0 0.0
    %3609 = vmatpush2.msra.mxu0 0.0
    %3610 = vmatprep.subr.mxu0 0.0
    %3611 = vmatpush2.msra.mxu0 0.0
    %3612 = vmatprep.subr.mxu0 0.0
    %3613 = vmatpush2.msra.mxu0 0.0
    %3614 = vmatprep.mubr.f32.mxu0 0.0
    %3615 = vmatmul.mubr.f32.gmra.mxu0 %v3539
    %v3616 = vpop.f32.mrf.mxu0
    %v3617 = vadd.f32 %v3521, %v3616
    %v3618 = vpop.f32.mrf.mxu0
    %3619 = vmatprep.mubr.f32.mxu0 0.0
    %3620 = vmatmul.mubr.f32.gmra.mxu0 %v3542
    %v3621 = vpop.f32.mrf.mxu0
    %v3622 = vadd.f32 %v3526, %v3621
    %v3623 = vpop.f32.mrf.mxu0
    %3624 = vmatprep.mubr.f32.mxu0 0.0
    %3625 = vmatmul.mubr.f32.gmra.mxu0 %v3545
    %v3626 = vpop.f32.mrf.mxu0
    %v3627 = vadd.f32 %v3531, %v3626
    %v3628 = vpop.f32.mrf.mxu0
    %3629 = vmatprep.mubr.f32.mxu0 0.0
    %3630 = vmatmul.mubr.f32.gmra.mxu0 %v3548
    %v3631 = vpop.f32.mrf.mxu0
    %v3632 = vadd.f32 %v3536, %v3631
    %v3633 = vpop.f32.mrf.mxu0
    %3634 = vdwg.mxu0
    %v3637 = vcombine.low %v1474, %v1475
    %v3639 = vunpack.c.l.s4 1966171168
    %v3640 = vunpack.c.0.s8 %v3639
    %v3641 = vlaneseq
    %v3642 = vshrl.u32 %v3641, 7
    %v3643 = vsub.s32 %v3640, %v3642
    %v3644 = vrot.slane %v3637, %v3643
    %v3646 = vunpack.c.l.s4 1966171168
    %v3647 = vunpack.c.0.s8 %v3646
    %v3648 = vlaneseq
    %v3649 = vshrl.u32 %v3648, 7
    %v3650 = vsub.s32 %v3647, %v3649
    %v3651 = vrot.slane %v3644, %v3650
    %v3653 = vlaneseq
    %vm3654 = vcmp.ge.s32.totalorder %v3653, 0
    %vm3655 = vcmp.lt.s32.totalorder %v3653, 256
    %vm3656 = vmand %vm3654, %vm3655
    %3657 = vst.msk [vmem:[%s19] sm:$0x3] %vm3656, %v3651
    %v3660 = vcombine.low %v2571, %v2572
    %v3662 = vunpack.c.l.s4 1966171168
    %v3663 = vunpack.c.0.s8 %v3662
    %v3664 = vlaneseq
    %v3665 = vshrl.u32 %v3664, 7
    %v3666 = vsub.s32 %v3663, %v3665
    %v3667 = vrot.slane %v3660, %v3666
    %v3669 = vunpack.c.l.s4 1966171168
    %v3670 = vunpack.c.0.s8 %v3669
    %v3671 = vlaneseq
    %v3672 = vshrl.u32 %v3671, 7
    %v3673 = vsub.s32 %v3670, %v3672
    %v3674 = vrot.slane %v3667, %v3673
    %3676 = vst.msk [vmem:[%s20] sm:$0x3] %vm3656, %v3674
    %v3677 = vld [vmem:[%s2] sm:$0xff]
    %v3678 = vld [vmem:[%s2 + $0x8] sm:$0xff]
    %v3679 = vld [vmem:[%s2 + $0x10] sm:$0xff]
    %v3680 = vld [vmem:[%s2 + $0x18] sm:$0xff]
    %v3681 = vld [vmem:[%s3] sm:$0xff]
    %v3682 = vld [vmem:[%s3 + $0x8] sm:$0xff]
    %v3683 = vld [vmem:[%s3 + $0x10] sm:$0xff]
    %v3684 = vld [vmem:[%s3 + $0x18] sm:$0xff]
    %v3686 = vsel %vm92, %v3681, 0
    %v3689 = vsel %vm92, %v3682, 0
    %v3692 = vsel %vm92, %v3683, 0
    %v3695 = vsel %vm92, %v3684, 0
    %3697 = vmatprep.subr.mxu0 0.0
    %3698 = vmatpush1.msra.mxu0 0.0
    %3699 = vmatprep.subr.mxu0 0.0
    %3700 = vmatpush1.msra.mxu0 0.0
    %3701 = vmatprep.subr.mxu0 0.0
    %3702 = vmatpush1.msra.mxu0 0.0
    %3703 = vmatprep.subr.mxu0 0.0
    %3704 = vmatpush1.msra.mxu0 0.0
    %3705 = vmatprep.subr.mxu0 0.0
    %3706 = vmatpush1.msra.mxu0 0.0
    %3707 = vmatprep.subr.mxu0 0.0
    %3708 = vmatpush1.msra.mxu0 0.0
    %3709 = vmatprep.subr.mxu0 0.0
    %3710 = vmatpush1.msra.mxu0 0.0
    %3711 = vmatprep.subr.mxu0 0.0
    %3712 = vmatpush1.msra.mxu0 0.0
    %3713 = vmatprep.subr.mxu0 0.0
    %3714 = vmatpush1.msra.mxu0 %v1565
    %3715 = vmatprep.subr.mxu0 0.0
    %3716 = vmatpush1.msra.mxu0 %v1564
    %3717 = vmatprep.subr.mxu0 0.0
    %3718 = vmatpush1.msra.mxu0 %v1563
    %3719 = vmatprep.subr.mxu0 0.0
    %3720 = vmatpush1.msra.mxu0 %v1562
    %3721 = vmatprep.subr.mxu0 0.0
    %3722 = vmatpush1.msra.mxu0 %v1561
    %3723 = vmatprep.subr.mxu0 0.0
    %3724 = vmatpush1.msra.mxu0 %v1560
    %3725 = vmatprep.subr.mxu0 0.0
    %3726 = vmatpush1.msra.mxu0 %v1559
    %3727 = vmatprep.subr.mxu0 0.0
    %3728 = vmatpush1.msra.mxu0 %v1558
    %3729 = vmatprep.subr.mxu0 0.0
    %3730 = vmatpush2.msra.mxu0 0.0
    %3731 = vmatprep.subr.mxu0 0.0
    %3732 = vmatpush2.msra.mxu0 0.0
    %3733 = vmatprep.subr.mxu0 0.0
    %3734 = vmatpush2.msra.mxu0 0.0
    %3735 = vmatprep.subr.mxu0 0.0
    %3736 = vmatpush2.msra.mxu0 0.0
    %3737 = vmatprep.subr.mxu0 0.0
    %3738 = vmatpush2.msra.mxu0 0.0
    %3739 = vmatprep.subr.mxu0 0.0
    %3740 = vmatpush2.msra.mxu0 0.0
    %3741 = vmatprep.subr.mxu0 0.0
    %3742 = vmatpush2.msra.mxu0 0.0
    %3743 = vmatprep.subr.mxu0 0.0
    %3744 = vmatpush2.msra.mxu0 0.0
    %3745 = vmatprep.subr.mxu0 0.0
    %3746 = vmatpush2.msra.mxu0 0.0
    %3747 = vmatprep.subr.mxu0 0.0
    %3748 = vmatpush2.msra.mxu0 0.0
    %3749 = vmatprep.subr.mxu0 0.0
    %3750 = vmatpush2.msra.mxu0 0.0
    %3751 = vmatprep.subr.mxu0 0.0
    %3752 = vmatpush2.msra.mxu0 0.0
    %3753 = vmatprep.subr.mxu0 0.0
    %3754 = vmatpush2.msra.mxu0 0.0
    %3755 = vmatprep.subr.mxu0 0.0
    %3756 = vmatpush2.msra.mxu0 0.0
    %3757 = vmatprep.subr.mxu0 0.0
    %3758 = vmatpush2.msra.mxu0 0.0
    %3759 = vmatprep.subr.mxu0 0.0
    %3760 = vmatpush2.msra.mxu0 0.0
    %3761 = vmatprep.mubr.f32.mxu0 0.0
    %3762 = vmatmul.mubr.f32.gmra.mxu0 %v3686
    %v3763 = vpop.f32.mrf.mxu0
    %v3764 = vadd.f32 0.0, %v3763
    %v3765 = vpop.f32.mrf.mxu0
    %3766 = vmatprep.mubr.f32.mxu0 0.0
    %3767 = vmatmul.mubr.f32.gmra.mxu0 %v3689
    %v3768 = vpop.f32.mrf.mxu0
    %v3769 = vadd.f32 0.0, %v3768
    %v3770 = vpop.f32.mrf.mxu0
    %3771 = vmatprep.mubr.f32.mxu0 0.0
    %3772 = vmatmul.mubr.f32.gmra.mxu0 %v3692
    %v3773 = vpop.f32.mrf.mxu0
    %v3774 = vadd.f32 0.0, %v3773
    %v3775 = vpop.f32.mrf.mxu0
    %3776 = vmatprep.mubr.f32.mxu0 0.0
    %3777 = vmatmul.mubr.f32.gmra.mxu0 %v3695
    %v3778 = vpop.f32.mrf.mxu0
    %v3779 = vadd.f32 0.0, %v3778
    %v3780 = vpop.f32.mrf.mxu0
    %3781 = vdwg.mxu0
    %v3783 = vsel %vm571, %v3677, 0
    %v3786 = vsel %vm571, %v3678, 0
    %v3789 = vsel %vm571, %v3679, 0
    %v3792 = vsel %vm571, %v3680, 0
    %3794 = vmatprep.subr.mxu0 0.0
    %3795 = vmatpush1.msra.mxu0 0.0
    %3796 = vmatprep.subr.mxu0 0.0
    %3797 = vmatpush1.msra.mxu0 0.0
    %3798 = vmatprep.subr.mxu0 0.0
    %3799 = vmatpush1.msra.mxu0 0.0
    %3800 = vmatprep.subr.mxu0 0.0
    %3801 = vmatpush1.msra.mxu0 0.0
    %3802 = vmatprep.subr.mxu0 0.0
    %3803 = vmatpush1.msra.mxu0 0.0
    %3804 = vmatprep.subr.mxu0 0.0
    %3805 = vmatpush1.msra.mxu0 0.0
    %3806 = vmatprep.subr.mxu0 0.0
    %3807 = vmatpush1.msra.mxu0 0.0
    %3808 = vmatprep.subr.mxu0 0.0
    %3809 = vmatpush1.msra.mxu0 0.0
    %3810 = vmatprep.subr.mxu0 0.0
    %3811 = vmatpush1.msra.mxu0 0.0
    %3812 = vmatprep.subr.mxu0 0.0
    %3813 = vmatpush1.msra.mxu0 0.0
    %3814 = vmatprep.subr.mxu0 0.0
    %3815 = vmatpush1.msra.mxu0 0.0
    %3816 = vmatprep.subr.mxu0 0.0
    %3817 = vmatpush1.msra.mxu0 0.0
    %3818 = vmatprep.subr.mxu0 0.0
    %3819 = vmatpush1.msra.mxu0 %v3632
    %3820 = vmatprep.subr.mxu0 0.0
    %3821 = vmatpush1.msra.mxu0 %v3627
    %3822 = vmatprep.subr.mxu0 0.0
    %3823 = vmatpush1.msra.mxu0 %v3622
    %3824 = vmatprep.subr.mxu0 0.0
    %3825 = vmatpush1.msra.mxu0 %v3617
    %3826 = vmatprep.subr.mxu0 0.0
    %3827 = vmatpush2.msra.mxu0 0.0
    %3828 = vmatprep.subr.mxu0 0.0
    %3829 = vmatpush2.msra.mxu0 0.0
    %3830 = vmatprep.subr.mxu0 0.0
    %3831 = vmatpush2.msra.mxu0 0.0
    %3832 = vmatprep.subr.mxu0 0.0
    %3833 = vmatpush2.msra.mxu0 0.0
    %3834 = vmatprep.subr.mxu0 0.0
    %3835 = vmatpush2.msra.mxu0 0.0
    %3836 = vmatprep.subr.mxu0 0.0
    %3837 = vmatpush2.msra.mxu0 0.0
    %3838 = vmatprep.subr.mxu0 0.0
    %3839 = vmatpush2.msra.mxu0 0.0
    %3840 = vmatprep.subr.mxu0 0.0
    %3841 = vmatpush2.msra.mxu0 0.0
    %3842 = vmatprep.subr.mxu0 0.0
    %3843 = vmatpush2.msra.mxu0 0.0
    %3844 = vmatprep.subr.mxu0 0.0
    %3845 = vmatpush2.msra.mxu0 0.0
    %3846 = vmatprep.subr.mxu0 0.0
    %3847 = vmatpush2.msra.mxu0 0.0
    %3848 = vmatprep.subr.mxu0 0.0
    %3849 = vmatpush2.msra.mxu0 0.0
    %3850 = vmatprep.subr.mxu0 0.0
    %3851 = vmatpush2.msra.mxu0 0.0
    %3852 = vmatprep.subr.mxu0 0.0
    %3853 = vmatpush2.msra.mxu0 0.0
    %3854 = vmatprep.subr.mxu0 0.0
    %3855 = vmatpush2.msra.mxu0 0.0
    %3856 = vmatprep.subr.mxu0 0.0
    %3857 = vmatpush2.msra.mxu0 0.0
    %3858 = vmatprep.mubr.f32.mxu0 0.0
    %3859 = vmatmul.mubr.f32.gmra.mxu0 %v3783
    %v3860 = vpop.f32.mrf.mxu0
    %v3861 = vadd.f32 %v3764, %v3860
    %v3862 = vpop.f32.mrf.mxu0
    %3863 = vmatprep.mubr.f32.mxu0 0.0
    %3864 = vmatmul.mubr.f32.gmra.mxu0 %v3786
    %v3865 = vpop.f32.mrf.mxu0
    %v3866 = vadd.f32 %v3769, %v3865
    %v3867 = vpop.f32.mrf.mxu0
    %3868 = vmatprep.mubr.f32.mxu0 0.0
    %3869 = vmatmul.mubr.f32.gmra.mxu0 %v3789
    %v3870 = vpop.f32.mrf.mxu0
    %v3871 = vadd.f32 %v3774, %v3870
    %v3872 = vpop.f32.mrf.mxu0
    %3873 = vmatprep.mubr.f32.mxu0 0.0
    %3874 = vmatmul.mubr.f32.gmra.mxu0 %v3792
    %v3875 = vpop.f32.mrf.mxu0
    %v3876 = vadd.f32 %v3779, %v3875
    %v3877 = vpop.f32.mrf.mxu0
    %3878 = vdwg.mxu0
    %v3879 = vld [vmem:[%s4] sm:$0xff]
    %v3880 = vld [vmem:[%s4 + $0x8] sm:$0xff]
    %v3881 = vld [vmem:[%s4 + $0x10] sm:$0xff]
    %v3882 = vld [vmem:[%s4 + $0x18] sm:$0xff]
    %v3884 = vsel %vm92, %v3879, 0
    %v3887 = vsel %vm92, %v3880, 0
    %v3890 = vsel %vm92, %v3881, 0
    %v3893 = vsel %vm92, %v3882, 0
    %3895 = vmatprep.subr.mxu0 0.0
    %3896 = vmatpush1.msra.mxu0 0.0
    %3897 = vmatprep.subr.mxu0 0.0
    %3898 = vmatpush1.msra.mxu0 0.0
    %3899 = vmatprep.subr.mxu0 0.0
    %3900 = vmatpush1.msra.mxu0 0.0
    %3901 = vmatprep.subr.mxu0 0.0
    %3902 = vmatpush1.msra.mxu0 0.0
    %3903 = vmatprep.subr.mxu0 0.0
    %3904 = vmatpush1.msra.mxu0 0.0
    %3905 = vmatprep.subr.mxu0 0.0
    %3906 = vmatpush1.msra.mxu0 0.0
    %3907 = vmatprep.subr.mxu0 0.0
    %3908 = vmatpush1.msra.mxu0 0.0
    %3909 = vmatprep.subr.mxu0 0.0
    %3910 = vmatpush1.msra.mxu0 0.0
    %3911 = vmatprep.subr.mxu0 0.0
    %3912 = vmatpush1.msra.mxu0 %v2658
    %3913 = vmatprep.subr.mxu0 0.0
    %3914 = vmatpush1.msra.mxu0 %v2657
    %3915 = vmatprep.subr.mxu0 0.0
    %3916 = vmatpush1.msra.mxu0 %v2656
    %3917 = vmatprep.subr.mxu0 0.0
    %3918 = vmatpush1.msra.mxu0 %v2655
    %3919 = vmatprep.subr.mxu0 0.0
    %3920 = vmatpush1.msra.mxu0 %v2654
    %3921 = vmatprep.subr.mxu0 0.0
    %3922 = vmatpush1.msra.mxu0 %v2653
    %3923 = vmatprep.subr.mxu0 0.0
    %3924 = vmatpush1.msra.mxu0 %v2652
    %3925 = vmatprep.subr.mxu0 0.0
    %3926 = vmatpush1.msra.mxu0 %v2651
    %3927 = vmatprep.subr.mxu0 0.0
    %3928 = vmatpush2.msra.mxu0 0.0
    %3929 = vmatprep.subr.mxu0 0.0
    %3930 = vmatpush2.msra.mxu0 0.0
    %3931 = vmatprep.subr.mxu0 0.0
    %3932 = vmatpush2.msra.mxu0 0.0
    %3933 = vmatprep.subr.mxu0 0.0
    %3934 = vmatpush2.msra.mxu0 0.0
    %3935 = vmatprep.subr.mxu0 0.0
    %3936 = vmatpush2.msra.mxu0 0.0
    %3937 = vmatprep.subr.mxu0 0.0
    %3938 = vmatpush2.msra.mxu0 0.0
    %3939 = vmatprep.subr.mxu0 0.0
    %3940 = vmatpush2.msra.mxu0 0.0
    %3941 = vmatprep.subr.mxu0 0.0
    %3942 = vmatpush2.msra.mxu0 0.0
    %3943 = vmatprep.subr.mxu0 0.0
    %3944 = vmatpush2.msra.mxu0 0.0
    %3945 = vmatprep.subr.mxu0 0.0
    %3946 = vmatpush2.msra.mxu0 0.0
    %3947 = vmatprep.subr.mxu0 0.0
    %3948 = vmatpush2.msra.mxu0 0.0
    %3949 = vmatprep.subr.mxu0 0.0
    %3950 = vmatpush2.msra.mxu0 0.0
    %3951 = vmatprep.subr.mxu0 0.0
    %3952 = vmatpush2.msra.mxu0 0.0
    %3953 = vmatprep.subr.mxu0 0.0
    %3954 = vmatpush2.msra.mxu0 0.0
    %3955 = vmatprep.subr.mxu0 0.0
    %3956 = vmatpush2.msra.mxu0 0.0
    %3957 = vmatprep.subr.mxu0 0.0
    %3958 = vmatpush2.msra.mxu0 0.0
    %3959 = vmatprep.mubr.f32.mxu0 0.0
    %3960 = vmatmul.mubr.f32.gmra.mxu0 %v3884
    %v3961 = vpop.f32.mrf.mxu0
    %v3962 = vadd.f32 0.0, %v3961
    %v3963 = vpop.f32.mrf.mxu0
    %3964 = vmatprep.mubr.f32.mxu0 0.0
    %3965 = vmatmul.mubr.f32.gmra.mxu0 %v3887
    %v3966 = vpop.f32.mrf.mxu0
    %v3967 = vadd.f32 0.0, %v3966
    %v3968 = vpop.f32.mrf.mxu0
    %3969 = vmatprep.mubr.f32.mxu0 0.0
    %3970 = vmatmul.mubr.f32.gmra.mxu0 %v3890
    %v3971 = vpop.f32.mrf.mxu0
    %v3972 = vadd.f32 0.0, %v3971
    %v3973 = vpop.f32.mrf.mxu0
    %3974 = vmatprep.mubr.f32.mxu0 0.0
    %3975 = vmatmul.mubr.f32.gmra.mxu0 %v3893
    %v3976 = vpop.f32.mrf.mxu0
    %v3977 = vadd.f32 0.0, %v3976
    %v3978 = vpop.f32.mrf.mxu0
    %3979 = vdwg.mxu0
    %v3980 = vadd.f32 %v3861, %v3962
    %v3981 = vadd.f32 %v3866, %v3967
    %v3982 = vadd.f32 %v3871, %v3972
    %v3983 = vadd.f32 %v3876, %v3977
    %v3984 = vtanh.pop %v3980
    %v3985 = vtanh.pop %v3981
    %v3986 = vtanh.pop %v3982
    %v3987 = vtanh.pop %v3983
    %v3988 = vld [vmem:[%s6] sm:$0xff]
    %v3989 = vld [vmem:[%s6 + $0x8] sm:$0xff]
    %v3990 = vld [vmem:[%s6 + $0x10] sm:$0xff]
    %v3991 = vld [vmem:[%s6 + $0x18] sm:$0xff]
    %v3992 = vld [vmem:[%s6 + $0x20] sm:$0xff]
    %v3993 = vld [vmem:[%s6 + $0x28] sm:$0xff]
    %v3994 = vld [vmem:[%s6 + $0x30] sm:$0xff]
    %v3995 = vld [vmem:[%s6 + $0x38] sm:$0xff]
    %v3997 = vsel %vm571, %v3988, 0
    %v4000 = vsel %vm571, %v3989, 0
    %v4003 = vsel %vm571, %v3990, 0
    %v4006 = vsel %vm571, %v3991, 0
    %v4009 = vsel %vm571, %v3992, 0
    %v4012 = vsel %vm571, %v3993, 0
    %v4015 = vsel %vm571, %v3994, 0
    %v4018 = vsel %vm571, %v3995, 0
    %4020 = vmatprep.subr.mxu0 0.0
    %4021 = vmatpush1.msra.mxu0 0.0
    %4022 = vmatprep.subr.mxu0 0.0
    %4023 = vmatpush1.msra.mxu0 0.0
    %4024 = vmatprep.subr.mxu0 0.0
    %4025 = vmatpush1.msra.mxu0 0.0
    %4026 = vmatprep.subr.mxu0 0.0
    %4027 = vmatpush1.msra.mxu0 0.0
    %4028 = vmatprep.subr.mxu0 0.0
    %4029 = vmatpush1.msra.mxu0 0.0
    %4030 = vmatprep.subr.mxu0 0.0
    %4031 = vmatpush1.msra.mxu0 0.0
    %4032 = vmatprep.subr.mxu0 0.0
    %4033 = vmatpush1.msra.mxu0 0.0
    %4034 = vmatprep.subr.mxu0 0.0
    %4035 = vmatpush1.msra.mxu0 0.0
    %4036 = vmatprep.subr.mxu0 0.0
    %4037 = vmatpush1.msra.mxu0 0.0
    %4038 = vmatprep.subr.mxu0 0.0
    %4039 = vmatpush1.msra.mxu0 0.0
    %4040 = vmatprep.subr.mxu0 0.0
    %4041 = vmatpush1.msra.mxu0 0.0
    %4042 = vmatprep.subr.mxu0 0.0
    %4043 = vmatpush1.msra.mxu0 0.0
    %4044 = vmatprep.subr.mxu0 0.0
    %4045 = vmatpush1.msra.mxu0 %v3987
    %4046 = vmatprep.subr.mxu0 0.0
    %4047 = vmatpush1.msra.mxu0 %v3986
    %4048 = vmatprep.subr.mxu0 0.0
    %4049 = vmatpush1.msra.mxu0 %v3985
    %4050 = vmatprep.subr.mxu0 0.0
    %4051 = vmatpush1.msra.mxu0 %v3984
    %4052 = vmatprep.subr.mxu0 0.0
    %4053 = vmatpush2.msra.mxu0 0.0
    %4054 = vmatprep.subr.mxu0 0.0
    %4055 = vmatpush2.msra.mxu0 0.0
    %4056 = vmatprep.subr.mxu0 0.0
    %4057 = vmatpush2.msra.mxu0 0.0
    %4058 = vmatprep.subr.mxu0 0.0
    %4059 = vmatpush2.msra.mxu0 0.0
    %4060 = vmatprep.subr.mxu0 0.0
    %4061 = vmatpush2.msra.mxu0 0.0
    %4062 = vmatprep.subr.mxu0 0.0
    %4063 = vmatpush2.msra.mxu0 0.0
    %4064 = vmatprep.subr.mxu0 0.0
    %4065 = vmatpush2.msra.mxu0 0.0
    %4066 = vmatprep.subr.mxu0 0.0
    %4067 = vmatpush2.msra.mxu0 0.0
    %4068 = vmatprep.subr.mxu0 0.0
    %4069 = vmatpush2.msra.mxu0 0.0
    %4070 = vmatprep.subr.mxu0 0.0
    %4071 = vmatpush2.msra.mxu0 0.0
    %4072 = vmatprep.subr.mxu0 0.0
    %4073 = vmatpush2.msra.mxu0 0.0
    %4074 = vmatprep.subr.mxu0 0.0
    %4075 = vmatpush2.msra.mxu0 0.0
    %4076 = vmatprep.subr.mxu0 0.0
    %4077 = vmatpush2.msra.mxu0 0.0
    %4078 = vmatprep.subr.mxu0 0.0
    %4079 = vmatpush2.msra.mxu0 0.0
    %4080 = vmatprep.subr.mxu0 0.0
    %4081 = vmatpush2.msra.mxu0 0.0
    %4082 = vmatprep.subr.mxu0 0.0
    %4083 = vmatpush2.msra.mxu0 0.0
    %4084 = vmatprep.mubr.f32.mxu0 0.0
    %4085 = vmatmul.mubr.f32.gmra.mxu0 %v3997
    %v4086 = vpop.f32.mrf.mxu0
    %v4087 = vadd.f32 0.0, %v4086
    %v4088 = vpop.f32.mrf.mxu0
    %4089 = vmatprep.mubr.f32.mxu0 0.0
    %4090 = vmatmul.mubr.f32.gmra.mxu0 %v4000
    %v4091 = vpop.f32.mrf.mxu0
    %v4092 = vadd.f32 0.0, %v4091
    %v4093 = vpop.f32.mrf.mxu0
    %4094 = vmatprep.mubr.f32.mxu0 0.0
    %4095 = vmatmul.mubr.f32.gmra.mxu0 %v4003
    %v4096 = vpop.f32.mrf.mxu0
    %v4097 = vadd.f32 0.0, %v4096
    %v4098 = vpop.f32.mrf.mxu0
    %4099 = vmatprep.mubr.f32.mxu0 0.0
    %4100 = vmatmul.mubr.f32.gmra.mxu0 %v4006
    %v4101 = vpop.f32.mrf.mxu0
    %v4102 = vadd.f32 0.0, %v4101
    %v4103 = vpop.f32.mrf.mxu0
    %4104 = vmatprep.mubr.f32.mxu0 0.0
    %4105 = vmatmul.mubr.f32.gmra.mxu0 %v4009
    %v4106 = vpop.f32.mrf.mxu0
    %v4107 = vadd.f32 0.0, %v4106
    %v4108 = vpop.f32.mrf.mxu0
    %4109 = vmatprep.mubr.f32.mxu0 0.0
    %4110 = vmatmul.mubr.f32.gmra.mxu0 %v4012
    %v4111 = vpop.f32.mrf.mxu0
    %v4112 = vadd.f32 0.0, %v4111
    %v4113 = vpop.f32.mrf.mxu0
    %4114 = vmatprep.mubr.f32.mxu0 0.0
    %4115 = vmatmul.mubr.f32.gmra.mxu0 %v4015
    %v4116 = vpop.f32.mrf.mxu0
    %v4117 = vadd.f32 0.0, %v4116
    %v4118 = vpop.f32.mrf.mxu0
    %4119 = vmatprep.mubr.f32.mxu0 0.0
    %4120 = vmatmul.mubr.f32.gmra.mxu0 %v4018
    %v4121 = vpop.f32.mrf.mxu0
    %v4122 = vadd.f32 0.0, %v4121
    %v4123 = vpop.f32.mrf.mxu0
    %4124 = vdwg.mxu0
    %4126 = vset.pattern.permute.xlu0 0
    %4127 = vperm.xlu0 %4126, %v4087
    %v4128 = vpop.permute.xlu0 %4127
    %4131 = vset.pattern.permute.xlu0 0
    %4132 = vperm.xlu0 %4131, %v4092
    %v4133 = vpop.permute.xlu0 %4132
    %4136 = vset.pattern.permute.xlu0 0
    %4137 = vperm.xlu0 %4136, %v4097
    %v4138 = vpop.permute.xlu0 %4137
    %4141 = vset.pattern.permute.xlu0 0
    %4142 = vperm.xlu0 %4141, %v4102
    %v4143 = vpop.permute.xlu0 %4142
    %4146 = vset.pattern.permute.xlu0 0
    %4147 = vperm.xlu0 %4146, %v4107
    %v4148 = vpop.permute.xlu0 %4147
    %4151 = vset.pattern.permute.xlu0 0
    %4152 = vperm.xlu0 %4151, %v4112
    %v4153 = vpop.permute.xlu0 %4152
    %4156 = vset.pattern.permute.xlu0 0
    %4157 = vperm.xlu0 %4156, %v4117
    %v4158 = vpop.permute.xlu0 %4157
    %4161 = vset.pattern.permute.xlu0 0
    %4162 = vperm.xlu0 %4161, %v4122
    %v4163 = vpop.permute.xlu0 %4162
    %4165 = vset.pattern.permute.xlu0 1
    %4166 = vperm.xlu0 %4165, %v4087
    %v4167 = vpop.permute.xlu0 %4166
    %4169 = vset.pattern.permute.xlu0 1
    %4170 = vperm.xlu0 %4169, %v4092
    %v4171 = vpop.permute.xlu0 %4170
    %4173 = vset.pattern.permute.xlu0 1
    %4174 = vperm.xlu0 %4173, %v4097
    %v4175 = vpop.permute.xlu0 %4174
    %4177 = vset.pattern.permute.xlu0 1
    %4178 = vperm.xlu0 %4177, %v4102
    %v4179 = vpop.permute.xlu0 %4178
    %4181 = vset.pattern.permute.xlu0 1
    %4182 = vperm.xlu0 %4181, %v4107
    %v4183 = vpop.permute.xlu0 %4182
    %4185 = vset.pattern.permute.xlu0 1
    %4186 = vperm.xlu0 %4185, %v4112
    %v4187 = vpop.permute.xlu0 %4186
    %4189 = vset.pattern.permute.xlu0 1
    %4190 = vperm.xlu0 %4189, %v4117
    %v4191 = vpop.permute.xlu0 %4190
    %4193 = vset.pattern.permute.xlu0 1
    %4194 = vperm.xlu0 %4193, %v4122
    %v4195 = vpop.permute.xlu0 %4194
    %v4197 = vld [vmem:[#allocation2] sm:$0xff]
    %v4198 = vld [vmem:[#allocation2 + $0x8] sm:$0xff]
    %v4199 = vld [vmem:[#allocation2 + $0x10] sm:$0xff]
    %v4200 = vld [vmem:[#allocation2 + $0x18] sm:$0xff]
    %v4201 = vld [vmem:[#allocation2 + $0x20] sm:$0xff]
    %v4202 = vld [vmem:[#allocation2 + $0x28] sm:$0xff]
    %v4203 = vld [vmem:[#allocation2 + $0x30] sm:$0xff]
    %v4204 = vld [vmem:[#allocation2 + $0x38] sm:$0xff]
    %v4205 = vld [vmem:[#allocation2 + $0x40] sm:$0xff]
    %v4206 = vld [vmem:[#allocation2 + $0x48] sm:$0xff]
    %v4207 = vld [vmem:[#allocation2 + $0x50] sm:$0xff]
    %v4208 = vld [vmem:[#allocation2 + $0x58] sm:$0xff]
    %v4209 = vld [vmem:[#allocation2 + $0x60] sm:$0xff]
    %v4210 = vld [vmem:[#allocation2 + $0x68] sm:$0xff]
    %v4211 = vld [vmem:[#allocation2 + $0x70] sm:$0xff]
    %v4212 = vld [vmem:[#allocation2 + $0x78] sm:$0xff]
    %v4213 = vadd.f32 %v4197, %v4128
    %v4214 = vadd.f32 %v4198, %v4167
    %v4215 = vadd.f32 %v4199, %v4133
    %v4216 = vadd.f32 %v4200, %v4171
    %v4217 = vadd.f32 %v4201, %v4138
    %v4218 = vadd.f32 %v4202, %v4175
    %v4219 = vadd.f32 %v4203, %v4143
    %v4220 = vadd.f32 %v4204, %v4179
    %v4221 = vadd.f32 %v4205, %v4148
    %v4222 = vadd.f32 %v4206, %v4183
    %v4223 = vadd.f32 %v4207, %v4153
    %v4224 = vadd.f32 %v4208, %v4187
    %v4225 = vadd.f32 %v4209, %v4158
    %v4226 = vadd.f32 %v4210, %v4191
    %v4227 = vadd.f32 %v4211, %v4163
    %v4228 = vadd.f32 %v4212, %v4195
    %v4229 = vld [vmem:[%s7] sm:$0xff]
    %v4230 = vld [vmem:[%s7 + $0x8] sm:$0xff]
    %v4231 = vld [vmem:[%s7 + $0x10] sm:$0xff]
    %v4232 = vld [vmem:[%s7 + $0x18] sm:$0xff]
    %v4233 = vld [vmem:[%s7 + $0x20] sm:$0xff]
    %v4234 = vld [vmem:[%s7 + $0x28] sm:$0xff]
    %v4235 = vld [vmem:[%s7 + $0x30] sm:$0xff]
    %v4236 = vld [vmem:[%s7 + $0x38] sm:$0xff]
    %4238 = vset.pattern.permute.xlu0 0
    %4239 = vperm.xlu0 %4238, %v4229
    %v4240 = vpop.permute.xlu0 %4239
    %4243 = vset.pattern.permute.xlu0 0
    %4244 = vperm.xlu0 %4243, %v4230
    %v4245 = vpop.permute.xlu0 %4244
    %4248 = vset.pattern.permute.xlu0 0
    %4249 = vperm.xlu0 %4248, %v4231
    %v4250 = vpop.permute.xlu0 %4249
    %4253 = vset.pattern.permute.xlu0 0
    %4254 = vperm.xlu0 %4253, %v4232
    %v4255 = vpop.permute.xlu0 %4254
    %4258 = vset.pattern.permute.xlu0 0
    %4259 = vperm.xlu0 %4258, %v4233
    %v4260 = vpop.permute.xlu0 %4259
    %4263 = vset.pattern.permute.xlu0 0
    %4264 = vperm.xlu0 %4263, %v4234
    %v4265 = vpop.permute.xlu0 %4264
    %4268 = vset.pattern.permute.xlu0 0
    %4269 = vperm.xlu0 %4268, %v4235
    %v4270 = vpop.permute.xlu0 %4269
    %4273 = vset.pattern.permute.xlu0 0
    %4274 = vperm.xlu0 %4273, %v4236
    %v4275 = vpop.permute.xlu0 %4274
    %v4277 = vadd.f32 %v4213, %v4240
    %v4278 = vadd.f32 %v4214, %v4240
    %v4279 = vadd.f32 %v4215, %v4245
    %v4280 = vadd.f32 %v4216, %v4245
    %v4281 = vadd.f32 %v4217, %v4250
    %v4282 = vadd.f32 %v4218, %v4250
    %v4283 = vadd.f32 %v4219, %v4255
    %v4284 = vadd.f32 %v4220, %v4255
    %v4285 = vadd.f32 %v4221, %v4260
    %v4286 = vadd.f32 %v4222, %v4260
    %v4287 = vadd.f32 %v4223, %v4265
    %v4288 = vadd.f32 %v4224, %v4265
    %v4289 = vadd.f32 %v4225, %v4270
    %v4290 = vadd.f32 %v4226, %v4270
    %v4291 = vadd.f32 %v4227, %v4275
    %v4292 = vadd.f32 %v4228, %v4275
    %v4293 = vmax.f32 %v4277, %v4285
    %v4294 = vmax.f32 %v4278, %v4286
    %v4295 = vmax.f32 %v4279, %v4287
    %v4296 = vmax.f32 %v4280, %v4288
    %v4297 = vmax.f32 %v4281, %v4289
    %v4298 = vmax.f32 %v4282, %v4290
    %v4299 = vmax.f32 %v4283, %v4291
    %v4300 = vmax.f32 %v4284, %v4292
    %v4301 = vld [vmem:[%s8] sm:$0xff]
    %v4302 = vld [vmem:[%s8 + $0x8] sm:$0xff]
    %v4303 = vld [vmem:[%s8 + $0x10] sm:$0xff]
    %v4304 = vld [vmem:[%s8 + $0x18] sm:$0xff]
    %v4305 = vld [vmem:[%s8 + $0x20] sm:$0xff]
    %v4306 = vld [vmem:[%s8 + $0x28] sm:$0xff]
    %v4307 = vld [vmem:[%s8 + $0x30] sm:$0xff]
    %v4308 = vld [vmem:[%s8 + $0x38] sm:$0xff]
    %v4309 = vld [vmem:[%s9] sm:$0xff]
    %v4310 = vld [vmem:[%s9 + $0x8] sm:$0xff]
    %v4311 = vld [vmem:[%s9 + $0x10] sm:$0xff]
    %v4312 = vld [vmem:[%s9 + $0x18] sm:$0xff]
    %v4313 = vld [vmem:[%s9 + $0x20] sm:$0xff]
    %v4314 = vld [vmem:[%s9 + $0x28] sm:$0xff]
    %v4315 = vld [vmem:[%s9 + $0x30] sm:$0xff]
    %v4316 = vld [vmem:[%s9 + $0x38] sm:$0xff]
    %4318 = vset.pattern.permute.xlu0 0
    %4319 = vperm.xlu0 %4318, %v4309
    %v4320 = vpop.permute.xlu0 %4319
    %4323 = vset.pattern.permute.xlu0 0
    %4324 = vperm.xlu0 %4323, %v4310
    %v4325 = vpop.permute.xlu0 %4324
    %4328 = vset.pattern.permute.xlu0 0
    %4329 = vperm.xlu0 %4328, %v4311
    %v4330 = vpop.permute.xlu0 %4329
    %4333 = vset.pattern.permute.xlu0 0
    %4334 = vperm.xlu0 %4333, %v4312
    %v4335 = vpop.permute.xlu0 %4334
    %4338 = vset.pattern.permute.xlu0 0
    %4339 = vperm.xlu0 %4338, %v4313
    %v4340 = vpop.permute.xlu0 %4339
    %4343 = vset.pattern.permute.xlu0 0
    %4344 = vperm.xlu0 %4343, %v4314
    %v4345 = vpop.permute.xlu0 %4344
    %4348 = vset.pattern.permute.xlu0 0
    %4349 = vperm.xlu0 %4348, %v4315
    %v4350 = vpop.permute.xlu0 %4349
    %4353 = vset.pattern.permute.xlu0 0
    %4354 = vperm.xlu0 %4353, %v4316
    %v4355 = vpop.permute.xlu0 %4354
    %v4358 = vsel %vm571, %v4301, 0
    %v4361 = vsel %vm571, %v4302, 0
    %v4364 = vsel %vm571, %v4303, 0
    %v4367 = vsel %vm571, %v4304, 0
    %v4370 = vsel %vm571, %v4305, 0
    %v4373 = vsel %vm571, %v4306, 0
    %v4376 = vsel %vm571, %v4307, 0
    %v4379 = vsel %vm571, %v4308, 0
    %4381 = vmatprep.subr.mxu0 0.0
    %4382 = vmatpush1.msra.mxu0 0.0
    %4383 = vmatprep.subr.mxu0 0.0
    %4384 = vmatpush1.msra.mxu0 0.0
    %4385 = vmatprep.subr.mxu0 0.0
    %4386 = vmatpush1.msra.mxu0 0.0
    %4387 = vmatprep.subr.mxu0 0.0
    %4388 = vmatpush1.msra.mxu0 0.0
    %4389 = vmatprep.subr.mxu0 0.0
    %4390 = vmatpush1.msra.mxu0 0.0
    %4391 = vmatprep.subr.mxu0 0.0
    %4392 = vmatpush1.msra.mxu0 0.0
    %4393 = vmatprep.subr.mxu0 0.0
    %4394 = vmatpush1.msra.mxu0 0.0
    %4395 = vmatprep.subr.mxu0 0.0
    %4396 = vmatpush1.msra.mxu0 0.0
    %4397 = vmatprep.subr.mxu0 0.0
    %4398 = vmatpush1.msra.mxu0 0.0
    %4399 = vmatprep.subr.mxu0 0.0
    %4400 = vmatpush1.msra.mxu0 0.0
    %4401 = vmatprep.subr.mxu0 0.0
    %4402 = vmatpush1.msra.mxu0 0.0
    %4403 = vmatprep.subr.mxu0 0.0
    %4404 = vmatpush1.msra.mxu0 0.0
    %4405 = vmatprep.subr.mxu0 %v4300
    %4406 = vmatpush1.msra.mxu0 %v4299
    %4407 = vmatprep.subr.mxu0 %v4298
    %4408 = vmatpush1.msra.mxu0 %v4297
    %4409 = vmatprep.subr.mxu0 %v4296
    %4410 = vmatpush1.msra.mxu0 %v4295
    %4411 = vmatprep.subr.mxu0 %v4294
    %4412 = vmatpush1.msra.mxu0 %v4293
    %4413 = vmatprep.subr.mxu0 0.0
    %4414 = vmatpush2.msra.mxu0 0.0
    %4415 = vmatprep.subr.mxu0 0.0
    %4416 = vmatpush2.msra.mxu0 0.0
    %4417 = vmatprep.subr.mxu0 0.0
    %4418 = vmatpush2.msra.mxu0 0.0
    %4419 = vmatprep.subr.mxu0 0.0
    %4420 = vmatpush2.msra.mxu0 0.0
    %4421 = vmatprep.subr.mxu0 0.0
    %4422 = vmatpush2.msra.mxu0 0.0
    %4423 = vmatprep.subr.mxu0 0.0
    %4424 = vmatpush2.msra.mxu0 0.0
    %4425 = vmatprep.subr.mxu0 0.0
    %4426 = vmatpush2.msra.mxu0 0.0
    %4427 = vmatprep.subr.mxu0 0.0
    %4428 = vmatpush2.msra.mxu0 0.0
    %4429 = vmatprep.subr.mxu0 0.0
    %4430 = vmatpush2.msra.mxu0 0.0
    %4431 = vmatprep.subr.mxu0 0.0
    %4432 = vmatpush2.msra.mxu0 0.0
    %4433 = vmatprep.subr.mxu0 0.0
    %4434 = vmatpush2.msra.mxu0 0.0
    %4435 = vmatprep.subr.mxu0 0.0
    %4436 = vmatpush2.msra.mxu0 0.0
    %4437 = vmatprep.subr.mxu0 0.0
    %4438 = vmatpush2.msra.mxu0 0.0
    %4439 = vmatprep.subr.mxu0 0.0
    %4440 = vmatpush2.msra.mxu0 0.0
    %4441 = vmatprep.subr.mxu0 0.0
    %4442 = vmatpush2.msra.mxu0 0.0
    %4443 = vmatprep.subr.mxu0 0.0
    %4444 = vmatpush2.msra.mxu0 0.0
    %4445 = vmatprep.mubr.f32.mxu0 0.0
    %4446 = vmatmul.mubr.f32.gmra.mxu0 %v4358
    %v4447 = vpop.f32.mrf.mxu0
    %v4448 = vadd.f32 %v4320, %v4447
    %v4449 = vpop.f32.mrf.mxu0
    %v4450 = vadd.f32 %v4320, %v4449
    %4451 = vmatprep.mubr.f32.mxu0 0.0
    %4452 = vmatmul.mubr.f32.gmra.mxu0 %v4361
    %v4453 = vpop.f32.mrf.mxu0
    %v4454 = vadd.f32 %v4325, %v4453
    %v4455 = vpop.f32.mrf.mxu0
    %v4456 = vadd.f32 %v4325, %v4455
    %4457 = vmatprep.mubr.f32.mxu0 0.0
    %4458 = vmatmul.mubr.f32.gmra.mxu0 %v4364
    %v4459 = vpop.f32.mrf.mxu0
    %v4460 = vadd.f32 %v4330, %v4459
    %v4461 = vpop.f32.mrf.mxu0
    %v4462 = vadd.f32 %v4330, %v4461
    %4463 = vmatprep.mubr.f32.mxu0 0.0
    %4464 = vmatmul.mubr.f32.gmra.mxu0 %v4367
    %v4465 = vpop.f32.mrf.mxu0
    %v4466 = vadd.f32 %v4335, %v4465
    %v4467 = vpop.f32.mrf.mxu0
    %v4468 = vadd.f32 %v4335, %v4467
    %4469 = vmatprep.mubr.f32.mxu0 0.0
    %4470 = vmatmul.mubr.f32.gmra.mxu0 %v4370
    %v4471 = vpop.f32.mrf.mxu0
    %v4472 = vadd.f32 %v4340, %v4471
    %v4473 = vpop.f32.mrf.mxu0
    %v4474 = vadd.f32 %v4340, %v4473
    %4475 = vmatprep.mubr.f32.mxu0 0.0
    %4476 = vmatmul.mubr.f32.gmra.mxu0 %v4373
    %v4477 = vpop.f32.mrf.mxu0
    %v4478 = vadd.f32 %v4345, %v4477
    %v4479 = vpop.f32.mrf.mxu0
    %v4480 = vadd.f32 %v4345, %v4479
    %4481 = vmatprep.mubr.f32.mxu0 0.0
    %4482 = vmatmul.mubr.f32.gmra.mxu0 %v4376
    %v4483 = vpop.f32.mrf.mxu0
    %v4484 = vadd.f32 %v4350, %v4483
    %v4485 = vpop.f32.mrf.mxu0
    %v4486 = vadd.f32 %v4350, %v4485
    %4487 = vmatprep.mubr.f32.mxu0 0.0
    %4488 = vmatmul.mubr.f32.gmra.mxu0 %v4379
    %v4489 = vpop.f32.mrf.mxu0
    %v4490 = vadd.f32 %v4355, %v4489
    %v4491 = vpop.f32.mrf.mxu0
    %v4492 = vadd.f32 %v4355, %v4491
    %4493 = vdwg.mxu0
    %v4494 = vmax.f32 %v4448, %v4472
    %v4495 = vmax.f32 %v4450, %v4474
    %v4496 = vmax.f32 %v4454, %v4478
    %v4497 = vmax.f32 %v4456, %v4480
    %v4498 = vmax.f32 %v4460, %v4484
    %v4499 = vmax.f32 %v4462, %v4486
    %v4500 = vmax.f32 %v4466, %v4490
    %v4501 = vmax.f32 %v4468, %v4492
    %v4502 = vld [vmem:[%s10] sm:$0xff]
    %v4503 = vld [vmem:[%s11] sm:$0xff]
    %v4505 = vsel %vm571, %v4503, 0
    %4507 = vmatprep.subr.mxu0 0.0
    %4508 = vmatpush1.msra.mxu0 0.0
    %4509 = vmatprep.subr.mxu0 0.0
    %4510 = vmatpush1.msra.mxu0 0.0
    %4511 = vmatprep.subr.mxu0 0.0
    %4512 = vmatpush1.msra.mxu0 0.0
    %4513 = vmatprep.subr.mxu0 0.0
    %4514 = vmatpush1.msra.mxu0 0.0
    %4515 = vmatprep.subr.mxu0 0.0
    %4516 = vmatpush1.msra.mxu0 0.0
    %4517 = vmatprep.subr.mxu0 0.0
    %4518 = vmatpush1.msra.mxu0 0.0
    %4519 = vmatprep.subr.mxu0 0.0
    %4520 = vmatpush1.msra.mxu0 0.0
    %4521 = vmatprep.subr.mxu0 0.0
    %4522 = vmatpush1.msra.mxu0 0.0
    %4523 = vmatprep.subr.mxu0 0.0
    %4524 = vmatpush1.msra.mxu0 0.0
    %4525 = vmatprep.subr.mxu0 0.0
    %4526 = vmatpush1.msra.mxu0 0.0
    %4527 = vmatprep.subr.mxu0 0.0
    %4528 = vmatpush1.msra.mxu0 0.0
    %4529 = vmatprep.subr.mxu0 0.0
    %4530 = vmatpush1.msra.mxu0 0.0
    %4531 = vmatprep.subr.mxu0 %v4501
    %4532 = vmatpush1.msra.mxu0 %v4500
    %4533 = vmatprep.subr.mxu0 %v4499
    %4534 = vmatpush1.msra.mxu0 %v4498
    %4535 = vmatprep.subr.mxu0 %v4497
    %4536 = vmatpush1.msra.mxu0 %v4496
    %4537 = vmatprep.subr.mxu0 %v4495
    %4538 = vmatpush1.msra.mxu0 %v4494
    %4539 = vmatprep.subr.mxu0 0.0
    %4540 = vmatpush2.msra.mxu0 0.0
    %4541 = vmatprep.subr.mxu0 0.0
    %4542 = vmatpush2.msra.mxu0 0.0
    %4543 = vmatprep.subr.mxu0 0.0
    %4544 = vmatpush2.msra.mxu0 0.0
    %4545 = vmatprep.subr.mxu0 0.0
    %4546 = vmatpush2.msra.mxu0 0.0
    %4547 = vmatprep.subr.mxu0 0.0
    %4548 = vmatpush2.msra.mxu0 0.0
    %4549 = vmatprep.subr.mxu0 0.0
    %4550 = vmatpush2.msra.mxu0 0.0
    %4551 = vmatprep.subr.mxu0 0.0
    %4552 = vmatpush2.msra.mxu0 0.0
    %4553 = vmatprep.subr.mxu0 0.0
    %4554 = vmatpush2.msra.mxu0 0.0
    %4555 = vmatprep.subr.mxu0 0.0
    %4556 = vmatpush2.msra.mxu0 0.0
    %4557 = vmatprep.subr.mxu0 0.0
    %4558 = vmatpush2.msra.mxu0 0.0
    %4559 = vmatprep.subr.mxu0 0.0
    %4560 = vmatpush2.msra.mxu0 0.0
    %4561 = vmatprep.subr.mxu0 0.0
    %4562 = vmatpush2.msra.mxu0 0.0
    %4563 = vmatprep.subr.mxu0 0.0
    %4564 = vmatpush2.msra.mxu0 0.0
    %4565 = vmatprep.subr.mxu0 0.0
    %4566 = vmatpush2.msra.mxu0 0.0
    %4567 = vmatprep.subr.mxu0 0.0
    %4568 = vmatpush2.msra.mxu0 0.0
    %4569 = vmatprep.subr.mxu0 0.0
    %4570 = vmatpush2.msra.mxu0 0.0
    %4571 = vmatprep.mubr.f32.mxu0 0.0
    %4572 = vmatmul.mubr.f32.gmra.mxu0 %v4505
    %v4573 = vpop.f32.mrf.mxu0
    %v4574 = vadd.f32 0.0, %v4573
    %v4575 = vpop.f32.mrf.mxu0
    %v4576 = vadd.f32 0.0, %v4575
    %4577 = vdwg.mxu0
    %v4579 = vsel %vm571, %v4502, 0
    %4581 = vmatprep.subr.mxu0 0.0
    %4582 = vmatpush1.msra.mxu0 0.0
    %4583 = vmatprep.subr.mxu0 0.0
    %4584 = vmatpush1.msra.mxu0 0.0
    %4585 = vmatprep.subr.mxu0 0.0
    %4586 = vmatpush1.msra.mxu0 0.0
    %4587 = vmatprep.subr.mxu0 0.0
    %4588 = vmatpush1.msra.mxu0 0.0
    %4589 = vmatprep.subr.mxu0 0.0
    %4590 = vmatpush1.msra.mxu0 0.0
    %4591 = vmatprep.subr.mxu0 0.0
    %4592 = vmatpush1.msra.mxu0 0.0
    %4593 = vmatprep.subr.mxu0 0.0
    %4594 = vmatpush1.msra.mxu0 0.0
    %4595 = vmatprep.subr.mxu0 0.0
    %4596 = vmatpush1.msra.mxu0 0.0
    %4597 = vmatprep.subr.mxu0 0.0
    %4598 = vmatpush1.msra.mxu0 0.0
    %4599 = vmatprep.subr.mxu0 0.0
    %4600 = vmatpush1.msra.mxu0 0.0
    %4601 = vmatprep.subr.mxu0 0.0
    %4602 = vmatpush1.msra.mxu0 0.0
    %4603 = vmatprep.subr.mxu0 0.0
    %4604 = vmatpush1.msra.mxu0 0.0
    %4605 = vmatprep.subr.mxu0 %v4300
    %4606 = vmatpush1.msra.mxu0 %v4299
    %4607 = vmatprep.subr.mxu0 %v4298
    %4608 = vmatpush1.msra.mxu0 %v4297
    %4609 = vmatprep.subr.mxu0 %v4296
    %4610 = vmatpush1.msra.mxu0 %v4295
    %4611 = vmatprep.subr.mxu0 %v4294
    %4612 = vmatpush1.msra.mxu0 %v4293
    %4613 = vmatprep.subr.mxu0 0.0
    %4614 = vmatpush2.msra.mxu0 0.0
    %4615 = vmatprep.subr.mxu0 0.0
    %4616 = vmatpush2.msra.mxu0 0.0
    %4617 = vmatprep.subr.mxu0 0.0
    %4618 = vmatpush2.msra.mxu0 0.0
    %4619 = vmatprep.subr.mxu0 0.0
    %4620 = vmatpush2.msra.mxu0 0.0
    %4621 = vmatprep.subr.mxu0 0.0
    %4622 = vmatpush2.msra.mxu0 0.0
    %4623 = vmatprep.subr.mxu0 0.0
    %4624 = vmatpush2.msra.mxu0 0.0
    %4625 = vmatprep.subr.mxu0 0.0
    %4626 = vmatpush2.msra.mxu0 0.0
    %4627 = vmatprep.subr.mxu0 0.0
    %4628 = vmatpush2.msra.mxu0 0.0
    %4629 = vmatprep.subr.mxu0 0.0
    %4630 = vmatpush2.msra.mxu0 0.0
    %4631 = vmatprep.subr.mxu0 0.0
    %4632 = vmatpush2.msra.mxu0 0.0
    %4633 = vmatprep.subr.mxu0 0.0
    %4634 = vmatpush2.msra.mxu0 0.0
    %4635 = vmatprep.subr.mxu0 0.0
    %4636 = vmatpush2.msra.mxu0 0.0
    %4637 = vmatprep.subr.mxu0 0.0
    %4638 = vmatpush2.msra.mxu0 0.0
    %4639 = vmatprep.subr.mxu0 0.0
    %4640 = vmatpush2.msra.mxu0 0.0
    %4641 = vmatprep.subr.mxu0 0.0
    %4642 = vmatpush2.msra.mxu0 0.0
    %4643 = vmatprep.subr.mxu0 0.0
    %4644 = vmatpush2.msra.mxu0 0.0
    %4645 = vmatprep.mubr.f32.mxu0 0.0
    %4646 = vmatmul.mubr.f32.gmra.mxu0 %v4579
    %v4647 = vpop.f32.mrf.mxu0
    %v4648 = vadd.f32 %v4574, %v4647
    %v4649 = vpop.f32.mrf.mxu0
    %v4650 = vadd.f32 %v4576, %v4649
    %4651 = vdwg.mxu0
    %v4652 = vld [vmem:[%s12] sm:$0xff]
    %4654 = vset.pattern.permute.xlu0 0
    %4655 = vperm.xlu0 %4654, %v4652
    %v4656 = vpop.permute.xlu0 %4655
    %v4658 = vadd.f32 %v4648, %v4656
    %v4659 = vadd.f32 %v4650, %v4656
    %v4660 = vrot.slane %v4658, 4
    %v4661 = vmax.f32 %v4658, %v4660
    %v4662 = vrot.slane %v4661, 2
    %v4663 = vmax.f32 %v4661, %v4662
    %v4664 = vrot.slane %v4663, 1
    %v4665 = vmax.f32 %v4663, %v4664
    %v4666 = vrot.slane %v4659, 4
    %v4667 = vmax.f32 %v4659, %v4666
    %v4668 = vrot.slane %v4667, 2
    %v4669 = vmax.f32 %v4667, %v4668
    %v4670 = vrot.slane %v4669, 1
    %v4671 = vmax.f32 %v4669, %v4670
    %v4672 = vld [vmem:[%s1] sm:$0x3]
    %v4674 = vlaneseq
    %v4675 = vshrl.u32 %v4674, 7
    %v4676 = vsub.s32 0, %v4675
    %v4677 = vrot.slane %v4672, %v4676
    %v4678 = vlaneseq
    %v4679 = vshrl.u32 %v4678, 7
    %v4680 = vsub.s32 1, %v4679
    %v4681 = vrot.slane %v4672, %v4680
    %v4684 = vsub.f32 %v4665, %v4677
    %v4685 = vsub.f32 %v4671, %v4681
    %v4686 = vsel %vm1479, %v4684, -inf
    %4687 = vmax.xlane.f32.xlu0 %v4686
    %v4688 = vpop.xlane.xlu0 %4687
    %vm4689 = vcmp.ge.f32.partialorder %v4684, %v4688
    %v4690 = vsel %vm4689, %v1478, 128.0
    %v4691 = vsel %vm1479, %v4690, inf
    %4692 = vmin.xlane.f32.xlu0 %v4691
    %v4693 = vpop.xlane.xlu0 %4692
    %vm4694 = vcmp.eq.f32.partialorder %v1478, %v4693
    %v4695 = vsel %vm4694, 1, 0
    %v4696 = vcvt.s32.f32 %v4695
    %v4697 = vld [vmem:[%s0] sm:$0xff]
    %v4698 = vld [vmem:[%s0 + $0x10] sm:$0xff]
    %v4699 = vld [vmem:[%s0 + $0x20] sm:$0xff]
    %v4700 = vld [vmem:[%s0 + $0x30] sm:$0xff]
    %v4701 = vld [vmem:[%s0 + $0x40] sm:$0xff]
    %v4702 = vld [vmem:[%s0 + $0x50] sm:$0xff]
    %v4703 = vld [vmem:[%s0 + $0x60] sm:$0xff]
    %v4704 = vld [vmem:[%s0 + $0x70] sm:$0xff]
    %v4705 = vlaneseq
    %v4706 = vshrl.u32 %v4705, 7
    %v4707 = vsub.s32 0, %v4706
    %v4708 = vrot.slane %v4696, %v4707
    %v4709 = vmul.f32 %v4697, %v4708
    %v4710 = vmul.f32 %v4698, %v4708
    %v4711 = vmul.f32 %v4699, %v4708
    %v4712 = vmul.f32 %v4700, %v4708
    %v4713 = vmul.f32 %v4701, %v4708
    %v4714 = vmul.f32 %v4702, %v4708
    %v4715 = vmul.f32 %v4703, %v4708
    %v4716 = vmul.f32 %v4704, %v4708
    %4717 = vadd.xlane.f32.xlu0 %v4709
    %v4718 = vpop.xlane.xlu0 %4717
    %4719 = vadd.xlane.f32.xlu0 %v4710
    %v4720 = vpop.xlane.xlu0 %4719
    %4721 = vadd.xlane.f32.xlu0 %v4711
    %v4722 = vpop.xlane.xlu0 %4721
    %4723 = vadd.xlane.f32.xlu0 %v4712
    %v4724 = vpop.xlane.xlu0 %4723
    %4725 = vadd.xlane.f32.xlu0 %v4713
    %v4726 = vpop.xlane.xlu0 %4725
    %4727 = vadd.xlane.f32.xlu0 %v4714
    %v4728 = vpop.xlane.xlu0 %4727
    %4729 = vadd.xlane.f32.xlu0 %v4715
    %v4730 = vpop.xlane.xlu0 %4729
    %4731 = vadd.xlane.f32.xlu0 %v4716
    %v4732 = vpop.xlane.xlu0 %4731
    %v4733 = vsel %vm1479, %v4685, -inf
    %4734 = vmax.xlane.f32.xlu0 %v4733
    %v4735 = vpop.xlane.xlu0 %4734
    %vm4736 = vcmp.ge.f32.partialorder %v4685, %v4735
    %v4737 = vsel %vm4736, %v1478, 128.0
    %v4738 = vsel %vm1479, %v4737, inf
    %4739 = vmin.xlane.f32.xlu0 %v4738
    %v4740 = vpop.xlane.xlu0 %4739
    %vm4741 = vcmp.eq.f32.partialorder %v1478, %v4740
    %v4742 = vsel %vm4741, 1, 0
    %v4743 = vcvt.s32.f32 %v4742
    %v4744 = vld [vmem:[%s0 + $0x8] sm:$0xff]
    %v4745 = vld [vmem:[%s0 + $0x18] sm:$0xff]
    %v4746 = vld [vmem:[%s0 + $0x28] sm:$0xff]
    %v4747 = vld [vmem:[%s0 + $0x38] sm:$0xff]
    %v4748 = vld [vmem:[%s0 + $0x48] sm:$0xff]
    %v4749 = vld [vmem:[%s0 + $0x58] sm:$0xff]
    %v4750 = vld [vmem:[%s0 + $0x68] sm:$0xff]
    %v4751 = vld [vmem:[%s0 + $0x78] sm:$0xff]
    %v4752 = vlaneseq
    %v4753 = vshrl.u32 %v4752, 7
    %v4754 = vsub.s32 0, %v4753
    %v4755 = vrot.slane %v4743, %v4754
    %v4756 = vmul.f32 %v4744, %v4755
    %v4757 = vmul.f32 %v4745, %v4755
    %v4758 = vmul.f32 %v4746, %v4755
    %v4759 = vmul.f32 %v4747, %v4755
    %v4760 = vmul.f32 %v4748, %v4755
    %v4761 = vmul.f32 %v4749, %v4755
    %v4762 = vmul.f32 %v4750, %v4755
    %v4763 = vmul.f32 %v4751, %v4755
    %4764 = vadd.xlane.f32.xlu0 %v4756
    %v4765 = vpop.xlane.xlu0 %4764
    %4766 = vadd.xlane.f32.xlu0 %v4757
    %v4767 = vpop.xlane.xlu0 %4766
    %4768 = vadd.xlane.f32.xlu0 %v4758
    %v4769 = vpop.xlane.xlu0 %4768
    %4770 = vadd.xlane.f32.xlu0 %v4759
    %v4771 = vpop.xlane.xlu0 %4770
    %4772 = vadd.xlane.f32.xlu0 %v4760
    %v4773 = vpop.xlane.xlu0 %4772
    %4774 = vadd.xlane.f32.xlu0 %v4761
    %v4775 = vpop.xlane.xlu0 %4774
    %4776 = vadd.xlane.f32.xlu0 %v4762
    %v4777 = vpop.xlane.xlu0 %4776
    %4778 = vadd.xlane.f32.xlu0 %v4763
    %v4779 = vpop.xlane.xlu0 %4778
    %v4780 = vsel %vm457, %v4693, %v4740
    %v4781 = vsel %vm457, %v4718, %v4765
    %v4782 = vsel %vm457, %v4720, %v4767
    %v4783 = vsel %vm457, %v4722, %v4769
    %v4784 = vsel %vm457, %v4724, %v4771
    %v4785 = vsel %vm457, %v4726, %v4773
    %v4786 = vsel %vm457, %v4728, %v4775
    %v4787 = vsel %vm457, %v4730, %v4777
    %v4788 = vsel %vm457, %v4732, %v4779
    %v4789 = vld [vmem:[%s1566] sm:$0xff]
    %v4790 = vld [vmem:[%s1566 + $0x8] sm:$0xff]
    %v4791 = vld [vmem:[%s1566 + $0x10] sm:$0xff]
    %v4792 = vld [vmem:[%s1566 + $0x18] sm:$0xff]
    %v4793 = vld [vmem:[%s1571] sm:$0xff]
    %v4794 = vld [vmem:[%s1571 + $0x8] sm:$0xff]
    %v4795 = vld [vmem:[%s1571 + $0x10] sm:$0xff]
    %v4796 = vld [vmem:[%s1571 + $0x18] sm:$0xff]
    %v4798 = vsel %vm92, %v4793, 0
    %v4801 = vsel %vm92, %v4794, 0
    %v4804 = vsel %vm92, %v4795, 0
    %v4807 = vsel %vm92, %v4796, 0
    %4809 = vmatprep.subr.mxu0 0.0
    %4810 = vmatpush1.msra.mxu0 0.0
    %4811 = vmatprep.subr.mxu0 0.0
    %4812 = vmatpush1.msra.mxu0 0.0
    %4813 = vmatprep.subr.mxu0 0.0
    %4814 = vmatpush1.msra.mxu0 0.0
    %4815 = vmatprep.subr.mxu0 0.0
    %4816 = vmatpush1.msra.mxu0 0.0
    %4817 = vmatprep.subr.mxu0 0.0
    %4818 = vmatpush1.msra.mxu0 0.0
    %4819 = vmatprep.subr.mxu0 0.0
    %4820 = vmatpush1.msra.mxu0 0.0
    %4821 = vmatprep.subr.mxu0 0.0
    %4822 = vmatpush1.msra.mxu0 0.0
    %4823 = vmatprep.subr.mxu0 0.0
    %4824 = vmatpush1.msra.mxu0 0.0
    %4825 = vmatprep.subr.mxu0 0.0
    %4826 = vmatpush1.msra.mxu0 %v4788
    %4827 = vmatprep.subr.mxu0 0.0
    %4828 = vmatpush1.msra.mxu0 %v4787
    %4829 = vmatprep.subr.mxu0 0.0
    %4830 = vmatpush1.msra.mxu0 %v4786
    %4831 = vmatprep.subr.mxu0 0.0
    %4832 = vmatpush1.msra.mxu0 %v4785
    %4833 = vmatprep.subr.mxu0 0.0
    %4834 = vmatpush1.msra.mxu0 %v4784
    %4835 = vmatprep.subr.mxu0 0.0
    %4836 = vmatpush1.msra.mxu0 %v4783
    %4837 = vmatprep.subr.mxu0 0.0
    %4838 = vmatpush1.msra.mxu0 %v4782
    %4839 = vmatprep.subr.mxu0 0.0
    %4840 = vmatpush1.msra.mxu0 %v4781
    %4841 = vmatprep.subr.mxu0 0.0
    %4842 = vmatpush2.msra.mxu0 0.0
    %4843 = vmatprep.subr.mxu0 0.0
    %4844 = vmatpush2.msra.mxu0 0.0
    %4845 = vmatprep.subr.mxu0 0.0
    %4846 = vmatpush2.msra.mxu0 0.0
    %4847 = vmatprep.subr.mxu0 0.0
    %4848 = vmatpush2.msra.mxu0 0.0
    %4849 = vmatprep.subr.mxu0 0.0
    %4850 = vmatpush2.msra.mxu0 0.0
    %4851 = vmatprep.subr.mxu0 0.0
    %4852 = vmatpush2.msra.mxu0 0.0
    %4853 = vmatprep.subr.mxu0 0.0
    %4854 = vmatpush2.msra.mxu0 0.0
    %4855 = vmatprep.subr.mxu0 0.0
    %4856 = vmatpush2.msra.mxu0 0.0
    %4857 = vmatprep.subr.mxu0 0.0
    %4858 = vmatpush2.msra.mxu0 0.0
    %4859 = vmatprep.subr.mxu0 0.0
    %4860 = vmatpush2.msra.mxu0 0.0
    %4861 = vmatprep.subr.mxu0 0.0
    %4862 = vmatpush2.msra.mxu0 0.0
    %4863 = vmatprep.subr.mxu0 0.0
    %4864 = vmatpush2.msra.mxu0 0.0
    %4865 = vmatprep.subr.mxu0 0.0
    %4866 = vmatpush2.msra.mxu0 0.0
    %4867 = vmatprep.subr.mxu0 0.0
    %4868 = vmatpush2.msra.mxu0 0.0
    %4869 = vmatprep.subr.mxu0 0.0
    %4870 = vmatpush2.msra.mxu0 0.0
    %4871 = vmatprep.subr.mxu0 0.0
    %4872 = vmatpush2.msra.mxu0 0.0
    %4873 = vmatprep.mubr.f32.mxu0 0.0
    %4874 = vmatmul.mubr.f32.gmra.mxu0 %v4798
    %v4875 = vpop.f32.mrf.mxu0
    %v4876 = vadd.f32 0.0, %v4875
    %v4877 = vpop.f32.mrf.mxu0
    %4878 = vmatprep.mubr.f32.mxu0 0.0
    %4879 = vmatmul.mubr.f32.gmra.mxu0 %v4801
    %v4880 = vpop.f32.mrf.mxu0
    %v4881 = vadd.f32 0.0, %v4880
    %v4882 = vpop.f32.mrf.mxu0
    %4883 = vmatprep.mubr.f32.mxu0 0.0
    %4884 = vmatmul.mubr.f32.gmra.mxu0 %v4804
    %v4885 = vpop.f32.mrf.mxu0
    %v4886 = vadd.f32 0.0, %v4885
    %v4887 = vpop.f32.mrf.mxu0
    %4888 = vmatprep.mubr.f32.mxu0 0.0
    %4889 = vmatmul.mubr.f32.gmra.mxu0 %v4807
    %v4890 = vpop.f32.mrf.mxu0
    %v4891 = vadd.f32 0.0, %v4890
    %v4892 = vpop.f32.mrf.mxu0
    %4893 = vdwg.mxu0
    %v4895 = vsel %vm571, %v4789, 0
    %v4898 = vsel %vm571, %v4790, 0
    %v4901 = vsel %vm571, %v4791, 0
    %v4904 = vsel %vm571, %v4792, 0
    %4906 = vmatprep.subr.mxu0 0.0
    %4907 = vmatpush1.msra.mxu0 0.0
    %4908 = vmatprep.subr.mxu0 0.0
    %4909 = vmatpush1.msra.mxu0 0.0
    %4910 = vmatprep.subr.mxu0 0.0
    %4911 = vmatpush1.msra.mxu0 0.0
    %4912 = vmatprep.subr.mxu0 0.0
    %4913 = vmatpush1.msra.mxu0 0.0
    %4914 = vmatprep.subr.mxu0 0.0
    %4915 = vmatpush1.msra.mxu0 0.0
    %4916 = vmatprep.subr.mxu0 0.0
    %4917 = vmatpush1.msra.mxu0 0.0
    %4918 = vmatprep.subr.mxu0 0.0
    %4919 = vmatpush1.msra.mxu0 0.0
    %4920 = vmatprep.subr.mxu0 0.0
    %4921 = vmatpush1.msra.mxu0 0.0
    %4922 = vmatprep.subr.mxu0 0.0
    %4923 = vmatpush1.msra.mxu0 0.0
    %4924 = vmatprep.subr.mxu0 0.0
    %4925 = vmatpush1.msra.mxu0 0.0
    %4926 = vmatprep.subr.mxu0 0.0
    %4927 = vmatpush1.msra.mxu0 0.0
    %4928 = vmatprep.subr.mxu0 0.0
    %4929 = vmatpush1.msra.mxu0 0.0
    %4930 = vmatprep.subr.mxu0 0.0
    %4931 = vmatpush1.msra.mxu0 %v3632
    %4932 = vmatprep.subr.mxu0 0.0
    %4933 = vmatpush1.msra.mxu0 %v3627
    %4934 = vmatprep.subr.mxu0 0.0
    %4935 = vmatpush1.msra.mxu0 %v3622
    %4936 = vmatprep.subr.mxu0 0.0
    %4937 = vmatpush1.msra.mxu0 %v3617
    %4938 = vmatprep.subr.mxu0 0.0
    %4939 = vmatpush2.msra.mxu0 0.0
    %4940 = vmatprep.subr.mxu0 0.0
    %4941 = vmatpush2.msra.mxu0 0.0
    %4942 = vmatprep.subr.mxu0 0.0
    %4943 = vmatpush2.msra.mxu0 0.0
    %4944 = vmatprep.subr.mxu0 0.0
    %4945 = vmatpush2.msra.mxu0 0.0
    %4946 = vmatprep.subr.mxu0 0.0
    %4947 = vmatpush2.msra.mxu0 0.0
    %4948 = vmatprep.subr.mxu0 0.0
    %4949 = vmatpush2.msra.mxu0 0.0
    %4950 = vmatprep.subr.mxu0 0.0
    %4951 = vmatpush2.msra.mxu0 0.0
    %4952 = vmatprep.subr.mxu0 0.0
    %4953 = vmatpush2.msra.mxu0 0.0
    %4954 = vmatprep.subr.mxu0 0.0
    %4955 = vmatpush2.msra.mxu0 0.0
    %4956 = vmatprep.subr.mxu0 0.0
    %4957 = vmatpush2.msra.mxu0 0.0
    %4958 = vmatprep.subr.mxu0 0.0
    %4959 = vmatpush2.msra.mxu0 0.0
    %4960 = vmatprep.subr.mxu0 0.0
    %4961 = vmatpush2.msra.mxu0 0.0
    %4962 = vmatprep.subr.mxu0 0.0
    %4963 = vmatpush2.msra.mxu0 0.0
    %4964 = vmatprep.subr.mxu0 0.0
    %4965 = vmatpush2.msra.mxu0 0.0
    %4966 = vmatprep.subr.mxu0 0.0
    %4967 = vmatpush2.msra.mxu0 0.0
    %4968 = vmatprep.subr.mxu0 0.0
    %4969 = vmatpush2.msra.mxu0 0.0
    %4970 = vmatprep.mubr.f32.mxu0 0.0
    %4971 = vmatmul.mubr.f32.gmra.mxu0 %v4895
    %v4972 = vpop.f32.mrf.mxu0
    %v4973 = vadd.f32 %v4876, %v4972
    %v4974 = vpop.f32.mrf.mxu0
    %4975 = vmatprep.mubr.f32.mxu0 0.0
    %4976 = vmatmul.mubr.f32.gmra.mxu0 %v4898
    %v4977 = vpop.f32.mrf.mxu0
    %v4978 = vadd.f32 %v4881, %v4977
    %v4979 = vpop.f32.mrf.mxu0
    %4980 = vmatprep.mubr.f32.mxu0 0.0
    %4981 = vmatmul.mubr.f32.gmra.mxu0 %v4901
    %v4982 = vpop.f32.mrf.mxu0
    %v4983 = vadd.f32 %v4886, %v4982
    %v4984 = vpop.f32.mrf.mxu0
    %4985 = vmatprep.mubr.f32.mxu0 0.0
    %4986 = vmatmul.mubr.f32.gmra.mxu0 %v4904
    %v4987 = vpop.f32.mrf.mxu0
    %v4988 = vadd.f32 %v4891, %v4987
    %v4989 = vpop.f32.mrf.mxu0
    %4990 = vdwg.mxu0
    %v4991 = vld [vmem:[%s1770] sm:$0xff]
    %v4992 = vld [vmem:[%s1770 + $0x8] sm:$0xff]
    %v4993 = vld [vmem:[%s1770 + $0x10] sm:$0xff]
    %v4994 = vld [vmem:[%s1770 + $0x18] sm:$0xff]
    %v4996 = vsel %vm92, %v4991, 0
    %v4999 = vsel %vm92, %v4992, 0
    %v5002 = vsel %vm92, %v4993, 0
    %v5005 = vsel %vm92, %v4994, 0
    %5007 = vmatprep.subr.mxu0 0.0
    %5008 = vmatpush1.msra.mxu0 0.0
    %5009 = vmatprep.subr.mxu0 0.0
    %5010 = vmatpush1.msra.mxu0 0.0
    %5011 = vmatprep.subr.mxu0 0.0
    %5012 = vmatpush1.msra.mxu0 0.0
    %5013 = vmatprep.subr.mxu0 0.0
    %5014 = vmatpush1.msra.mxu0 0.0
    %5015 = vmatprep.subr.mxu0 0.0
    %5016 = vmatpush1.msra.mxu0 0.0
    %5017 = vmatprep.subr.mxu0 0.0
    %5018 = vmatpush1.msra.mxu0 0.0
    %5019 = vmatprep.subr.mxu0 0.0
    %5020 = vmatpush1.msra.mxu0 0.0
    %5021 = vmatprep.subr.mxu0 0.0
    %5022 = vmatpush1.msra.mxu0 0.0
    %5023 = vmatprep.subr.mxu0 0.0
    %5024 = vmatpush1.msra.mxu0 %v2658
    %5025 = vmatprep.subr.mxu0 0.0
    %5026 = vmatpush1.msra.mxu0 %v2657
    %5027 = vmatprep.subr.mxu0 0.0
    %5028 = vmatpush1.msra.mxu0 %v2656
    %5029 = vmatprep.subr.mxu0 0.0
    %5030 = vmatpush1.msra.mxu0 %v2655
    %5031 = vmatprep.subr.mxu0 0.0
    %5032 = vmatpush1.msra.mxu0 %v2654
    %5033 = vmatprep.subr.mxu0 0.0
    %5034 = vmatpush1.msra.mxu0 %v2653
    %5035 = vmatprep.subr.mxu0 0.0
    %5036 = vmatpush1.msra.mxu0 %v2652
    %5037 = vmatprep.subr.mxu0 0.0
    %5038 = vmatpush1.msra.mxu0 %v2651
    %5039 = vmatprep.subr.mxu0 0.0
    %5040 = vmatpush2.msra.mxu0 0.0
    %5041 = vmatprep.subr.mxu0 0.0
    %5042 = vmatpush2.msra.mxu0 0.0
    %5043 = vmatprep.subr.mxu0 0.0
    %5044 = vmatpush2.msra.mxu0 0.0
    %5045 = vmatprep.subr.mxu0 0.0
    %5046 = vmatpush2.msra.mxu0 0.0
    %5047 = vmatprep.subr.mxu0 0.0
    %5048 = vmatpush2.msra.mxu0 0.0
    %5049 = vmatprep.subr.mxu0 0.0
    %5050 = vmatpush2.msra.mxu0 0.0
    %5051 = vmatprep.subr.mxu0 0.0
    %5052 = vmatpush2.msra.mxu0 0.0
    %5053 = vmatprep.subr.mxu0 0.0
    %5054 = vmatpush2.msra.mxu0 0.0
    %5055 = vmatprep.subr.mxu0 0.0
    %5056 = vmatpush2.msra.mxu0 0.0
    %5057 = vmatprep.subr.mxu0 0.0
    %5058 = vmatpush2.msra.mxu0 0.0
    %5059 = vmatprep.subr.mxu0 0.0
    %5060 = vmatpush2.msra.mxu0 0.0
    %5061 = vmatprep.subr.mxu0 0.0
    %5062 = vmatpush2.msra.mxu0 0.0
    %5063 = vmatprep.subr.mxu0 0.0
    %5064 = vmatpush2.msra.mxu0 0.0
    %5065 = vmatprep.subr.mxu0 0.0
    %5066 = vmatpush2.msra.mxu0 0.0
    %5067 = vmatprep.subr.mxu0 0.0
    %5068 = vmatpush2.msra.mxu0 0.0
    %5069 = vmatprep.subr.mxu0 0.0
    %5070 = vmatpush2.msra.mxu0 0.0
    %5071 = vmatprep.mubr.f32.mxu0 0.0
    %5072 = vmatmul.mubr.f32.gmra.mxu0 %v4996
    %v5073 = vpop.f32.mrf.mxu0
    %v5074 = vadd.f32 0.0, %v5073
    %v5075 = vpop.f32.mrf.mxu0
    %5076 = vmatprep.mubr.f32.mxu0 0.0
    %5077 = vmatmul.mubr.f32.gmra.mxu0 %v4999
    %v5078 = vpop.f32.mrf.mxu0
    %v5079 = vadd.f32 0.0, %v5078
    %v5080 = vpop.f32.mrf.mxu0
    %5081 = vmatprep.mubr.f32.mxu0 0.0
    %5082 = vmatmul.mubr.f32.gmra.mxu0 %v5002
    %v5083 = vpop.f32.mrf.mxu0
    %v5084 = vadd.f32 0.0, %v5083
    %v5085 = vpop.f32.mrf.mxu0
    %5086 = vmatprep.mubr.f32.mxu0 0.0
    %5087 = vmatmul.mubr.f32.gmra.mxu0 %v5005
    %v5088 = vpop.f32.mrf.mxu0
    %v5089 = vadd.f32 0.0, %v5088
    %v5090 = vpop.f32.mrf.mxu0
    %5091 = vdwg.mxu0
    %v5092 = vadd.f32 %v4973, %v5074
    %v5093 = vadd.f32 %v4978, %v5079
    %v5094 = vadd.f32 %v4983, %v5084
    %v5095 = vadd.f32 %v4988, %v5089
    %v5096 = vtanh.pop %v5092
    %v5097 = vtanh.pop %v5093
    %v5098 = vtanh.pop %v5094
    %v5099 = vtanh.pop %v5095
    %v5100 = vld [vmem:[%s1880] sm:$0xff]
    %v5101 = vld [vmem:[%s1880 + $0x8] sm:$0xff]
    %v5102 = vld [vmem:[%s1880 + $0x10] sm:$0xff]
    %v5103 = vld [vmem:[%s1880 + $0x18] sm:$0xff]
    %v5104 = vld [vmem:[%s1880 + $0x20] sm:$0xff]
    %v5105 = vld [vmem:[%s1880 + $0x28] sm:$0xff]
    %v5106 = vld [vmem:[%s1880 + $0x30] sm:$0xff]
    %v5107 = vld [vmem:[%s1880 + $0x38] sm:$0xff]
    %v5109 = vsel %vm571, %v5100, 0
    %v5112 = vsel %vm571, %v5101, 0
    %v5115 = vsel %vm571, %v5102, 0
    %v5118 = vsel %vm571, %v5103, 0
    %v5121 = vsel %vm571, %v5104, 0
    %v5124 = vsel %vm571, %v5105, 0
    %v5127 = vsel %vm571, %v5106, 0
    %v5130 = vsel %vm571, %v5107, 0
    %5132 = vmatprep.subr.mxu0 0.0
    %5133 = vmatpush1.msra.mxu0 0.0
    %5134 = vmatprep.subr.mxu0 0.0
    %5135 = vmatpush1.msra.mxu0 0.0
    %5136 = vmatprep.subr.mxu0 0.0
    %5137 = vmatpush1.msra.mxu0 0.0
    %5138 = vmatprep.subr.mxu0 0.0
    %5139 = vmatpush1.msra.mxu0 0.0
    %5140 = vmatprep.subr.mxu0 0.0
    %5141 = vmatpush1.msra.mxu0 0.0
    %5142 = vmatprep.subr.mxu0 0.0
    %5143 = vmatpush1.msra.mxu0 0.0
    %5144 = vmatprep.subr.mxu0 0.0
    %5145 = vmatpush1.msra.mxu0 0.0
    %5146 = vmatprep.subr.mxu0 0.0
    %5147 = vmatpush1.msra.mxu0 0.0
    %5148 = vmatprep.subr.mxu0 0.0
    %5149 = vmatpush1.msra.mxu0 0.0
    %5150 = vmatprep.subr.mxu0 0.0
    %5151 = vmatpush1.msra.mxu0 0.0
    %5152 = vmatprep.subr.mxu0 0.0
    %5153 = vmatpush1.msra.mxu0 0.0
    %5154 = vmatprep.subr.mxu0 0.0
    %5155 = vmatpush1.msra.mxu0 0.0
    %5156 = vmatprep.subr.mxu0 0.0
    %5157 = vmatpush1.msra.mxu0 %v5099
    %5158 = vmatprep.subr.mxu0 0.0
    %5159 = vmatpush1.msra.mxu0 %v5098
    %5160 = vmatprep.subr.mxu0 0.0
    %5161 = vmatpush1.msra.mxu0 %v5097
    %5162 = vmatprep.subr.mxu0 0.0
    %5163 = vmatpush1.msra.mxu0 %v5096
    %5164 = vmatprep.subr.mxu0 0.0
    %5165 = vmatpush2.msra.mxu0 0.0
    %5166 = vmatprep.subr.mxu0 0.0
    %5167 = vmatpush2.msra.mxu0 0.0
    %5168 = vmatprep.subr.mxu0 0.0
    %5169 = vmatpush2.msra.mxu0 0.0
    %5170 = vmatprep.subr.mxu0 0.0
    %5171 = vmatpush2.msra.mxu0 0.0
    %5172 = vmatprep.subr.mxu0 0.0
    %5173 = vmatpush2.msra.mxu0 0.0
    %5174 = vmatprep.subr.mxu0 0.0
    %5175 = vmatpush2.msra.mxu0 0.0
    %5176 = vmatprep.subr.mxu0 0.0
    %5177 = vmatpush2.msra.mxu0 0.0
    %5178 = vmatprep.subr.mxu0 0.0
    %5179 = vmatpush2.msra.mxu0 0.0
    %5180 = vmatprep.subr.mxu0 0.0
    %5181 = vmatpush2.msra.mxu0 0.0
    %5182 = vmatprep.subr.mxu0 0.0
    %5183 = vmatpush2.msra.mxu0 0.0
    %5184 = vmatprep.subr.mxu0 0.0
    %5185 = vmatpush2.msra.mxu0 0.0
    %5186 = vmatprep.subr.mxu0 0.0
    %5187 = vmatpush2.msra.mxu0 0.0
    %5188 = vmatprep.subr.mxu0 0.0
    %5189 = vmatpush2.msra.mxu0 0.0
    %5190 = vmatprep.subr.mxu0 0.0
    %5191 = vmatpush2.msra.mxu0 0.0
    %5192 = vmatprep.subr.mxu0 0.0
    %5193 = vmatpush2.msra.mxu0 0.0
    %5194 = vmatprep.subr.mxu0 0.0
    %5195 = vmatpush2.msra.mxu0 0.0
    %5196 = vmatprep.mubr.f32.mxu0 0.0
    %5197 = vmatmul.mubr.f32.gmra.mxu0 %v5109
    %v5198 = vpop.f32.mrf.mxu0
    %v5199 = vadd.f32 0.0, %v5198
    %v5200 = vpop.f32.mrf.mxu0
    %5201 = vmatprep.mubr.f32.mxu0 0.0
    %5202 = vmatmul.mubr.f32.gmra.mxu0 %v5112
    %v5203 = vpop.f32.mrf.mxu0
    %v5204 = vadd.f32 0.0, %v5203
    %v5205 = vpop.f32.mrf.mxu0
    %5206 = vmatprep.mubr.f32.mxu0 0.0
    %5207 = vmatmul.mubr.f32.gmra.mxu0 %v5115
    %v5208 = vpop.f32.mrf.mxu0
    %v5209 = vadd.f32 0.0, %v5208
    %v5210 = vpop.f32.mrf.mxu0
    %5211 = vmatprep.mubr.f32.mxu0 0.0
    %5212 = vmatmul.mubr.f32.gmra.mxu0 %v5118
    %v5213 = vpop.f32.mrf.mxu0
    %v5214 = vadd.f32 0.0, %v5213
    %v5215 = vpop.f32.mrf.mxu0
    %5216 = vmatprep.mubr.f32.mxu0 0.0
    %5217 = vmatmul.mubr.f32.gmra.mxu0 %v5121
    %v5218 = vpop.f32.mrf.mxu0
    %v5219 = vadd.f32 0.0, %v5218
    %v5220 = vpop.f32.mrf.mxu0
    %5221 = vmatprep.mubr.f32.mxu0 0.0
    %5222 = vmatmul.mubr.f32.gmra.mxu0 %v5124
    %v5223 = vpop.f32.mrf.mxu0
    %v5224 = vadd.f32 0.0, %v5223
    %v5225 = vpop.f32.mrf.mxu0
    %5226 = vmatprep.mubr.f32.mxu0 0.0
    %5227 = vmatmul.mubr.f32.gmra.mxu0 %v5127
    %v5228 = vpop.f32.mrf.mxu0
    %v5229 = vadd.f32 0.0, %v5228
    %v5230 = vpop.f32.mrf.mxu0
    %5231 = vmatprep.mubr.f32.mxu0 0.0
    %5232 = vmatmul.mubr.f32.gmra.mxu0 %v5130
    %v5233 = vpop.f32.mrf.mxu0
    %v5234 = vadd.f32 0.0, %v5233
    %v5235 = vpop.f32.mrf.mxu0
    %5236 = vdwg.mxu0
    %5238 = vset.pattern.permute.xlu0 0
    %5239 = vperm.xlu0 %5238, %v5199
    %v5240 = vpop.permute.xlu0 %5239
    %5243 = vset.pattern.permute.xlu0 0
    %5244 = vperm.xlu0 %5243, %v5204
    %v5245 = vpop.permute.xlu0 %5244
    %5248 = vset.pattern.permute.xlu0 0
    %5249 = vperm.xlu0 %5248, %v5209
    %v5250 = vpop.permute.xlu0 %5249
    %5253 = vset.pattern.permute.xlu0 0
    %5254 = vperm.xlu0 %5253, %v5214
    %v5255 = vpop.permute.xlu0 %5254
    %5258 = vset.pattern.permute.xlu0 0
    %5259 = vperm.xlu0 %5258, %v5219
    %v5260 = vpop.permute.xlu0 %5259
    %5263 = vset.pattern.permute.xlu0 0
    %5264 = vperm.xlu0 %5263, %v5224
    %v5265 = vpop.permute.xlu0 %5264
    %5268 = vset.pattern.permute.xlu0 0
    %5269 = vperm.xlu0 %5268, %v5229
    %v5270 = vpop.permute.xlu0 %5269
    %5273 = vset.pattern.permute.xlu0 0
    %5274 = vperm.xlu0 %5273, %v5234
    %v5275 = vpop.permute.xlu0 %5274
    %5277 = vset.pattern.permute.xlu0 1
    %5278 = vperm.xlu0 %5277, %v5199
    %v5279 = vpop.permute.xlu0 %5278
    %5281 = vset.pattern.permute.xlu0 1
    %5282 = vperm.xlu0 %5281, %v5204
    %v5283 = vpop.permute.xlu0 %5282
    %5285 = vset.pattern.permute.xlu0 1
    %5286 = vperm.xlu0 %5285, %v5209
    %v5287 = vpop.permute.xlu0 %5286
    %5289 = vset.pattern.permute.xlu0 1
    %5290 = vperm.xlu0 %5289, %v5214
    %v5291 = vpop.permute.xlu0 %5290
    %5293 = vset.pattern.permute.xlu0 1
    %5294 = vperm.xlu0 %5293, %v5219
    %v5295 = vpop.permute.xlu0 %5294
    %5297 = vset.pattern.permute.xlu0 1
    %5298 = vperm.xlu0 %5297, %v5224
    %v5299 = vpop.permute.xlu0 %5298
    %5301 = vset.pattern.permute.xlu0 1
    %5302 = vperm.xlu0 %5301, %v5229
    %v5303 = vpop.permute.xlu0 %5302
    %5305 = vset.pattern.permute.xlu0 1
    %5306 = vperm.xlu0 %5305, %v5234
    %v5307 = vpop.permute.xlu0 %5306
    %v5309 = vld [vmem:[%s392] sm:$0xff]
    %v5310 = vld [vmem:[%s392 + $0x8] sm:$0xff]
    %v5311 = vld [vmem:[%s392 + $0x10] sm:$0xff]
    %v5312 = vld [vmem:[%s392 + $0x18] sm:$0xff]
    %v5313 = vld [vmem:[%s392 + $0x20] sm:$0xff]
    %v5314 = vld [vmem:[%s392 + $0x28] sm:$0xff]
    %v5315 = vld [vmem:[%s392 + $0x30] sm:$0xff]
    %v5316 = vld [vmem:[%s392 + $0x38] sm:$0xff]
    %v5317 = vld [vmem:[%s392 + $0x40] sm:$0xff]
    %v5318 = vld [vmem:[%s392 + $0x48] sm:$0xff]
    %v5319 = vld [vmem:[%s392 + $0x50] sm:$0xff]
    %v5320 = vld [vmem:[%s392 + $0x58] sm:$0xff]
    %v5321 = vld [vmem:[%s392 + $0x60] sm:$0xff]
    %v5322 = vld [vmem:[%s392 + $0x68] sm:$0xff]
    %v5323 = vld [vmem:[%s392 + $0x70] sm:$0xff]
    %v5324 = vld [vmem:[%s392 + $0x78] sm:$0xff]
    %v5325 = vadd.f32 %v5309, %v5240
    %v5326 = vadd.f32 %v5310, %v5279
    %v5327 = vadd.f32 %v5311, %v5245
    %v5328 = vadd.f32 %v5312, %v5283
    %v5329 = vadd.f32 %v5313, %v5250
    %v5330 = vadd.f32 %v5314, %v5287
    %v5331 = vadd.f32 %v5315, %v5255
    %v5332 = vadd.f32 %v5316, %v5291
    %v5333 = vadd.f32 %v5317, %v5260
    %v5334 = vadd.f32 %v5318, %v5295
    %v5335 = vadd.f32 %v5319, %v5265
    %v5336 = vadd.f32 %v5320, %v5299
    %v5337 = vadd.f32 %v5321, %v5270
    %v5338 = vadd.f32 %v5322, %v5303
    %v5339 = vadd.f32 %v5323, %v5275
    %v5340 = vadd.f32 %v5324, %v5307
    %v5341 = vld [vmem:[%s2122] sm:$0xff]
    %v5342 = vld [vmem:[%s2122 + $0x8] sm:$0xff]
    %v5343 = vld [vmem:[%s2122 + $0x10] sm:$0xff]
    %v5344 = vld [vmem:[%s2122 + $0x18] sm:$0xff]
    %v5345 = vld [vmem:[%s2122 + $0x20] sm:$0xff]
    %v5346 = vld [vmem:[%s2122 + $0x28] sm:$0xff]
    %v5347 = vld [vmem:[%s2122 + $0x30] sm:$0xff]
    %v5348 = vld [vmem:[%s2122 + $0x38] sm:$0xff]
    %5350 = vset.pattern.permute.xlu0 0
    %5351 = vperm.xlu0 %5350, %v5341
    %v5352 = vpop.permute.xlu0 %5351
    %5355 = vset.pattern.permute.xlu0 0
    %5356 = vperm.xlu0 %5355, %v5342
    %v5357 = vpop.permute.xlu0 %5356
    %5360 = vset.pattern.permute.xlu0 0
    %5361 = vperm.xlu0 %5360, %v5343
    %v5362 = vpop.permute.xlu0 %5361
    %5365 = vset.pattern.permute.xlu0 0
    %5366 = vperm.xlu0 %5365, %v5344
    %v5367 = vpop.permute.xlu0 %5366
    %5370 = vset.pattern.permute.xlu0 0
    %5371 = vperm.xlu0 %5370, %v5345
    %v5372 = vpop.permute.xlu0 %5371
    %5375 = vset.pattern.permute.xlu0 0
    %5376 = vperm.xlu0 %5375, %v5346
    %v5377 = vpop.permute.xlu0 %5376
    %5380 = vset.pattern.permute.xlu0 0
    %5381 = vperm.xlu0 %5380, %v5347
    %v5382 = vpop.permute.xlu0 %5381
    %5385 = vset.pattern.permute.xlu0 0
    %5386 = vperm.xlu0 %5385, %v5348
    %v5387 = vpop.permute.xlu0 %5386
    %v5389 = vadd.f32 %v5325, %v5352
    %v5390 = vadd.f32 %v5326, %v5352
    %v5391 = vadd.f32 %v5327, %v5357
    %v5392 = vadd.f32 %v5328, %v5357
    %v5393 = vadd.f32 %v5329, %v5362
    %v5394 = vadd.f32 %v5330, %v5362
    %v5395 = vadd.f32 %v5331, %v5367
    %v5396 = vadd.f32 %v5332, %v5367
    %v5397 = vadd.f32 %v5333, %v5372
    %v5398 = vadd.f32 %v5334, %v5372
    %v5399 = vadd.f32 %v5335, %v5377
    %v5400 = vadd.f32 %v5336, %v5377
    %v5401 = vadd.f32 %v5337, %v5382
    %v5402 = vadd.f32 %v5338, %v5382
    %v5403 = vadd.f32 %v5339, %v5387
    %v5404 = vadd.f32 %v5340, %v5387
    %v5405 = vmax.f32 %v5389, %v5397
    %v5406 = vmax.f32 %v5390, %v5398
    %v5407 = vmax.f32 %v5391, %v5399
    %v5408 = vmax.f32 %v5392, %v5400
    %v5409 = vmax.f32 %v5393, %v5401
    %v5410 = vmax.f32 %v5394, %v5402
    %v5411 = vmax.f32 %v5395, %v5403
    %v5412 = vmax.f32 %v5396, %v5404
    %v5413 = vld [vmem:[%s2195] sm:$0xff]
    %v5414 = vld [vmem:[%s2195 + $0x8] sm:$0xff]
    %v5415 = vld [vmem:[%s2195 + $0x10] sm:$0xff]
    %v5416 = vld [vmem:[%s2195 + $0x18] sm:$0xff]
    %v5417 = vld [vmem:[%s2195 + $0x20] sm:$0xff]
    %v5418 = vld [vmem:[%s2195 + $0x28] sm:$0xff]
    %v5419 = vld [vmem:[%s2195 + $0x30] sm:$0xff]
    %v5420 = vld [vmem:[%s2195 + $0x38] sm:$0xff]
    %v5421 = vld [vmem:[%s2204] sm:$0xff]
    %v5422 = vld [vmem:[%s2204 + $0x8] sm:$0xff]
    %v5423 = vld [vmem:[%s2204 + $0x10] sm:$0xff]
    %v5424 = vld [vmem:[%s2204 + $0x18] sm:$0xff]
    %v5425 = vld [vmem:[%s2204 + $0x20] sm:$0xff]
    %v5426 = vld [vmem:[%s2204 + $0x28] sm:$0xff]
    %v5427 = vld [vmem:[%s2204 + $0x30] sm:$0xff]
    %v5428 = vld [vmem:[%s2204 + $0x38] sm:$0xff]
    %5430 = vset.pattern.permute.xlu0 0
    %5431 = vperm.xlu0 %5430, %v5421
    %v5432 = vpop.permute.xlu0 %5431
    %5435 = vset.pattern.permute.xlu0 0
    %5436 = vperm.xlu0 %5435, %v5422
    %v5437 = vpop.permute.xlu0 %5436
    %5440 = vset.pattern.permute.xlu0 0
    %5441 = vperm.xlu0 %5440, %v5423
    %v5442 = vpop.permute.xlu0 %5441
    %5445 = vset.pattern.permute.xlu0 0
    %5446 = vperm.xlu0 %5445, %v5424
    %v5447 = vpop.permute.xlu0 %5446
    %5450 = vset.pattern.permute.xlu0 0
    %5451 = vperm.xlu0 %5450, %v5425
    %v5452 = vpop.permute.xlu0 %5451
    %5455 = vset.pattern.permute.xlu0 0
    %5456 = vperm.xlu0 %5455, %v5426
    %v5457 = vpop.permute.xlu0 %5456
    %5460 = vset.pattern.permute.xlu0 0
    %5461 = vperm.xlu0 %5460, %v5427
    %v5462 = vpop.permute.xlu0 %5461
    %5465 = vset.pattern.permute.xlu0 0
    %5466 = vperm.xlu0 %5465, %v5428
    %v5467 = vpop.permute.xlu0 %5466
    %v5470 = vsel %vm571, %v5413, 0
    %v5473 = vsel %vm571, %v5414, 0
    %v5476 = vsel %vm571, %v5415, 0
    %v5479 = vsel %vm571, %v5416, 0
    %v5482 = vsel %vm571, %v5417, 0
    %v5485 = vsel %vm571, %v5418, 0
    %v5488 = vsel %vm571, %v5419, 0
    %v5491 = vsel %vm571, %v5420, 0
    %5493 = vmatprep.subr.mxu0 0.0
    %5494 = vmatpush1.msra.mxu0 0.0
    %5495 = vmatprep.subr.mxu0 0.0
    %5496 = vmatpush1.msra.mxu0 0.0
    %5497 = vmatprep.subr.mxu0 0.0
    %5498 = vmatpush1.msra.mxu0 0.0
    %5499 = vmatprep.subr.mxu0 0.0
    %5500 = vmatpush1.msra.mxu0 0.0
    %5501 = vmatprep.subr.mxu0 0.0
    %5502 = vmatpush1.msra.mxu0 0.0
    %5503 = vmatprep.subr.mxu0 0.0
    %5504 = vmatpush1.msra.mxu0 0.0
    %5505 = vmatprep.subr.mxu0 0.0
    %5506 = vmatpush1.msra.mxu0 0.0
    %5507 = vmatprep.subr.mxu0 0.0
    %5508 = vmatpush1.msra.mxu0 0.0
    %5509 = vmatprep.subr.mxu0 0.0
    %5510 = vmatpush1.msra.mxu0 0.0
    %5511 = vmatprep.subr.mxu0 0.0
    %5512 = vmatpush1.msra.mxu0 0.0
    %5513 = vmatprep.subr.mxu0 0.0
    %5514 = vmatpush1.msra.mxu0 0.0
    %5515 = vmatprep.subr.mxu0 0.0
    %5516 = vmatpush1.msra.mxu0 0.0
    %5517 = vmatprep.subr.mxu0 %v5412
    %5518 = vmatpush1.msra.mxu0 %v5411
    %5519 = vmatprep.subr.mxu0 %v5410
    %5520 = vmatpush1.msra.mxu0 %v5409
    %5521 = vmatprep.subr.mxu0 %v5408
    %5522 = vmatpush1.msra.mxu0 %v5407
    %5523 = vmatprep.subr.mxu0 %v5406
    %5524 = vmatpush1.msra.mxu0 %v5405
    %5525 = vmatprep.subr.mxu0 0.0
    %5526 = vmatpush2.msra.mxu0 0.0
    %5527 = vmatprep.subr.mxu0 0.0
    %5528 = vmatpush2.msra.mxu0 0.0
    %5529 = vmatprep.subr.mxu0 0.0
    %5530 = vmatpush2.msra.mxu0 0.0
    %5531 = vmatprep.subr.mxu0 0.0
    %5532 = vmatpush2.msra.mxu0 0.0
    %5533 = vmatprep.subr.mxu0 0.0
    %5534 = vmatpush2.msra.mxu0 0.0
    %5535 = vmatprep.subr.mxu0 0.0
    %5536 = vmatpush2.msra.mxu0 0.0
    %5537 = vmatprep.subr.mxu0 0.0
    %5538 = vmatpush2.msra.mxu0 0.0
    %5539 = vmatprep.subr.mxu0 0.0
    %5540 = vmatpush2.msra.mxu0 0.0
    %5541 = vmatprep.subr.mxu0 0.0
    %5542 = vmatpush2.msra.mxu0 0.0
    %5543 = vmatprep.subr.mxu0 0.0
    %5544 = vmatpush2.msra.mxu0 0.0
    %5545 = vmatprep.subr.mxu0 0.0
    %5546 = vmatpush2.msra.mxu0 0.0
    %5547 = vmatprep.subr.mxu0 0.0
    %5548 = vmatpush2.msra.mxu0 0.0
    %5549 = vmatprep.subr.mxu0 0.0
    %5550 = vmatpush2.msra.mxu0 0.0
    %5551 = vmatprep.subr.mxu0 0.0
    %5552 = vmatpush2.msra.mxu0 0.0
    %5553 = vmatprep.subr.mxu0 0.0
    %5554 = vmatpush2.msra.mxu0 0.0
    %5555 = vmatprep.subr.mxu0 0.0
    %5556 = vmatpush2.msra.mxu0 0.0
    %5557 = vmatprep.mubr.f32.mxu0 0.0
    %5558 = vmatmul.mubr.f32.gmra.mxu0 %v5470
    %v5559 = vpop.f32.mrf.mxu0
    %v5560 = vadd.f32 %v5432, %v5559
    %v5561 = vpop.f32.mrf.mxu0
    %v5562 = vadd.f32 %v5432, %v5561
    %5563 = vmatprep.mubr.f32.mxu0 0.0
    %5564 = vmatmul.mubr.f32.gmra.mxu0 %v5473
    %v5565 = vpop.f32.mrf.mxu0
    %v5566 = vadd.f32 %v5437, %v5565
    %v5567 = vpop.f32.mrf.mxu0
    %v5568 = vadd.f32 %v5437, %v5567
    %5569 = vmatprep.mubr.f32.mxu0 0.0
    %5570 = vmatmul.mubr.f32.gmra.mxu0 %v5476
    %v5571 = vpop.f32.mrf.mxu0
    %v5572 = vadd.f32 %v5442, %v5571
    %v5573 = vpop.f32.mrf.mxu0
    %v5574 = vadd.f32 %v5442, %v5573
    %5575 = vmatprep.mubr.f32.mxu0 0.0
    %5576 = vmatmul.mubr.f32.gmra.mxu0 %v5479
    %v5577 = vpop.f32.mrf.mxu0
    %v5578 = vadd.f32 %v5447, %v5577
    %v5579 = vpop.f32.mrf.mxu0
    %v5580 = vadd.f32 %v5447, %v5579
    %5581 = vmatprep.mubr.f32.mxu0 0.0
    %5582 = vmatmul.mubr.f32.gmra.mxu0 %v5482
    %v5583 = vpop.f32.mrf.mxu0
    %v5584 = vadd.f32 %v5452, %v5583
    %v5585 = vpop.f32.mrf.mxu0
    %v5586 = vadd.f32 %v5452, %v5585
    %5587 = vmatprep.mubr.f32.mxu0 0.0
    %5588 = vmatmul.mubr.f32.gmra.mxu0 %v5485
    %v5589 = vpop.f32.mrf.mxu0
    %v5590 = vadd.f32 %v5457, %v5589
    %v5591 = vpop.f32.mrf.mxu0
    %v5592 = vadd.f32 %v5457, %v5591
    %5593 = vmatprep.mubr.f32.mxu0 0.0
    %5594 = vmatmul.mubr.f32.gmra.mxu0 %v5488
    %v5595 = vpop.f32.mrf.mxu0
    %v5596 = vadd.f32 %v5462, %v5595
    %v5597 = vpop.f32.mrf.mxu0
    %v5598 = vadd.f32 %v5462, %v5597
    %5599 = vmatprep.mubr.f32.mxu0 0.0
    %5600 = vmatmul.mubr.f32.gmra.mxu0 %v5491
    %v5601 = vpop.f32.mrf.mxu0
    %v5602 = vadd.f32 %v5467, %v5601
    %v5603 = vpop.f32.mrf.mxu0
    %v5604 = vadd.f32 %v5467, %v5603
    %5605 = vdwg.mxu0
    %v5606 = vmax.f32 %v5560, %v5584
    %v5607 = vmax.f32 %v5562, %v5586
    %v5608 = vmax.f32 %v5566, %v5590
    %v5609 = vmax.f32 %v5568, %v5592
    %v5610 = vmax.f32 %v5572, %v5596
    %v5611 = vmax.f32 %v5574, %v5598
    %v5612 = vmax.f32 %v5578, %v5602
    %v5613 = vmax.f32 %v5580, %v5604
    %v5614 = vld [vmem:[%s2398] sm:$0xff]
    %v5615 = vld [vmem:[%s2400] sm:$0xff]
    %v5617 = vsel %vm571, %v5615, 0
    %5619 = vmatprep.subr.mxu0 0.0
    %5620 = vmatpush1.msra.mxu0 0.0
    %5621 = vmatprep.subr.mxu0 0.0
    %5622 = vmatpush1.msra.mxu0 0.0
    %5623 = vmatprep.subr.mxu0 0.0
    %5624 = vmatpush1.msra.mxu0 0.0
    %5625 = vmatprep.subr.mxu0 0.0
    %5626 = vmatpush1.msra.mxu0 0.0
    %5627 = vmatprep.subr.mxu0 0.0
    %5628 = vmatpush1.msra.mxu0 0.0
    %5629 = vmatprep.subr.mxu0 0.0
    %5630 = vmatpush1.msra.mxu0 0.0
    %5631 = vmatprep.subr.mxu0 0.0
    %5632 = vmatpush1.msra.mxu0 0.0
    %5633 = vmatprep.subr.mxu0 0.0
    %5634 = vmatpush1.msra.mxu0 0.0
    %5635 = vmatprep.subr.mxu0 0.0
    %5636 = vmatpush1.msra.mxu0 0.0
    %5637 = vmatprep.subr.mxu0 0.0
    %5638 = vmatpush1.msra.mxu0 0.0
    %5639 = vmatprep.subr.mxu0 0.0
    %5640 = vmatpush1.msra.mxu0 0.0
    %5641 = vmatprep.subr.mxu0 0.0
    %5642 = vmatpush1.msra.mxu0 0.0
    %5643 = vmatprep.subr.mxu0 %v5613
    %5644 = vmatpush1.msra.mxu0 %v5612
    %5645 = vmatprep.subr.mxu0 %v5611
    %5646 = vmatpush1.msra.mxu0 %v5610
    %5647 = vmatprep.subr.mxu0 %v5609
    %5648 = vmatpush1.msra.mxu0 %v5608
    %5649 = vmatprep.subr.mxu0 %v5607
    %5650 = vmatpush1.msra.mxu0 %v5606
    %5651 = vmatprep.subr.mxu0 0.0
    %5652 = vmatpush2.msra.mxu0 0.0
    %5653 = vmatprep.subr.mxu0 0.0
    %5654 = vmatpush2.msra.mxu0 0.0
    %5655 = vmatprep.subr.mxu0 0.0
    %5656 = vmatpush2.msra.mxu0 0.0
    %5657 = vmatprep.subr.mxu0 0.0
    %5658 = vmatpush2.msra.mxu0 0.0
    %5659 = vmatprep.subr.mxu0 0.0
    %5660 = vmatpush2.msra.mxu0 0.0
    %5661 = vmatprep.subr.mxu0 0.0
    %5662 = vmatpush2.msra.mxu0 0.0
    %5663 = vmatprep.subr.mxu0 0.0
    %5664 = vmatpush2.msra.mxu0 0.0
    %5665 = vmatprep.subr.mxu0 0.0
    %5666 = vmatpush2.msra.mxu0 0.0
    %5667 = vmatprep.subr.mxu0 0.0
    %5668 = vmatpush2.msra.mxu0 0.0
    %5669 = vmatprep.subr.mxu0 0.0
    %5670 = vmatpush2.msra.mxu0 0.0
    %5671 = vmatprep.subr.mxu0 0.0
    %5672 = vmatpush2.msra.mxu0 0.0
    %5673 = vmatprep.subr.mxu0 0.0
    %5674 = vmatpush2.msra.mxu0 0.0
    %5675 = vmatprep.subr.mxu0 0.0
    %5676 = vmatpush2.msra.mxu0 0.0
    %5677 = vmatprep.subr.mxu0 0.0
    %5678 = vmatpush2.msra.mxu0 0.0
    %5679 = vmatprep.subr.mxu0 0.0
    %5680 = vmatpush2.msra.mxu0 0.0
    %5681 = vmatprep.subr.mxu0 0.0
    %5682 = vmatpush2.msra.mxu0 0.0
    %5683 = vmatprep.mubr.f32.mxu0 0.0
    %5684 = vmatmul.mubr.f32.gmra.mxu0 %v5617
    %v5685 = vpop.f32.mrf.mxu0
    %v5686 = vadd.f32 0.0, %v5685
    %v5687 = vpop.f32.mrf.mxu0
    %v5688 = vadd.f32 0.0, %v5687
    %5689 = vdwg.mxu0
    %v5691 = vsel %vm571, %v5614, 0
    %5693 = vmatprep.subr.mxu0 0.0
    %5694 = vmatpush1.msra.mxu0 0.0
    %5695 = vmatprep.subr.mxu0 0.0
    %5696 = vmatpush1.msra.mxu0 0.0
    %5697 = vmatprep.subr.mxu0 0.0
    %5698 = vmatpush1.msra.mxu0 0.0
    %5699 = vmatprep.subr.mxu0 0.0
    %5700 = vmatpush1.msra.mxu0 0.0
    %5701 = vmatprep.subr.mxu0 0.0
    %5702 = vmatpush1.msra.mxu0 0.0
    %5703 = vmatprep.subr.mxu0 0.0
    %5704 = vmatpush1.msra.mxu0 0.0
    %5705 = vmatprep.subr.mxu0 0.0
    %5706 = vmatpush1.msra.mxu0 0.0
    %5707 = vmatprep.subr.mxu0 0.0
    %5708 = vmatpush1.msra.mxu0 0.0
    %5709 = vmatprep.subr.mxu0 0.0
    %5710 = vmatpush1.msra.mxu0 0.0
    %5711 = vmatprep.subr.mxu0 0.0
    %5712 = vmatpush1.msra.mxu0 0.0
    %5713 = vmatprep.subr.mxu0 0.0
    %5714 = vmatpush1.msra.mxu0 0.0
    %5715 = vmatprep.subr.mxu0 0.0
    %5716 = vmatpush1.msra.mxu0 0.0
    %5717 = vmatprep.subr.mxu0 %v5412
    %5718 = vmatpush1.msra.mxu0 %v5411
    %5719 = vmatprep.subr.mxu0 %v5410
    %5720 = vmatpush1.msra.mxu0 %v5409
    %5721 = vmatprep.subr.mxu0 %v5408
    %5722 = vmatpush1.msra.mxu0 %v5407
    %5723 = vmatprep.subr.mxu0 %v5406
    %5724 = vmatpush1.msra.mxu0 %v5405
    %5725 = vmatprep.subr.mxu0 0.0
    %5726 = vmatpush2.msra.mxu0 0.0
    %5727 = vmatprep.subr.mxu0 0.0
    %5728 = vmatpush2.msra.mxu0 0.0
    %5729 = vmatprep.subr.mxu0 0.0
    %5730 = vmatpush2.msra.mxu0 0.0
    %5731 = vmatprep.subr.mxu0 0.0
    %5732 = vmatpush2.msra.mxu0 0.0
    %5733 = vmatprep.subr.mxu0 0.0
    %5734 = vmatpush2.msra.mxu0 0.0
    %5735 = vmatprep.subr.mxu0 0.0
    %5736 = vmatpush2.msra.mxu0 0.0
    %5737 = vmatprep.subr.mxu0 0.0
    %5738 = vmatpush2.msra.mxu0 0.0
    %5739 = vmatprep.subr.mxu0 0.0
    %5740 = vmatpush2.msra.mxu0 0.0
    %5741 = vmatprep.subr.mxu0 0.0
    %5742 = vmatpush2.msra.mxu0 0.0
    %5743 = vmatprep.subr.mxu0 0.0
    %5744 = vmatpush2.msra.mxu0 0.0
    %5745 = vmatprep.subr.mxu0 0.0
    %5746 = vmatpush2.msra.mxu0 0.0
    %5747 = vmatprep.subr.mxu0 0.0
    %5748 = vmatpush2.msra.mxu0 0.0
    %5749 = vmatprep.subr.mxu0 0.0
    %5750 = vmatpush2.msra.mxu0 0.0
    %5751 = vmatprep.subr.mxu0 0.0
    %5752 = vmatpush2.msra.mxu0 0.0
    %5753 = vmatprep.subr.mxu0 0.0
    %5754 = vmatpush2.msra.mxu0 0.0
    %5755 = vmatprep.subr.mxu0 0.0
    %5756 = vmatpush2.msra.mxu0 0.0
    %5757 = vmatprep.mubr.f32.mxu0 0.0
    %5758 = vmatmul.mubr.f32.gmra.mxu0 %v5691
    %v5759 = vpop.f32.mrf.mxu0
    %v5760 = vadd.f32 %v5686, %v5759
    %v5761 = vpop.f32.mrf.mxu0
    %v5762 = vadd.f32 %v5688, %v5761
    %5763 = vdwg.mxu0
    %v5764 = vld [vmem:[%s2550] sm:$0xff]
    %5766 = vset.pattern.permute.xlu0 0
    %5767 = vperm.xlu0 %5766, %v5764
    %v5768 = vpop.permute.xlu0 %5767
    %v5770 = vadd.f32 %v5760, %v5768
    %v5771 = vadd.f32 %v5762, %v5768
    %v5772 = vrot.slane %v5770, 4
    %v5773 = vmax.f32 %v5770, %v5772
    %v5774 = vrot.slane %v5773, 2
    %v5775 = vmax.f32 %v5773, %v5774
    %v5776 = vrot.slane %v5775, 1
    %v5777 = vmax.f32 %v5775, %v5776
    %v5778 = vrot.slane %v5771, 4
    %v5779 = vmax.f32 %v5771, %v5778
    %v5780 = vrot.slane %v5779, 2
    %v5781 = vmax.f32 %v5779, %v5780
    %v5782 = vrot.slane %v5781, 1
    %v5783 = vmax.f32 %v5781, %v5782
    %v5784 = vsub.f32 %v5777, %v4677
    %v5785 = vsub.f32 %v5783, %v4681
    %v5786 = vsel %vm1479, %v5784, -inf
    %5787 = vmax.xlane.f32.xlu0 %v5786
    %v5788 = vpop.xlane.xlu0 %5787
    %vm5789 = vcmp.ge.f32.partialorder %v5784, %v5788
    %v5790 = vsel %vm5789, %v1478, 128.0
    %v5791 = vsel %vm1479, %v5790, inf
    %5792 = vmin.xlane.f32.xlu0 %v5791
    %v5793 = vpop.xlane.xlu0 %5792
    %v5794 = vsel %vm1479, %v5785, -inf
    %5795 = vmax.xlane.f32.xlu0 %v5794
    %v5796 = vpop.xlane.xlu0 %5795
    %vm5797 = vcmp.ge.f32.partialorder %v5785, %v5796
    %v5798 = vsel %vm5797, %v1478, 128.0
    %v5799 = vsel %vm1479, %v5798, inf
    %5800 = vmin.xlane.f32.xlu0 %v5799
    %v5801 = vpop.xlane.xlu0 %5800
    %v5802 = vsel %vm457, %v5793, %v5801
    %v5805 = vcombine.low %v4684, %v4685
    %v5807 = vunpack.c.l.s4 1966171168
    %v5808 = vunpack.c.0.s8 %v5807
    %v5809 = vlaneseq
    %v5810 = vshrl.u32 %v5809, 7
    %v5811 = vsub.s32 %v5808, %v5810
    %v5812 = vrot.slane %v5805, %v5811
    %v5814 = vunpack.c.l.s4 1966171168
    %v5815 = vunpack.c.0.s8 %v5814
    %v5816 = vlaneseq
    %v5817 = vshrl.u32 %v5816, 7
    %v5818 = vsub.s32 %v5815, %v5817
    %v5819 = vrot.slane %v5812, %v5818
    %s5821 = scalar_lea.vmem %s19, 2
    %5822 = vst.msk [vmem:[%s5821] sm:$0x3] %vm3656, %v5819
    %v5825 = vcombine.low %v5784, %v5785
    %v5827 = vunpack.c.l.s4 1966171168
    %v5828 = vunpack.c.0.s8 %v5827
    %v5829 = vlaneseq
    %v5830 = vshrl.u32 %v5829, 7
    %v5831 = vsub.s32 %v5828, %v5830
    %v5832 = vrot.slane %v5825, %v5831
    %v5834 = vunpack.c.l.s4 1966171168
    %v5835 = vunpack.c.0.s8 %v5834
    %v5836 = vlaneseq
    %v5837 = vshrl.u32 %v5836, 7
    %v5838 = vsub.s32 %v5835, %v5837
    %v5839 = vrot.slane %v5832, %v5838
    %s5841 = scalar_lea.vmem %s20, 2
    %5842 = vst.msk [vmem:[%s5841] sm:$0x3] %vm3656, %v5839
    %v5843 = vcvt.f32.s32.to.zero.pseudo %v4780
    %vm5844 = vcmask 8192
    %5845 = vst.msk [vmem:[#allocation3] sm:$0x1] %vm5844, %v5843
    %v5846 = vcvt.f32.s32.to.zero.pseudo %v5802
    %5847 = vst.msk [vmem:[#allocation5] sm:$0x1] %vm5844, %v5846
    // Predicated region
    $region78: #{decoder_forward.1} parent=1 // pred_check
      _
    $region79: #{decoder_forward.1} parent=1 // pred_check_branch
      %5849 = sbr.rel (0) target = $region81
    $region80: #{decoder_forward.1} parent=1 // pred_region
      _
    $region81: #{decoder_forward.1} parent=1 // pred_fallthru
      _
    // Predicated region
    $region82: #{decoder_forward.1} parent=1 // pred_check
      _
    $region83: #{decoder_forward.1} parent=1 // pred_check_branch
      %5851 = sbr.rel (0) target = $region85
    $region84: #{decoder_forward.1} parent=1 // pred_region
      _
    $region85: #{decoder_forward.1} parent=1 // pred_fallthru
      _
    // Predicated region
    $region86: #{decoder_forward.1} parent=1 // pred_check
      _
    $region87: #{decoder_forward.1} parent=1 // pred_check_branch
      %5853 = sbr.rel (0) target = $region89
    $region88: #{decoder_forward.1} parent=1 // pred_region
      %s5855 = ssub.s32 16, 16
      %5856 = vsyncadd [#allocation4], %s5855
      %s5858 = sshll.u32 [#allocation3], 4
      %s5859 = int_to_ptr.vmem [resolvable:$true] %s5858
      %5861 = dma.vmem_to_hbm [thread:$0]  %s5859, 16, %s21, [#allocation4]
    $region89: #{decoder_forward.1} parent=1 // pred_fallthru
      _
    // Predicated region
    $region90: #{decoder_forward.1} parent=1 // pred_check
      _
    $region91: #{decoder_forward.1} parent=1 // pred_check_branch
      %5863 = sbr.rel (0) target = $region93
    $region92: #{decoder_forward.1} parent=1 // pred_region
      %s5865 = ssub.s32 16, 16
      %5866 = vsyncadd [#allocation6], %s5865
      %s5868 = sshll.u32 [#allocation5], 4
      %s5869 = int_to_ptr.vmem [resolvable:$true] %s5868
      %5871 = dma.vmem_to_hbm [thread:$0]  %s5869, 16, %s22, [#allocation6]
    $region93: #{decoder_forward.1} parent=1 // pred_fallthru
      _
    // Predicated region
    $region94: #{decoder_forward.1} parent=1 // pred_check
      _
    $region95: #{decoder_forward.1} parent=1 // pred_check_branch
      %5873 = sbr.rel (0) target = $region97
    $region96: #{decoder_forward.1} parent=1 // pred_region
      _
    $region97: #{decoder_forward.1} parent=1 // pred_fallthru
      _
    // Predicated region
    $region98: #{decoder_forward.1} parent=1 // pred_check
      _
    $region99: #{decoder_forward.1} parent=1 // pred_check_branch
      %5875 = sbr.rel (0) target = $region101
    $region100: #{decoder_forward.1} parent=1 // pred_region
      _
    $region101: #{decoder_forward.1} parent=1 // pred_fallthru
      _
    // Predicated region
    $region102: #{decoder_forward.1} parent=1 // pred_check
      _
    $region103: #{decoder_forward.1} parent=1 // pred_check_branch
      %5877 = sbr.rel (0) target = $region105
    $region104: #{decoder_forward.1} parent=1 // pred_region
      %5878 = dma.done [#allocation4], 16
    $region105: #{decoder_forward.1} parent=1 // pred_fallthru
      _
    // Predicated region
    $region106: #{decoder_forward.1} parent=1 // pred_check
      _
    $region107: #{decoder_forward.1} parent=1 // pred_check_branch
      %5880 = sbr.rel (0) target = $region109
    $region108: #{decoder_forward.1} parent=1 // pred_region
      %5881 = dma.done [#allocation6], 16
    $region109: #{decoder_forward.1} parent=1 // pred_fallthru
      _
    %5882 = vsyncpa [#allocation4], 1
    %5883 = vsyncpa [#allocation6], 1

</llo_original>
